<compile_context>
chip_gen: v6e
topology: v6e:2x2x1
jax: 0.10.0
libtpu: 0.0.40
codegen_flags: <defaults>
</compile_context>

<pallas_src>
import numpy as np
import jax
import jax.numpy as jnp
from jax.experimental import pallas as pl
from jax.experimental.pallas import tpu as pltpu


# ----------------------------------------------------------------------------
# Static network description:  (ksize, cin, cout, bn+relu)
# ----------------------------------------------------------------------------
_LAYERS = (
    (3, 1, 8, True),     # conv1[0]
    (3, 8, 10, True),    # conv1[4]
    (1, 10, 10, False),  # trans1 (1x1)  -> MaxPool2d(2,2) right after
    (3, 10, 12, True),   # conv2[0]
    (3, 12, 14, True),   # conv2[4]
    (3, 14, 16, True),   # conv2[8]
    (3, 16, 16, True),   # conv2[12]
    (1, 16, 10, False),  # trans2 (1x1)
)
_POOL_AFTER = 2
_HW = 28
_CANVAS = _HW * _HW        # 784 flat positions per image (canvas kept fixed)
_MARGIN = 128              # > max tap offset (2*56 + 2*2 = 116) and pool offset 29
_CMAX = 16                 # max channel count
_KROWS = 1 + 9 * 16        # bias row + max im2col rows (145)
_NCLS = 10


def _col_offsets():
    offs, c = [], 0
    for (k, cin, _cout, _bn) in _LAYERS:
        offs.append(c)
        c += 1 + k * k * cin
    return tuple(offs), c


_WCOL_OFF, _WCOLS = _col_offsets()     # per-layer column offset in packed weights, total 583


# ----------------------------------------------------------------------------
# Fused kernel
# ----------------------------------------------------------------------------
def _net8_kernel(x_ref, w_ref, g_ref, o_ref, buf_a, buf_b, pat):
    f32 = jnp.float32
    M = x_ref.shape[-1]                     # TB * 784 (static)

    # Zero both canvases once: tap windows deliberately over-read into the
    # margin / garbage columns, and zeros keep every column finite so garbage
    # can never poison the masked GAP reduction (valid outputs never read it).
    buf_a[...] = jnp.zeros(buf_a.shape, f32)
    buf_b[...] = jnp.zeros(buf_b.shape, f32)
    # Constant-1 row of the im2col matrix: the folded BN shift rides along as
    # column 0 of each packed weight block, so the bias add happens in the MXU.
    pat[0:1, :] = jnp.ones((1, M), f32)

    # Stage-1 canvas: per-image flat 28x28, row stride 28, col stride 1.
    buf_a[0:1, 0:M] = x_ref[...]

    bufs = (buf_a, buf_b)
    src = 0
    final = None
    for li, (k, cin, cout, bn) in enumerate(_LAYERS):
        # Stage 2 (post-pool) keeps the 784-wide canvas but uses dilated
        # indexing (row stride 56, col stride 2): taps remain contiguous
        # lane-offset slices - no strided gathers, no reshapes, no relayouts.
        rs, cs = (28, 1) if li <= _POOL_AFTER else (56, 2)
        c0 = _WCOL_OFF[li]
        s_ref = bufs[src]
        K = k * k * cin

        if k == 1:
            # 1x1 conv: one matmul straight off the source canvas (no shift).
            w = w_ref[0:cout, c0 + 1:c0 + 1 + cin]
            out = jnp.dot(w, s_ref[0:cin, 0:M], preferred_element_type=f32)
        else:
            # im2col: 9 shifted lane-dense window copies -> one MXU matmul.
            for t in range(9):
                di, dj = t // 3, t % 3
                off = di * rs + dj * cs
                pat[1 + t * cin:1 + (t + 1) * cin, :] = s_ref[0:cin, off:off + M]
            w = w_ref[0:cout, c0:c0 + 1 + K]
            out = jnp.dot(w, pat[0:1 + K, 0:M], preferred_element_type=f32)

        if bn:
            out = jnp.maximum(out, 0.0)     # BN shift already added via bias row

        if li == len(_LAYERS) - 1:
            final = out                      # [10, M] stays as a value
            break

        dst = bufs[1 - src]
        dst[0:cout, 0:M] = out               # lane-dense full-width store
        src = 1 - src

        if li == _POOL_AFTER:
            # Fused 2x2/2 max-pool: 4 contiguous offset reads + max; result is
            # written on the dilated stage-2 canvas (same flat size per image).
            p_ref = bufs[src]
            m4 = jnp.maximum(
                jnp.maximum(p_ref[0:cout, 0:M], p_ref[0:cout, 1:M + 1]),
                jnp.maximum(p_ref[0:cout, 28:M + 28], p_ref[0:cout, 29:M + 29]))
            q_ref = bufs[1 - src]
            q_ref[0:cout, 0:M] = m4
            src = 1 - src

    # GAP over the valid 4x4 map + per-image reduction as one small matmul
    # against a host-built selection matrix (1/16 at the 16 valid flat
    # positions of each image, 0 elsewhere) -> [TB, 10], then log_softmax.
    gap = jax.lax.dot_general(g_ref[...], final,
                              dimension_numbers=(((1,), (1,)), ((), ())),
                              preferred_element_type=f32)
    z = gap - jnp.max(gap, axis=-1, keepdims=True)
    lse = jnp.log(jnp.sum(jnp.exp(z), axis=-1, keepdims=True))
    o_ref[...] = (z - lse).astype(o_ref.dtype)


# ----------------------------------------------------------------------------
# Host-side wrapper
# ----------------------------------------------------------------------------
def _choose_tb(batch):
    # Largest batch tile (folds into matmul M) that still leaves >= 2 grid
    # steps, so both v7x TensorCores get work; capped at 8 to bound VMEM.
    for tb in (8, 4, 2, 1):
        if batch % tb == 0 and batch // tb >= 2:
            return tb
    return 1


def _gap_matrix(tb):
    g = np.zeros((tb, tb * _CANVAS), np.float32)
    for b in range(tb):
        for i in range(4):
            for j in range(4):
                g[b, b * _CANVAS + 56 * i + 2 * j] = 1.0 / 16.0
    return g


def _flops(tb, steps):
    m = tb * _CANVAS
    macs = sum(cout * (k * k * cin + 1) * m for (k, cin, cout, _bn) in _LAYERS)
    macs += _NCLS * m * tb                 # GAP selection matmul
    return 2 * macs * steps


@jax.jit
def net8_forward(x_nchw, w_pack):
    """Net8.forward (eval mode).  x_nchw: [B, 1, 28, 28] f32 -> [B, 10] log-probs."""
    B = x_nchw.shape[0]
    tb = _choose_tb(B)
    steps = (B + tb - 1) // tb
    bp = steps * tb
    x = x_nchw.astype(jnp.float32).reshape(B, _CANVAS)
    if bp != B:
        x = jnp.pad(x, ((0, bp - B), (0, 0)))
    m = tb * _CANVAS
    x_steps = x.reshape(steps, 1, m)                 # dense lane-major input
    gmat = jnp.asarray(_gap_matrix(tb))

    cost = pl.CostEstimate(
        flops=_flops(tb, steps),
        transcendentals=bp * (_NCLS + 1),
        bytes_accessed=(x.size + bp * _NCLS) * 4 + steps * (w_pack.size + gmat.size) * 4,
    )

    out = pl.pallas_call(
        _net8_kernel,
        grid=(steps,),
        out_shape=jax.ShapeDtypeStruct((steps, tb, _NCLS), jnp.float32),
        in_specs=[
            pl.BlockSpec((None, 1, m), lambda s: (s, 0, 0)),     # TB flattened images
            pl.BlockSpec((_CMAX, _WCOLS), lambda s: (0, 0)),     # packed weights+shifts
            pl.BlockSpec((tb, m), lambda s: (0, 0)),             # GAP selection matrix
        ],
        out_specs=pl.BlockSpec((None, tb, _NCLS), lambda s: (s, 0, 0)),
        scratch_shapes=[
            pltpu.VMEM((_CMAX, m + _MARGIN), jnp.float32),       # canvas ping
            pltpu.VMEM((_CMAX, m + _MARGIN), jnp.float32),       # canvas pong
            pltpu.VMEM((_KROWS, m), jnp.float32),                # im2col matrix
        ],
        compiler_params=pltpu.CompilerParams(dimension_semantics=("parallel",)),
        cost_estimate=cost,
    )(x_steps, w_pack, gmat)
    return out.reshape(bp, _NCLS)[:B]


# ----------------------------------------------------------------------------
# Parameters: raw HWIO conv weights + BN stats; packer folds BN and builds the
# single [16, 583] kernel weight array ([shift | taps] per layer, row-padded).
# ----------------------------------------------------------------------------
def init_params(key):
    eps = 1e-5
    params = []
    for (k, cin, cout, bn) in _LAYERS:
        key, kw, kg, kb, km, kv = jax.random.split(key, 6)
        entry = {'w': 0.1 * jax.random.normal(kw, (k, k, cin, cout), jnp.float32)}
        if bn:
            gamma = 1.0 + 0.1 * jax.random.normal(kg, (cout,), jnp.float32)
            beta = 0.1 * jax.random.normal(kb, (cout,), jnp.float32)
            mean = 0.1 * jax.random.normal(km, (cout,), jnp.float32)
            var = 0.5 + jax.random.uniform(kv, (cout,), jnp.float32)
            scale = gamma / jnp.sqrt(var + eps)
            entry['scale'] = scale
            entry['shift'] = beta - mean * scale
        params.append(entry)
    return params


def pack_params(params):
    blocks = []
    for (k, cin, cout, bn), p in zip(_LAYERS, params):
        if bn:
            scale, shift = p['scale'], p['shift']
        else:
            scale = jnp.ones((cout,), jnp.float32)
            shift = jnp.zeros((cout,), jnp.float32)
        # HWIO * scale -> [cout, k*k*cin] with column order (di, dj, cin),
        # matching the im2col row order inside the kernel.
        wf = (p['w'] * scale).transpose(3, 0, 1, 2).reshape(cout, k * k * cin)
        blk = jnp.concatenate([shift[:, None], wf], axis=1)       # [cout, 1+K]
        blocks.append(jnp.pad(blk, ((0, _CMAX - cout), (0, 0))))
    return jnp.concatenate(blocks, axis=1)                         # [16, 583]


# ----------------------------------------------------------------------------
# Pure-JAX reference (correctness check only)
# ----------------------------------------------------------------------------
def net8_reference(x_nchw, params):
    B = x_nchw.shape[0]
    x = x_nchw.astype(jnp.float32).reshape(B, _HW, _HW, 1)
    for li, ((k, cin, cout, bn), p) in enumerate(zip(_LAYERS, params)):
        x = jax.lax.conv_general_dilated(
            x, p['w'], window_strides=(1, 1), padding='VALID',
            dimension_numbers=('NHWC', 'HWIO', 'NHWC'))
        if bn:
            x = jnp.maximum(x * p['scale'] + p['shift'], 0.0)
        if li == _POOL_AFTER:
            b, h, w, c = x.shape
            x = x.reshape(b, h // 2, 2, w // 2, 2, c).max(axis=(2, 4))
    gap = jnp.mean(x, axis=(1, 2))
    return jax.nn.log_softmax(gap, axis=-1)


# ----------------------------------------------------------------------------
# Main
# ----------------------------------------------------------------------------
if __name__ == "__main__":
    key = jax.random.PRNGKey(0)
    k_params, k_x = jax.random.split(key)
    params = init_params(k_params)
    w_pack = pack_params(params)
    # MNIST-like input: batch=2, 1 channel, 28x28 (final valid map is 4x4).
    x = jax.random.normal(k_x, (2, 1, 28, 28), jnp.float32)

    out = jax.block_until_ready(net8_forward(x, w_pack))
    assert out.shape == (2, 10), out.shape
    # log_softmax rows must sum to ~1 in probability space.
    assert jnp.allclose(jnp.sum(jnp.exp(out), axis=-1), 1.0, atol=1e-4)
    # Match the pure-JAX (XLA conv) reference; slack covers MXU default-precision
    # f32 matmul differences between the two lowering paths.
    ref = jax.block_until_ready(net8_reference(x, params))
    assert jnp.allclose(out, ref, atol=5e-2), float(jnp.max(jnp.abs(out - ref)))
    print("KERNEL_OK")
</pallas_src>

<mosaic_0001>
module attributes {stable_mosaic.version = 11 : i64} {
  func.func @_net8_kernel(%arg0: i32, %arg1: memref<1x1x784xf32, #tpu.memory_space<vmem>>, %arg2: memref<16x583xf32, #tpu.memory_space<vmem>>, %arg3: memref<1x784xf32, #tpu.memory_space<vmem>>, %arg4: memref<1x1x10xf32, #tpu.memory_space<vmem>>, %arg5: memref<16x912xf32, #tpu.memory_space<vmem>>, %arg6: memref<16x912xf32, #tpu.memory_space<vmem>>, %arg7: memref<145x784xf32, #tpu.memory_space<vmem>>) attributes {dimension_semantics = [#tpu.dimension_semantics<parallel>], iteration_bounds = array<i64: 2>, scalar_prefetch = 0 : i64, scratch_operands = 3 : i64, tpu.core_type = #tpu.core_type<tc>, window_params = [{transform_indices = @transform_0, window_bounds = array<i64: 1, 1, 784>}, {pipeline_mode = #tpu.pipeline_mode<synchronous>, transform_indices = @transform_1, window_bounds = array<i64: 16, 583>}, {pipeline_mode = #tpu.pipeline_mode<synchronous>, transform_indices = @transform_2, window_bounds = array<i64: 1, 784>}, {transform_indices = @transform_3, window_bounds = array<i64: 1, 1, 10>}]} {
    %cst = arith.constant 0.000000e+00 : f32
    %0 = vector.broadcast %cst : f32 to vector<16x912xf32>
    %c0 = arith.constant 0 : index
    %c0_0 = arith.constant 0 : index
    %1 = vector.load %arg5[%c0, %c0_0] : memref<16x912xf32, #tpu.memory_space<vmem>>, vector<16x912xf32>
    tpu.vector_store %arg5[%c0, %c0_0], %0 {strides = array<i32>} : memref<16x912xf32, #tpu.memory_space<vmem>>, vector<16x912xf32>,
    %cst_1 = arith.constant 0.000000e+00 : f32
    %2 = vector.broadcast %cst_1 : f32 to vector<16x912xf32>
    %c0_2 = arith.constant 0 : index
    %c0_3 = arith.constant 0 : index
    %3 = vector.load %arg6[%c0_2, %c0_3] : memref<16x912xf32, #tpu.memory_space<vmem>>, vector<16x912xf32>
    tpu.vector_store %arg6[%c0_2, %c0_3], %2 {strides = array<i32>} : memref<16x912xf32, #tpu.memory_space<vmem>>, vector<16x912xf32>,
    %cst_4 = arith.constant 1.000000e+00 : f32
    %4 = vector.broadcast %cst_4 : f32 to vector<1x784xf32>
    %c0_5 = arith.constant 0 : index
    %c0_6 = arith.constant 0 : index
    %5 = vector.load %arg7[%c0_5, %c0_6] : memref<145x784xf32, #tpu.memory_space<vmem>>, vector<1x784xf32>
    tpu.vector_store %arg7[%c0_5, %c0_6], %4 {strides = array<i32>} : memref<145x784xf32, #tpu.memory_space<vmem>>, vector<1x784xf32>,
    %c0_7 = arith.constant 0 : index
    %c0_8 = arith.constant 0 : index
    %c0_9 = arith.constant 0 : index
    %6 = vector.load %arg1[%c0_7, %c0_8, %c0_9] : memref<1x1x784xf32, #tpu.memory_space<vmem>>, vector<1x1x784xf32>
    %7 = vector.shape_cast %6 : vector<1x1x784xf32> to vector<1x784xf32>
    %c0_10 = arith.constant 0 : index
    %c0_11 = arith.constant 0 : index
    %8 = vector.load %arg5[%c0_10, %c0_11] : memref<16x912xf32, #tpu.memory_space<vmem>>, vector<1x784xf32>
    tpu.vector_store %arg5[%c0_10, %c0_11], %7 {strides = array<i32>} : memref<16x912xf32, #tpu.memory_space<vmem>>, vector<1x784xf32>,
    %c0_12 = arith.constant 0 : index
    %c0_13 = arith.constant 0 : index
    %9 = vector.load %arg5[%c0_12, %c0_13] : memref<16x912xf32, #tpu.memory_space<vmem>>, vector<1x784xf32>
    %c1 = arith.constant 1 : index
    %c0_14 = arith.constant 0 : index
    %10 = vector.load %arg7[%c1, %c0_14] : memref<145x784xf32, #tpu.memory_space<vmem>>, vector<1x784xf32>
    tpu.vector_store %arg7[%c1, %c0_14], %9 {strides = array<i32>} : memref<145x784xf32, #tpu.memory_space<vmem>>, vector<1x784xf32>,
    %c0_15 = arith.constant 0 : index
    %c1_16 = arith.constant 1 : index
    %11 = vector.load %arg5[%c0_15, %c1_16] : memref<16x912xf32, #tpu.memory_space<vmem>>, vector<1x784xf32>
    %c2 = arith.constant 2 : index
    %c0_17 = arith.constant 0 : index
    %12 = vector.load %arg7[%c2, %c0_17] : memref<145x784xf32, #tpu.memory_space<vmem>>, vector<1x784xf32>
    tpu.vector_store %arg7[%c2, %c0_17], %11 {strides = array<i32>} : memref<145x784xf32, #tpu.memory_space<vmem>>, vector<1x784xf32>,
    %c0_18 = arith.constant 0 : index
    %c2_19 = arith.constant 2 : index
    %13 = vector.load %arg5[%c0_18, %c2_19] : memref<16x912xf32, #tpu.memory_space<vmem>>, vector<1x784xf32>
    %c3 = arith.constant 3 : index
    %c0_20 = arith.constant 0 : index
    %14 = vector.load %arg7[%c3, %c0_20] : memref<145x784xf32, #tpu.memory_space<vmem>>, vector<1x784xf32>
    tpu.vector_store %arg7[%c3, %c0_20], %13 {strides = array<i32>} : memref<145x784xf32, #tpu.memory_space<vmem>>, vector<1x784xf32>,
    %c0_21 = arith.constant 0 : index
    %c28 = arith.constant 28 : index
    %15 = vector.load %arg5[%c0_21, %c28] : memref<16x912xf32, #tpu.memory_space<vmem>>, vector<1x784xf32>
    %c4 = arith.constant 4 : index
    %c0_22 = arith.constant 0 : index
    %16 = vector.load %arg7[%c4, %c0_22] : memref<145x784xf32, #tpu.memory_space<vmem>>, vector<1x784xf32>
    tpu.vector_store %arg7[%c4, %c0_22], %15 {strides = array<i32>} : memref<145x784xf32, #tpu.memory_space<vmem>>, vector<1x784xf32>,
    %c0_23 = arith.constant 0 : index
    %c29 = arith.constant 29 : index
    %17 = vector.load %arg5[%c0_23, %c29] : memref<16x912xf32, #tpu.memory_space<vmem>>, vector<1x784xf32>
    %c5 = arith.constant 5 : index
    %c0_24 = arith.constant 0 : index
    %18 = vector.load %arg7[%c5, %c0_24] : memref<145x784xf32, #tpu.memory_space<vmem>>, vector<1x784xf32>
    tpu.vector_store %arg7[%c5, %c0_24], %17 {strides = array<i32>} : memref<145x784xf32, #tpu.memory_space<vmem>>, vector<1x784xf32>,
    %c0_25 = arith.constant 0 : index
    %c30 = arith.constant 30 : index
    %19 = vector.load %arg5[%c0_25, %c30] : memref<16x912xf32, #tpu.memory_space<vmem>>, vector<1x784xf32>
    %c6 = arith.constant 6 : index
    %c0_26 = arith.constant 0 : index
    %20 = vector.load %arg7[%c6, %c0_26] : memref<145x784xf32, #tpu.memory_space<vmem>>, vector<1x784xf32>
    tpu.vector_store %arg7[%c6, %c0_26], %19 {strides = array<i32>} : memref<145x784xf32, #tpu.memory_space<vmem>>, vector<1x784xf32>,
    %c0_27 = arith.constant 0 : index
    %c56 = arith.constant 56 : index
    %21 = vector.load %arg5[%c0_27, %c56] : memref<16x912xf32, #tpu.memory_space<vmem>>, vector<1x784xf32>
    %c7 = arith.constant 7 : index
    %c0_28 = arith.constant 0 : index
    %22 = vector.load %arg7[%c7, %c0_28] : memref<145x784xf32, #tpu.memory_space<vmem>>, vector<1x784xf32>
    tpu.vector_store %arg7[%c7, %c0_28], %21 {strides = array<i32>} : memref<145x784xf32, #tpu.memory_space<vmem>>, vector<1x784xf32>,
    %c0_29 = arith.constant 0 : index
    %c57 = arith.constant 57 : index
    %23 = vector.load %arg5[%c0_29, %c57] : memref<16x912xf32, #tpu.memory_space<vmem>>, vector<1x784xf32>
    %c8 = arith.constant 8 : index
    %c0_30 = arith.constant 0 : index
    %24 = vector.load %arg7[%c8, %c0_30] : memref<145x784xf32, #tpu.memory_space<vmem>>, vector<1x784xf32>
    tpu.vector_store %arg7[%c8, %c0_30], %23 {strides = array<i32>} : memref<145x784xf32, #tpu.memory_space<vmem>>, vector<1x784xf32>,
    %c0_31 = arith.constant 0 : index
    %c58 = arith.constant 58 : index
    %25 = vector.load %arg5[%c0_31, %c58] : memref<16x912xf32, #tpu.memory_space<vmem>>, vector<1x784xf32>
    %c9 = arith.constant 9 : index
    %c0_32 = arith.constant 0 : index
    %26 = vector.load %arg7[%c9, %c0_32] : memref<145x784xf32, #tpu.memory_space<vmem>>, vector<1x784xf32>
    tpu.vector_store %arg7[%c9, %c0_32], %25 {strides = array<i32>} : memref<145x784xf32, #tpu.memory_space<vmem>>, vector<1x784xf32>,
    %c0_33 = arith.constant 0 : index
    %c0_34 = arith.constant 0 : index
    %27 = vector.load %arg2[%c0_33, %c0_34] : memref<16x583xf32, #tpu.memory_space<vmem>>, vector<8x10xf32>
    %c0_35 = arith.constant 0 : index
    %c0_36 = arith.constant 0 : index
    %28 = vector.load %arg7[%c0_35, %c0_36] : memref<145x784xf32, #tpu.memory_space<vmem>>, vector<10x784xf32>
    %cst_37 = arith.constant dense<0.000000e+00> : vector<8x784xf32>
    %29 = tpu.matmul %27, %28, %cst_37 {dimension_numbers = #tpu.dot_dimension_numbers<[1], [0], [0], [1], [0, 0, 1, 1], [], []>} : vector<8x10xf32>, vector<10x784xf32>, vector<8x784xf32> -> vector<8x784xf32>
    %cst_38 = arith.constant 0.000000e+00 : f32
    %30 = vector.broadcast %cst_38 : f32 to vector<8x784xf32>
    %31 = arith.maximumf %29, %30 : vector<8x784xf32>
    %c0_39 = arith.constant 0 : index
    %c0_40 = arith.constant 0 : index
    %32 = vector.load %arg6[%c0_39, %c0_40] : memref<16x912xf32, #tpu.memory_space<vmem>>, vector<8x784xf32>
    tpu.vector_store %arg6[%c0_39, %c0_40], %31 {strides = array<i32>} : memref<16x912xf32, #tpu.memory_space<vmem>>, vector<8x784xf32>,
    %c0_41 = arith.constant 0 : index
    %c0_42 = arith.constant 0 : index
    %33 = vector.load %arg6[%c0_41, %c0_42] : memref<16x912xf32, #tpu.memory_space<vmem>>, vector<8x784xf32>
    %c1_43 = arith.constant 1 : index
    %c0_44 = arith.constant 0 : index
    %34 = vector.load %arg7[%c1_43, %c0_44] : memref<145x784xf32, #tpu.memory_space<vmem>>, vector<8x784xf32>
    tpu.vector_store %arg7[%c1_43, %c0_44], %33 {strides = array<i32>} : memref<145x784xf32, #tpu.memory_space<vmem>>, vector<8x784xf32>,
    %c0_45 = arith.constant 0 : index
    %c1_46 = arith.constant 1 : index
    %35 = vector.load %arg6[%c0_45, %c1_46] : memref<16x912xf32, #tpu.memory_space<vmem>>, vector<8x784xf32>
    %c9_47 = arith.constant 9 : index
    %c0_48 = arith.constant 0 : index
    %36 = vector.load %arg7[%c9_47, %c0_48] : memref<145x784xf32, #tpu.memory_space<vmem>>, vector<8x784xf32>
    tpu.vector_store %arg7[%c9_47, %c0_48], %35 {strides = array<i32>} : memref<145x784xf32, #tpu.memory_space<vmem>>, vector<8x784xf32>,
    %c0_49 = arith.constant 0 : index
    %c2_50 = arith.constant 2 : index
    %37 = vector.load %arg6[%c0_49, %c2_50] : memref<16x912xf32, #tpu.memory_space<vmem>>, vector<8x784xf32>
    %c17 = arith.constant 17 : index
    %c0_51 = arith.constant 0 : index
    %38 = vector.load %arg7[%c17, %c0_51] : memref<145x784xf32, #tpu.memory_space<vmem>>, vector<8x784xf32>
    tpu.vector_store %arg7[%c17, %c0_51], %37 {strides = array<i32>} : memref<145x784xf32, #tpu.memory_space<vmem>>, vector<8x784xf32>,
    %c0_52 = arith.constant 0 : index
    %c28_53 = arith.constant 28 : index
    %39 = vector.load %arg6[%c0_52, %c28_53] : memref<16x912xf32, #tpu.memory_space<vmem>>, vector<8x784xf32>
    %c25 = arith.constant 25 : index
    %c0_54 = arith.constant 0 : index
    %40 = vector.load %arg7[%c25, %c0_54] : memref<145x784xf32, #tpu.memory_space<vmem>>, vector<8x784xf32>
    tpu.vector_store %arg7[%c25, %c0_54], %39 {strides = array<i32>} : memref<145x784xf32, #tpu.memory_space<vmem>>, vector<8x784xf32>,
    %c0_55 = arith.constant 0 : index
    %c29_56 = arith.constant 29 : index
    %41 = vector.load %arg6[%c0_55, %c29_56] : memref<16x912xf32, #tpu.memory_space<vmem>>, vector<8x784xf32>
    %c33 = arith.constant 33 : index
    %c0_57 = arith.constant 0 : index
    %42 = vector.load %arg7[%c33, %c0_57] : memref<145x784xf32, #tpu.memory_space<vmem>>, vector<8x784xf32>
    tpu.vector_store %arg7[%c33, %c0_57], %41 {strides = array<i32>} : memref<145x784xf32, #tpu.memory_space<vmem>>, vector<8x784xf32>,
    %c0_58 = arith.constant 0 : index
    %c30_59 = arith.constant 30 : index
    %43 = vector.load %arg6[%c0_58, %c30_59] : memref<16x912xf32, #tpu.memory_space<vmem>>, vector<8x784xf32>
    %c41 = arith.constant 41 : index
    %c0_60 = arith.constant 0 : index
    %44 = vector.load %arg7[%c41, %c0_60] : memref<145x784xf32, #tpu.memory_space<vmem>>, vector<8x784xf32>
    tpu.vector_store %arg7[%c41, %c0_60], %43 {strides = array<i32>} : memref<145x784xf32, #tpu.memory_space<vmem>>, vector<8x784xf32>,
    %c0_61 = arith.constant 0 : index
    %c56_62 = arith.constant 56 : index
    %45 = vector.load %arg6[%c0_61, %c56_62] : memref<16x912xf32, #tpu.memory_space<vmem>>, vector<8x784xf32>
    %c49 = arith.constant 49 : index
    %c0_63 = arith.constant 0 : index
    %46 = vector.load %arg7[%c49, %c0_63] : memref<145x784xf32, #tpu.memory_space<vmem>>, vector<8x784xf32>
    tpu.vector_store %arg7[%c49, %c0_63], %45 {strides = array<i32>} : memref<145x784xf32, #tpu.memory_space<vmem>>, vector<8x784xf32>,
    %c0_64 = arith.constant 0 : index
    %c57_65 = arith.constant 57 : index
    %47 = vector.load %arg6[%c0_64, %c57_65] : memref<16x912xf32, #tpu.memory_space<vmem>>, vector<8x784xf32>
    %c57_66 = arith.constant 57 : index
    %c0_67 = arith.constant 0 : index
    %48 = vector.load %arg7[%c57_66, %c0_67] : memref<145x784xf32, #tpu.memory_space<vmem>>, vector<8x784xf32>
    tpu.vector_store %arg7[%c57_66, %c0_67], %47 {strides = array<i32>} : memref<145x784xf32, #tpu.memory_space<vmem>>, vector<8x784xf32>,
    %c0_68 = arith.constant 0 : index
    %c58_69 = arith.constant 58 : index
    %49 = vector.load %arg6[%c0_68, %c58_69] : memref<16x912xf32, #tpu.memory_space<vmem>>, vector<8x784xf32>
    %c65 = arith.constant 65 : index
    %c0_70 = arith.constant 0 : index
    %50 = vector.load %arg7[%c65, %c0_70] : memref<145x784xf32, #tpu.memory_space<vmem>>, vector<8x784xf32>
    tpu.vector_store %arg7[%c65, %c0_70], %49 {strides = array<i32>} : memref<145x784xf32, #tpu.memory_space<vmem>>, vector<8x784xf32>,
    %c0_71 = arith.constant 0 : index
    %c10 = arith.constant 10 : index
    %51 = vector.load %arg2[%c0_71, %c10] : memref<16x583xf32, #tpu.memory_space<vmem>>, vector<10x73xf32>
    %c0_72 = arith.constant 0 : index
    %c0_73 = arith.constant 0 : index
    %52 = vector.load %arg7[%c0_72, %c0_73] : memref<145x784xf32, #tpu.memory_space<vmem>>, vector<73x784xf32>
    %cst_74 = arith.constant dense<0.000000e+00> : vector<10x784xf32>
    %53 = tpu.matmul %51, %52, %cst_74 {dimension_numbers = #tpu.dot_dimension_numbers<[1], [0], [0], [1], [0, 0, 1, 1], [], []>} : vector<10x73xf32>, vector<73x784xf32>, vector<10x784xf32> -> vector<10x784xf32>
    %cst_75 = arith.constant 0.000000e+00 : f32
    %54 = vector.broadcast %cst_75 : f32 to vector<10x784xf32>
    %55 = arith.maximumf %53, %54 : vector<10x784xf32>
    %c0_76 = arith.constant 0 : index
    %c0_77 = arith.constant 0 : index
    %56 = vector.load %arg5[%c0_76, %c0_77] : memref<16x912xf32, #tpu.memory_space<vmem>>, vector<10x784xf32>
    tpu.vector_store %arg5[%c0_76, %c0_77], %55 {strides = array<i32>} : memref<16x912xf32, #tpu.memory_space<vmem>>, vector<10x784xf32>,
    %c0_78 = arith.constant 0 : index
    %c84 = arith.constant 84 : index
    %57 = vector.load %arg2[%c0_78, %c84] : memref<16x583xf32, #tpu.memory_space<vmem>>, vector<10x10xf32>
    %c0_79 = arith.constant 0 : index
    %c0_80 = arith.constant 0 : index
    %58 = vector.load %arg5[%c0_79, %c0_80] : memref<16x912xf32, #tpu.memory_space<vmem>>, vector<10x784xf32>
    %cst_81 = arith.constant dense<0.000000e+00> : vector<10x784xf32>
    %59 = tpu.matmul %57, %58, %cst_81 {dimension_numbers = #tpu.dot_dimension_numbers<[1], [0], [0], [1], [0, 0, 1, 1], [], []>} : vector<10x10xf32>, vector<10x784xf32>, vector<10x784xf32> -> vector<10x784xf32>
    %c0_82 = arith.constant 0 : index
    %c0_83 = arith.constant 0 : index
    %60 = vector.load %arg6[%c0_82, %c0_83] : memref<16x912xf32, #tpu.memory_space<vmem>>, vector<10x784xf32>
    tpu.vector_store %arg6[%c0_82, %c0_83], %59 {strides = array<i32>} : memref<16x912xf32, #tpu.memory_space<vmem>>, vector<10x784xf32>,
    %c0_84 = arith.constant 0 : index
    %c0_85 = arith.constant 0 : index
    %61 = vector.load %arg6[%c0_84, %c0_85] : memref<16x912xf32, #tpu.memory_space<vmem>>, vector<10x784xf32>
    %c0_86 = arith.constant 0 : index
    %c1_87 = arith.constant 1 : index
    %62 = vector.load %arg6[%c0_86, %c1_87] : memref<16x912xf32, #tpu.memory_space<vmem>>, vector<10x784xf32>
    %63 = arith.maximumf %61, %62 : vector<10x784xf32>
    %c0_88 = arith.constant 0 : index
    %c28_89 = arith.constant 28 : index
    %64 = vector.load %arg6[%c0_88, %c28_89] : memref<16x912xf32, #tpu.memory_space<vmem>>, vector<10x784xf32>
    %c0_90 = arith.constant 0 : index
    %c29_91 = arith.constant 29 : index
    %65 = vector.load %arg6[%c0_90, %c29_91] : memref<16x912xf32, #tpu.memory_space<vmem>>, vector<10x784xf32>
    %66 = arith.maximumf %64, %65 : vector<10x784xf32>
    %67 = arith.maximumf %63, %66 : vector<10x784xf32>
    %c0_92 = arith.constant 0 : index
    %c0_93 = arith.constant 0 : index
    %68 = vector.load %arg5[%c0_92, %c0_93] : memref<16x912xf32, #tpu.memory_space<vmem>>, vector<10x784xf32>
    tpu.vector_store %arg5[%c0_92, %c0_93], %67 {strides = array<i32>} : memref<16x912xf32, #tpu.memory_space<vmem>>, vector<10x784xf32>,
    %c0_94 = arith.constant 0 : index
    %c0_95 = arith.constant 0 : index
    %69 = vector.load %arg5[%c0_94, %c0_95] : memref<16x912xf32, #tpu.memory_space<vmem>>, vector<10x784xf32>
    %c1_96 = arith.constant 1 : index
    %c0_97 = arith.constant 0 : index
    %70 = vector.load %arg7[%c1_96, %c0_97] : memref<145x784xf32, #tpu.memory_space<vmem>>, vector<10x784xf32>
    tpu.vector_store %arg7[%c1_96, %c0_97], %69 {strides = array<i32>} : memref<145x784xf32, #tpu.memory_space<vmem>>, vector<10x784xf32>,
    %c0_98 = arith.constant 0 : index
    %c2_99 = arith.constant 2 : index
    %71 = vector.load %arg5[%c0_98, %c2_99] : memref<16x912xf32, #tpu.memory_space<vmem>>, vector<10x784xf32>
    %c11 = arith.constant 11 : index
    %c0_100 = arith.constant 0 : index
    %72 = vector.load %arg7[%c11, %c0_100] : memref<145x784xf32, #tpu.memory_space<vmem>>, vector<10x784xf32>
    tpu.vector_store %arg7[%c11, %c0_100], %71 {strides = array<i32>} : memref<145x784xf32, #tpu.memory_space<vmem>>, vector<10x784xf32>,
    %c0_101 = arith.constant 0 : index
    %c4_102 = arith.constant 4 : index
    %73 = vector.load %arg5[%c0_101, %c4_102] : memref<16x912xf32, #tpu.memory_space<vmem>>, vector<10x784xf32>
    %c21 = arith.constant 21 : index
    %c0_103 = arith.constant 0 : index
    %74 = vector.load %arg7[%c21, %c0_103] : memref<145x784xf32, #tpu.memory_space<vmem>>, vector<10x784xf32>
    tpu.vector_store %arg7[%c21, %c0_103], %73 {strides = array<i32>} : memref<145x784xf32, #tpu.memory_space<vmem>>, vector<10x784xf32>,
    %c0_104 = arith.constant 0 : index
    %c56_105 = arith.constant 56 : index
    %75 = vector.load %arg5[%c0_104, %c56_105] : memref<16x912xf32, #tpu.memory_space<vmem>>, vector<10x784xf32>
    %c31 = arith.constant 31 : index
    %c0_106 = arith.constant 0 : index
    %76 = vector.load %arg7[%c31, %c0_106] : memref<145x784xf32, #tpu.memory_space<vmem>>, vector<10x784xf32>
    tpu.vector_store %arg7[%c31, %c0_106], %75 {strides = array<i32>} : memref<145x784xf32, #tpu.memory_space<vmem>>, vector<10x784xf32>,
    %c0_107 = arith.constant 0 : index
    %c58_108 = arith.constant 58 : index
    %77 = vector.load %arg5[%c0_107, %c58_108] : memref<16x912xf32, #tpu.memory_space<vmem>>, vector<10x784xf32>
    %c41_109 = arith.constant 41 : index
    %c0_110 = arith.constant 0 : index
    %78 = vector.load %arg7[%c41_109, %c0_110] : memref<145x784xf32, #tpu.memory_space<vmem>>, vector<10x784xf32>
    tpu.vector_store %arg7[%c41_109, %c0_110], %77 {strides = array<i32>} : memref<145x784xf32, #tpu.memory_space<vmem>>, vector<10x784xf32>,
    %c0_111 = arith.constant 0 : index
    %c60 = arith.constant 60 : index
    %79 = vector.load %arg5[%c0_111, %c60] : memref<16x912xf32, #tpu.memory_space<vmem>>, vector<10x784xf32>
    %c51 = arith.constant 51 : index
    %c0_112 = arith.constant 0 : index
    %80 = vector.load %arg7[%c51, %c0_112] : memref<145x784xf32, #tpu.memory_space<vmem>>, vector<10x784xf32>
    tpu.vector_store %arg7[%c51, %c0_112], %79 {strides = array<i32>} : memref<145x784xf32, #tpu.memory_space<vmem>>, vector<10x784xf32>,
    %c0_113 = arith.constant 0 : index
    %c112 = arith.constant 112 : index
    %81 = vector.load %arg5[%c0_113, %c112] : memref<16x912xf32, #tpu.memory_space<vmem>>, vector<10x784xf32>
    %c61 = arith.constant 61 : index
    %c0_114 = arith.constant 0 : index
    %82 = vector.load %arg7[%c61, %c0_114] : memref<145x784xf32, #tpu.memory_space<vmem>>, vector<10x784xf32>
    tpu.vector_store %arg7[%c61, %c0_114], %81 {strides = array<i32>} : memref<145x784xf32, #tpu.memory_space<vmem>>, vector<10x784xf32>,
    %c0_115 = arith.constant 0 : index
    %c114 = arith.constant 114 : index
    %83 = vector.load %arg5[%c0_115, %c114] : memref<16x912xf32, #tpu.memory_space<vmem>>, vector<10x784xf32>
    %c71 = arith.constant 71 : index
    %c0_116 = arith.constant 0 : index
    %84 = vector.load %arg7[%c71, %c0_116] : memref<145x784xf32, #tpu.memory_space<vmem>>, vector<10x784xf32>
    tpu.vector_store %arg7[%c71, %c0_116], %83 {strides = array<i32>} : memref<145x784xf32, #tpu.memory_space<vmem>>, vector<10x784xf32>,
    %c0_117 = arith.constant 0 : index
    %c116 = arith.constant 116 : index
    %85 = vector.load %arg5[%c0_117, %c116] : memref<16x912xf32, #tpu.memory_space<vmem>>, vector<10x784xf32>
    %c81 = arith.constant 81 : index
    %c0_118 = arith.constant 0 : index
    %86 = vector.load %arg7[%c81, %c0_118] : memref<145x784xf32, #tpu.memory_space<vmem>>, vector<10x784xf32>
    tpu.vector_store %arg7[%c81, %c0_118], %85 {strides = array<i32>} : memref<145x784xf32, #tpu.memory_space<vmem>>, vector<10x784xf32>,
    %c0_119 = arith.constant 0 : index
    %c94 = arith.constant 94 : index
    %87 = vector.load %arg2[%c0_119, %c94] : memref<16x583xf32, #tpu.memory_space<vmem>>, vector<12x91xf32>
    %c0_120 = arith.constant 0 : index
    %c0_121 = arith.constant 0 : index
    %88 = vector.load %arg7[%c0_120, %c0_121] : memref<145x784xf32, #tpu.memory_space<vmem>>, vector<91x784xf32>
    %cst_122 = arith.constant dense<0.000000e+00> : vector<12x784xf32>
    %89 = tpu.matmul %87, %88, %cst_122 {dimension_numbers = #tpu.dot_dimension_numbers<[1], [0], [0], [1], [0, 0, 1, 1], [], []>} : vector<12x91xf32>, vector<91x784xf32>, vector<12x784xf32> -> vector<12x784xf32>
    %cst_123 = arith.constant 0.000000e+00 : f32
    %90 = vector.broadcast %cst_123 : f32 to vector<12x784xf32>
    %91 = arith.maximumf %89, %90 : vector<12x784xf32>
    %c0_124 = arith.constant 0 : index
    %c0_125 = arith.constant 0 : index
    %92 = vector.load %arg6[%c0_124, %c0_125] : memref<16x912xf32, #tpu.memory_space<vmem>>, vector<12x784xf32>
    tpu.vector_store %arg6[%c0_124, %c0_125], %91 {strides = array<i32>} : memref<16x912xf32, #tpu.memory_space<vmem>>, vector<12x784xf32>,
    %c0_126 = arith.constant 0 : index
    %c0_127 = arith.constant 0 : index
    %93 = vector.load %arg6[%c0_126, %c0_127] : memref<16x912xf32, #tpu.memory_space<vmem>>, vector<12x784xf32>
    %c1_128 = arith.constant 1 : index
    %c0_129 = arith.constant 0 : index
    %94 = vector.load %arg7[%c1_128, %c0_129] : memref<145x784xf32, #tpu.memory_space<vmem>>, vector<12x784xf32>
    tpu.vector_store %arg7[%c1_128, %c0_129], %93 {strides = array<i32>} : memref<145x784xf32, #tpu.memory_space<vmem>>, vector<12x784xf32>,
    %c0_130 = arith.constant 0 : index
    %c2_131 = arith.constant 2 : index
    %95 = vector.load %arg6[%c0_130, %c2_131] : memref<16x912xf32, #tpu.memory_space<vmem>>, vector<12x784xf32>
    %c13 = arith.constant 13 : index
    %c0_132 = arith.constant 0 : index
    %96 = vector.load %arg7[%c13, %c0_132] : memref<145x784xf32, #tpu.memory_space<vmem>>, vector<12x784xf32>
    tpu.vector_store %arg7[%c13, %c0_132], %95 {strides = array<i32>} : memref<145x784xf32, #tpu.memory_space<vmem>>, vector<12x784xf32>,
    %c0_133 = arith.constant 0 : index
    %c4_134 = arith.constant 4 : index
    %97 = vector.load %arg6[%c0_133, %c4_134] : memref<16x912xf32, #tpu.memory_space<vmem>>, vector<12x784xf32>
    %c25_135 = arith.constant 25 : index
    %c0_136 = arith.constant 0 : index
    %98 = vector.load %arg7[%c25_135, %c0_136] : memref<145x784xf32, #tpu.memory_space<vmem>>, vector<12x784xf32>
    tpu.vector_store %arg7[%c25_135, %c0_136], %97 {strides = array<i32>} : memref<145x784xf32, #tpu.memory_space<vmem>>, vector<12x784xf32>,
    %c0_137 = arith.constant 0 : index
    %c56_138 = arith.constant 56 : index
    %99 = vector.load %arg6[%c0_137, %c56_138] : memref<16x912xf32, #tpu.memory_space<vmem>>, vector<12x784xf32>
    %c37 = arith.constant 37 : index
    %c0_139 = arith.constant 0 : index
    %100 = vector.load %arg7[%c37, %c0_139] : memref<145x784xf32, #tpu.memory_space<vmem>>, vector<12x784xf32>
    tpu.vector_store %arg7[%c37, %c0_139], %99 {strides = array<i32>} : memref<145x784xf32, #tpu.memory_space<vmem>>, vector<12x784xf32>,
    %c0_140 = arith.constant 0 : index
    %c58_141 = arith.constant 58 : index
    %101 = vector.load %arg6[%c0_140, %c58_141] : memref<16x912xf32, #tpu.memory_space<vmem>>, vector<12x784xf32>
    %c49_142 = arith.constant 49 : index
    %c0_143 = arith.constant 0 : index
    %102 = vector.load %arg7[%c49_142, %c0_143] : memref<145x784xf32, #tpu.memory_space<vmem>>, vector<12x784xf32>
    tpu.vector_store %arg7[%c49_142, %c0_143], %101 {strides = array<i32>} : memref<145x784xf32, #tpu.memory_space<vmem>>, vector<12x784xf32>,
    %c0_144 = arith.constant 0 : index
    %c60_145 = arith.constant 60 : index
    %103 = vector.load %arg6[%c0_144, %c60_145] : memref<16x912xf32, #tpu.memory_space<vmem>>, vector<12x784xf32>
    %c61_146 = arith.constant 61 : index
    %c0_147 = arith.constant 0 : index
    %104 = vector.load %arg7[%c61_146, %c0_147] : memref<145x784xf32, #tpu.memory_space<vmem>>, vector<12x784xf32>
    tpu.vector_store %arg7[%c61_146, %c0_147], %103 {strides = array<i32>} : memref<145x784xf32, #tpu.memory_space<vmem>>, vector<12x784xf32>,
    %c0_148 = arith.constant 0 : index
    %c112_149 = arith.constant 112 : index
    %105 = vector.load %arg6[%c0_148, %c112_149] : memref<16x912xf32, #tpu.memory_space<vmem>>, vector<12x784xf32>
    %c73 = arith.constant 73 : index
    %c0_150 = arith.constant 0 : index
    %106 = vector.load %arg7[%c73, %c0_150] : memref<145x784xf32, #tpu.memory_space<vmem>>, vector<12x784xf32>
    tpu.vector_store %arg7[%c73, %c0_150], %105 {strides = array<i32>} : memref<145x784xf32, #tpu.memory_space<vmem>>, vector<12x784xf32>,
    %c0_151 = arith.constant 0 : index
    %c114_152 = arith.constant 114 : index
    %107 = vector.load %arg6[%c0_151, %c114_152] : memref<16x912xf32, #tpu.memory_space<vmem>>, vector<12x784xf32>
    %c85 = arith.constant 85 : index
    %c0_153 = arith.constant 0 : index
    %108 = vector.load %arg7[%c85, %c0_153] : memref<145x784xf32, #tpu.memory_space<vmem>>, vector<12x784xf32>
    tpu.vector_store %arg7[%c85, %c0_153], %107 {strides = array<i32>} : memref<145x784xf32, #tpu.memory_space<vmem>>, vector<12x784xf32>,
    %c0_154 = arith.constant 0 : index
    %c116_155 = arith.constant 116 : index
    %109 = vector.load %arg6[%c0_154, %c116_155] : memref<16x912xf32, #tpu.memory_space<vmem>>, vector<12x784xf32>
    %c97 = arith.constant 97 : index
    %c0_156 = arith.constant 0 : index
    %110 = vector.load %arg7[%c97, %c0_156] : memref<145x784xf32, #tpu.memory_space<vmem>>, vector<12x784xf32>
    tpu.vector_store %arg7[%c97, %c0_156], %109 {strides = array<i32>} : memref<145x784xf32, #tpu.memory_space<vmem>>, vector<12x784xf32>,
    %c0_157 = arith.constant 0 : index
    %c185 = arith.constant 185 : index
    %111 = vector.load %arg2[%c0_157, %c185] : memref<16x583xf32, #tpu.memory_space<vmem>>, vector<14x109xf32>
    %c0_158 = arith.constant 0 : index
    %c0_159 = arith.constant 0 : index
    %112 = vector.load %arg7[%c0_158, %c0_159] : memref<145x784xf32, #tpu.memory_space<vmem>>, vector<109x784xf32>
    %cst_160 = arith.constant dense<0.000000e+00> : vector<14x784xf32>
    %113 = tpu.matmul %111, %112, %cst_160 {dimension_numbers = #tpu.dot_dimension_numbers<[1], [0], [0], [1], [0, 0, 1, 1], [], []>} : vector<14x109xf32>, vector<109x784xf32>, vector<14x784xf32> -> vector<14x784xf32>
    %cst_161 = arith.constant 0.000000e+00 : f32
    %114 = vector.broadcast %cst_161 : f32 to vector<14x784xf32>
    %115 = arith.maximumf %113, %114 : vector<14x784xf32>
    %c0_162 = arith.constant 0 : index
    %c0_163 = arith.constant 0 : index
    %116 = vector.load %arg5[%c0_162, %c0_163] : memref<16x912xf32, #tpu.memory_space<vmem>>, vector<14x784xf32>
    tpu.vector_store %arg5[%c0_162, %c0_163], %115 {strides = array<i32>} : memref<16x912xf32, #tpu.memory_space<vmem>>, vector<14x784xf32>,
    %c0_164 = arith.constant 0 : index
    %c0_165 = arith.constant 0 : index
    %117 = vector.load %arg5[%c0_164, %c0_165] : memref<16x912xf32, #tpu.memory_space<vmem>>, vector<14x784xf32>
    %c1_166 = arith.constant 1 : index
    %c0_167 = arith.constant 0 : index
    %118 = vector.load %arg7[%c1_166, %c0_167] : memref<145x784xf32, #tpu.memory_space<vmem>>, vector<14x784xf32>
    tpu.vector_store %arg7[%c1_166, %c0_167], %117 {strides = array<i32>} : memref<145x784xf32, #tpu.memory_space<vmem>>, vector<14x784xf32>,
    %c0_168 = arith.constant 0 : index
    %c2_169 = arith.constant 2 : index
    %119 = vector.load %arg5[%c0_168, %c2_169] : memref<16x912xf32, #tpu.memory_space<vmem>>, vector<14x784xf32>
    %c15 = arith.constant 15 : index
    %c0_170 = arith.constant 0 : index
    %120 = vector.load %arg7[%c15, %c0_170] : memref<145x784xf32, #tpu.memory_space<vmem>>, vector<14x784xf32>
    tpu.vector_store %arg7[%c15, %c0_170], %119 {strides = array<i32>} : memref<145x784xf32, #tpu.memory_space<vmem>>, vector<14x784xf32>,
    %c0_171 = arith.constant 0 : index
    %c4_172 = arith.constant 4 : index
    %121 = vector.load %arg5[%c0_171, %c4_172] : memref<16x912xf32, #tpu.memory_space<vmem>>, vector<14x784xf32>
    %c29_173 = arith.constant 29 : index
    %c0_174 = arith.constant 0 : index
    %122 = vector.load %arg7[%c29_173, %c0_174] : memref<145x784xf32, #tpu.memory_space<vmem>>, vector<14x784xf32>
    tpu.vector_store %arg7[%c29_173, %c0_174], %121 {strides = array<i32>} : memref<145x784xf32, #tpu.memory_space<vmem>>, vector<14x784xf32>,
    %c0_175 = arith.constant 0 : index
    %c56_176 = arith.constant 56 : index
    %123 = vector.load %arg5[%c0_175, %c56_176] : memref<16x912xf32, #tpu.memory_space<vmem>>, vector<14x784xf32>
    %c43 = arith.constant 43 : index
    %c0_177 = arith.constant 0 : index
    %124 = vector.load %arg7[%c43, %c0_177] : memref<145x784xf32, #tpu.memory_space<vmem>>, vector<14x784xf32>
    tpu.vector_store %arg7[%c43, %c0_177], %123 {strides = array<i32>} : memref<145x784xf32, #tpu.memory_space<vmem>>, vector<14x784xf32>,
    %c0_178 = arith.constant 0 : index
    %c58_179 = arith.constant 58 : index
    %125 = vector.load %arg5[%c0_178, %c58_179] : memref<16x912xf32, #tpu.memory_space<vmem>>, vector<14x784xf32>
    %c57_180 = arith.constant 57 : index
    %c0_181 = arith.constant 0 : index
    %126 = vector.load %arg7[%c57_180, %c0_181] : memref<145x784xf32, #tpu.memory_space<vmem>>, vector<14x784xf32>
    tpu.vector_store %arg7[%c57_180, %c0_181], %125 {strides = array<i32>} : memref<145x784xf32, #tpu.memory_space<vmem>>, vector<14x784xf32>,
    %c0_182 = arith.constant 0 : index
    %c60_183 = arith.constant 60 : index
    %127 = vector.load %arg5[%c0_182, %c60_183] : memref<16x912xf32, #tpu.memory_space<vmem>>, vector<14x784xf32>
    %c71_184 = arith.constant 71 : index
    %c0_185 = arith.constant 0 : index
    %128 = vector.load %arg7[%c71_184, %c0_185] : memref<145x784xf32, #tpu.memory_space<vmem>>, vector<14x784xf32>
    tpu.vector_store %arg7[%c71_184, %c0_185], %127 {strides = array<i32>} : memref<145x784xf32, #tpu.memory_space<vmem>>, vector<14x784xf32>,
    %c0_186 = arith.constant 0 : index
    %c112_187 = arith.constant 112 : index
    %129 = vector.load %arg5[%c0_186, %c112_187] : memref<16x912xf32, #tpu.memory_space<vmem>>, vector<14x784xf32>
    %c85_188 = arith.constant 85 : index
    %c0_189 = arith.constant 0 : index
    %130 = vector.load %arg7[%c85_188, %c0_189] : memref<145x784xf32, #tpu.memory_space<vmem>>, vector<14x784xf32>
    tpu.vector_store %arg7[%c85_188, %c0_189], %129 {strides = array<i32>} : memref<145x784xf32, #tpu.memory_space<vmem>>, vector<14x784xf32>,
    %c0_190 = arith.constant 0 : index
    %c114_191 = arith.constant 114 : index
    %131 = vector.load %arg5[%c0_190, %c114_191] : memref<16x912xf32, #tpu.memory_space<vmem>>, vector<14x784xf32>
    %c99 = arith.constant 99 : index
    %c0_192 = arith.constant 0 : index
    %132 = vector.load %arg7[%c99, %c0_192] : memref<145x784xf32, #tpu.memory_space<vmem>>, vector<14x784xf32>
    tpu.vector_store %arg7[%c99, %c0_192], %131 {strides = array<i32>} : memref<145x784xf32, #tpu.memory_space<vmem>>, vector<14x784xf32>,
    %c0_193 = arith.constant 0 : index
    %c116_194 = arith.constant 116 : index
    %133 = vector.load %arg5[%c0_193, %c116_194] : memref<16x912xf32, #tpu.memory_space<vmem>>, vector<14x784xf32>
    %c113 = arith.constant 113 : index
    %c0_195 = arith.constant 0 : index
    %134 = vector.load %arg7[%c113, %c0_195] : memref<145x784xf32, #tpu.memory_space<vmem>>, vector<14x784xf32>
    tpu.vector_store %arg7[%c113, %c0_195], %133 {strides = array<i32>} : memref<145x784xf32, #tpu.memory_space<vmem>>, vector<14x784xf32>,
    %c0_196 = arith.constant 0 : index
    %c294 = arith.constant 294 : index
    %135 = vector.load %arg2[%c0_196, %c294] : memref<16x583xf32, #tpu.memory_space<vmem>>, vector<16x127xf32>
    %c0_197 = arith.constant 0 : index
    %c0_198 = arith.constant 0 : index
    %136 = vector.load %arg7[%c0_197, %c0_198] : memref<145x784xf32, #tpu.memory_space<vmem>>, vector<127x784xf32>
    %cst_199 = arith.constant dense<0.000000e+00> : vector<16x784xf32>
    %137 = tpu.matmul %135, %136, %cst_199 {dimension_numbers = #tpu.dot_dimension_numbers<[1], [0], [0], [1], [0, 0, 1, 1], [], []>} : vector<16x127xf32>, vector<127x784xf32>, vector<16x784xf32> -> vector<16x784xf32>
    %cst_200 = arith.constant 0.000000e+00 : f32
    %138 = vector.broadcast %cst_200 : f32 to vector<16x784xf32>
    %139 = arith.maximumf %137, %138 : vector<16x784xf32>
    %c0_201 = arith.constant 0 : index
    %c0_202 = arith.constant 0 : index
    %140 = vector.load %arg6[%c0_201, %c0_202] : memref<16x912xf32, #tpu.memory_space<vmem>>, vector<16x784xf32>
    tpu.vector_store %arg6[%c0_201, %c0_202], %139 {strides = array<i32>} : memref<16x912xf32, #tpu.memory_space<vmem>>, vector<16x784xf32>,
    %c0_203 = arith.constant 0 : index
    %c0_204 = arith.constant 0 : index
    %141 = vector.load %arg6[%c0_203, %c0_204] : memref<16x912xf32, #tpu.memory_space<vmem>>, vector<16x784xf32>
    %c1_205 = arith.constant 1 : index
    %c0_206 = arith.constant 0 : index
    %142 = vector.load %arg7[%c1_205, %c0_206] : memref<145x784xf32, #tpu.memory_space<vmem>>, vector<16x784xf32>
    tpu.vector_store %arg7[%c1_205, %c0_206], %141 {strides = array<i32>} : memref<145x784xf32, #tpu.memory_space<vmem>>, vector<16x784xf32>,
    %c0_207 = arith.constant 0 : index
    %c2_208 = arith.constant 2 : index
    %143 = vector.load %arg6[%c0_207, %c2_208] : memref<16x912xf32, #tpu.memory_space<vmem>>, vector<16x784xf32>
    %c17_209 = arith.constant 17 : index
    %c0_210 = arith.constant 0 : index
    %144 = vector.load %arg7[%c17_209, %c0_210] : memref<145x784xf32, #tpu.memory_space<vmem>>, vector<16x784xf32>
    tpu.vector_store %arg7[%c17_209, %c0_210], %143 {strides = array<i32>} : memref<145x784xf32, #tpu.memory_space<vmem>>, vector<16x784xf32>,
    %c0_211 = arith.constant 0 : index
    %c4_212 = arith.constant 4 : index
    %145 = vector.load %arg6[%c0_211, %c4_212] : memref<16x912xf32, #tpu.memory_space<vmem>>, vector<16x784xf32>
    %c33_213 = arith.constant 33 : index
    %c0_214 = arith.constant 0 : index
    %146 = vector.load %arg7[%c33_213, %c0_214] : memref<145x784xf32, #tpu.memory_space<vmem>>, vector<16x784xf32>
    tpu.vector_store %arg7[%c33_213, %c0_214], %145 {strides = array<i32>} : memref<145x784xf32, #tpu.memory_space<vmem>>, vector<16x784xf32>,
    %c0_215 = arith.constant 0 : index
    %c56_216 = arith.constant 56 : index
    %147 = vector.load %arg6[%c0_215, %c56_216] : memref<16x912xf32, #tpu.memory_space<vmem>>, vector<16x784xf32>
    %c49_217 = arith.constant 49 : index
    %c0_218 = arith.constant 0 : index
    %148 = vector.load %arg7[%c49_217, %c0_218] : memref<145x784xf32, #tpu.memory_space<vmem>>, vector<16x784xf32>
    tpu.vector_store %arg7[%c49_217, %c0_218], %147 {strides = array<i32>} : memref<145x784xf32, #tpu.memory_space<vmem>>, vector<16x784xf32>,
    %c0_219 = arith.constant 0 : index
    %c58_220 = arith.constant 58 : index
    %149 = vector.load %arg6[%c0_219, %c58_220] : memref<16x912xf32, #tpu.memory_space<vmem>>, vector<16x784xf32>
    %c65_221 = arith.constant 65 : index
    %c0_222 = arith.constant 0 : index
    %150 = vector.load %arg7[%c65_221, %c0_222] : memref<145x784xf32, #tpu.memory_space<vmem>>, vector<16x784xf32>
    tpu.vector_store %arg7[%c65_221, %c0_222], %149 {strides = array<i32>} : memref<145x784xf32, #tpu.memory_space<vmem>>, vector<16x784xf32>,
    %c0_223 = arith.constant 0 : index
    %c60_224 = arith.constant 60 : index
    %151 = vector.load %arg6[%c0_223, %c60_224] : memref<16x912xf32, #tpu.memory_space<vmem>>, vector<16x784xf32>
    %c81_225 = arith.constant 81 : index
    %c0_226 = arith.constant 0 : index
    %152 = vector.load %arg7[%c81_225, %c0_226] : memref<145x784xf32, #tpu.memory_space<vmem>>, vector<16x784xf32>
    tpu.vector_store %arg7[%c81_225, %c0_226], %151 {strides = array<i32>} : memref<145x784xf32, #tpu.memory_space<vmem>>, vector<16x784xf32>,
    %c0_227 = arith.constant 0 : index
    %c112_228 = arith.constant 112 : index
    %153 = vector.load %arg6[%c0_227, %c112_228] : memref<16x912xf32, #tpu.memory_space<vmem>>, vector<16x784xf32>
    %c97_229 = arith.constant 97 : index
    %c0_230 = arith.constant 0 : index
    %154 = vector.load %arg7[%c97_229, %c0_230] : memref<145x784xf32, #tpu.memory_space<vmem>>, vector<16x784xf32>
    tpu.vector_store %arg7[%c97_229, %c0_230], %153 {strides = array<i32>} : memref<145x784xf32, #tpu.memory_space<vmem>>, vector<16x784xf32>,
    %c0_231 = arith.constant 0 : index
    %c114_232 = arith.constant 114 : index
    %155 = vector.load %arg6[%c0_231, %c114_232] : memref<16x912xf32, #tpu.memory_space<vmem>>, vector<16x784xf32>
    %c113_233 = arith.constant 113 : index
    %c0_234 = arith.constant 0 : index
    %156 = vector.load %arg7[%c113_233, %c0_234] : memref<145x784xf32, #tpu.memory_space<vmem>>, vector<16x784xf32>
    tpu.vector_store %arg7[%c113_233, %c0_234], %155 {strides = array<i32>} : memref<145x784xf32, #tpu.memory_space<vmem>>, vector<16x784xf32>,
    %c0_235 = arith.constant 0 : index
    %c116_236 = arith.constant 116 : index
    %157 = vector.load %arg6[%c0_235, %c116_236] : memref<16x912xf32, #tpu.memory_space<vmem>>, vector<16x784xf32>
    %c129 = arith.constant 129 : index
    %c0_237 = arith.constant 0 : index
    %158 = vector.load %arg7[%c129, %c0_237] : memref<145x784xf32, #tpu.memory_space<vmem>>, vector<16x784xf32>
    tpu.vector_store %arg7[%c129, %c0_237], %157 {strides = array<i32>} : memref<145x784xf32, #tpu.memory_space<vmem>>, vector<16x784xf32>,
    %c0_238 = arith.constant 0 : index
    %c421 = arith.constant 421 : index
    %159 = vector.load %arg2[%c0_238, %c421] : memref<16x583xf32, #tpu.memory_space<vmem>>, vector<16x145xf32>
    %c0_239 = arith.constant 0 : index
    %c0_240 = arith.constant 0 : index
    %160 = vector.load %arg7[%c0_239, %c0_240] : memref<145x784xf32, #tpu.memory_space<vmem>>, vector<145x784xf32>
    %cst_241 = arith.constant dense<0.000000e+00> : vector<16x784xf32>
    %161 = tpu.matmul %159, %160, %cst_241 {dimension_numbers = #tpu.dot_dimension_numbers<[1], [0], [0], [1], [0, 0, 1, 1], [], []>} : vector<16x145xf32>, vector<145x784xf32>, vector<16x784xf32> -> vector<16x784xf32>
    %cst_242 = arith.constant 0.000000e+00 : f32
    %162 = vector.broadcast %cst_242 : f32 to vector<16x784xf32>
    %163 = arith.maximumf %161, %162 : vector<16x784xf32>
    %c0_243 = arith.constant 0 : index
    %c0_244 = arith.constant 0 : index
    %164 = vector.load %arg5[%c0_243, %c0_244] : memref<16x912xf32, #tpu.memory_space<vmem>>, vector<16x784xf32>
    tpu.vector_store %arg5[%c0_243, %c0_244], %163 {strides = array<i32>} : memref<16x912xf32, #tpu.memory_space<vmem>>, vector<16x784xf32>,
    %c0_245 = arith.constant 0 : index
    %c567 = arith.constant 567 : index
    %165 = vector.load %arg2[%c0_245, %c567] : memref<16x583xf32, #tpu.memory_space<vmem>>, vector<10x16xf32>
    %c0_246 = arith.constant 0 : index
    %c0_247 = arith.constant 0 : index
    %166 = vector.load %arg5[%c0_246, %c0_247] : memref<16x912xf32, #tpu.memory_space<vmem>>, vector<16x784xf32>
    %cst_248 = arith.constant dense<0.000000e+00> : vector<10x784xf32>
    %167 = tpu.matmul %165, %166, %cst_248 {dimension_numbers = #tpu.dot_dimension_numbers<[1], [0], [0], [1], [0, 0, 1, 1], [], []>} : vector<10x16xf32>, vector<16x784xf32>, vector<10x784xf32> -> vector<10x784xf32>
    %c0_249 = arith.constant 0 : index
    %c0_250 = arith.constant 0 : index
    %168 = vector.load %arg3[%c0_249, %c0_250] : memref<1x784xf32, #tpu.memory_space<vmem>>, vector<1x784xf32>
    %cst_251 = arith.constant dense<0.000000e+00> : vector<1x10xf32>
    %169 = tpu.matmul %168, %167, %cst_251 {dimension_numbers = #tpu.dot_dimension_numbers<[1], [1], [0], [0], [0, 0, 1, 0], [], []>} : vector<1x784xf32>, vector<10x784xf32>, vector<1x10xf32> -> vector<1x10xf32>
    %cst_252 = arith.constant dense<0xFF800000> : vector<1xf32>
    %170 = vector.multi_reduction <maximumf>, %169, %cst_252 [1] : vector<1x10xf32> to vector<1xf32>
    %171 = vector.shape_cast %170 : vector<1xf32> to vector<1x1xf32>
    %172 = vector.broadcast %171 : vector<1x1xf32> to vector<1x10xf32>
    %173 = arith.subf %169, %172 : vector<1x10xf32>
    %174 = math.exp %173 : vector<1x10xf32>
    %cst_253 = arith.constant dense<0.000000e+00> : vector<1xf32>
    %175 = vector.multi_reduction <add>, %174, %cst_253 [1] : vector<1x10xf32> to vector<1xf32>
    %176 = vector.shape_cast %175 : vector<1xf32> to vector<1x1xf32>
    %177 = math.log %176 : vector<1x1xf32>
    %178 = vector.broadcast %177 : vector<1x1xf32> to vector<1x10xf32>
    %179 = arith.subf %173, %178 : vector<1x10xf32>
    %c0_254 = arith.constant 0 : index
    %c0_255 = arith.constant 0 : index
    %c0_256 = arith.constant 0 : index
    %180 = vector.load %arg4[%c0_254, %c0_255, %c0_256] : memref<1x1x10xf32, #tpu.memory_space<vmem>>, vector<1x1x10xf32>
    %181 = vector.shape_cast %180 : vector<1x1x10xf32> to vector<1x10xf32>
    %182 = vector.shape_cast %179 : vector<1x10xf32> to vector<1x1x10xf32>
    tpu.vector_store %arg4[%c0_254, %c0_255, %c0_256], %182 {strides = array<i32>} : memref<1x1x10xf32, #tpu.memory_space<vmem>>, vector<1x1x10xf32>,
    return
  }
  func.func @transform_0(%arg0: i32) -> (i32, i32, i32) {
    %c0_i32 = arith.constant 0 : i32
    %c0_i32_0 = arith.constant 0 : i32
    %c0_i32_1 = arith.constant 0 : i32
    return %arg0, %c0_i32, %c0_i32_0 : i32, i32, i32
  }
  func.func @transform_1(%arg0: i32) -> (i32, i32) {
    %c0_i32 = arith.constant 0 : i32
    %c0_i32_0 = arith.constant 0 : i32
    %c0_i32_1 = arith.constant 0 : i32
    return %c0_i32, %c0_i32_0 : i32, i32
  }
  func.func @transform_2(%arg0: i32) -> (i32, i32) {
    %c0_i32 = arith.constant 0 : i32
    %c0_i32_0 = arith.constant 0 : i32
    %c0_i32_1 = arith.constant 0 : i32
    return %c0_i32, %c0_i32_0 : i32, i32
  }
  func.func @transform_3(%arg0: i32) -> (i32, i32, i32) {
    %c0_i32 = arith.constant 0 : i32
    %c0_i32_0 = arith.constant 0 : i32
    %c0_i32_1 = arith.constant 0 : i32
    return %arg0, %c0_i32, %c0_i32_0 : i32, i32, i32
  }
}

</mosaic_0001>

<llo_original>
// kernel: net8_forward.1
$region0: #{net8_forward.1}
  #allocation0 [shape = 'u32[]', space=smem, size = 0x4, offset = 0x4, fixed_abs, tag = 'smem constant byte address 0x4 - core index']
  #allocation1 [shape = 'u32[144,128]{1,0:T(1,128)}', space=vmem, size = 0x12000, scoped, tag = 'internal scratch']
  #allocation2 [shape = 'f32[16,912]{1,0:T(8,128)}', space=vmem, size = 0x10000, scoped, tag = 'scratch operand']
  #allocation3 [shape = 'f32[16,912]{1,0:T(8,128)}', space=vmem, size = 0x10000, scoped, tag = 'scratch operand']
  #allocation4 [shape = 'f32[145,784]{1,0:T(8,128)}', space=vmem, size = 0x85000, scoped, tag = 'scratch operand']
  %s0 = inlined_call_operand.vmem [shape: f32[2,1,784], index: 0, kind: input, shape index: {}]
  %s1 = inlined_call_operand.vmem [shape: f32[16,583], index: 1, kind: input, shape index: {}]
  %s2 = inlined_call_operand.vmem [shape: f32[1,784], index: 2, kind: input, shape index: {}]
  %s3 = inlined_call_operand.hbm [shape: f32[2,1,10], index: 3, kind: output, shape index: {}]
  %s4 = sld [smem:[#allocation0]]
  $region45: #{net8_forward.1} parent=0
    _
  %s6 = ssub.s32 1, %s4
  %s7 = scalar_select 0, %s6, %s4
  $region1: #{net8_forward.1} parent=0
    #allocation5 [shape = 'u8[1024]{0}', space=vmem, size = 0x400, scoped, tag = 'output window, operand 0']
    #allocation6 [shape = 's32[2]{0}', space=sflag, size = 0x8, scoped, tag = 'scoped memory for net8_forward.1']
    %8 = vsyncpa [#allocation6], 0
    %s9 = scalar_lea.sflag [#allocation6], 1
    %10 = vsyncpa %s9, 0
    loop: start=0, step=1, limit=4
    $region2: #{net8_forward.1} parent=1 // loop_pre_header
      _
    $region3: #{net8_forward.1} parent=1 // loop_header
      %s12 = sphi 0, %s16
      %p13 = scmp.ge.s32.totalorder %s12, 4
      %s22 = sphi 0, %s24
      %s25 = sphi 0, %s22
      %s26 = sphi 0, %s25
      %s42 = sphi 0, %s26
      %s46 = sphi 0, %s46
      %s48 = sphi 0, %s46
      %s49 = sphi 0, %s48
      %s63 = sphi 0, %s49
      %s67 = sphi 0, %s67
      %s69 = sphi 0, %s67
      %s70 = sphi 0, %s69
      %s84 = sphi 0, %s70
      %s90 = sphi 0, %s92
      %s93 = sphi 0, %s90
      %s94 = sphi 0, %s93
      %s110 = sphi 0, %s94
    $region4: #{net8_forward.1} parent=1 // loop_header_branch
      %15 = sbr.rel (%p13) target = $region8
    $region5: #{net8_forward.1} parent=1 // loop_body
      %s17 = ssub.s32 %s12, 1
      %s18 = ssub.s32 %s12, 2
      %s19 = sadd.s32 %s12, 1
      %s20 = ssub.s32 %s12, %s19
      %p21 = scmp.eq.s32.totalorder %s20, 0
      %s23 = sadd.s32 %s22, 1
      %s24 = scalar_select %p21, %s22, %s23
      %p27 = pneg %p21
      %p28 = scmp.eq.s32.totalorder %s12, 1
      %p29 = por %p27, %p28
      %p30 = scmp.ne.s32.totalorder %s22, %s25
      %p31 = scmp.eq.s32.totalorder %s12, 0
      %p32 = por %p30, %p31
      %p33 = scmp.ne.s32.totalorder %s22, %s25
      %p34 = scmp.eq.s32.totalorder %s17, 1
      %p35 = por %p33, %p34
      %p36 = scmp.ne.s32.totalorder %s25, %s26
      %p37 = scmp.eq.s32.totalorder %s17, 0
      %p38 = por %p36, %p37
      %p39 = scmp.ne.s32.totalorder %s25, %s26
      %p40 = scmp.eq.s32.totalorder %s18, 1
      %p41 = por %p39, %p40
      %p43 = scmp.ne.s32.totalorder %s26, %s42
      %p44 = scmp.eq.s32.totalorder %s18, 0
      %p45 = por %p43, %p44
      %s47 = sadd.s32 %s46, 1
      %p50 = scmp.eq.s32.totalorder %s12, 1
      %p51 = scmp.ne.s32.totalorder %s46, %s48
      %p52 = scmp.eq.s32.totalorder %s12, 0
      %p53 = por %p51, %p52
      %p54 = scmp.ne.s32.totalorder %s46, %s48
      %p55 = scmp.eq.s32.totalorder %s17, 1
      %p56 = por %p54, %p55
      %p57 = scmp.ne.s32.totalorder %s48, %s49
      %p58 = scmp.eq.s32.totalorder %s17, 0
      %p59 = por %p57, %p58
      %p60 = scmp.ne.s32.totalorder %s48, %s49
      %p61 = scmp.eq.s32.totalorder %s18, 1
      %p62 = por %p60, %p61
      %p64 = scmp.ne.s32.totalorder %s49, %s63
      %p65 = scmp.eq.s32.totalorder %s18, 0
      %p66 = por %p64, %p65
      %s68 = sadd.s32 %s67, 1
      %p71 = scmp.eq.s32.totalorder %s12, 1
      %p72 = scmp.ne.s32.totalorder %s67, %s69
      %p73 = scmp.eq.s32.totalorder %s12, 0
      %p74 = por %p72, %p73
      %p75 = scmp.ne.s32.totalorder %s67, %s69
      %p76 = scmp.eq.s32.totalorder %s17, 1
      %p77 = por %p75, %p76
      %p78 = scmp.ne.s32.totalorder %s69, %s70
      %p79 = scmp.eq.s32.totalorder %s17, 0
      %p80 = por %p78, %p79
      %p81 = scmp.ne.s32.totalorder %s69, %s70
      %p82 = scmp.eq.s32.totalorder %s18, 1
      %p83 = por %p81, %p82
      %p85 = scmp.ne.s32.totalorder %s70, %s84
      %p86 = scmp.eq.s32.totalorder %s18, 0
      %p87 = por %p85, %p86
      %s88 = ssub.s32 %s12, %s19
      %p89 = scmp.eq.s32.totalorder %s88, 0
      %s91 = sadd.s32 %s90, 1
      %s92 = scalar_select %p89, %s90, %s91
      %p95 = pneg %p89
      %p96 = scmp.eq.s32.totalorder %s12, 1
      %p97 = por %p95, %p96
      %p98 = scmp.ne.s32.totalorder %s90, %s93
      %p99 = scmp.eq.s32.totalorder %s12, 0
      %p100 = por %p98, %p99
      %p101 = scmp.ne.s32.totalorder %s90, %s93
      %p102 = scmp.eq.s32.totalorder %s17, 1
      %p103 = por %p101, %p102
      %p104 = scmp.ne.s32.totalorder %s93, %s94
      %p105 = scmp.eq.s32.totalorder %s17, 0
      %p106 = por %p104, %p105
      %p107 = scmp.ne.s32.totalorder %s93, %s94
      %p108 = scmp.eq.s32.totalorder %s18, 1
      %p109 = por %p107, %p108
      %p111 = scmp.ne.s32.totalorder %s94, %s110
      %p112 = scmp.eq.s32.totalorder %s18, 0
      %p113 = por %p111, %p112
      %p114 = scmp.le.s32.totalorder 1, %s12
      %p115 = scmp.lt.s32.totalorder %s12, 3
      %p116 = pnand %p114, %p115
      %p117 = pneg %p116
      // Predicated region
      $region9: #{net8_forward.1} parent=5 // pred_check
        _
      $region10: #{net8_forward.1} parent=5 // pred_check_branch
        %119 = sbr.rel (%p116) target = $region12
      $region11: #{net8_forward.1} parent=5 // pred_region
        %s120 = ssub.s32 %s12, 1
        // Predicated region
        $region13: #{net8_forward.1} parent=11 // pred_check
          %p121 = pneg %p59
        $region14: #{net8_forward.1} parent=11 // pred_check_branch
          %123 = sbr.rel (%p121) target = $region16
        $region15: #{net8_forward.1} parent=11 // pred_region
          _
        $region16: #{net8_forward.1} parent=11 // pred_fallthru
          _
        // Predicated region
        $region17: #{net8_forward.1} parent=11 // pred_check
          %p124 = pneg %p80
        $region18: #{net8_forward.1} parent=11 // pred_check_branch
          %126 = sbr.rel (%p124) target = $region20
        $region19: #{net8_forward.1} parent=11 // pred_region
          _
        $region20: #{net8_forward.1} parent=11 // pred_fallthru
          _
      $region12: #{net8_forward.1} parent=5 // pred_fallthru
        _
      %p127 = scmp.lt.s32.totalorder %s12, 2
      // Predicated region
      $region21: #{net8_forward.1} parent=5 // pred_check
        %p128 = pneg %p127
      $region22: #{net8_forward.1} parent=5 // pred_check_branch
        %130 = sbr.rel (%p128) target = $region24
      $region23: #{net8_forward.1} parent=5 // pred_region
        // Predicated region
        $region25: #{net8_forward.1} parent=23 // pred_check
          %p131 = pneg %p32
        $region26: #{net8_forward.1} parent=23 // pred_check_branch
          %133 = sbr.rel (%p131) target = $region28
        $region27: #{net8_forward.1} parent=23 // pred_region
          %p134 = scmp.lt.s32.totalorder %s12, 1
          %s135 = scalar_select %p134, %s12, 1
          %s136 = smul.addr %s135, 7
          %s137 = scalar_lea.vmem %s0, %s136
        $region28: #{net8_forward.1} parent=23 // pred_fallthru
          _
      $region24: #{net8_forward.1} parent=5 // pred_fallthru
        _
      %p138 = scmp.le.s32.totalorder 1, %s12
      %p139 = scmp.lt.s32.totalorder %s12, 3
      %p140 = pnand %p138, %p139
      %p141 = pneg %p140
      // Predicated region
      $region29: #{net8_forward.1} parent=5 // pred_check
        _
      $region30: #{net8_forward.1} parent=5 // pred_check_branch
        %143 = sbr.rel (%p140) target = $region32
      $region31: #{net8_forward.1} parent=5 // pred_region
        %s144 = ssub.s32 %s12, 1
        %p145 = scmp.lt.s32.totalorder %s17, 1
        %s146 = scalar_select %p145, %s17, 1
        %s147 = smul.addr %s146, 7
        %s148 = scalar_lea.vmem %s0, %s147
        %p149 = pneg %p38
        %p150 = pneg %p35
        %p151 = pneg %p59
        %p152 = pneg %p56
        %p153 = pneg %p80
        %p154 = pneg %p77
        %p155 = pneg %p106
        %p156 = pneg %p103
        %s157 = sand.u32 %s93, 1
        %s158 = scalar_lea.sflag [#allocation6], %s157
        %s159 = sand.u32 %s93, 1
        %s160 = scalar_lea.vmem [#allocation5], %s159
        %p161 = scmp.lt.s32.totalorder %s17, 1
        %s162 = scalar_select %p161, %s17, 1
        %s163 = smul.addr %s162, 7
        %s164 = scalar_lea.vmem %s0, %s163
        %165 = vst [vmem:[#allocation2] sm:$0xff] 0.0
        %166 = vst [vmem:[#allocation2 + $0x8] sm:$0xff] 0.0
        %167 = vst [vmem:[#allocation2 + $0x10] sm:$0xff] 0.0
        %168 = vst [vmem:[#allocation2 + $0x18] sm:$0xff] 0.0
        %169 = vst [vmem:[#allocation2 + $0x20] sm:$0xff] 0.0
        %170 = vst [vmem:[#allocation2 + $0x28] sm:$0xff] 0.0
        %171 = vst [vmem:[#allocation2 + $0x30] sm:$0xff] 0.0
        %vm172 = vcmask 130048
        %173 = vst.msk [vmem:[#allocation2 + $0x38] sm:$0xff] %vm172, 0.0
        %174 = vst [vmem:[#allocation2 + $0x40] sm:$0xff] 0.0
        %175 = vst [vmem:[#allocation2 + $0x48] sm:$0xff] 0.0
        %176 = vst [vmem:[#allocation2 + $0x50] sm:$0xff] 0.0
        %177 = vst [vmem:[#allocation2 + $0x58] sm:$0xff] 0.0
        %178 = vst [vmem:[#allocation2 + $0x60] sm:$0xff] 0.0
        %179 = vst [vmem:[#allocation2 + $0x68] sm:$0xff] 0.0
        %180 = vst [vmem:[#allocation2 + $0x70] sm:$0xff] 0.0
        %181 = vst.msk [vmem:[#allocation2 + $0x78] sm:$0xff] %vm172, 0.0
        %182 = vst [vmem:[#allocation3] sm:$0xff] 0.0
        %183 = vst [vmem:[#allocation3 + $0x8] sm:$0xff] 0.0
        %184 = vst [vmem:[#allocation3 + $0x10] sm:$0xff] 0.0
        %185 = vst [vmem:[#allocation3 + $0x18] sm:$0xff] 0.0
        %186 = vst [vmem:[#allocation3 + $0x20] sm:$0xff] 0.0
        %187 = vst [vmem:[#allocation3 + $0x28] sm:$0xff] 0.0
        %188 = vst [vmem:[#allocation3 + $0x30] sm:$0xff] 0.0
        %189 = vst.msk [vmem:[#allocation3 + $0x38] sm:$0xff] %vm172, 0.0
        %190 = vst [vmem:[#allocation3 + $0x40] sm:$0xff] 0.0
        %191 = vst [vmem:[#allocation3 + $0x48] sm:$0xff] 0.0
        %192 = vst [vmem:[#allocation3 + $0x50] sm:$0xff] 0.0
        %193 = vst [vmem:[#allocation3 + $0x58] sm:$0xff] 0.0
        %194 = vst [vmem:[#allocation3 + $0x60] sm:$0xff] 0.0
        %195 = vst [vmem:[#allocation3 + $0x68] sm:$0xff] 0.0
        %196 = vst [vmem:[#allocation3 + $0x70] sm:$0xff] 0.0
        %197 = vst.msk [vmem:[#allocation3 + $0x78] sm:$0xff] %vm172, 0.0
        %v198 = vlaneseq
        %vm199 = vcmp.ge.s32.totalorder %v198, 0
        %vm200 = vcmp.lt.s32.totalorder %v198, 784
        %vm201 = vmand %vm199, %vm200
        %202 = vst.msk [vmem:[#allocation4] ss:$8 sm:$0xf] %vm201, 1.0
        %203 = vst.msk [vmem:[#allocation4] ss:$8 sm:$0x70] %vm201, 1.0
        %v204 = vld [vmem:[%s164] sm:$0x7f]
        %205 = vst.msk [vmem:[#allocation2] ss:$8 sm:$0xf] %vm201, %v204
        %206 = vst.msk [vmem:[#allocation2] ss:$8 sm:$0x70] %vm201, %v204
        %v207 = vld [vmem:[#allocation2] ss:$8 sm:$0xf]
        %v208 = vld [vmem:[#allocation2] ss:$8 sm:$0x70]
        %v209 = vor.u32 %v207, %v208
        %s210 = scalar_lea.vmem [#allocation4], 1
        %211 = vst.msk [vmem:[%s210] ss:$8 sm:$0xf] %vm201, %v209
        %212 = vst.msk [vmem:[%s210] ss:$8 sm:$0x70] %vm201, %v209
        %v213 = vld [vmem:[#allocation2] ss:$8 sm:$0xf]
        %v214 = vld [vmem:[#allocation2] ss:$8 sm:$0x70]
        %v215 = vor.u32 %v213, %v214
        %217 = vrot.lane.b32.xlu0 %v215, 127
        %v218 = vpop.permute.xlu0 %217
        %v219 = vrot.slane %v218, 1
        %vm220 = vcmask 1039360
        %v221 = vsel %vm220, %v218, %v219
        %s223 = scalar_lea.vmem [#allocation4], 2
        %224 = vst.msk [vmem:[%s223] ss:$8 sm:$0xf] %vm201, %v221
        %225 = vst.msk [vmem:[%s223] ss:$8 sm:$0x70] %vm201, %v221
        %v226 = vld [vmem:[#allocation2] ss:$8 sm:$0xf]
        %v227 = vld [vmem:[#allocation2] ss:$8 sm:$0x70]
        %v228 = vor.u32 %v226, %v227
        %230 = vrot.lane.b32.xlu0 %v228, 126
        %v231 = vpop.permute.xlu0 %230
        %v232 = vrot.slane %v231, 1
        %vm233 = vcmask 1031168
        %v234 = vsel %vm233, %v231, %v232
        %s236 = scalar_lea.vmem [#allocation4], 3
        %237 = vst.msk [vmem:[%s236] ss:$8 sm:$0xf] %vm201, %v234
        %238 = vst.msk [vmem:[%s236] ss:$8 sm:$0x70] %vm201, %v234
        %v239 = vld [vmem:[#allocation2] ss:$8 sm:$0xf]
        %v240 = vld [vmem:[#allocation2] ss:$8 sm:$0x70]
        %v241 = vor.u32 %v239, %v240
        %243 = vrot.lane.b32.xlu0 %v241, 100
        %v244 = vpop.permute.xlu0 %243
        %v245 = vrot.slane %v244, 1
        %vm246 = vcmask 818176
        %v247 = vsel %vm246, %v244, %v245
        %s249 = scalar_lea.vmem [#allocation4], 4
        %250 = vst.msk [vmem:[%s249] ss:$8 sm:$0xf] %vm201, %v247
        %251 = vst.msk [vmem:[%s249] ss:$8 sm:$0x70] %vm201, %v247
        %v252 = vld [vmem:[#allocation2] ss:$8 sm:$0xf]
        %v253 = vld [vmem:[#allocation2] ss:$8 sm:$0x70]
        %v254 = vor.u32 %v252, %v253
        %256 = vrot.lane.b32.xlu0 %v254, 99
        %v257 = vpop.permute.xlu0 %256
        %v258 = vrot.slane %v257, 1
        %vm259 = vcmask 809984
        %v260 = vsel %vm259, %v257, %v258
        %s262 = scalar_lea.vmem [#allocation4], 5
        %263 = vst.msk [vmem:[%s262] ss:$8 sm:$0xf] %vm201, %v260
        %264 = vst.msk [vmem:[%s262] ss:$8 sm:$0x70] %vm201, %v260
        %v265 = vld [vmem:[#allocation2] ss:$8 sm:$0xf]
        %v266 = vld [vmem:[#allocation2] ss:$8 sm:$0x70]
        %v267 = vor.u32 %v265, %v266
        %269 = vrot.lane.b32.xlu0 %v267, 98
        %v270 = vpop.permute.xlu0 %269
        %v271 = vrot.slane %v270, 1
        %vm272 = vcmask 801792
        %v273 = vsel %vm272, %v270, %v271
        %s275 = scalar_lea.vmem [#allocation4], 6
        %276 = vst.msk [vmem:[%s275] ss:$8 sm:$0xf] %vm201, %v273
        %277 = vst.msk [vmem:[%s275] ss:$8 sm:$0x70] %vm201, %v273
        %v278 = vld [vmem:[#allocation2] ss:$8 sm:$0xf]
        %v279 = vld [vmem:[#allocation2] ss:$8 sm:$0x70]
        %v280 = vor.u32 %v278, %v279
        %282 = vrot.lane.b32.xlu0 %v280, 72
        %v283 = vpop.permute.xlu0 %282
        %v284 = vrot.slane %v283, 1
        %vm285 = vcmask 588800
        %v286 = vsel %vm285, %v283, %v284
        %s288 = scalar_lea.vmem [#allocation4], 7
        %289 = vst.msk [vmem:[%s288] ss:$8 sm:$0xf] %vm201, %v286
        %290 = vst.msk [vmem:[%s288] ss:$8 sm:$0x70] %vm201, %v286
        %v291 = vld [vmem:[#allocation2] ss:$8 sm:$0xf]
        %v292 = vld [vmem:[#allocation2] ss:$8 sm:$0x70]
        %v293 = vor.u32 %v291, %v292
        %295 = vrot.lane.b32.xlu0 %v293, 71
        %v296 = vpop.permute.xlu0 %295
        %v297 = vrot.slane %v296, 1
        %vm298 = vcmask 580608
        %v299 = vsel %vm298, %v296, %v297
        %s301 = scalar_lea.vmem [#allocation4], 56
        %302 = vst.msk [vmem:[%s301] ss:$8 sm:$0xf] %vm201, %v299
        %303 = vst.msk [vmem:[%s301] ss:$8 sm:$0x70] %vm201, %v299
        %v304 = vld [vmem:[#allocation2] ss:$8 sm:$0xf]
        %v305 = vld [vmem:[#allocation2] ss:$8 sm:$0x70]
        %v306 = vor.u32 %v304, %v305
        %308 = vrot.lane.b32.xlu0 %v306, 70
        %v309 = vpop.permute.xlu0 %308
        %v310 = vrot.slane %v309, 1
        %vm311 = vcmask 572416
        %v312 = vsel %vm311, %v309, %v310
        %s314 = scalar_lea.vmem [#allocation4], 57
        %315 = vst.msk [vmem:[%s314] ss:$8 sm:$0xf] %vm201, %v312
        %316 = vst.msk [vmem:[%s314] ss:$8 sm:$0x70] %vm201, %v312
        %v317 = vld [vmem:[%s1] sm:$0xff]
        %v318 = vld [vmem:[#allocation4] sm:$0xff]
        %v319 = vld [vmem:[#allocation4 + $0x8] sm:$0xff]
        %v320 = vld [vmem:[#allocation4 + $0x10] sm:$0xff]
        %v321 = vld [vmem:[#allocation4 + $0x18] sm:$0xff]
        %v322 = vld [vmem:[#allocation4 + $0x20] sm:$0xff]
        %v323 = vld [vmem:[#allocation4 + $0x28] sm:$0xff]
        %v324 = vld [vmem:[#allocation4 + $0x30] sm:$0xff]
        %v325 = vld [vmem:[#allocation4 + $0x38] sm:$0x3]
        %v326 = vld [vmem:[#allocation4 + $0x40] sm:$0x3]
        %v327 = vld [vmem:[#allocation4 + $0x48] sm:$0x3]
        %v328 = vld [vmem:[#allocation4 + $0x50] sm:$0x3]
        %v329 = vld [vmem:[#allocation4 + $0x58] sm:$0x3]
        %v330 = vld [vmem:[#allocation4 + $0x60] sm:$0x3]
        %v331 = vld [vmem:[#allocation4 + $0x68] sm:$0x3]
        %vm332 = vcmask 80896
        %v334 = vsel %vm332, %v317, 0
        %vm336 = vcmask 1041408
        %v338 = vsel %vm336, %v325, 0
        %v341 = vsel %vm336, %v326, 0
        %v344 = vsel %vm336, %v327, 0
        %v347 = vsel %vm336, %v328, 0
        %v350 = vsel %vm336, %v329, 0
        %v353 = vsel %vm336, %v330, 0
        %v356 = vsel %vm336, %v331, 0
        %358 = vmatprep.subr.mxu0 0.0
        %359 = vmatpush1.msra.mxu0 0.0
        %360 = vmatprep.subr.mxu0 0.0
        %361 = vmatpush1.msra.mxu0 0.0
        %362 = vmatprep.subr.mxu0 0.0
        %363 = vmatpush1.msra.mxu0 0.0
        %364 = vmatprep.subr.mxu0 0.0
        %365 = vmatpush1.msra.mxu0 0.0
        %366 = vmatprep.subr.mxu0 0.0
        %367 = vmatpush1.msra.mxu0 0.0
        %368 = vmatprep.subr.mxu0 0.0
        %369 = vmatpush1.msra.mxu0 0.0
        %370 = vmatprep.subr.mxu0 0.0
        %371 = vmatpush1.msra.mxu0 0.0
        %372 = vmatprep.subr.mxu0 0.0
        %373 = vmatpush1.msra.mxu0 0.0
        %374 = vmatprep.subr.mxu0 0.0
        %375 = vmatpush1.msra.mxu0 0.0
        %376 = vmatprep.subr.mxu0 0.0
        %377 = vmatpush1.msra.mxu0 0.0
        %378 = vmatprep.subr.mxu0 0.0
        %379 = vmatpush1.msra.mxu0 0.0
        %380 = vmatprep.subr.mxu0 0.0
        %381 = vmatpush1.msra.mxu0 0.0
        %382 = vmatprep.subr.mxu0 0.0
        %383 = vmatpush1.msra.mxu0 0.0
        %384 = vmatprep.subr.mxu0 0.0
        %385 = vmatpush1.msra.mxu0 0.0
        %386 = vmatprep.subr.mxu0 %v341
        %387 = vmatpush1.msra.mxu0 %v338
        %388 = vmatprep.subr.mxu0 %v319
        %389 = vmatpush1.msra.mxu0 %v318
        %390 = vmatprep.subr.mxu0 0.0
        %391 = vmatpush2.msra.mxu0 0.0
        %392 = vmatprep.subr.mxu0 0.0
        %393 = vmatpush2.msra.mxu0 0.0
        %394 = vmatprep.subr.mxu0 0.0
        %395 = vmatpush2.msra.mxu0 0.0
        %396 = vmatprep.subr.mxu0 0.0
        %397 = vmatpush2.msra.mxu0 0.0
        %398 = vmatprep.subr.mxu0 0.0
        %399 = vmatpush2.msra.mxu0 0.0
        %400 = vmatprep.subr.mxu0 0.0
        %401 = vmatpush2.msra.mxu0 0.0
        %402 = vmatprep.subr.mxu0 0.0
        %403 = vmatpush2.msra.mxu0 0.0
        %404 = vmatprep.subr.mxu0 0.0
        %405 = vmatpush2.msra.mxu0 0.0
        %406 = vmatprep.subr.mxu0 0.0
        %407 = vmatpush2.msra.mxu0 0.0
        %408 = vmatprep.subr.mxu0 0.0
        %409 = vmatpush2.msra.mxu0 0.0
        %410 = vmatprep.subr.mxu0 0.0
        %411 = vmatpush2.msra.mxu0 0.0
        %412 = vmatprep.subr.mxu0 0.0
        %413 = vmatpush2.msra.mxu0 0.0
        %414 = vmatprep.subr.mxu0 0.0
        %415 = vmatpush2.msra.mxu0 0.0
        %416 = vmatprep.subr.mxu0 0.0
        %417 = vmatpush2.msra.mxu0 0.0
        %418 = vmatprep.subr.mxu0 0.0
        %419 = vmatpush2.msra.mxu0 0.0
        %420 = vmatprep.subr.mxu0 0.0
        %421 = vmatpush2.msra.mxu0 0.0
        %422 = vmatprep.mubr.f32.mxu0 0.0
        %423 = vmatmul.mubr.f32.gmra.mxu0 %v334
        %v424 = vpop.f32.mrf.mxu0
        %v425 = vadd.f32 0.0, %v424
        %v426 = vpop.f32.mrf.mxu0
        %v427 = vadd.f32 0.0, %v426
        %428 = vdwg.mxu0
        %429 = vmatprep.subr.mxu0 0.0
        %430 = vmatpush1.msra.mxu0 0.0
        %431 = vmatprep.subr.mxu0 0.0
        %432 = vmatpush1.msra.mxu0 0.0
        %433 = vmatprep.subr.mxu0 0.0
        %434 = vmatpush1.msra.mxu0 0.0
        %435 = vmatprep.subr.mxu0 0.0
        %436 = vmatpush1.msra.mxu0 0.0
        %437 = vmatprep.subr.mxu0 0.0
        %438 = vmatpush1.msra.mxu0 0.0
        %439 = vmatprep.subr.mxu0 0.0
        %440 = vmatpush1.msra.mxu0 0.0
        %441 = vmatprep.subr.mxu0 0.0
        %442 = vmatpush1.msra.mxu0 0.0
        %443 = vmatprep.subr.mxu0 0.0
        %444 = vmatpush1.msra.mxu0 0.0
        %445 = vmatprep.subr.mxu0 0.0
        %446 = vmatpush1.msra.mxu0 0.0
        %447 = vmatprep.subr.mxu0 0.0
        %448 = vmatpush1.msra.mxu0 0.0
        %449 = vmatprep.subr.mxu0 0.0
        %450 = vmatpush1.msra.mxu0 0.0
        %451 = vmatprep.subr.mxu0 0.0
        %452 = vmatpush1.msra.mxu0 0.0
        %453 = vmatprep.subr.mxu0 0.0
        %454 = vmatpush1.msra.mxu0 0.0
        %455 = vmatprep.subr.mxu0 0.0
        %456 = vmatpush1.msra.mxu0 0.0
        %457 = vmatprep.subr.mxu0 %v347
        %458 = vmatpush1.msra.mxu0 %v344
        %459 = vmatprep.subr.mxu0 %v321
        %460 = vmatpush1.msra.mxu0 %v320
        %461 = vmatprep.subr.mxu0 0.0
        %462 = vmatpush2.msra.mxu0 0.0
        %463 = vmatprep.subr.mxu0 0.0
        %464 = vmatpush2.msra.mxu0 0.0
        %465 = vmatprep.subr.mxu0 0.0
        %466 = vmatpush2.msra.mxu0 0.0
        %467 = vmatprep.subr.mxu0 0.0
        %468 = vmatpush2.msra.mxu0 0.0
        %469 = vmatprep.subr.mxu0 0.0
        %470 = vmatpush2.msra.mxu0 0.0
        %471 = vmatprep.subr.mxu0 0.0
        %472 = vmatpush2.msra.mxu0 0.0
        %473 = vmatprep.subr.mxu0 0.0
        %474 = vmatpush2.msra.mxu0 0.0
        %475 = vmatprep.subr.mxu0 0.0
        %476 = vmatpush2.msra.mxu0 0.0
        %477 = vmatprep.subr.mxu0 0.0
        %478 = vmatpush2.msra.mxu0 0.0
        %479 = vmatprep.subr.mxu0 0.0
        %480 = vmatpush2.msra.mxu0 0.0
        %481 = vmatprep.subr.mxu0 0.0
        %482 = vmatpush2.msra.mxu0 0.0
        %483 = vmatprep.subr.mxu0 0.0
        %484 = vmatpush2.msra.mxu0 0.0
        %485 = vmatprep.subr.mxu0 0.0
        %486 = vmatpush2.msra.mxu0 0.0
        %487 = vmatprep.subr.mxu0 0.0
        %488 = vmatpush2.msra.mxu0 0.0
        %489 = vmatprep.subr.mxu0 0.0
        %490 = vmatpush2.msra.mxu0 0.0
        %491 = vmatprep.subr.mxu0 0.0
        %492 = vmatpush2.msra.mxu0 0.0
        %493 = vmatprep.mubr.f32.mxu0 0.0
        %494 = vmatmul.mubr.f32.gmra.mxu0 %v334
        %v495 = vpop.f32.mrf.mxu0
        %v496 = vadd.f32 0.0, %v495
        %v497 = vpop.f32.mrf.mxu0
        %v498 = vadd.f32 0.0, %v497
        %499 = vdwg.mxu0
        %500 = vmatprep.subr.mxu0 0.0
        %501 = vmatpush1.msra.mxu0 0.0
        %502 = vmatprep.subr.mxu0 0.0
        %503 = vmatpush1.msra.mxu0 0.0
        %504 = vmatprep.subr.mxu0 0.0
        %505 = vmatpush1.msra.mxu0 0.0
        %506 = vmatprep.subr.mxu0 0.0
        %507 = vmatpush1.msra.mxu0 0.0
        %508 = vmatprep.subr.mxu0 0.0
        %509 = vmatpush1.msra.mxu0 0.0
        %510 = vmatprep.subr.mxu0 0.0
        %511 = vmatpush1.msra.mxu0 0.0
        %512 = vmatprep.subr.mxu0 0.0
        %513 = vmatpush1.msra.mxu0 0.0
        %514 = vmatprep.subr.mxu0 0.0
        %515 = vmatpush1.msra.mxu0 0.0
        %516 = vmatprep.subr.mxu0 0.0
        %517 = vmatpush1.msra.mxu0 0.0
        %518 = vmatprep.subr.mxu0 0.0
        %519 = vmatpush1.msra.mxu0 0.0
        %520 = vmatprep.subr.mxu0 0.0
        %521 = vmatpush1.msra.mxu0 0.0
        %522 = vmatprep.subr.mxu0 0.0
        %523 = vmatpush1.msra.mxu0 0.0
        %524 = vmatprep.subr.mxu0 0.0
        %525 = vmatpush1.msra.mxu0 0.0
        %526 = vmatprep.subr.mxu0 0.0
        %527 = vmatpush1.msra.mxu0 0.0
        %528 = vmatprep.subr.mxu0 %v353
        %529 = vmatpush1.msra.mxu0 %v350
        %530 = vmatprep.subr.mxu0 %v323
        %531 = vmatpush1.msra.mxu0 %v322
        %532 = vmatprep.subr.mxu0 0.0
        %533 = vmatpush2.msra.mxu0 0.0
        %534 = vmatprep.subr.mxu0 0.0
        %535 = vmatpush2.msra.mxu0 0.0
        %536 = vmatprep.subr.mxu0 0.0
        %537 = vmatpush2.msra.mxu0 0.0
        %538 = vmatprep.subr.mxu0 0.0
        %539 = vmatpush2.msra.mxu0 0.0
        %540 = vmatprep.subr.mxu0 0.0
        %541 = vmatpush2.msra.mxu0 0.0
        %542 = vmatprep.subr.mxu0 0.0
        %543 = vmatpush2.msra.mxu0 0.0
        %544 = vmatprep.subr.mxu0 0.0
        %545 = vmatpush2.msra.mxu0 0.0
        %546 = vmatprep.subr.mxu0 0.0
        %547 = vmatpush2.msra.mxu0 0.0
        %548 = vmatprep.subr.mxu0 0.0
        %549 = vmatpush2.msra.mxu0 0.0
        %550 = vmatprep.subr.mxu0 0.0
        %551 = vmatpush2.msra.mxu0 0.0
        %552 = vmatprep.subr.mxu0 0.0
        %553 = vmatpush2.msra.mxu0 0.0
        %554 = vmatprep.subr.mxu0 0.0
        %555 = vmatpush2.msra.mxu0 0.0
        %556 = vmatprep.subr.mxu0 0.0
        %557 = vmatpush2.msra.mxu0 0.0
        %558 = vmatprep.subr.mxu0 0.0
        %559 = vmatpush2.msra.mxu0 0.0
        %560 = vmatprep.subr.mxu0 0.0
        %561 = vmatpush2.msra.mxu0 0.0
        %562 = vmatprep.subr.mxu0 0.0
        %563 = vmatpush2.msra.mxu0 0.0
        %564 = vmatprep.mubr.f32.mxu0 0.0
        %565 = vmatmul.mubr.f32.gmra.mxu0 %v334
        %v566 = vpop.f32.mrf.mxu0
        %v567 = vadd.f32 0.0, %v566
        %v568 = vpop.f32.mrf.mxu0
        %v569 = vadd.f32 0.0, %v568
        %570 = vdwg.mxu0
        %571 = vmatprep.subr.mxu0 0.0
        %572 = vmatpush1.msra.mxu0 0.0
        %573 = vmatprep.subr.mxu0 0.0
        %574 = vmatpush1.msra.mxu0 0.0
        %575 = vmatprep.subr.mxu0 0.0
        %576 = vmatpush1.msra.mxu0 0.0
        %577 = vmatprep.subr.mxu0 0.0
        %578 = vmatpush1.msra.mxu0 0.0
        %579 = vmatprep.subr.mxu0 0.0
        %580 = vmatpush1.msra.mxu0 0.0
        %581 = vmatprep.subr.mxu0 0.0
        %582 = vmatpush1.msra.mxu0 0.0
        %583 = vmatprep.subr.mxu0 0.0
        %584 = vmatpush1.msra.mxu0 0.0
        %585 = vmatprep.subr.mxu0 0.0
        %586 = vmatpush1.msra.mxu0 0.0
        %587 = vmatprep.subr.mxu0 0.0
        %588 = vmatpush1.msra.mxu0 0.0
        %589 = vmatprep.subr.mxu0 0.0
        %590 = vmatpush1.msra.mxu0 0.0
        %591 = vmatprep.subr.mxu0 0.0
        %592 = vmatpush1.msra.mxu0 0.0
        %593 = vmatprep.subr.mxu0 0.0
        %594 = vmatpush1.msra.mxu0 0.0
        %595 = vmatprep.subr.mxu0 0.0
        %596 = vmatpush1.msra.mxu0 0.0
        %597 = vmatprep.subr.mxu0 0.0
        %598 = vmatpush1.msra.mxu0 0.0
        %599 = vmatprep.subr.mxu0 0.0
        %600 = vmatpush1.msra.mxu0 %v356
        %601 = vmatprep.subr.mxu0 0.0
        %602 = vmatpush1.msra.mxu0 %v324
        %603 = vmatprep.subr.mxu0 0.0
        %604 = vmatpush2.msra.mxu0 0.0
        %605 = vmatprep.subr.mxu0 0.0
        %606 = vmatpush2.msra.mxu0 0.0
        %607 = vmatprep.subr.mxu0 0.0
        %608 = vmatpush2.msra.mxu0 0.0
        %609 = vmatprep.subr.mxu0 0.0
        %610 = vmatpush2.msra.mxu0 0.0
        %611 = vmatprep.subr.mxu0 0.0
        %612 = vmatpush2.msra.mxu0 0.0
        %613 = vmatprep.subr.mxu0 0.0
        %614 = vmatpush2.msra.mxu0 0.0
        %615 = vmatprep.subr.mxu0 0.0
        %616 = vmatpush2.msra.mxu0 0.0
        %617 = vmatprep.subr.mxu0 0.0
        %618 = vmatpush2.msra.mxu0 0.0
        %619 = vmatprep.subr.mxu0 0.0
        %620 = vmatpush2.msra.mxu0 0.0
        %621 = vmatprep.subr.mxu0 0.0
        %622 = vmatpush2.msra.mxu0 0.0
        %623 = vmatprep.subr.mxu0 0.0
        %624 = vmatpush2.msra.mxu0 0.0
        %625 = vmatprep.subr.mxu0 0.0
        %626 = vmatpush2.msra.mxu0 0.0
        %627 = vmatprep.subr.mxu0 0.0
        %628 = vmatpush2.msra.mxu0 0.0
        %629 = vmatprep.subr.mxu0 0.0
        %630 = vmatpush2.msra.mxu0 0.0
        %631 = vmatprep.subr.mxu0 0.0
        %632 = vmatpush2.msra.mxu0 0.0
        %633 = vmatprep.subr.mxu0 0.0
        %634 = vmatpush2.msra.mxu0 0.0
        %635 = vmatprep.mubr.f32.mxu0 0.0
        %636 = vmatmul.mubr.f32.gmra.mxu0 %v334
        %v637 = vpop.f32.mrf.mxu0
        %v638 = vadd.f32 0.0, %v637
        %v639 = vpop.f32.mrf.mxu0
        %640 = vdwg.mxu0
        %v641 = vmax.f32 %v425, 0.0
        %v642 = vmax.f32 %v427, 0.0
        %v643 = vmax.f32 %v496, 0.0
        %v644 = vmax.f32 %v498, 0.0
        %v645 = vmax.f32 %v567, 0.0
        %v646 = vmax.f32 %v569, 0.0
        %v647 = vmax.f32 %v638, 0.0
        %648 = vst [vmem:[#allocation3] sm:$0xff] %v641
        %649 = vst [vmem:[#allocation3 + $0x8] sm:$0xff] %v642
        %650 = vst [vmem:[#allocation3 + $0x10] sm:$0xff] %v643
        %651 = vst [vmem:[#allocation3 + $0x18] sm:$0xff] %v644
        %652 = vst [vmem:[#allocation3 + $0x20] sm:$0xff] %v645
        %653 = vst [vmem:[#allocation3 + $0x28] sm:$0xff] %v646
        %654 = vst.msk [vmem:[#allocation3 + $0x30] sm:$0xff] %vm172, %v647
        %v655 = vld [vmem:[#allocation3] sm:$0xff]
        %v656 = vld [vmem:[#allocation3 + $0x8] sm:$0xff]
        %v657 = vld [vmem:[#allocation3 + $0x10] sm:$0xff]
        %v658 = vld [vmem:[#allocation3 + $0x18] sm:$0xff]
        %v659 = vld [vmem:[#allocation3 + $0x20] sm:$0xff]
        %v660 = vld [vmem:[#allocation3 + $0x28] sm:$0xff]
        %v661 = vld [vmem:[#allocation3 + $0x30] sm:$0xff]
        %v669 = vrot.slane %v655, 7
        %v670 = vrot.slane %v656, 7
        %v671 = vrot.slane %v657, 7
        %v672 = vrot.slane %v658, 7
        %v673 = vrot.slane %v659, 7
        %v674 = vrot.slane %v660, 7
        %v675 = vrot.slane %v661, 7
        %683 = vst [vmem:[#allocation4] sm:$0xfe] %v669
        %684 = vst [vmem:[#allocation4 + $0x8] sm:$0xfe] %v670
        %685 = vst [vmem:[#allocation4 + $0x10] sm:$0xfe] %v671
        %686 = vst [vmem:[#allocation4 + $0x18] sm:$0xfe] %v672
        %687 = vst [vmem:[#allocation4 + $0x20] sm:$0xfe] %v673
        %688 = vst [vmem:[#allocation4 + $0x28] sm:$0xfe] %v674
        %vm689 = vcmask 130049
        %690 = vst.msk [vmem:[#allocation4 + $0x30] sm:$0xfe] %vm689, %v675
        %691 = vst [vmem:[#allocation4 + $0x38] sm:$0x1] %v669
        %692 = vst [vmem:[#allocation4 + $0x40] sm:$0x1] %v670
        %693 = vst [vmem:[#allocation4 + $0x48] sm:$0x1] %v671
        %694 = vst [vmem:[#allocation4 + $0x50] sm:$0x1] %v672
        %695 = vst [vmem:[#allocation4 + $0x58] sm:$0x1] %v673
        %696 = vst [vmem:[#allocation4 + $0x60] sm:$0x1] %v674
        %vm697 = vcmask 122880
        %698 = vst.msk [vmem:[#allocation4 + $0x68] sm:$0x1] %vm697, %v675
        %v699 = vld [vmem:[#allocation3] sm:$0xff]
        %v700 = vld [vmem:[#allocation3 + $0x8] sm:$0xff]
        %v701 = vld [vmem:[#allocation3 + $0x10] sm:$0xff]
        %v702 = vld [vmem:[#allocation3 + $0x18] sm:$0xff]
        %v703 = vld [vmem:[#allocation3 + $0x20] sm:$0xff]
        %v704 = vld [vmem:[#allocation3 + $0x28] sm:$0xff]
        %v705 = vld [vmem:[#allocation3 + $0x30] sm:$0xff]
        %v713 = vrot.slane %v699, 7
        %v714 = vrot.slane %v700, 7
        %v715 = vrot.slane %v701, 7
        %v716 = vrot.slane %v702, 7
        %v717 = vrot.slane %v703, 7
        %v718 = vrot.slane %v704, 7
        %v719 = vrot.slane %v705, 7
        %720 = vrot.lane.b32.xlu0 %v713, 127
        %v721 = vpop.permute.xlu0 %720
        %722 = vrot.lane.b32.xlu0 %v714, 127
        %v723 = vpop.permute.xlu0 %722
        %724 = vrot.lane.b32.xlu0 %v715, 127
        %v725 = vpop.permute.xlu0 %724
        %726 = vrot.lane.b32.xlu0 %v716, 127
        %v727 = vpop.permute.xlu0 %726
        %728 = vrot.lane.b32.xlu0 %v717, 127
        %v729 = vpop.permute.xlu0 %728
        %730 = vrot.lane.b32.xlu0 %v718, 127
        %v731 = vpop.permute.xlu0 %730
        %732 = vrot.lane.b32.xlu0 %v719, 127
        %v733 = vpop.permute.xlu0 %732
        %v734 = vsel %vm220, %v721, %v723
        %v735 = vsel %vm220, %v723, %v725
        %v736 = vsel %vm220, %v725, %v727
        %v737 = vsel %vm220, %v727, %v729
        %v738 = vsel %vm220, %v729, %v731
        %v739 = vsel %vm220, %v731, %v733
        %747 = vst [vmem:[#allocation4 + $0x38] sm:$0xfe] %v734
        %748 = vst [vmem:[#allocation4 + $0x40] sm:$0xfe] %v735
        %749 = vst [vmem:[#allocation4 + $0x48] sm:$0xfe] %v736
        %750 = vst [vmem:[#allocation4 + $0x50] sm:$0xfe] %v737
        %751 = vst [vmem:[#allocation4 + $0x58] sm:$0xfe] %v738
        %752 = vst [vmem:[#allocation4 + $0x60] sm:$0xfe] %v739
        %753 = vst.msk [vmem:[#allocation4 + $0x68] sm:$0xfe] %vm689, %v733
        %754 = vst [vmem:[#allocation4 + $0x70] sm:$0x1] %v734
        %755 = vst [vmem:[#allocation4 + $0x78] sm:$0x1] %v735
        %756 = vst [vmem:[#allocation4 + $0x80] sm:$0x1] %v736
        %757 = vst [vmem:[#allocation4 + $0x88] sm:$0x1] %v737
        %758 = vst [vmem:[#allocation4 + $0x90] sm:$0x1] %v738
        %759 = vst [vmem:[#allocation4 + $0x98] sm:$0x1] %v739
        %760 = vst.msk [vmem:[#allocation4 + $0xa0] sm:$0x1] %vm697, %v733
        %v761 = vld [vmem:[#allocation3] sm:$0xff]
        %v762 = vld [vmem:[#allocation3 + $0x8] sm:$0xff]
        %v763 = vld [vmem:[#allocation3 + $0x10] sm:$0xff]
        %v764 = vld [vmem:[#allocation3 + $0x18] sm:$0xff]
        %v765 = vld [vmem:[#allocation3 + $0x20] sm:$0xff]
        %v766 = vld [vmem:[#allocation3 + $0x28] sm:$0xff]
        %v767 = vld [vmem:[#allocation3 + $0x30] sm:$0xff]
        %v775 = vrot.slane %v761, 7
        %v776 = vrot.slane %v762, 7
        %v777 = vrot.slane %v763, 7
        %v778 = vrot.slane %v764, 7
        %v779 = vrot.slane %v765, 7
        %v780 = vrot.slane %v766, 7
        %v781 = vrot.slane %v767, 7
        %782 = vrot.lane.b32.xlu0 %v775, 126
        %v783 = vpop.permute.xlu0 %782
        %784 = vrot.lane.b32.xlu0 %v776, 126
        %v785 = vpop.permute.xlu0 %784
        %786 = vrot.lane.b32.xlu0 %v777, 126
        %v787 = vpop.permute.xlu0 %786
        %788 = vrot.lane.b32.xlu0 %v778, 126
        %v789 = vpop.permute.xlu0 %788
        %790 = vrot.lane.b32.xlu0 %v779, 126
        %v791 = vpop.permute.xlu0 %790
        %792 = vrot.lane.b32.xlu0 %v780, 126
        %v793 = vpop.permute.xlu0 %792
        %794 = vrot.lane.b32.xlu0 %v781, 126
        %v795 = vpop.permute.xlu0 %794
        %v796 = vsel %vm233, %v783, %v785
        %v797 = vsel %vm233, %v785, %v787
        %v798 = vsel %vm233, %v787, %v789
        %v799 = vsel %vm233, %v789, %v791
        %v800 = vsel %vm233, %v791, %v793
        %v801 = vsel %vm233, %v793, %v795
        %809 = vst [vmem:[#allocation4 + $0x70] sm:$0xfe] %v796
        %810 = vst [vmem:[#allocation4 + $0x78] sm:$0xfe] %v797
        %811 = vst [vmem:[#allocation4 + $0x80] sm:$0xfe] %v798
        %812 = vst [vmem:[#allocation4 + $0x88] sm:$0xfe] %v799
        %813 = vst [vmem:[#allocation4 + $0x90] sm:$0xfe] %v800
        %814 = vst [vmem:[#allocation4 + $0x98] sm:$0xfe] %v801
        %815 = vst.msk [vmem:[#allocation4 + $0xa0] sm:$0xfe] %vm689, %v795
        %816 = vst [vmem:[#allocation4 + $0xa8] sm:$0x1] %v796
        %817 = vst [vmem:[#allocation4 + $0xb0] sm:$0x1] %v797
        %818 = vst [vmem:[#allocation4 + $0xb8] sm:$0x1] %v798
        %819 = vst [vmem:[#allocation4 + $0xc0] sm:$0x1] %v799
        %820 = vst [vmem:[#allocation4 + $0xc8] sm:$0x1] %v800
        %821 = vst [vmem:[#allocation4 + $0xd0] sm:$0x1] %v801
        %822 = vst.msk [vmem:[#allocation4 + $0xd8] sm:$0x1] %vm697, %v795
        %v823 = vld [vmem:[#allocation3] sm:$0xff]
        %v824 = vld [vmem:[#allocation3 + $0x8] sm:$0xff]
        %v825 = vld [vmem:[#allocation3 + $0x10] sm:$0xff]
        %v826 = vld [vmem:[#allocation3 + $0x18] sm:$0xff]
        %v827 = vld [vmem:[#allocation3 + $0x20] sm:$0xff]
        %v828 = vld [vmem:[#allocation3 + $0x28] sm:$0xff]
        %v829 = vld [vmem:[#allocation3 + $0x30] sm:$0xff]
        %v837 = vrot.slane %v823, 7
        %v838 = vrot.slane %v824, 7
        %v839 = vrot.slane %v825, 7
        %v840 = vrot.slane %v826, 7
        %v841 = vrot.slane %v827, 7
        %v842 = vrot.slane %v828, 7
        %v843 = vrot.slane %v829, 7
        %844 = vrot.lane.b32.xlu0 %v837, 100
        %v845 = vpop.permute.xlu0 %844
        %846 = vrot.lane.b32.xlu0 %v838, 100
        %v847 = vpop.permute.xlu0 %846
        %848 = vrot.lane.b32.xlu0 %v839, 100
        %v849 = vpop.permute.xlu0 %848
        %850 = vrot.lane.b32.xlu0 %v840, 100
        %v851 = vpop.permute.xlu0 %850
        %852 = vrot.lane.b32.xlu0 %v841, 100
        %v853 = vpop.permute.xlu0 %852
        %854 = vrot.lane.b32.xlu0 %v842, 100
        %v855 = vpop.permute.xlu0 %854
        %856 = vrot.lane.b32.xlu0 %v843, 100
        %v857 = vpop.permute.xlu0 %856
        %v858 = vsel %vm246, %v845, %v847
        %v859 = vsel %vm246, %v847, %v849
        %v860 = vsel %vm246, %v849, %v851
        %v861 = vsel %vm246, %v851, %v853
        %v862 = vsel %vm246, %v853, %v855
        %v863 = vsel %vm246, %v855, %v857
        %871 = vst [vmem:[#allocation4 + $0xa8] sm:$0xfe] %v858
        %872 = vst [vmem:[#allocation4 + $0xb0] sm:$0xfe] %v859
        %873 = vst [vmem:[#allocation4 + $0xb8] sm:$0xfe] %v860
        %874 = vst [vmem:[#allocation4 + $0xc0] sm:$0xfe] %v861
        %875 = vst [vmem:[#allocation4 + $0xc8] sm:$0xfe] %v862
        %876 = vst [vmem:[#allocation4 + $0xd0] sm:$0xfe] %v863
        %877 = vst.msk [vmem:[#allocation4 + $0xd8] sm:$0xfe] %vm689, %v857
        %878 = vst [vmem:[#allocation4 + $0xe0] sm:$0x1] %v858
        %879 = vst [vmem:[#allocation4 + $0xe8] sm:$0x1] %v859
        %880 = vst [vmem:[#allocation4 + $0xf0] sm:$0x1] %v860
        %881 = vst [vmem:[#allocation4 + $0xf8] sm:$0x1] %v861
        %882 = vst [vmem:[#allocation4 + $0x100] sm:$0x1] %v862
        %883 = vst [vmem:[#allocation4 + $0x108] sm:$0x1] %v863
        %884 = vst.msk [vmem:[#allocation4 + $0x110] sm:$0x1] %vm697, %v857
        %v885 = vld [vmem:[#allocation3] sm:$0xff]
        %v886 = vld [vmem:[#allocation3 + $0x8] sm:$0xff]
        %v887 = vld [vmem:[#allocation3 + $0x10] sm:$0xff]
        %v888 = vld [vmem:[#allocation3 + $0x18] sm:$0xff]
        %v889 = vld [vmem:[#allocation3 + $0x20] sm:$0xff]
        %v890 = vld [vmem:[#allocation3 + $0x28] sm:$0xff]
        %v891 = vld [vmem:[#allocation3 + $0x30] sm:$0xff]
        %v899 = vrot.slane %v885, 7
        %v900 = vrot.slane %v886, 7
        %v901 = vrot.slane %v887, 7
        %v902 = vrot.slane %v888, 7
        %v903 = vrot.slane %v889, 7
        %v904 = vrot.slane %v890, 7
        %v905 = vrot.slane %v891, 7
        %906 = vrot.lane.b32.xlu0 %v899, 99
        %v907 = vpop.permute.xlu0 %906
        %908 = vrot.lane.b32.xlu0 %v900, 99
        %v909 = vpop.permute.xlu0 %908
        %910 = vrot.lane.b32.xlu0 %v901, 99
        %v911 = vpop.permute.xlu0 %910
        %912 = vrot.lane.b32.xlu0 %v902, 99
        %v913 = vpop.permute.xlu0 %912
        %914 = vrot.lane.b32.xlu0 %v903, 99
        %v915 = vpop.permute.xlu0 %914
        %916 = vrot.lane.b32.xlu0 %v904, 99
        %v917 = vpop.permute.xlu0 %916
        %918 = vrot.lane.b32.xlu0 %v905, 99
        %v919 = vpop.permute.xlu0 %918
        %v920 = vsel %vm259, %v907, %v909
        %v921 = vsel %vm259, %v909, %v911
        %v922 = vsel %vm259, %v911, %v913
        %v923 = vsel %vm259, %v913, %v915
        %v924 = vsel %vm259, %v915, %v917
        %v925 = vsel %vm259, %v917, %v919
        %933 = vst [vmem:[#allocation4 + $0xe0] sm:$0xfe] %v920
        %934 = vst [vmem:[#allocation4 + $0xe8] sm:$0xfe] %v921
        %935 = vst [vmem:[#allocation4 + $0xf0] sm:$0xfe] %v922
        %936 = vst [vmem:[#allocation4 + $0xf8] sm:$0xfe] %v923
        %937 = vst [vmem:[#allocation4 + $0x100] sm:$0xfe] %v924
        %938 = vst [vmem:[#allocation4 + $0x108] sm:$0xfe] %v925
        %939 = vst.msk [vmem:[#allocation4 + $0x110] sm:$0xfe] %vm689, %v919
        %940 = vst [vmem:[#allocation4 + $0x118] sm:$0x1] %v920
        %941 = vst [vmem:[#allocation4 + $0x120] sm:$0x1] %v921
        %942 = vst [vmem:[#allocation4 + $0x128] sm:$0x1] %v922
        %943 = vst [vmem:[#allocation4 + $0x130] sm:$0x1] %v923
        %944 = vst [vmem:[#allocation4 + $0x138] sm:$0x1] %v924
        %945 = vst [vmem:[#allocation4 + $0x140] sm:$0x1] %v925
        %946 = vst.msk [vmem:[#allocation4 + $0x148] sm:$0x1] %vm697, %v919
        %v947 = vld [vmem:[#allocation3] sm:$0xff]
        %v948 = vld [vmem:[#allocation3 + $0x8] sm:$0xff]
        %v949 = vld [vmem:[#allocation3 + $0x10] sm:$0xff]
        %v950 = vld [vmem:[#allocation3 + $0x18] sm:$0xff]
        %v951 = vld [vmem:[#allocation3 + $0x20] sm:$0xff]
        %v952 = vld [vmem:[#allocation3 + $0x28] sm:$0xff]
        %v953 = vld [vmem:[#allocation3 + $0x30] sm:$0xff]
        %v961 = vrot.slane %v947, 7
        %v962 = vrot.slane %v948, 7
        %v963 = vrot.slane %v949, 7
        %v964 = vrot.slane %v950, 7
        %v965 = vrot.slane %v951, 7
        %v966 = vrot.slane %v952, 7
        %v967 = vrot.slane %v953, 7
        %968 = vrot.lane.b32.xlu0 %v961, 98
        %v969 = vpop.permute.xlu0 %968
        %970 = vrot.lane.b32.xlu0 %v962, 98
        %v971 = vpop.permute.xlu0 %970
        %972 = vrot.lane.b32.xlu0 %v963, 98
        %v973 = vpop.permute.xlu0 %972
        %974 = vrot.lane.b32.xlu0 %v964, 98
        %v975 = vpop.permute.xlu0 %974
        %976 = vrot.lane.b32.xlu0 %v965, 98
        %v977 = vpop.permute.xlu0 %976
        %978 = vrot.lane.b32.xlu0 %v966, 98
        %v979 = vpop.permute.xlu0 %978
        %980 = vrot.lane.b32.xlu0 %v967, 98
        %v981 = vpop.permute.xlu0 %980
        %v982 = vsel %vm272, %v969, %v971
        %v983 = vsel %vm272, %v971, %v973
        %v984 = vsel %vm272, %v973, %v975
        %v985 = vsel %vm272, %v975, %v977
        %v986 = vsel %vm272, %v977, %v979
        %v987 = vsel %vm272, %v979, %v981
        %995 = vst [vmem:[#allocation4 + $0x118] sm:$0xfe] %v982
        %996 = vst [vmem:[#allocation4 + $0x120] sm:$0xfe] %v983
        %997 = vst [vmem:[#allocation4 + $0x128] sm:$0xfe] %v984
        %998 = vst [vmem:[#allocation4 + $0x130] sm:$0xfe] %v985
        %999 = vst [vmem:[#allocation4 + $0x138] sm:$0xfe] %v986
        %1000 = vst [vmem:[#allocation4 + $0x140] sm:$0xfe] %v987
        %1001 = vst.msk [vmem:[#allocation4 + $0x148] sm:$0xfe] %vm689, %v981
        %1002 = vst [vmem:[#allocation4 + $0x150] sm:$0x1] %v982
        %1003 = vst [vmem:[#allocation4 + $0x158] sm:$0x1] %v983
        %1004 = vst [vmem:[#allocation4 + $0x160] sm:$0x1] %v984
        %1005 = vst [vmem:[#allocation4 + $0x168] sm:$0x1] %v985
        %1006 = vst [vmem:[#allocation4 + $0x170] sm:$0x1] %v986
        %1007 = vst [vmem:[#allocation4 + $0x178] sm:$0x1] %v987
        %1008 = vst.msk [vmem:[#allocation4 + $0x180] sm:$0x1] %vm697, %v981
        %v1009 = vld [vmem:[#allocation3] sm:$0xff]
        %v1010 = vld [vmem:[#allocation3 + $0x8] sm:$0xff]
        %v1011 = vld [vmem:[#allocation3 + $0x10] sm:$0xff]
        %v1012 = vld [vmem:[#allocation3 + $0x18] sm:$0xff]
        %v1013 = vld [vmem:[#allocation3 + $0x20] sm:$0xff]
        %v1014 = vld [vmem:[#allocation3 + $0x28] sm:$0xff]
        %v1015 = vld [vmem:[#allocation3 + $0x30] sm:$0xff]
        %v1023 = vrot.slane %v1009, 7
        %v1024 = vrot.slane %v1010, 7
        %v1025 = vrot.slane %v1011, 7
        %v1026 = vrot.slane %v1012, 7
        %v1027 = vrot.slane %v1013, 7
        %v1028 = vrot.slane %v1014, 7
        %v1029 = vrot.slane %v1015, 7
        %1030 = vrot.lane.b32.xlu0 %v1023, 72
        %v1031 = vpop.permute.xlu0 %1030
        %1032 = vrot.lane.b32.xlu0 %v1024, 72
        %v1033 = vpop.permute.xlu0 %1032
        %1034 = vrot.lane.b32.xlu0 %v1025, 72
        %v1035 = vpop.permute.xlu0 %1034
        %1036 = vrot.lane.b32.xlu0 %v1026, 72
        %v1037 = vpop.permute.xlu0 %1036
        %1038 = vrot.lane.b32.xlu0 %v1027, 72
        %v1039 = vpop.permute.xlu0 %1038
        %1040 = vrot.lane.b32.xlu0 %v1028, 72
        %v1041 = vpop.permute.xlu0 %1040
        %1042 = vrot.lane.b32.xlu0 %v1029, 72
        %v1043 = vpop.permute.xlu0 %1042
        %v1044 = vsel %vm285, %v1031, %v1033
        %v1045 = vsel %vm285, %v1033, %v1035
        %v1046 = vsel %vm285, %v1035, %v1037
        %v1047 = vsel %vm285, %v1037, %v1039
        %v1048 = vsel %vm285, %v1039, %v1041
        %v1049 = vsel %vm285, %v1041, %v1043
        %1057 = vst [vmem:[#allocation4 + $0x150] sm:$0xfe] %v1044
        %1058 = vst [vmem:[#allocation4 + $0x158] sm:$0xfe] %v1045
        %1059 = vst [vmem:[#allocation4 + $0x160] sm:$0xfe] %v1046
        %1060 = vst [vmem:[#allocation4 + $0x168] sm:$0xfe] %v1047
        %1061 = vst [vmem:[#allocation4 + $0x170] sm:$0xfe] %v1048
        %1062 = vst [vmem:[#allocation4 + $0x178] sm:$0xfe] %v1049
        %1063 = vst.msk [vmem:[#allocation4 + $0x180] sm:$0xfe] %vm689, %v1043
        %1064 = vst [vmem:[#allocation4 + $0x188] sm:$0x1] %v1044
        %1065 = vst [vmem:[#allocation4 + $0x190] sm:$0x1] %v1045
        %1066 = vst [vmem:[#allocation4 + $0x198] sm:$0x1] %v1046
        %1067 = vst [vmem:[#allocation4 + $0x1a0] sm:$0x1] %v1047
        %1068 = vst [vmem:[#allocation4 + $0x1a8] sm:$0x1] %v1048
        %1069 = vst [vmem:[#allocation4 + $0x1b0] sm:$0x1] %v1049
        %1070 = vst.msk [vmem:[#allocation4 + $0x1b8] sm:$0x1] %vm697, %v1043
        %v1071 = vld [vmem:[#allocation3] sm:$0xff]
        %v1072 = vld [vmem:[#allocation3 + $0x8] sm:$0xff]
        %v1073 = vld [vmem:[#allocation3 + $0x10] sm:$0xff]
        %v1074 = vld [vmem:[#allocation3 + $0x18] sm:$0xff]
        %v1075 = vld [vmem:[#allocation3 + $0x20] sm:$0xff]
        %v1076 = vld [vmem:[#allocation3 + $0x28] sm:$0xff]
        %v1077 = vld [vmem:[#allocation3 + $0x30] sm:$0xff]
        %v1085 = vrot.slane %v1071, 7
        %v1086 = vrot.slane %v1072, 7
        %v1087 = vrot.slane %v1073, 7
        %v1088 = vrot.slane %v1074, 7
        %v1089 = vrot.slane %v1075, 7
        %v1090 = vrot.slane %v1076, 7
        %v1091 = vrot.slane %v1077, 7
        %1092 = vrot.lane.b32.xlu0 %v1085, 71
        %v1093 = vpop.permute.xlu0 %1092
        %1094 = vrot.lane.b32.xlu0 %v1086, 71
        %v1095 = vpop.permute.xlu0 %1094
        %1096 = vrot.lane.b32.xlu0 %v1087, 71
        %v1097 = vpop.permute.xlu0 %1096
        %1098 = vrot.lane.b32.xlu0 %v1088, 71
        %v1099 = vpop.permute.xlu0 %1098
        %1100 = vrot.lane.b32.xlu0 %v1089, 71
        %v1101 = vpop.permute.xlu0 %1100
        %1102 = vrot.lane.b32.xlu0 %v1090, 71
        %v1103 = vpop.permute.xlu0 %1102
        %1104 = vrot.lane.b32.xlu0 %v1091, 71
        %v1105 = vpop.permute.xlu0 %1104
        %v1106 = vsel %vm298, %v1093, %v1095
        %v1107 = vsel %vm298, %v1095, %v1097
        %v1108 = vsel %vm298, %v1097, %v1099
        %v1109 = vsel %vm298, %v1099, %v1101
        %v1110 = vsel %vm298, %v1101, %v1103
        %v1111 = vsel %vm298, %v1103, %v1105
        %1119 = vst [vmem:[#allocation4 + $0x188] sm:$0xfe] %v1106
        %1120 = vst [vmem:[#allocation4 + $0x190] sm:$0xfe] %v1107
        %1121 = vst [vmem:[#allocation4 + $0x198] sm:$0xfe] %v1108
        %1122 = vst [vmem:[#allocation4 + $0x1a0] sm:$0xfe] %v1109
        %1123 = vst [vmem:[#allocation4 + $0x1a8] sm:$0xfe] %v1110
        %1124 = vst [vmem:[#allocation4 + $0x1b0] sm:$0xfe] %v1111
        %1125 = vst.msk [vmem:[#allocation4 + $0x1b8] sm:$0xfe] %vm689, %v1105
        %1126 = vst [vmem:[#allocation4 + $0x1c0] sm:$0x1] %v1106
        %1127 = vst [vmem:[#allocation4 + $0x1c8] sm:$0x1] %v1107
        %1128 = vst [vmem:[#allocation4 + $0x1d0] sm:$0x1] %v1108
        %1129 = vst [vmem:[#allocation4 + $0x1d8] sm:$0x1] %v1109
        %1130 = vst [vmem:[#allocation4 + $0x1e0] sm:$0x1] %v1110
        %1131 = vst [vmem:[#allocation4 + $0x1e8] sm:$0x1] %v1111
        %1132 = vst.msk [vmem:[#allocation4 + $0x1f0] sm:$0x1] %vm697, %v1105
        %v1133 = vld [vmem:[#allocation3] sm:$0xff]
        %v1134 = vld [vmem:[#allocation3 + $0x8] sm:$0xff]
        %v1135 = vld [vmem:[#allocation3 + $0x10] sm:$0xff]
        %v1136 = vld [vmem:[#allocation3 + $0x18] sm:$0xff]
        %v1137 = vld [vmem:[#allocation3 + $0x20] sm:$0xff]
        %v1138 = vld [vmem:[#allocation3 + $0x28] sm:$0xff]
        %v1139 = vld [vmem:[#allocation3 + $0x30] sm:$0xff]
        %v1147 = vrot.slane %v1133, 7
        %v1148 = vrot.slane %v1134, 7
        %v1149 = vrot.slane %v1135, 7
        %v1150 = vrot.slane %v1136, 7
        %v1151 = vrot.slane %v1137, 7
        %v1152 = vrot.slane %v1138, 7
        %v1153 = vrot.slane %v1139, 7
        %1154 = vrot.lane.b32.xlu0 %v1147, 70
        %v1155 = vpop.permute.xlu0 %1154
        %1156 = vrot.lane.b32.xlu0 %v1148, 70
        %v1157 = vpop.permute.xlu0 %1156
        %1158 = vrot.lane.b32.xlu0 %v1149, 70
        %v1159 = vpop.permute.xlu0 %1158
        %1160 = vrot.lane.b32.xlu0 %v1150, 70
        %v1161 = vpop.permute.xlu0 %1160
        %1162 = vrot.lane.b32.xlu0 %v1151, 70
        %v1163 = vpop.permute.xlu0 %1162
        %1164 = vrot.lane.b32.xlu0 %v1152, 70
        %v1165 = vpop.permute.xlu0 %1164
        %1166 = vrot.lane.b32.xlu0 %v1153, 70
        %v1167 = vpop.permute.xlu0 %1166
        %v1168 = vsel %vm311, %v1155, %v1157
        %v1169 = vsel %vm311, %v1157, %v1159
        %v1170 = vsel %vm311, %v1159, %v1161
        %v1171 = vsel %vm311, %v1161, %v1163
        %v1172 = vsel %vm311, %v1163, %v1165
        %v1173 = vsel %vm311, %v1165, %v1167
        %1181 = vst [vmem:[#allocation4 + $0x1c0] sm:$0xfe] %v1168
        %1182 = vst [vmem:[#allocation4 + $0x1c8] sm:$0xfe] %v1169
        %1183 = vst [vmem:[#allocation4 + $0x1d0] sm:$0xfe] %v1170
        %1184 = vst [vmem:[#allocation4 + $0x1d8] sm:$0xfe] %v1171
        %1185 = vst [vmem:[#allocation4 + $0x1e0] sm:$0xfe] %v1172
        %1186 = vst [vmem:[#allocation4 + $0x1e8] sm:$0xfe] %v1173
        %1187 = vst.msk [vmem:[#allocation4 + $0x1f0] sm:$0xfe] %vm689, %v1167
        %1188 = vst [vmem:[#allocation4 + $0x1f8] sm:$0x1] %v1168
        %1189 = vst [vmem:[#allocation4 + $0x200] sm:$0x1] %v1169
        %1190 = vst [vmem:[#allocation4 + $0x208] sm:$0x1] %v1170
        %1191 = vst [vmem:[#allocation4 + $0x210] sm:$0x1] %v1171
        %1192 = vst [vmem:[#allocation4 + $0x218] sm:$0x1] %v1172
        %1193 = vst [vmem:[#allocation4 + $0x220] sm:$0x1] %v1173
        %1194 = vst.msk [vmem:[#allocation4 + $0x228] sm:$0x1] %vm697, %v1167
        %v1195 = vld [vmem:[%s1] sm:$0xff]
        %v1196 = vld [vmem:[%s1 + $0x28] sm:$0x3]
        %v1197 = vld [vmem:[#allocation4] sm:$0xff]
        %v1198 = vld [vmem:[#allocation4 + $0x8] sm:$0xff]
        %v1199 = vld [vmem:[#allocation4 + $0x10] sm:$0xff]
        %v1200 = vld [vmem:[#allocation4 + $0x18] sm:$0xff]
        %v1201 = vld [vmem:[#allocation4 + $0x20] sm:$0xff]
        %v1202 = vld [vmem:[#allocation4 + $0x28] sm:$0xff]
        %v1203 = vld [vmem:[#allocation4 + $0x30] sm:$0xff]
        %v1204 = vld [vmem:[#allocation4 + $0x38] sm:$0xff]
        %v1205 = vld [vmem:[#allocation4 + $0x40] sm:$0xff]
        %v1206 = vld [vmem:[#allocation4 + $0x48] sm:$0xff]
        %v1207 = vld [vmem:[#allocation4 + $0x50] sm:$0xff]
        %v1208 = vld [vmem:[#allocation4 + $0x58] sm:$0xff]
        %v1209 = vld [vmem:[#allocation4 + $0x60] sm:$0xff]
        %v1210 = vld [vmem:[#allocation4 + $0x68] sm:$0xff]
        %v1211 = vld [vmem:[#allocation4 + $0x70] sm:$0xff]
        %v1212 = vld [vmem:[#allocation4 + $0x78] sm:$0xff]
        %v1213 = vld [vmem:[#allocation4 + $0x80] sm:$0xff]
        %v1214 = vld [vmem:[#allocation4 + $0x88] sm:$0xff]
        %v1215 = vld [vmem:[#allocation4 + $0x90] sm:$0xff]
        %v1216 = vld [vmem:[#allocation4 + $0x98] sm:$0xff]
        %v1217 = vld [vmem:[#allocation4 + $0xa0] sm:$0xff]
        %v1218 = vld [vmem:[#allocation4 + $0xa8] sm:$0xff]
        %v1219 = vld [vmem:[#allocation4 + $0xb0] sm:$0xff]
        %v1220 = vld [vmem:[#allocation4 + $0xb8] sm:$0xff]
        %v1221 = vld [vmem:[#allocation4 + $0xc0] sm:$0xff]
        %v1222 = vld [vmem:[#allocation4 + $0xc8] sm:$0xff]
        %v1223 = vld [vmem:[#allocation4 + $0xd0] sm:$0xff]
        %v1224 = vld [vmem:[#allocation4 + $0xd8] sm:$0xff]
        %v1225 = vld [vmem:[#allocation4 + $0xe0] sm:$0xff]
        %v1226 = vld [vmem:[#allocation4 + $0xe8] sm:$0xff]
        %v1227 = vld [vmem:[#allocation4 + $0xf0] sm:$0xff]
        %v1228 = vld [vmem:[#allocation4 + $0xf8] sm:$0xff]
        %v1229 = vld [vmem:[#allocation4 + $0x100] sm:$0xff]
        %v1230 = vld [vmem:[#allocation4 + $0x108] sm:$0xff]
        %v1231 = vld [vmem:[#allocation4 + $0x110] sm:$0xff]
        %v1232 = vld [vmem:[#allocation4 + $0x118] sm:$0xff]
        %v1233 = vld [vmem:[#allocation4 + $0x120] sm:$0xff]
        %v1234 = vld [vmem:[#allocation4 + $0x128] sm:$0xff]
        %v1235 = vld [vmem:[#allocation4 + $0x130] sm:$0xff]
        %v1236 = vld [vmem:[#allocation4 + $0x138] sm:$0xff]
        %v1237 = vld [vmem:[#allocation4 + $0x140] sm:$0xff]
        %v1238 = vld [vmem:[#allocation4 + $0x148] sm:$0xff]
        %v1239 = vld [vmem:[#allocation4 + $0x150] sm:$0xff]
        %v1240 = vld [vmem:[#allocation4 + $0x158] sm:$0xff]
        %v1241 = vld [vmem:[#allocation4 + $0x160] sm:$0xff]
        %v1242 = vld [vmem:[#allocation4 + $0x168] sm:$0xff]
        %v1243 = vld [vmem:[#allocation4 + $0x170] sm:$0xff]
        %v1244 = vld [vmem:[#allocation4 + $0x178] sm:$0xff]
        %v1245 = vld [vmem:[#allocation4 + $0x180] sm:$0xff]
        %v1246 = vld [vmem:[#allocation4 + $0x188] sm:$0xff]
        %v1247 = vld [vmem:[#allocation4 + $0x190] sm:$0xff]
        %v1248 = vld [vmem:[#allocation4 + $0x198] sm:$0xff]
        %v1249 = vld [vmem:[#allocation4 + $0x1a0] sm:$0xff]
        %v1250 = vld [vmem:[#allocation4 + $0x1a8] sm:$0xff]
        %v1251 = vld [vmem:[#allocation4 + $0x1b0] sm:$0xff]
        %v1252 = vld [vmem:[#allocation4 + $0x1b8] sm:$0xff]
        %v1253 = vld [vmem:[#allocation4 + $0x1c0] sm:$0xff]
        %v1254 = vld [vmem:[#allocation4 + $0x1c8] sm:$0xff]
        %v1255 = vld [vmem:[#allocation4 + $0x1d0] sm:$0xff]
        %v1256 = vld [vmem:[#allocation4 + $0x1d8] sm:$0xff]
        %v1257 = vld [vmem:[#allocation4 + $0x1e0] sm:$0xff]
        %v1258 = vld [vmem:[#allocation4 + $0x1e8] sm:$0xff]
        %v1259 = vld [vmem:[#allocation4 + $0x1f0] sm:$0xff]
        %v1260 = vld [vmem:[#allocation4 + $0x1f8] sm:$0x1]
        %v1261 = vld [vmem:[#allocation4 + $0x200] sm:$0x1]
        %v1262 = vld [vmem:[#allocation4 + $0x208] sm:$0x1]
        %v1263 = vld [vmem:[#allocation4 + $0x210] sm:$0x1]
        %v1264 = vld [vmem:[#allocation4 + $0x218] sm:$0x1]
        %v1265 = vld [vmem:[#allocation4 + $0x220] sm:$0x1]
        %v1266 = vld [vmem:[#allocation4 + $0x228] sm:$0x1]
        %1269 = vrot.lane.b32.xlu0 %v1195, 118
        %v1270 = vpop.permute.xlu0 %1269
        %1271 = vrot.lane.b32.xlu0 %v1196, 118
        %v1272 = vpop.permute.xlu0 %1271
        %vm1273 = vcmask 596992
        %v1274 = vsel %vm1273, %v1270, 0
        %v1276 = vsel %vm1273, %v1272, 0
        %vm1278 = vcmask 1040384
        %v1280 = vsel %vm1278, %v1260, 0
        %v1283 = vsel %vm1278, %v1261, 0
        %v1286 = vsel %vm1278, %v1262, 0
        %v1289 = vsel %vm1278, %v1263, 0
        %v1292 = vsel %vm1278, %v1264, 0
        %v1295 = vsel %vm1278, %v1265, 0
        %v1298 = vsel %vm1278, %v1266, 0
        %1300 = vmatprep.subr.mxu0 0.0
        %1301 = vmatpush1.msra.mxu0 0.0
        %1302 = vmatprep.subr.mxu0 0.0
        %1303 = vmatpush1.msra.mxu0 0.0
        %1304 = vmatprep.subr.mxu0 0.0
        %1305 = vmatpush1.msra.mxu0 0.0
        %1306 = vmatprep.subr.mxu0 0.0
        %1307 = vmatpush1.msra.mxu0 0.0
        %1308 = vmatprep.subr.mxu0 0.0
        %1309 = vmatpush1.msra.mxu0 0.0
        %1310 = vmatprep.subr.mxu0 0.0
        %1311 = vmatpush1.msra.mxu0 0.0
        %1312 = vmatprep.subr.mxu0 %v1283
        %1313 = vmatpush1.msra.mxu0 %v1280
        %1314 = vmatprep.subr.mxu0 %v1254
        %1315 = vmatpush1.msra.mxu0 %v1253
        %1316 = vmatprep.subr.mxu0 %v1247
        %1317 = vmatpush1.msra.mxu0 %v1246
        %1318 = vmatprep.subr.mxu0 %v1240
        %1319 = vmatpush1.msra.mxu0 %v1239
        %1320 = vmatprep.subr.mxu0 %v1233
        %1321 = vmatpush1.msra.mxu0 %v1232
        %1322 = vmatprep.subr.mxu0 %v1226
        %1323 = vmatpush1.msra.mxu0 %v1225
        %1324 = vmatprep.subr.mxu0 %v1219
        %1325 = vmatpush1.msra.mxu0 %v1218
        %1326 = vmatprep.subr.mxu0 %v1212
        %1327 = vmatpush1.msra.mxu0 %v1211
        %1328 = vmatprep.subr.mxu0 %v1205
        %1329 = vmatpush1.msra.mxu0 %v1204
        %1330 = vmatprep.subr.mxu0 %v1198
        %1331 = vmatpush1.msra.mxu0 %v1197
        %1332 = vmatprep.subr.mxu0 0.0
        %1333 = vmatpush2.msra.mxu0 0.0
        %1334 = vmatprep.subr.mxu0 0.0
        %1335 = vmatpush2.msra.mxu0 0.0
        %1336 = vmatprep.subr.mxu0 0.0
        %1337 = vmatpush2.msra.mxu0 0.0
        %1338 = vmatprep.subr.mxu0 0.0
        %1339 = vmatpush2.msra.mxu0 0.0
        %1340 = vmatprep.subr.mxu0 0.0
        %1341 = vmatpush2.msra.mxu0 0.0
        %1342 = vmatprep.subr.mxu0 0.0
        %1343 = vmatpush2.msra.mxu0 0.0
        %1344 = vmatprep.subr.mxu0 0.0
        %1345 = vmatpush2.msra.mxu0 0.0
        %1346 = vmatprep.subr.mxu0 0.0
        %1347 = vmatpush2.msra.mxu0 0.0
        %1348 = vmatprep.subr.mxu0 0.0
        %1349 = vmatpush2.msra.mxu0 0.0
        %1350 = vmatprep.subr.mxu0 0.0
        %1351 = vmatpush2.msra.mxu0 0.0
        %1352 = vmatprep.subr.mxu0 0.0
        %1353 = vmatpush2.msra.mxu0 0.0
        %1354 = vmatprep.subr.mxu0 0.0
        %1355 = vmatpush2.msra.mxu0 0.0
        %1356 = vmatprep.subr.mxu0 0.0
        %1357 = vmatpush2.msra.mxu0 0.0
        %1358 = vmatprep.subr.mxu0 0.0
        %1359 = vmatpush2.msra.mxu0 0.0
        %1360 = vmatprep.subr.mxu0 0.0
        %1361 = vmatpush2.msra.mxu0 0.0
        %1362 = vmatprep.subr.mxu0 0.0
        %1363 = vmatpush2.msra.mxu0 0.0
        %1364 = vmatprep.mubr.f32.mxu0 0.0
        %1365 = vmatmul.mubr.f32.gmra.mxu0 %v1274
        %v1366 = vpop.f32.mrf.mxu0
        %v1367 = vadd.f32 0.0, %v1366
        %v1368 = vpop.f32.mrf.mxu0
        %v1369 = vadd.f32 0.0, %v1368
        %1370 = vmatprep.mubr.f32.mxu0 0.0
        %1371 = vmatmul.mubr.f32.gmra.mxu0 %v1276
        %v1372 = vpop.f32.mrf.mxu0
        %v1373 = vadd.f32 0.0, %v1372
        %v1374 = vpop.f32.mrf.mxu0
        %v1375 = vadd.f32 0.0, %v1374
        %1376 = vdwg.mxu0
        %1377 = vmatprep.subr.mxu0 0.0
        %1378 = vmatpush1.msra.mxu0 0.0
        %1379 = vmatprep.subr.mxu0 0.0
        %1380 = vmatpush1.msra.mxu0 0.0
        %1381 = vmatprep.subr.mxu0 0.0
        %1382 = vmatpush1.msra.mxu0 0.0
        %1383 = vmatprep.subr.mxu0 0.0
        %1384 = vmatpush1.msra.mxu0 0.0
        %1385 = vmatprep.subr.mxu0 0.0
        %1386 = vmatpush1.msra.mxu0 0.0
        %1387 = vmatprep.subr.mxu0 0.0
        %1388 = vmatpush1.msra.mxu0 0.0
        %1389 = vmatprep.subr.mxu0 %v1289
        %1390 = vmatpush1.msra.mxu0 %v1286
        %1391 = vmatprep.subr.mxu0 %v1256
        %1392 = vmatpush1.msra.mxu0 %v1255
        %1393 = vmatprep.subr.mxu0 %v1249
        %1394 = vmatpush1.msra.mxu0 %v1248
        %1395 = vmatprep.subr.mxu0 %v1242
        %1396 = vmatpush1.msra.mxu0 %v1241
        %1397 = vmatprep.subr.mxu0 %v1235
        %1398 = vmatpush1.msra.mxu0 %v1234
        %1399 = vmatprep.subr.mxu0 %v1228
        %1400 = vmatpush1.msra.mxu0 %v1227
        %1401 = vmatprep.subr.mxu0 %v1221
        %1402 = vmatpush1.msra.mxu0 %v1220
        %1403 = vmatprep.subr.mxu0 %v1214
        %1404 = vmatpush1.msra.mxu0 %v1213
        %1405 = vmatprep.subr.mxu0 %v1207
        %1406 = vmatpush1.msra.mxu0 %v1206
        %1407 = vmatprep.subr.mxu0 %v1200
        %1408 = vmatpush1.msra.mxu0 %v1199
        %1409 = vmatprep.subr.mxu0 0.0
        %1410 = vmatpush2.msra.mxu0 0.0
        %1411 = vmatprep.subr.mxu0 0.0
        %1412 = vmatpush2.msra.mxu0 0.0
        %1413 = vmatprep.subr.mxu0 0.0
        %1414 = vmatpush2.msra.mxu0 0.0
        %1415 = vmatprep.subr.mxu0 0.0
        %1416 = vmatpush2.msra.mxu0 0.0
        %1417 = vmatprep.subr.mxu0 0.0
        %1418 = vmatpush2.msra.mxu0 0.0
        %1419 = vmatprep.subr.mxu0 0.0
        %1420 = vmatpush2.msra.mxu0 0.0
        %1421 = vmatprep.subr.mxu0 0.0
        %1422 = vmatpush2.msra.mxu0 0.0
        %1423 = vmatprep.subr.mxu0 0.0
        %1424 = vmatpush2.msra.mxu0 0.0
        %1425 = vmatprep.subr.mxu0 0.0
        %1426 = vmatpush2.msra.mxu0 0.0
        %1427 = vmatprep.subr.mxu0 0.0
        %1428 = vmatpush2.msra.mxu0 0.0
        %1429 = vmatprep.subr.mxu0 0.0
        %1430 = vmatpush2.msra.mxu0 0.0
        %1431 = vmatprep.subr.mxu0 0.0
        %1432 = vmatpush2.msra.mxu0 0.0
        %1433 = vmatprep.subr.mxu0 0.0
        %1434 = vmatpush2.msra.mxu0 0.0
        %1435 = vmatprep.subr.mxu0 0.0
        %1436 = vmatpush2.msra.mxu0 0.0
        %1437 = vmatprep.subr.mxu0 0.0
        %1438 = vmatpush2.msra.mxu0 0.0
        %1439 = vmatprep.subr.mxu0 0.0
        %1440 = vmatpush2.msra.mxu0 0.0
        %1441 = vmatprep.mubr.f32.mxu0 0.0
        %1442 = vmatmul.mubr.f32.gmra.mxu0 %v1274
        %v1443 = vpop.f32.mrf.mxu0
        %v1444 = vadd.f32 0.0, %v1443
        %v1445 = vpop.f32.mrf.mxu0
        %v1446 = vadd.f32 0.0, %v1445
        %1447 = vmatprep.mubr.f32.mxu0 0.0
        %1448 = vmatmul.mubr.f32.gmra.mxu0 %v1276
        %v1449 = vpop.f32.mrf.mxu0
        %v1450 = vadd.f32 0.0, %v1449
        %v1451 = vpop.f32.mrf.mxu0
        %v1452 = vadd.f32 0.0, %v1451
        %1453 = vdwg.mxu0
        %1454 = vmatprep.subr.mxu0 0.0
        %1455 = vmatpush1.msra.mxu0 0.0
        %1456 = vmatprep.subr.mxu0 0.0
        %1457 = vmatpush1.msra.mxu0 0.0
        %1458 = vmatprep.subr.mxu0 0.0
        %1459 = vmatpush1.msra.mxu0 0.0
        %1460 = vmatprep.subr.mxu0 0.0
        %1461 = vmatpush1.msra.mxu0 0.0
        %1462 = vmatprep.subr.mxu0 0.0
        %1463 = vmatpush1.msra.mxu0 0.0
        %1464 = vmatprep.subr.mxu0 0.0
        %1465 = vmatpush1.msra.mxu0 0.0
        %1466 = vmatprep.subr.mxu0 %v1295
        %1467 = vmatpush1.msra.mxu0 %v1292
        %1468 = vmatprep.subr.mxu0 %v1258
        %1469 = vmatpush1.msra.mxu0 %v1257
        %1470 = vmatprep.subr.mxu0 %v1251
        %1471 = vmatpush1.msra.mxu0 %v1250
        %1472 = vmatprep.subr.mxu0 %v1244
        %1473 = vmatpush1.msra.mxu0 %v1243
        %1474 = vmatprep.subr.mxu0 %v1237
        %1475 = vmatpush1.msra.mxu0 %v1236
        %1476 = vmatprep.subr.mxu0 %v1230
        %1477 = vmatpush1.msra.mxu0 %v1229
        %1478 = vmatprep.subr.mxu0 %v1223
        %1479 = vmatpush1.msra.mxu0 %v1222
        %1480 = vmatprep.subr.mxu0 %v1216
        %1481 = vmatpush1.msra.mxu0 %v1215
        %1482 = vmatprep.subr.mxu0 %v1209
        %1483 = vmatpush1.msra.mxu0 %v1208
        %1484 = vmatprep.subr.mxu0 %v1202
        %1485 = vmatpush1.msra.mxu0 %v1201
        %1486 = vmatprep.subr.mxu0 0.0
        %1487 = vmatpush2.msra.mxu0 0.0
        %1488 = vmatprep.subr.mxu0 0.0
        %1489 = vmatpush2.msra.mxu0 0.0
        %1490 = vmatprep.subr.mxu0 0.0
        %1491 = vmatpush2.msra.mxu0 0.0
        %1492 = vmatprep.subr.mxu0 0.0
        %1493 = vmatpush2.msra.mxu0 0.0
        %1494 = vmatprep.subr.mxu0 0.0
        %1495 = vmatpush2.msra.mxu0 0.0
        %1496 = vmatprep.subr.mxu0 0.0
        %1497 = vmatpush2.msra.mxu0 0.0
        %1498 = vmatprep.subr.mxu0 0.0
        %1499 = vmatpush2.msra.mxu0 0.0
        %1500 = vmatprep.subr.mxu0 0.0
        %1501 = vmatpush2.msra.mxu0 0.0
        %1502 = vmatprep.subr.mxu0 0.0
        %1503 = vmatpush2.msra.mxu0 0.0
        %1504 = vmatprep.subr.mxu0 0.0
        %1505 = vmatpush2.msra.mxu0 0.0
        %1506 = vmatprep.subr.mxu0 0.0
        %1507 = vmatpush2.msra.mxu0 0.0
        %1508 = vmatprep.subr.mxu0 0.0
        %1509 = vmatpush2.msra.mxu0 0.0
        %1510 = vmatprep.subr.mxu0 0.0
        %1511 = vmatpush2.msra.mxu0 0.0
        %1512 = vmatprep.subr.mxu0 0.0
        %1513 = vmatpush2.msra.mxu0 0.0
        %1514 = vmatprep.subr.mxu0 0.0
        %1515 = vmatpush2.msra.mxu0 0.0
        %1516 = vmatprep.subr.mxu0 0.0
        %1517 = vmatpush2.msra.mxu0 0.0
        %1518 = vmatprep.mubr.f32.mxu0 0.0
        %1519 = vmatmul.mubr.f32.gmra.mxu0 %v1274
        %v1520 = vpop.f32.mrf.mxu0
        %v1521 = vadd.f32 0.0, %v1520
        %v1522 = vpop.f32.mrf.mxu0
        %v1523 = vadd.f32 0.0, %v1522
        %1524 = vmatprep.mubr.f32.mxu0 0.0
        %1525 = vmatmul.mubr.f32.gmra.mxu0 %v1276
        %v1526 = vpop.f32.mrf.mxu0
        %v1527 = vadd.f32 0.0, %v1526
        %v1528 = vpop.f32.mrf.mxu0
        %v1529 = vadd.f32 0.0, %v1528
        %1530 = vdwg.mxu0
        %1531 = vmatprep.subr.mxu0 0.0
        %1532 = vmatpush1.msra.mxu0 0.0
        %1533 = vmatprep.subr.mxu0 0.0
        %1534 = vmatpush1.msra.mxu0 0.0
        %1535 = vmatprep.subr.mxu0 0.0
        %1536 = vmatpush1.msra.mxu0 0.0
        %1537 = vmatprep.subr.mxu0 0.0
        %1538 = vmatpush1.msra.mxu0 0.0
        %1539 = vmatprep.subr.mxu0 0.0
        %1540 = vmatpush1.msra.mxu0 0.0
        %1541 = vmatprep.subr.mxu0 0.0
        %1542 = vmatpush1.msra.mxu0 0.0
        %1543 = vmatprep.subr.mxu0 0.0
        %1544 = vmatpush1.msra.mxu0 %v1298
        %1545 = vmatprep.subr.mxu0 0.0
        %1546 = vmatpush1.msra.mxu0 %v1259
        %1547 = vmatprep.subr.mxu0 0.0
        %1548 = vmatpush1.msra.mxu0 %v1252
        %1549 = vmatprep.subr.mxu0 0.0
        %1550 = vmatpush1.msra.mxu0 %v1245
        %1551 = vmatprep.subr.mxu0 0.0
        %1552 = vmatpush1.msra.mxu0 %v1238
        %1553 = vmatprep.subr.mxu0 0.0
        %1554 = vmatpush1.msra.mxu0 %v1231
        %1555 = vmatprep.subr.mxu0 0.0
        %1556 = vmatpush1.msra.mxu0 %v1224
        %1557 = vmatprep.subr.mxu0 0.0
        %1558 = vmatpush1.msra.mxu0 %v1217
        %1559 = vmatprep.subr.mxu0 0.0
        %1560 = vmatpush1.msra.mxu0 %v1210
        %1561 = vmatprep.subr.mxu0 0.0
        %1562 = vmatpush1.msra.mxu0 %v1203
        %1563 = vmatprep.subr.mxu0 0.0
        %1564 = vmatpush2.msra.mxu0 0.0
        %1565 = vmatprep.subr.mxu0 0.0
        %1566 = vmatpush2.msra.mxu0 0.0
        %1567 = vmatprep.subr.mxu0 0.0
        %1568 = vmatpush2.msra.mxu0 0.0
        %1569 = vmatprep.subr.mxu0 0.0
        %1570 = vmatpush2.msra.mxu0 0.0
        %1571 = vmatprep.subr.mxu0 0.0
        %1572 = vmatpush2.msra.mxu0 0.0
        %1573 = vmatprep.subr.mxu0 0.0
        %1574 = vmatpush2.msra.mxu0 0.0
        %1575 = vmatprep.subr.mxu0 0.0
        %1576 = vmatpush2.msra.mxu0 0.0
        %1577 = vmatprep.subr.mxu0 0.0
        %1578 = vmatpush2.msra.mxu0 0.0
        %1579 = vmatprep.subr.mxu0 0.0
        %1580 = vmatpush2.msra.mxu0 0.0
        %1581 = vmatprep.subr.mxu0 0.0
        %1582 = vmatpush2.msra.mxu0 0.0
        %1583 = vmatprep.subr.mxu0 0.0
        %1584 = vmatpush2.msra.mxu0 0.0
        %1585 = vmatprep.subr.mxu0 0.0
        %1586 = vmatpush2.msra.mxu0 0.0
        %1587 = vmatprep.subr.mxu0 0.0
        %1588 = vmatpush2.msra.mxu0 0.0
        %1589 = vmatprep.subr.mxu0 0.0
        %1590 = vmatpush2.msra.mxu0 0.0
        %1591 = vmatprep.subr.mxu0 0.0
        %1592 = vmatpush2.msra.mxu0 0.0
        %1593 = vmatprep.subr.mxu0 0.0
        %1594 = vmatpush2.msra.mxu0 0.0
        %1595 = vmatprep.mubr.f32.mxu0 0.0
        %1596 = vmatmul.mubr.f32.gmra.mxu0 %v1274
        %v1597 = vpop.f32.mrf.mxu0
        %v1598 = vadd.f32 0.0, %v1597
        %v1599 = vpop.f32.mrf.mxu0
        %1600 = vmatprep.mubr.f32.mxu0 0.0
        %1601 = vmatmul.mubr.f32.gmra.mxu0 %v1276
        %v1602 = vpop.f32.mrf.mxu0
        %v1603 = vadd.f32 0.0, %v1602
        %v1604 = vpop.f32.mrf.mxu0
        %1605 = vdwg.mxu0
        %v1606 = vmax.f32 %v1367, 0.0
        %v1607 = vmax.f32 %v1369, 0.0
        %v1608 = vmax.f32 %v1444, 0.0
        %v1609 = vmax.f32 %v1446, 0.0
        %v1610 = vmax.f32 %v1521, 0.0
        %v1611 = vmax.f32 %v1523, 0.0
        %v1612 = vmax.f32 %v1598, 0.0
        %v1613 = vmax.f32 %v1373, 0.0
        %v1614 = vmax.f32 %v1375, 0.0
        %v1615 = vmax.f32 %v1450, 0.0
        %v1616 = vmax.f32 %v1452, 0.0
        %v1617 = vmax.f32 %v1527, 0.0
        %v1618 = vmax.f32 %v1529, 0.0
        %v1619 = vmax.f32 %v1603, 0.0
        %1620 = vst [vmem:[#allocation2] sm:$0xff] %v1606
        %1621 = vst [vmem:[#allocation2 + $0x8] sm:$0xff] %v1607
        %1622 = vst [vmem:[#allocation2 + $0x10] sm:$0xff] %v1608
        %1623 = vst [vmem:[#allocation2 + $0x18] sm:$0xff] %v1609
        %1624 = vst [vmem:[#allocation2 + $0x20] sm:$0xff] %v1610
        %1625 = vst [vmem:[#allocation2 + $0x28] sm:$0xff] %v1611
        %1626 = vst.msk [vmem:[#allocation2 + $0x30] sm:$0xff] %vm172, %v1612
        %1627 = vst [vmem:[#allocation2 + $0x40] sm:$0x3] %v1613
        %1628 = vst [vmem:[#allocation2 + $0x48] sm:$0x3] %v1614
        %1629 = vst [vmem:[#allocation2 + $0x50] sm:$0x3] %v1615
        %1630 = vst [vmem:[#allocation2 + $0x58] sm:$0x3] %v1616
        %1631 = vst [vmem:[#allocation2 + $0x60] sm:$0x3] %v1617
        %1632 = vst [vmem:[#allocation2 + $0x68] sm:$0x3] %v1618
        %vm1633 = vcmask 123904
        %1634 = vst.msk [vmem:[#allocation2 + $0x70] sm:$0x3] %vm1633, %v1619
        %v1635 = vld [vmem:[%s1] sm:$0xff]
        %v1636 = vld [vmem:[%s1 + $0x28] sm:$0x3]
        %v1637 = vld [vmem:[#allocation2] sm:$0xff]
        %v1638 = vld [vmem:[#allocation2 + $0x8] sm:$0xff]
        %v1639 = vld [vmem:[#allocation2 + $0x10] sm:$0xff]
        %v1640 = vld [vmem:[#allocation2 + $0x18] sm:$0xff]
        %v1641 = vld [vmem:[#allocation2 + $0x20] sm:$0xff]
        %v1642 = vld [vmem:[#allocation2 + $0x28] sm:$0xff]
        %v1643 = vld [vmem:[#allocation2 + $0x30] sm:$0xff]
        %v1644 = vld [vmem:[#allocation2 + $0x40] sm:$0x3]
        %v1645 = vld [vmem:[#allocation2 + $0x48] sm:$0x3]
        %v1646 = vld [vmem:[#allocation2 + $0x50] sm:$0x3]
        %v1647 = vld [vmem:[#allocation2 + $0x58] sm:$0x3]
        %v1648 = vld [vmem:[#allocation2 + $0x60] sm:$0x3]
        %v1649 = vld [vmem:[#allocation2 + $0x68] sm:$0x3]
        %v1650 = vld [vmem:[#allocation2 + $0x70] sm:$0x3]
        %1653 = vrot.lane.b32.xlu0 %v1635, 44
        %v1654 = vpop.permute.xlu0 %1653
        %1655 = vrot.lane.b32.xlu0 %v1636, 44
        %v1656 = vpop.permute.xlu0 %1655
        %v1657 = vsel %vm332, %v1654, 0
        %v1659 = vsel %vm332, %v1656, 0
        %v1662 = vsel %vm336, %v1644, 0
        %v1665 = vsel %vm336, %v1645, 0
        %v1668 = vsel %vm336, %v1646, 0
        %v1671 = vsel %vm336, %v1647, 0
        %v1674 = vsel %vm336, %v1648, 0
        %v1677 = vsel %vm336, %v1649, 0
        %v1680 = vsel %vm336, %v1650, 0
        %1682 = vmatprep.subr.mxu0 0.0
        %1683 = vmatpush1.msra.mxu0 0.0
        %1684 = vmatprep.subr.mxu0 0.0
        %1685 = vmatpush1.msra.mxu0 0.0
        %1686 = vmatprep.subr.mxu0 0.0
        %1687 = vmatpush1.msra.mxu0 0.0
        %1688 = vmatprep.subr.mxu0 0.0
        %1689 = vmatpush1.msra.mxu0 0.0
        %1690 = vmatprep.subr.mxu0 0.0
        %1691 = vmatpush1.msra.mxu0 0.0
        %1692 = vmatprep.subr.mxu0 0.0
        %1693 = vmatpush1.msra.mxu0 0.0
        %1694 = vmatprep.subr.mxu0 0.0
        %1695 = vmatpush1.msra.mxu0 0.0
        %1696 = vmatprep.subr.mxu0 0.0
        %1697 = vmatpush1.msra.mxu0 0.0
        %1698 = vmatprep.subr.mxu0 0.0
        %1699 = vmatpush1.msra.mxu0 0.0
        %1700 = vmatprep.subr.mxu0 0.0
        %1701 = vmatpush1.msra.mxu0 0.0
        %1702 = vmatprep.subr.mxu0 0.0
        %1703 = vmatpush1.msra.mxu0 0.0
        %1704 = vmatprep.subr.mxu0 0.0
        %1705 = vmatpush1.msra.mxu0 0.0
        %1706 = vmatprep.subr.mxu0 0.0
        %1707 = vmatpush1.msra.mxu0 0.0
        %1708 = vmatprep.subr.mxu0 0.0
        %1709 = vmatpush1.msra.mxu0 0.0
        %1710 = vmatprep.subr.mxu0 %v1665
        %1711 = vmatpush1.msra.mxu0 %v1662
        %1712 = vmatprep.subr.mxu0 %v1638
        %1713 = vmatpush1.msra.mxu0 %v1637
        %1714 = vmatprep.subr.mxu0 0.0
        %1715 = vmatpush2.msra.mxu0 0.0
        %1716 = vmatprep.subr.mxu0 0.0
        %1717 = vmatpush2.msra.mxu0 0.0
        %1718 = vmatprep.subr.mxu0 0.0
        %1719 = vmatpush2.msra.mxu0 0.0
        %1720 = vmatprep.subr.mxu0 0.0
        %1721 = vmatpush2.msra.mxu0 0.0
        %1722 = vmatprep.subr.mxu0 0.0
        %1723 = vmatpush2.msra.mxu0 0.0
        %1724 = vmatprep.subr.mxu0 0.0
        %1725 = vmatpush2.msra.mxu0 0.0
        %1726 = vmatprep.subr.mxu0 0.0
        %1727 = vmatpush2.msra.mxu0 0.0
        %1728 = vmatprep.subr.mxu0 0.0
        %1729 = vmatpush2.msra.mxu0 0.0
        %1730 = vmatprep.subr.mxu0 0.0
        %1731 = vmatpush2.msra.mxu0 0.0
        %1732 = vmatprep.subr.mxu0 0.0
        %1733 = vmatpush2.msra.mxu0 0.0
        %1734 = vmatprep.subr.mxu0 0.0
        %1735 = vmatpush2.msra.mxu0 0.0
        %1736 = vmatprep.subr.mxu0 0.0
        %1737 = vmatpush2.msra.mxu0 0.0
        %1738 = vmatprep.subr.mxu0 0.0
        %1739 = vmatpush2.msra.mxu0 0.0
        %1740 = vmatprep.subr.mxu0 0.0
        %1741 = vmatpush2.msra.mxu0 0.0
        %1742 = vmatprep.subr.mxu0 0.0
        %1743 = vmatpush2.msra.mxu0 0.0
        %1744 = vmatprep.subr.mxu0 0.0
        %1745 = vmatpush2.msra.mxu0 0.0
        %1746 = vmatprep.mubr.f32.mxu0 0.0
        %1747 = vmatmul.mubr.f32.gmra.mxu0 %v1657
        %v1748 = vpop.f32.mrf.mxu0
        %v1749 = vadd.f32 0.0, %v1748
        %v1750 = vpop.f32.mrf.mxu0
        %v1751 = vadd.f32 0.0, %v1750
        %1752 = vmatprep.mubr.f32.mxu0 0.0
        %1753 = vmatmul.mubr.f32.gmra.mxu0 %v1659
        %v1754 = vpop.f32.mrf.mxu0
        %v1755 = vadd.f32 0.0, %v1754
        %v1756 = vpop.f32.mrf.mxu0
        %v1757 = vadd.f32 0.0, %v1756
        %1758 = vdwg.mxu0
        %1759 = vmatprep.subr.mxu0 0.0
        %1760 = vmatpush1.msra.mxu0 0.0
        %1761 = vmatprep.subr.mxu0 0.0
        %1762 = vmatpush1.msra.mxu0 0.0
        %1763 = vmatprep.subr.mxu0 0.0
        %1764 = vmatpush1.msra.mxu0 0.0
        %1765 = vmatprep.subr.mxu0 0.0
        %1766 = vmatpush1.msra.mxu0 0.0
        %1767 = vmatprep.subr.mxu0 0.0
        %1768 = vmatpush1.msra.mxu0 0.0
        %1769 = vmatprep.subr.mxu0 0.0
        %1770 = vmatpush1.msra.mxu0 0.0
        %1771 = vmatprep.subr.mxu0 0.0
        %1772 = vmatpush1.msra.mxu0 0.0
        %1773 = vmatprep.subr.mxu0 0.0
        %1774 = vmatpush1.msra.mxu0 0.0
        %1775 = vmatprep.subr.mxu0 0.0
        %1776 = vmatpush1.msra.mxu0 0.0
        %1777 = vmatprep.subr.mxu0 0.0
        %1778 = vmatpush1.msra.mxu0 0.0
        %1779 = vmatprep.subr.mxu0 0.0
        %1780 = vmatpush1.msra.mxu0 0.0
        %1781 = vmatprep.subr.mxu0 0.0
        %1782 = vmatpush1.msra.mxu0 0.0
        %1783 = vmatprep.subr.mxu0 0.0
        %1784 = vmatpush1.msra.mxu0 0.0
        %1785 = vmatprep.subr.mxu0 0.0
        %1786 = vmatpush1.msra.mxu0 0.0
        %1787 = vmatprep.subr.mxu0 %v1671
        %1788 = vmatpush1.msra.mxu0 %v1668
        %1789 = vmatprep.subr.mxu0 %v1640
        %1790 = vmatpush1.msra.mxu0 %v1639
        %1791 = vmatprep.subr.mxu0 0.0
        %1792 = vmatpush2.msra.mxu0 0.0
        %1793 = vmatprep.subr.mxu0 0.0
        %1794 = vmatpush2.msra.mxu0 0.0
        %1795 = vmatprep.subr.mxu0 0.0
        %1796 = vmatpush2.msra.mxu0 0.0
        %1797 = vmatprep.subr.mxu0 0.0
        %1798 = vmatpush2.msra.mxu0 0.0
        %1799 = vmatprep.subr.mxu0 0.0
        %1800 = vmatpush2.msra.mxu0 0.0
        %1801 = vmatprep.subr.mxu0 0.0
        %1802 = vmatpush2.msra.mxu0 0.0
        %1803 = vmatprep.subr.mxu0 0.0
        %1804 = vmatpush2.msra.mxu0 0.0
        %1805 = vmatprep.subr.mxu0 0.0
        %1806 = vmatpush2.msra.mxu0 0.0
        %1807 = vmatprep.subr.mxu0 0.0
        %1808 = vmatpush2.msra.mxu0 0.0
        %1809 = vmatprep.subr.mxu0 0.0
        %1810 = vmatpush2.msra.mxu0 0.0
        %1811 = vmatprep.subr.mxu0 0.0
        %1812 = vmatpush2.msra.mxu0 0.0
        %1813 = vmatprep.subr.mxu0 0.0
        %1814 = vmatpush2.msra.mxu0 0.0
        %1815 = vmatprep.subr.mxu0 0.0
        %1816 = vmatpush2.msra.mxu0 0.0
        %1817 = vmatprep.subr.mxu0 0.0
        %1818 = vmatpush2.msra.mxu0 0.0
        %1819 = vmatprep.subr.mxu0 0.0
        %1820 = vmatpush2.msra.mxu0 0.0
        %1821 = vmatprep.subr.mxu0 0.0
        %1822 = vmatpush2.msra.mxu0 0.0
        %1823 = vmatprep.mubr.f32.mxu0 0.0
        %1824 = vmatmul.mubr.f32.gmra.mxu0 %v1657
        %v1825 = vpop.f32.mrf.mxu0
        %v1826 = vadd.f32 0.0, %v1825
        %v1827 = vpop.f32.mrf.mxu0
        %v1828 = vadd.f32 0.0, %v1827
        %1829 = vmatprep.mubr.f32.mxu0 0.0
        %1830 = vmatmul.mubr.f32.gmra.mxu0 %v1659
        %v1831 = vpop.f32.mrf.mxu0
        %v1832 = vadd.f32 0.0, %v1831
        %v1833 = vpop.f32.mrf.mxu0
        %v1834 = vadd.f32 0.0, %v1833
        %1835 = vdwg.mxu0
        %1836 = vmatprep.subr.mxu0 0.0
        %1837 = vmatpush1.msra.mxu0 0.0
        %1838 = vmatprep.subr.mxu0 0.0
        %1839 = vmatpush1.msra.mxu0 0.0
        %1840 = vmatprep.subr.mxu0 0.0
        %1841 = vmatpush1.msra.mxu0 0.0
        %1842 = vmatprep.subr.mxu0 0.0
        %1843 = vmatpush1.msra.mxu0 0.0
        %1844 = vmatprep.subr.mxu0 0.0
        %1845 = vmatpush1.msra.mxu0 0.0
        %1846 = vmatprep.subr.mxu0 0.0
        %1847 = vmatpush1.msra.mxu0 0.0
        %1848 = vmatprep.subr.mxu0 0.0
        %1849 = vmatpush1.msra.mxu0 0.0
        %1850 = vmatprep.subr.mxu0 0.0
        %1851 = vmatpush1.msra.mxu0 0.0
        %1852 = vmatprep.subr.mxu0 0.0
        %1853 = vmatpush1.msra.mxu0 0.0
        %1854 = vmatprep.subr.mxu0 0.0
        %1855 = vmatpush1.msra.mxu0 0.0
        %1856 = vmatprep.subr.mxu0 0.0
        %1857 = vmatpush1.msra.mxu0 0.0
        %1858 = vmatprep.subr.mxu0 0.0
        %1859 = vmatpush1.msra.mxu0 0.0
        %1860 = vmatprep.subr.mxu0 0.0
        %1861 = vmatpush1.msra.mxu0 0.0
        %1862 = vmatprep.subr.mxu0 0.0
        %1863 = vmatpush1.msra.mxu0 0.0
        %1864 = vmatprep.subr.mxu0 %v1677
        %1865 = vmatpush1.msra.mxu0 %v1674
        %1866 = vmatprep.subr.mxu0 %v1642
        %1867 = vmatpush1.msra.mxu0 %v1641
        %1868 = vmatprep.subr.mxu0 0.0
        %1869 = vmatpush2.msra.mxu0 0.0
        %1870 = vmatprep.subr.mxu0 0.0
        %1871 = vmatpush2.msra.mxu0 0.0
        %1872 = vmatprep.subr.mxu0 0.0
        %1873 = vmatpush2.msra.mxu0 0.0
        %1874 = vmatprep.subr.mxu0 0.0
        %1875 = vmatpush2.msra.mxu0 0.0
        %1876 = vmatprep.subr.mxu0 0.0
        %1877 = vmatpush2.msra.mxu0 0.0
        %1878 = vmatprep.subr.mxu0 0.0
        %1879 = vmatpush2.msra.mxu0 0.0
        %1880 = vmatprep.subr.mxu0 0.0
        %1881 = vmatpush2.msra.mxu0 0.0
        %1882 = vmatprep.subr.mxu0 0.0
        %1883 = vmatpush2.msra.mxu0 0.0
        %1884 = vmatprep.subr.mxu0 0.0
        %1885 = vmatpush2.msra.mxu0 0.0
        %1886 = vmatprep.subr.mxu0 0.0
        %1887 = vmatpush2.msra.mxu0 0.0
        %1888 = vmatprep.subr.mxu0 0.0
        %1889 = vmatpush2.msra.mxu0 0.0
        %1890 = vmatprep.subr.mxu0 0.0
        %1891 = vmatpush2.msra.mxu0 0.0
        %1892 = vmatprep.subr.mxu0 0.0
        %1893 = vmatpush2.msra.mxu0 0.0
        %1894 = vmatprep.subr.mxu0 0.0
        %1895 = vmatpush2.msra.mxu0 0.0
        %1896 = vmatprep.subr.mxu0 0.0
        %1897 = vmatpush2.msra.mxu0 0.0
        %1898 = vmatprep.subr.mxu0 0.0
        %1899 = vmatpush2.msra.mxu0 0.0
        %1900 = vmatprep.mubr.f32.mxu0 0.0
        %1901 = vmatmul.mubr.f32.gmra.mxu0 %v1657
        %v1902 = vpop.f32.mrf.mxu0
        %v1903 = vadd.f32 0.0, %v1902
        %v1904 = vpop.f32.mrf.mxu0
        %v1905 = vadd.f32 0.0, %v1904
        %1906 = vmatprep.mubr.f32.mxu0 0.0
        %1907 = vmatmul.mubr.f32.gmra.mxu0 %v1659
        %v1908 = vpop.f32.mrf.mxu0
        %v1909 = vadd.f32 0.0, %v1908
        %v1910 = vpop.f32.mrf.mxu0
        %v1911 = vadd.f32 0.0, %v1910
        %1912 = vdwg.mxu0
        %1913 = vmatprep.subr.mxu0 0.0
        %1914 = vmatpush1.msra.mxu0 0.0
        %1915 = vmatprep.subr.mxu0 0.0
        %1916 = vmatpush1.msra.mxu0 0.0
        %1917 = vmatprep.subr.mxu0 0.0
        %1918 = vmatpush1.msra.mxu0 0.0
        %1919 = vmatprep.subr.mxu0 0.0
        %1920 = vmatpush1.msra.mxu0 0.0
        %1921 = vmatprep.subr.mxu0 0.0
        %1922 = vmatpush1.msra.mxu0 0.0
        %1923 = vmatprep.subr.mxu0 0.0
        %1924 = vmatpush1.msra.mxu0 0.0
        %1925 = vmatprep.subr.mxu0 0.0
        %1926 = vmatpush1.msra.mxu0 0.0
        %1927 = vmatprep.subr.mxu0 0.0
        %1928 = vmatpush1.msra.mxu0 0.0
        %1929 = vmatprep.subr.mxu0 0.0
        %1930 = vmatpush1.msra.mxu0 0.0
        %1931 = vmatprep.subr.mxu0 0.0
        %1932 = vmatpush1.msra.mxu0 0.0
        %1933 = vmatprep.subr.mxu0 0.0
        %1934 = vmatpush1.msra.mxu0 0.0
        %1935 = vmatprep.subr.mxu0 0.0
        %1936 = vmatpush1.msra.mxu0 0.0
        %1937 = vmatprep.subr.mxu0 0.0
        %1938 = vmatpush1.msra.mxu0 0.0
        %1939 = vmatprep.subr.mxu0 0.0
        %1940 = vmatpush1.msra.mxu0 0.0
        %1941 = vmatprep.subr.mxu0 0.0
        %1942 = vmatpush1.msra.mxu0 %v1680
        %1943 = vmatprep.subr.mxu0 0.0
        %1944 = vmatpush1.msra.mxu0 %v1643
        %1945 = vmatprep.subr.mxu0 0.0
        %1946 = vmatpush2.msra.mxu0 0.0
        %1947 = vmatprep.subr.mxu0 0.0
        %1948 = vmatpush2.msra.mxu0 0.0
        %1949 = vmatprep.subr.mxu0 0.0
        %1950 = vmatpush2.msra.mxu0 0.0
        %1951 = vmatprep.subr.mxu0 0.0
        %1952 = vmatpush2.msra.mxu0 0.0
        %1953 = vmatprep.subr.mxu0 0.0
        %1954 = vmatpush2.msra.mxu0 0.0
        %1955 = vmatprep.subr.mxu0 0.0
        %1956 = vmatpush2.msra.mxu0 0.0
        %1957 = vmatprep.subr.mxu0 0.0
        %1958 = vmatpush2.msra.mxu0 0.0
        %1959 = vmatprep.subr.mxu0 0.0
        %1960 = vmatpush2.msra.mxu0 0.0
        %1961 = vmatprep.subr.mxu0 0.0
        %1962 = vmatpush2.msra.mxu0 0.0
        %1963 = vmatprep.subr.mxu0 0.0
        %1964 = vmatpush2.msra.mxu0 0.0
        %1965 = vmatprep.subr.mxu0 0.0
        %1966 = vmatpush2.msra.mxu0 0.0
        %1967 = vmatprep.subr.mxu0 0.0
        %1968 = vmatpush2.msra.mxu0 0.0
        %1969 = vmatprep.subr.mxu0 0.0
        %1970 = vmatpush2.msra.mxu0 0.0
        %1971 = vmatprep.subr.mxu0 0.0
        %1972 = vmatpush2.msra.mxu0 0.0
        %1973 = vmatprep.subr.mxu0 0.0
        %1974 = vmatpush2.msra.mxu0 0.0
        %1975 = vmatprep.subr.mxu0 0.0
        %1976 = vmatpush2.msra.mxu0 0.0
        %1977 = vmatprep.mubr.f32.mxu0 0.0
        %1978 = vmatmul.mubr.f32.gmra.mxu0 %v1657
        %v1979 = vpop.f32.mrf.mxu0
        %v1980 = vadd.f32 0.0, %v1979
        %v1981 = vpop.f32.mrf.mxu0
        %1982 = vmatprep.mubr.f32.mxu0 0.0
        %1983 = vmatmul.mubr.f32.gmra.mxu0 %v1659
        %v1984 = vpop.f32.mrf.mxu0
        %v1985 = vadd.f32 0.0, %v1984
        %v1986 = vpop.f32.mrf.mxu0
        %1987 = vdwg.mxu0
        %1988 = vst [vmem:[#allocation3] sm:$0xff] %v1749
        %1989 = vst [vmem:[#allocation3 + $0x8] sm:$0xff] %v1751
        %1990 = vst [vmem:[#allocation3 + $0x10] sm:$0xff] %v1826
        %1991 = vst [vmem:[#allocation3 + $0x18] sm:$0xff] %v1828
        %1992 = vst [vmem:[#allocation3 + $0x20] sm:$0xff] %v1903
        %1993 = vst [vmem:[#allocation3 + $0x28] sm:$0xff] %v1905
        %1994 = vst.msk [vmem:[#allocation3 + $0x30] sm:$0xff] %vm172, %v1980
        %1995 = vst [vmem:[#allocation3 + $0x40] sm:$0x3] %v1755
        %1996 = vst [vmem:[#allocation3 + $0x48] sm:$0x3] %v1757
        %1997 = vst [vmem:[#allocation3 + $0x50] sm:$0x3] %v1832
        %1998 = vst [vmem:[#allocation3 + $0x58] sm:$0x3] %v1834
        %1999 = vst [vmem:[#allocation3 + $0x60] sm:$0x3] %v1909
        %2000 = vst [vmem:[#allocation3 + $0x68] sm:$0x3] %v1911
        %2001 = vst.msk [vmem:[#allocation3 + $0x70] sm:$0x3] %vm1633, %v1985
        %v2002 = vld [vmem:[#allocation3] sm:$0xff]
        %v2003 = vld [vmem:[#allocation3 + $0x8] sm:$0xff]
        %v2004 = vld [vmem:[#allocation3 + $0x10] sm:$0xff]
        %v2005 = vld [vmem:[#allocation3 + $0x18] sm:$0xff]
        %v2006 = vld [vmem:[#allocation3 + $0x20] sm:$0xff]
        %v2007 = vld [vmem:[#allocation3 + $0x28] sm:$0xff]
        %v2008 = vld [vmem:[#allocation3 + $0x30] sm:$0xff]
        %v2009 = vld [vmem:[#allocation3 + $0x40] sm:$0x3]
        %v2010 = vld [vmem:[#allocation3 + $0x48] sm:$0x3]
        %v2011 = vld [vmem:[#allocation3 + $0x50] sm:$0x3]
        %v2012 = vld [vmem:[#allocation3 + $0x58] sm:$0x3]
        %v2013 = vld [vmem:[#allocation3 + $0x60] sm:$0x3]
        %v2014 = vld [vmem:[#allocation3 + $0x68] sm:$0x3]
        %v2015 = vld [vmem:[#allocation3 + $0x70] sm:$0x3]
        %2030 = vrot.lane.b32.xlu0 %v2002, 127
        %v2031 = vpop.permute.xlu0 %2030
        %2032 = vrot.lane.b32.xlu0 %v2003, 127
        %v2033 = vpop.permute.xlu0 %2032
        %2034 = vrot.lane.b32.xlu0 %v2004, 127
        %v2035 = vpop.permute.xlu0 %2034
        %2036 = vrot.lane.b32.xlu0 %v2005, 127
        %v2037 = vpop.permute.xlu0 %2036
        %2038 = vrot.lane.b32.xlu0 %v2006, 127
        %v2039 = vpop.permute.xlu0 %2038
        %2040 = vrot.lane.b32.xlu0 %v2007, 127
        %v2041 = vpop.permute.xlu0 %2040
        %2042 = vrot.lane.b32.xlu0 %v2008, 127
        %v2043 = vpop.permute.xlu0 %2042
        %2044 = vrot.lane.b32.xlu0 %v2009, 127
        %v2045 = vpop.permute.xlu0 %2044
        %2046 = vrot.lane.b32.xlu0 %v2010, 127
        %v2047 = vpop.permute.xlu0 %2046
        %2048 = vrot.lane.b32.xlu0 %v2011, 127
        %v2049 = vpop.permute.xlu0 %2048
        %2050 = vrot.lane.b32.xlu0 %v2012, 127
        %v2051 = vpop.permute.xlu0 %2050
        %2052 = vrot.lane.b32.xlu0 %v2013, 127
        %v2053 = vpop.permute.xlu0 %2052
        %2054 = vrot.lane.b32.xlu0 %v2014, 127
        %v2055 = vpop.permute.xlu0 %2054
        %2056 = vrot.lane.b32.xlu0 %v2015, 127
        %v2057 = vpop.permute.xlu0 %2056
        %v2058 = vsel %vm220, %v2031, %v2033
        %v2059 = vsel %vm220, %v2033, %v2035
        %v2060 = vsel %vm220, %v2035, %v2037
        %v2061 = vsel %vm220, %v2037, %v2039
        %v2062 = vsel %vm220, %v2039, %v2041
        %v2063 = vsel %vm220, %v2041, %v2043
        %v2064 = vsel %vm220, %v2045, %v2047
        %v2065 = vsel %vm220, %v2047, %v2049
        %v2066 = vsel %vm220, %v2049, %v2051
        %v2067 = vsel %vm220, %v2051, %v2053
        %v2068 = vsel %vm220, %v2053, %v2055
        %v2069 = vsel %vm220, %v2055, %v2057
        %v2084 = vmax.f32 %v2002, %v2058
        %v2085 = vmax.f32 %v2003, %v2059
        %v2086 = vmax.f32 %v2004, %v2060
        %v2087 = vmax.f32 %v2005, %v2061
        %v2088 = vmax.f32 %v2006, %v2062
        %v2089 = vmax.f32 %v2007, %v2063
        %v2090 = vmax.f32 %v2008, %v2043
        %v2091 = vmax.f32 %v2009, %v2064
        %v2092 = vmax.f32 %v2010, %v2065
        %v2093 = vmax.f32 %v2011, %v2066
        %v2094 = vmax.f32 %v2012, %v2067
        %v2095 = vmax.f32 %v2013, %v2068
        %v2096 = vmax.f32 %v2014, %v2069
        %v2097 = vmax.f32 %v2015, %v2057
        %2112 = vrot.lane.b32.xlu0 %v2084, 100
        %v2113 = vpop.permute.xlu0 %2112
        %2114 = vrot.lane.b32.xlu0 %v2085, 100
        %v2115 = vpop.permute.xlu0 %2114
        %2116 = vrot.lane.b32.xlu0 %v2086, 100
        %v2117 = vpop.permute.xlu0 %2116
        %2118 = vrot.lane.b32.xlu0 %v2087, 100
        %v2119 = vpop.permute.xlu0 %2118
        %2120 = vrot.lane.b32.xlu0 %v2088, 100
        %v2121 = vpop.permute.xlu0 %2120
        %2122 = vrot.lane.b32.xlu0 %v2089, 100
        %v2123 = vpop.permute.xlu0 %2122
        %2124 = vrot.lane.b32.xlu0 %v2090, 100
        %v2125 = vpop.permute.xlu0 %2124
        %2126 = vrot.lane.b32.xlu0 %v2091, 100
        %v2127 = vpop.permute.xlu0 %2126
        %2128 = vrot.lane.b32.xlu0 %v2092, 100
        %v2129 = vpop.permute.xlu0 %2128
        %2130 = vrot.lane.b32.xlu0 %v2093, 100
        %v2131 = vpop.permute.xlu0 %2130
        %2132 = vrot.lane.b32.xlu0 %v2094, 100
        %v2133 = vpop.permute.xlu0 %2132
        %2134 = vrot.lane.b32.xlu0 %v2095, 100
        %v2135 = vpop.permute.xlu0 %2134
        %2136 = vrot.lane.b32.xlu0 %v2096, 100
        %v2137 = vpop.permute.xlu0 %2136
        %2138 = vrot.lane.b32.xlu0 %v2097, 100
        %v2139 = vpop.permute.xlu0 %2138
        %v2140 = vsel %vm246, %v2113, %v2115
        %v2141 = vsel %vm246, %v2115, %v2117
        %v2142 = vsel %vm246, %v2117, %v2119
        %v2143 = vsel %vm246, %v2119, %v2121
        %v2144 = vsel %vm246, %v2121, %v2123
        %v2145 = vsel %vm246, %v2123, %v2125
        %v2146 = vsel %vm246, %v2127, %v2129
        %v2147 = vsel %vm246, %v2129, %v2131
        %v2148 = vsel %vm246, %v2131, %v2133
        %v2149 = vsel %vm246, %v2133, %v2135
        %v2150 = vsel %vm246, %v2135, %v2137
        %v2151 = vsel %vm246, %v2137, %v2139
        %v2166 = vmax.f32 %v2084, %v2140
        %v2167 = vmax.f32 %v2085, %v2141
        %v2168 = vmax.f32 %v2086, %v2142
        %v2169 = vmax.f32 %v2087, %v2143
        %v2170 = vmax.f32 %v2088, %v2144
        %v2171 = vmax.f32 %v2089, %v2145
        %v2172 = vmax.f32 %v2090, %v2125
        %v2173 = vmax.f32 %v2091, %v2146
        %v2174 = vmax.f32 %v2092, %v2147
        %v2175 = vmax.f32 %v2093, %v2148
        %v2176 = vmax.f32 %v2094, %v2149
        %v2177 = vmax.f32 %v2095, %v2150
        %v2178 = vmax.f32 %v2096, %v2151
        %v2179 = vmax.f32 %v2097, %v2139
        %2180 = vst [vmem:[#allocation2] sm:$0xff] %v2166
        %2181 = vst [vmem:[#allocation2 + $0x8] sm:$0xff] %v2167
        %2182 = vst [vmem:[#allocation2 + $0x10] sm:$0xff] %v2168
        %2183 = vst [vmem:[#allocation2 + $0x18] sm:$0xff] %v2169
        %2184 = vst [vmem:[#allocation2 + $0x20] sm:$0xff] %v2170
        %2185 = vst [vmem:[#allocation2 + $0x28] sm:$0xff] %v2171
        %2186 = vst.msk [vmem:[#allocation2 + $0x30] sm:$0xff] %vm172, %v2172
        %2187 = vst [vmem:[#allocation2 + $0x40] sm:$0x3] %v2173
        %2188 = vst [vmem:[#allocation2 + $0x48] sm:$0x3] %v2174
        %2189 = vst [vmem:[#allocation2 + $0x50] sm:$0x3] %v2175
        %2190 = vst [vmem:[#allocation2 + $0x58] sm:$0x3] %v2176
        %2191 = vst [vmem:[#allocation2 + $0x60] sm:$0x3] %v2177
        %2192 = vst [vmem:[#allocation2 + $0x68] sm:$0x3] %v2178
        %2193 = vst.msk [vmem:[#allocation2 + $0x70] sm:$0x3] %vm1633, %v2179
        %v2194 = vld [vmem:[#allocation2] sm:$0xff]
        %v2195 = vld [vmem:[#allocation2 + $0x8] sm:$0xff]
        %v2196 = vld [vmem:[#allocation2 + $0x10] sm:$0xff]
        %v2197 = vld [vmem:[#allocation2 + $0x18] sm:$0xff]
        %v2198 = vld [vmem:[#allocation2 + $0x20] sm:$0xff]
        %v2199 = vld [vmem:[#allocation2 + $0x28] sm:$0xff]
        %v2200 = vld [vmem:[#allocation2 + $0x30] sm:$0xff]
        %v2201 = vld [vmem:[#allocation2 + $0x40] sm:$0x3]
        %v2202 = vld [vmem:[#allocation2 + $0x48] sm:$0x3]
        %v2203 = vld [vmem:[#allocation2 + $0x50] sm:$0x3]
        %v2204 = vld [vmem:[#allocation2 + $0x58] sm:$0x3]
        %v2205 = vld [vmem:[#allocation2 + $0x60] sm:$0x3]
        %v2206 = vld [vmem:[#allocation2 + $0x68] sm:$0x3]
        %v2207 = vld [vmem:[#allocation2 + $0x70] sm:$0x3]
        %v2222 = vrot.slane %v2194, 7
        %v2223 = vrot.slane %v2195, 7
        %v2224 = vrot.slane %v2196, 7
        %v2225 = vrot.slane %v2197, 7
        %v2226 = vrot.slane %v2198, 7
        %v2227 = vrot.slane %v2199, 7
        %v2228 = vrot.slane %v2200, 7
        %v2229 = vrot.slane %v2201, 7
        %v2230 = vsel %vm1278, %v2222, %v2229
        %v2231 = vrot.slane %v2202, 7
        %v2232 = vsel %vm1278, %v2223, %v2231
        %v2233 = vrot.slane %v2203, 7
        %v2234 = vsel %vm1278, %v2224, %v2233
        %v2235 = vrot.slane %v2204, 7
        %v2236 = vsel %vm1278, %v2225, %v2235
        %v2237 = vrot.slane %v2205, 7
        %v2238 = vsel %vm1278, %v2226, %v2237
        %v2239 = vrot.slane %v2206, 7
        %v2240 = vsel %vm1278, %v2227, %v2239
        %v2241 = vrot.slane %v2207, 7
        %v2242 = vsel %vm1278, %v2228, %v2241
        %2257 = vst [vmem:[#allocation4] sm:$0xfe] %v2222
        %2258 = vst [vmem:[#allocation4 + $0x8] sm:$0xfe] %v2223
        %2259 = vst [vmem:[#allocation4 + $0x10] sm:$0xfe] %v2224
        %2260 = vst [vmem:[#allocation4 + $0x18] sm:$0xfe] %v2225
        %2261 = vst [vmem:[#allocation4 + $0x20] sm:$0xfe] %v2226
        %2262 = vst [vmem:[#allocation4 + $0x28] sm:$0xfe] %v2227
        %2263 = vst.msk [vmem:[#allocation4 + $0x30] sm:$0xfe] %vm689, %v2228
        %2264 = vst [vmem:[#allocation4 + $0x38] sm:$0x7] %v2230
        %2265 = vst [vmem:[#allocation4 + $0x40] sm:$0x7] %v2232
        %2266 = vst [vmem:[#allocation4 + $0x48] sm:$0x7] %v2234
        %2267 = vst [vmem:[#allocation4 + $0x50] sm:$0x7] %v2236
        %2268 = vst [vmem:[#allocation4 + $0x58] sm:$0x7] %v2238
        %2269 = vst [vmem:[#allocation4 + $0x60] sm:$0x7] %v2240
        %vm2270 = vcmask 124928
        %2271 = vst.msk [vmem:[#allocation4 + $0x68] sm:$0x7] %vm2270, %v2242
        %v2272 = vld [vmem:[#allocation2] sm:$0xff]
        %v2273 = vld [vmem:[#allocation2 + $0x8] sm:$0xff]
        %v2274 = vld [vmem:[#allocation2 + $0x10] sm:$0xff]
        %v2275 = vld [vmem:[#allocation2 + $0x18] sm:$0xff]
        %v2276 = vld [vmem:[#allocation2 + $0x20] sm:$0xff]
        %v2277 = vld [vmem:[#allocation2 + $0x28] sm:$0xff]
        %v2278 = vld [vmem:[#allocation2 + $0x30] sm:$0xff]
        %v2279 = vld [vmem:[#allocation2 + $0x40] sm:$0x3]
        %v2280 = vld [vmem:[#allocation2 + $0x48] sm:$0x3]
        %v2281 = vld [vmem:[#allocation2 + $0x50] sm:$0x3]
        %v2282 = vld [vmem:[#allocation2 + $0x58] sm:$0x3]
        %v2283 = vld [vmem:[#allocation2 + $0x60] sm:$0x3]
        %v2284 = vld [vmem:[#allocation2 + $0x68] sm:$0x3]
        %v2285 = vld [vmem:[#allocation2 + $0x70] sm:$0x3]
        %vm2300 = vcmask 1042432
        %v2301 = vrot.slane %v2272, 5
        %v2302 = vrot.slane %v2273, 5
        %v2303 = vrot.slane %v2274, 5
        %v2304 = vrot.slane %v2275, 5
        %v2305 = vrot.slane %v2276, 5
        %v2306 = vrot.slane %v2277, 5
        %v2307 = vrot.slane %v2278, 5
        %v2308 = vrot.slane %v2279, 5
        %v2309 = vsel %vm2300, %v2301, %v2308
        %v2310 = vrot.slane %v2280, 5
        %v2311 = vsel %vm2300, %v2302, %v2310
        %v2312 = vrot.slane %v2281, 5
        %v2313 = vsel %vm2300, %v2303, %v2312
        %v2314 = vrot.slane %v2282, 5
        %v2315 = vsel %vm2300, %v2304, %v2314
        %v2316 = vrot.slane %v2283, 5
        %v2317 = vsel %vm2300, %v2305, %v2316
        %v2318 = vrot.slane %v2284, 5
        %v2319 = vsel %vm2300, %v2306, %v2318
        %v2320 = vrot.slane %v2285, 5
        %v2321 = vsel %vm2300, %v2307, %v2320
        %2322 = vrot.lane.b32.xlu0 %v2301, 126
        %v2323 = vpop.permute.xlu0 %2322
        %2324 = vrot.lane.b32.xlu0 %v2302, 126
        %v2325 = vpop.permute.xlu0 %2324
        %2326 = vrot.lane.b32.xlu0 %v2303, 126
        %v2327 = vpop.permute.xlu0 %2326
        %2328 = vrot.lane.b32.xlu0 %v2304, 126
        %v2329 = vpop.permute.xlu0 %2328
        %2330 = vrot.lane.b32.xlu0 %v2305, 126
        %v2331 = vpop.permute.xlu0 %2330
        %2332 = vrot.lane.b32.xlu0 %v2306, 126
        %v2333 = vpop.permute.xlu0 %2332
        %2334 = vrot.lane.b32.xlu0 %v2307, 126
        %v2335 = vpop.permute.xlu0 %2334
        %2336 = vrot.lane.b32.xlu0 %v2309, 126
        %v2337 = vpop.permute.xlu0 %2336
        %2338 = vrot.lane.b32.xlu0 %v2311, 126
        %v2339 = vpop.permute.xlu0 %2338
        %2340 = vrot.lane.b32.xlu0 %v2313, 126
        %v2341 = vpop.permute.xlu0 %2340
        %2342 = vrot.lane.b32.xlu0 %v2315, 126
        %v2343 = vpop.permute.xlu0 %2342
        %2344 = vrot.lane.b32.xlu0 %v2317, 126
        %v2345 = vpop.permute.xlu0 %2344
        %2346 = vrot.lane.b32.xlu0 %v2319, 126
        %v2347 = vpop.permute.xlu0 %2346
        %2348 = vrot.lane.b32.xlu0 %v2321, 126
        %v2349 = vpop.permute.xlu0 %2348
        %v2350 = vsel %vm233, %v2323, %v2325
        %v2351 = vsel %vm233, %v2325, %v2327
        %v2352 = vsel %vm233, %v2327, %v2329
        %v2353 = vsel %vm233, %v2329, %v2331
        %v2354 = vsel %vm233, %v2331, %v2333
        %v2355 = vsel %vm233, %v2333, %v2335
        %v2356 = vsel %vm233, %v2337, %v2339
        %v2357 = vsel %vm233, %v2339, %v2341
        %v2358 = vsel %vm233, %v2341, %v2343
        %v2359 = vsel %vm233, %v2343, %v2345
        %v2360 = vsel %vm233, %v2345, %v2347
        %v2361 = vsel %vm233, %v2347, %v2349
        %2376 = vst [vmem:[#allocation4 + $0x38] sm:$0xf8] %v2350
        %2377 = vst [vmem:[#allocation4 + $0x40] sm:$0xf8] %v2351
        %2378 = vst [vmem:[#allocation4 + $0x48] sm:$0xf8] %v2352
        %2379 = vst [vmem:[#allocation4 + $0x50] sm:$0xf8] %v2353
        %2380 = vst [vmem:[#allocation4 + $0x58] sm:$0xf8] %v2354
        %2381 = vst [vmem:[#allocation4 + $0x60] sm:$0xf8] %v2355
        %vm2382 = vcmask 130051
        %2383 = vst.msk [vmem:[#allocation4 + $0x68] sm:$0xf8] %vm2382, %v2335
        %2384 = vst [vmem:[#allocation4 + $0x70] sm:$0x1f] %v2356
        %2385 = vst [vmem:[#allocation4 + $0x78] sm:$0x1f] %v2357
        %2386 = vst [vmem:[#allocation4 + $0x80] sm:$0x1f] %v2358
        %2387 = vst [vmem:[#allocation4 + $0x88] sm:$0x1f] %v2359
        %2388 = vst [vmem:[#allocation4 + $0x90] sm:$0x1f] %v2360
        %2389 = vst [vmem:[#allocation4 + $0x98] sm:$0x1f] %v2361
        %vm2390 = vcmask 126976
        %2391 = vst.msk [vmem:[#allocation4 + $0xa0] sm:$0x1f] %vm2390, %v2349
        %v2392 = vld [vmem:[#allocation2] sm:$0xff]
        %v2393 = vld [vmem:[#allocation2 + $0x8] sm:$0xff]
        %v2394 = vld [vmem:[#allocation2 + $0x10] sm:$0xff]
        %v2395 = vld [vmem:[#allocation2 + $0x18] sm:$0xff]
        %v2396 = vld [vmem:[#allocation2 + $0x20] sm:$0xff]
        %v2397 = vld [vmem:[#allocation2 + $0x28] sm:$0xff]
        %v2398 = vld [vmem:[#allocation2 + $0x30] sm:$0xff]
        %v2399 = vld [vmem:[#allocation2 + $0x40] sm:$0x3]
        %v2400 = vld [vmem:[#allocation2 + $0x48] sm:$0x3]
        %v2401 = vld [vmem:[#allocation2 + $0x50] sm:$0x3]
        %v2402 = vld [vmem:[#allocation2 + $0x58] sm:$0x3]
        %v2403 = vld [vmem:[#allocation2 + $0x60] sm:$0x3]
        %v2404 = vld [vmem:[#allocation2 + $0x68] sm:$0x3]
        %v2405 = vld [vmem:[#allocation2 + $0x70] sm:$0x3]
        %vm2420 = vcmask 1044480
        %v2421 = vrot.slane %v2392, 3
        %v2422 = vrot.slane %v2393, 3
        %v2423 = vrot.slane %v2394, 3
        %v2424 = vrot.slane %v2395, 3
        %v2425 = vrot.slane %v2396, 3
        %v2426 = vrot.slane %v2397, 3
        %v2427 = vrot.slane %v2398, 3
        %v2428 = vrot.slane %v2399, 3
        %v2429 = vsel %vm2420, %v2421, %v2428
        %v2430 = vrot.slane %v2400, 3
        %v2431 = vsel %vm2420, %v2422, %v2430
        %v2432 = vrot.slane %v2401, 3
        %v2433 = vsel %vm2420, %v2423, %v2432
        %v2434 = vrot.slane %v2402, 3
        %v2435 = vsel %vm2420, %v2424, %v2434
        %v2436 = vrot.slane %v2403, 3
        %v2437 = vsel %vm2420, %v2425, %v2436
        %v2438 = vrot.slane %v2404, 3
        %v2439 = vsel %vm2420, %v2426, %v2438
        %v2440 = vrot.slane %v2405, 3
        %v2441 = vsel %vm2420, %v2427, %v2440
        %2442 = vrot.lane.b32.xlu0 %v2421, 124
        %v2443 = vpop.permute.xlu0 %2442
        %2444 = vrot.lane.b32.xlu0 %v2422, 124
        %v2445 = vpop.permute.xlu0 %2444
        %2446 = vrot.lane.b32.xlu0 %v2423, 124
        %v2447 = vpop.permute.xlu0 %2446
        %2448 = vrot.lane.b32.xlu0 %v2424, 124
        %v2449 = vpop.permute.xlu0 %2448
        %2450 = vrot.lane.b32.xlu0 %v2425, 124
        %v2451 = vpop.permute.xlu0 %2450
        %2452 = vrot.lane.b32.xlu0 %v2426, 124
        %v2453 = vpop.permute.xlu0 %2452
        %2454 = vrot.lane.b32.xlu0 %v2427, 124
        %v2455 = vpop.permute.xlu0 %2454
        %2456 = vrot.lane.b32.xlu0 %v2429, 124
        %v2457 = vpop.permute.xlu0 %2456
        %2458 = vrot.lane.b32.xlu0 %v2431, 124
        %v2459 = vpop.permute.xlu0 %2458
        %2460 = vrot.lane.b32.xlu0 %v2433, 124
        %v2461 = vpop.permute.xlu0 %2460
        %2462 = vrot.lane.b32.xlu0 %v2435, 124
        %v2463 = vpop.permute.xlu0 %2462
        %2464 = vrot.lane.b32.xlu0 %v2437, 124
        %v2465 = vpop.permute.xlu0 %2464
        %2466 = vrot.lane.b32.xlu0 %v2439, 124
        %v2467 = vpop.permute.xlu0 %2466
        %2468 = vrot.lane.b32.xlu0 %v2441, 124
        %v2469 = vpop.permute.xlu0 %2468
        %vm2470 = vcmask 1014784
        %v2471 = vsel %vm2470, %v2443, %v2445
        %v2472 = vsel %vm2470, %v2445, %v2447
        %v2473 = vsel %vm2470, %v2447, %v2449
        %v2474 = vsel %vm2470, %v2449, %v2451
        %v2475 = vsel %vm2470, %v2451, %v2453
        %v2476 = vsel %vm2470, %v2453, %v2455
        %v2477 = vsel %vm2470, %v2457, %v2459
        %v2478 = vsel %vm2470, %v2459, %v2461
        %v2479 = vsel %vm2470, %v2461, %v2463
        %v2480 = vsel %vm2470, %v2463, %v2465
        %v2481 = vsel %vm2470, %v2465, %v2467
        %v2482 = vsel %vm2470, %v2467, %v2469
        %2497 = vst [vmem:[#allocation4 + $0x70] sm:$0xe0] %v2471
        %2498 = vst [vmem:[#allocation4 + $0x78] sm:$0xe0] %v2472
        %2499 = vst [vmem:[#allocation4 + $0x80] sm:$0xe0] %v2473
        %2500 = vst [vmem:[#allocation4 + $0x88] sm:$0xe0] %v2474
        %2501 = vst [vmem:[#allocation4 + $0x90] sm:$0xe0] %v2475
        %2502 = vst [vmem:[#allocation4 + $0x98] sm:$0xe0] %v2476
        %vm2503 = vcmask 130053
        %2504 = vst.msk [vmem:[#allocation4 + $0xa0] sm:$0xe0] %vm2503, %v2455
        %2505 = vst [vmem:[#allocation4 + $0xa8] sm:$0x7f] %v2477
        %2506 = vst [vmem:[#allocation4 + $0xb0] sm:$0x7f] %v2478
        %2507 = vst [vmem:[#allocation4 + $0xb8] sm:$0x7f] %v2479
        %2508 = vst [vmem:[#allocation4 + $0xc0] sm:$0x7f] %v2480
        %2509 = vst [vmem:[#allocation4 + $0xc8] sm:$0x7f] %v2481
        %2510 = vst [vmem:[#allocation4 + $0xd0] sm:$0x7f] %v2482
        %vm2511 = vcmask 129024
        %2512 = vst.msk [vmem:[#allocation4 + $0xd8] sm:$0x7f] %vm2511, %v2469
        %v2513 = vld [vmem:[#allocation2] sm:$0xff]
        %v2514 = vld [vmem:[#allocation2 + $0x8] sm:$0xff]
        %v2515 = vld [vmem:[#allocation2 + $0x10] sm:$0xff]
        %v2516 = vld [vmem:[#allocation2 + $0x18] sm:$0xff]
        %v2517 = vld [vmem:[#allocation2 + $0x20] sm:$0xff]
        %v2518 = vld [vmem:[#allocation2 + $0x28] sm:$0xff]
        %v2519 = vld [vmem:[#allocation2 + $0x30] sm:$0xff]
        %v2520 = vld [vmem:[#allocation2 + $0x40] sm:$0x3]
        %v2521 = vld [vmem:[#allocation2 + $0x48] sm:$0x3]
        %v2522 = vld [vmem:[#allocation2 + $0x50] sm:$0x3]
        %v2523 = vld [vmem:[#allocation2 + $0x58] sm:$0x3]
        %v2524 = vld [vmem:[#allocation2 + $0x60] sm:$0x3]
        %v2525 = vld [vmem:[#allocation2 + $0x68] sm:$0x3]
        %v2526 = vld [vmem:[#allocation2 + $0x70] sm:$0x3]
        %vm2541 = vcmask 1046528
        %v2542 = vrot.slane %v2513, 1
        %v2543 = vrot.slane %v2514, 1
        %v2544 = vrot.slane %v2515, 1
        %v2545 = vrot.slane %v2516, 1
        %v2546 = vrot.slane %v2517, 1
        %v2547 = vrot.slane %v2518, 1
        %v2548 = vrot.slane %v2519, 1
        %v2549 = vrot.slane %v2520, 1
        %v2550 = vsel %vm2541, %v2542, %v2549
        %v2551 = vrot.slane %v2521, 1
        %v2552 = vsel %vm2541, %v2543, %v2551
        %v2553 = vrot.slane %v2522, 1
        %v2554 = vsel %vm2541, %v2544, %v2553
        %v2555 = vrot.slane %v2523, 1
        %v2556 = vsel %vm2541, %v2545, %v2555
        %v2557 = vrot.slane %v2524, 1
        %v2558 = vsel %vm2541, %v2546, %v2557
        %v2559 = vrot.slane %v2525, 1
        %v2560 = vsel %vm2541, %v2547, %v2559
        %v2561 = vrot.slane %v2526, 1
        %v2562 = vsel %vm2541, %v2548, %v2561
        %2563 = vrot.lane.b32.xlu0 %v2542, 72
        %v2564 = vpop.permute.xlu0 %2563
        %2565 = vrot.lane.b32.xlu0 %v2543, 72
        %v2566 = vpop.permute.xlu0 %2565
        %2567 = vrot.lane.b32.xlu0 %v2544, 72
        %v2568 = vpop.permute.xlu0 %2567
        %2569 = vrot.lane.b32.xlu0 %v2545, 72
        %v2570 = vpop.permute.xlu0 %2569
        %2571 = vrot.lane.b32.xlu0 %v2546, 72
        %v2572 = vpop.permute.xlu0 %2571
        %2573 = vrot.lane.b32.xlu0 %v2547, 72
        %v2574 = vpop.permute.xlu0 %2573
        %2575 = vrot.lane.b32.xlu0 %v2548, 72
        %v2576 = vpop.permute.xlu0 %2575
        %2577 = vrot.lane.b32.xlu0 %v2550, 72
        %v2578 = vpop.permute.xlu0 %2577
        %2579 = vrot.lane.b32.xlu0 %v2552, 72
        %v2580 = vpop.permute.xlu0 %2579
        %2581 = vrot.lane.b32.xlu0 %v2554, 72
        %v2582 = vpop.permute.xlu0 %2581
        %2583 = vrot.lane.b32.xlu0 %v2556, 72
        %v2584 = vpop.permute.xlu0 %2583
        %2585 = vrot.lane.b32.xlu0 %v2558, 72
        %v2586 = vpop.permute.xlu0 %2585
        %2587 = vrot.lane.b32.xlu0 %v2560, 72
        %v2588 = vpop.permute.xlu0 %2587
        %2589 = vrot.lane.b32.xlu0 %v2562, 72
        %v2590 = vpop.permute.xlu0 %2589
        %2591 = vrot.lane.b32.xlu0 %v2549, 72
        %v2592 = vpop.permute.xlu0 %2591
        %2593 = vrot.lane.b32.xlu0 %v2551, 72
        %v2594 = vpop.permute.xlu0 %2593
        %2595 = vrot.lane.b32.xlu0 %v2553, 72
        %v2596 = vpop.permute.xlu0 %2595
        %2597 = vrot.lane.b32.xlu0 %v2555, 72
        %v2598 = vpop.permute.xlu0 %2597
        %2599 = vrot.lane.b32.xlu0 %v2557, 72
        %v2600 = vpop.permute.xlu0 %2599
        %2601 = vrot.lane.b32.xlu0 %v2559, 72
        %v2602 = vpop.permute.xlu0 %2601
        %2603 = vrot.lane.b32.xlu0 %v2561, 72
        %v2604 = vpop.permute.xlu0 %2603
        %v2605 = vsel %vm285, %v2564, %v2566
        %v2606 = vsel %vm285, %v2566, %v2568
        %v2607 = vsel %vm285, %v2568, %v2570
        %v2608 = vsel %vm285, %v2570, %v2572
        %v2609 = vsel %vm285, %v2572, %v2574
        %v2610 = vsel %vm285, %v2574, %v2576
        %v2611 = vsel %vm285, %v2578, %v2580
        %v2612 = vsel %vm285, %v2580, %v2582
        %v2613 = vsel %vm285, %v2582, %v2584
        %v2614 = vsel %vm285, %v2584, %v2586
        %v2615 = vsel %vm285, %v2586, %v2588
        %v2616 = vsel %vm285, %v2588, %v2590
        %v2617 = vsel %vm285, %v2592, %v2594
        %v2618 = vsel %vm285, %v2594, %v2596
        %v2619 = vsel %vm285, %v2596, %v2598
        %v2620 = vsel %vm285, %v2598, %v2600
        %v2621 = vsel %vm285, %v2600, %v2602
        %v2622 = vsel %vm285, %v2602, %v2604
        %2644 = vst [vmem:[#allocation4 + $0xa8] sm:$0x80] %v2605
        %2645 = vst [vmem:[#allocation4 + $0xb0] sm:$0x80] %v2606
        %2646 = vst [vmem:[#allocation4 + $0xb8] sm:$0x80] %v2607
        %2647 = vst [vmem:[#allocation4 + $0xc0] sm:$0x80] %v2608
        %2648 = vst [vmem:[#allocation4 + $0xc8] sm:$0x80] %v2609
        %2649 = vst [vmem:[#allocation4 + $0xd0] sm:$0x80] %v2610
        %vm2650 = vcmask 130055
        %2651 = vst.msk [vmem:[#allocation4 + $0xd8] sm:$0x80] %vm2650, %v2576
        %2652 = vst [vmem:[#allocation4 + $0xe0] sm:$0xff] %v2611
        %2653 = vst [vmem:[#allocation4 + $0xe8] sm:$0xff] %v2612
        %2654 = vst [vmem:[#allocation4 + $0xf0] sm:$0xff] %v2613
        %2655 = vst [vmem:[#allocation4 + $0xf8] sm:$0xff] %v2614
        %2656 = vst [vmem:[#allocation4 + $0x100] sm:$0xff] %v2615
        %2657 = vst [vmem:[#allocation4 + $0x108] sm:$0xff] %v2616
        %2658 = vst.msk [vmem:[#allocation4 + $0x110] sm:$0xff] %vm172, %v2590
        %2659 = vst [vmem:[#allocation4 + $0x118] sm:$0x1] %v2617
        %2660 = vst [vmem:[#allocation4 + $0x120] sm:$0x1] %v2618
        %2661 = vst [vmem:[#allocation4 + $0x128] sm:$0x1] %v2619
        %2662 = vst [vmem:[#allocation4 + $0x130] sm:$0x1] %v2620
        %2663 = vst [vmem:[#allocation4 + $0x138] sm:$0x1] %v2621
        %2664 = vst [vmem:[#allocation4 + $0x140] sm:$0x1] %v2622
        %2665 = vst.msk [vmem:[#allocation4 + $0x148] sm:$0x1] %vm697, %v2604
        %v2666 = vld [vmem:[#allocation2] sm:$0xff]
        %v2667 = vld [vmem:[#allocation2 + $0x8] sm:$0xff]
        %v2668 = vld [vmem:[#allocation2 + $0x10] sm:$0xff]
        %v2669 = vld [vmem:[#allocation2 + $0x18] sm:$0xff]
        %v2670 = vld [vmem:[#allocation2 + $0x20] sm:$0xff]
        %v2671 = vld [vmem:[#allocation2 + $0x28] sm:$0xff]
        %v2672 = vld [vmem:[#allocation2 + $0x30] sm:$0xff]
        %v2673 = vld [vmem:[#allocation2 + $0x40] sm:$0x3]
        %v2674 = vld [vmem:[#allocation2 + $0x48] sm:$0x3]
        %v2675 = vld [vmem:[#allocation2 + $0x50] sm:$0x3]
        %v2676 = vld [vmem:[#allocation2 + $0x58] sm:$0x3]
        %v2677 = vld [vmem:[#allocation2 + $0x60] sm:$0x3]
        %v2678 = vld [vmem:[#allocation2 + $0x68] sm:$0x3]
        %v2679 = vld [vmem:[#allocation2 + $0x70] sm:$0x3]
        %v2694 = vrot.slane %v2666, 7
        %v2695 = vrot.slane %v2667, 7
        %v2696 = vrot.slane %v2668, 7
        %v2697 = vrot.slane %v2669, 7
        %v2698 = vrot.slane %v2670, 7
        %v2699 = vrot.slane %v2671, 7
        %v2700 = vrot.slane %v2672, 7
        %v2701 = vrot.slane %v2673, 7
        %v2702 = vsel %vm1278, %v2694, %v2701
        %v2703 = vrot.slane %v2674, 7
        %v2704 = vsel %vm1278, %v2695, %v2703
        %v2705 = vrot.slane %v2675, 7
        %v2706 = vsel %vm1278, %v2696, %v2705
        %v2707 = vrot.slane %v2676, 7
        %v2708 = vsel %vm1278, %v2697, %v2707
        %v2709 = vrot.slane %v2677, 7
        %v2710 = vsel %vm1278, %v2698, %v2709
        %v2711 = vrot.slane %v2678, 7
        %v2712 = vsel %vm1278, %v2699, %v2711
        %v2713 = vrot.slane %v2679, 7
        %v2714 = vsel %vm1278, %v2700, %v2713
        %2715 = vrot.lane.b32.xlu0 %v2694, 70
        %v2716 = vpop.permute.xlu0 %2715
        %2717 = vrot.lane.b32.xlu0 %v2695, 70
        %v2718 = vpop.permute.xlu0 %2717
        %2719 = vrot.lane.b32.xlu0 %v2696, 70
        %v2720 = vpop.permute.xlu0 %2719
        %2721 = vrot.lane.b32.xlu0 %v2697, 70
        %v2722 = vpop.permute.xlu0 %2721
        %2723 = vrot.lane.b32.xlu0 %v2698, 70
        %v2724 = vpop.permute.xlu0 %2723
        %2725 = vrot.lane.b32.xlu0 %v2699, 70
        %v2726 = vpop.permute.xlu0 %2725
        %2727 = vrot.lane.b32.xlu0 %v2700, 70
        %v2728 = vpop.permute.xlu0 %2727
        %2729 = vrot.lane.b32.xlu0 %v2702, 70
        %v2730 = vpop.permute.xlu0 %2729
        %2731 = vrot.lane.b32.xlu0 %v2704, 70
        %v2732 = vpop.permute.xlu0 %2731
        %2733 = vrot.lane.b32.xlu0 %v2706, 70
        %v2734 = vpop.permute.xlu0 %2733
        %2735 = vrot.lane.b32.xlu0 %v2708, 70
        %v2736 = vpop.permute.xlu0 %2735
        %2737 = vrot.lane.b32.xlu0 %v2710, 70
        %v2738 = vpop.permute.xlu0 %2737
        %2739 = vrot.lane.b32.xlu0 %v2712, 70
        %v2740 = vpop.permute.xlu0 %2739
        %2741 = vrot.lane.b32.xlu0 %v2714, 70
        %v2742 = vpop.permute.xlu0 %2741
        %v2743 = vsel %vm311, %v2716, %v2718
        %v2744 = vsel %vm311, %v2718, %v2720
        %v2745 = vsel %vm311, %v2720, %v2722
        %v2746 = vsel %vm311, %v2722, %v2724
        %v2747 = vsel %vm311, %v2724, %v2726
        %v2748 = vsel %vm311, %v2726, %v2728
        %v2749 = vsel %vm311, %v2730, %v2732
        %v2750 = vsel %vm311, %v2732, %v2734
        %v2751 = vsel %vm311, %v2734, %v2736
        %v2752 = vsel %vm311, %v2736, %v2738
        %v2753 = vsel %vm311, %v2738, %v2740
        %v2754 = vsel %vm311, %v2740, %v2742
        %2769 = vst [vmem:[#allocation4 + $0x118] sm:$0xfe] %v2743
        %2770 = vst [vmem:[#allocation4 + $0x120] sm:$0xfe] %v2744
        %2771 = vst [vmem:[#allocation4 + $0x128] sm:$0xfe] %v2745
        %2772 = vst [vmem:[#allocation4 + $0x130] sm:$0xfe] %v2746
        %2773 = vst [vmem:[#allocation4 + $0x138] sm:$0xfe] %v2747
        %2774 = vst [vmem:[#allocation4 + $0x140] sm:$0xfe] %v2748
        %2775 = vst.msk [vmem:[#allocation4 + $0x148] sm:$0xfe] %vm689, %v2728
        %2776 = vst [vmem:[#allocation4 + $0x150] sm:$0x7] %v2749
        %2777 = vst [vmem:[#allocation4 + $0x158] sm:$0x7] %v2750
        %2778 = vst [vmem:[#allocation4 + $0x160] sm:$0x7] %v2751
        %2779 = vst [vmem:[#allocation4 + $0x168] sm:$0x7] %v2752
        %2780 = vst [vmem:[#allocation4 + $0x170] sm:$0x7] %v2753
        %2781 = vst [vmem:[#allocation4 + $0x178] sm:$0x7] %v2754
        %2782 = vst.msk [vmem:[#allocation4 + $0x180] sm:$0x7] %vm2270, %v2742
        %v2783 = vld [vmem:[#allocation2] sm:$0xff]
        %v2784 = vld [vmem:[#allocation2 + $0x8] sm:$0xff]
        %v2785 = vld [vmem:[#allocation2 + $0x10] sm:$0xff]
        %v2786 = vld [vmem:[#allocation2 + $0x18] sm:$0xff]
        %v2787 = vld [vmem:[#allocation2 + $0x20] sm:$0xff]
        %v2788 = vld [vmem:[#allocation2 + $0x28] sm:$0xff]
        %v2789 = vld [vmem:[#allocation2 + $0x30] sm:$0xff]
        %v2790 = vld [vmem:[#allocation2 + $0x40] sm:$0x3]
        %v2791 = vld [vmem:[#allocation2 + $0x48] sm:$0x3]
        %v2792 = vld [vmem:[#allocation2 + $0x50] sm:$0x3]
        %v2793 = vld [vmem:[#allocation2 + $0x58] sm:$0x3]
        %v2794 = vld [vmem:[#allocation2 + $0x60] sm:$0x3]
        %v2795 = vld [vmem:[#allocation2 + $0x68] sm:$0x3]
        %v2796 = vld [vmem:[#allocation2 + $0x70] sm:$0x3]
        %v2811 = vrot.slane %v2783, 5
        %v2812 = vrot.slane %v2784, 5
        %v2813 = vrot.slane %v2785, 5
        %v2814 = vrot.slane %v2786, 5
        %v2815 = vrot.slane %v2787, 5
        %v2816 = vrot.slane %v2788, 5
        %v2817 = vrot.slane %v2789, 5
        %v2818 = vrot.slane %v2790, 5
        %v2819 = vsel %vm2300, %v2811, %v2818
        %v2820 = vrot.slane %v2791, 5
        %v2821 = vsel %vm2300, %v2812, %v2820
        %v2822 = vrot.slane %v2792, 5
        %v2823 = vsel %vm2300, %v2813, %v2822
        %v2824 = vrot.slane %v2793, 5
        %v2825 = vsel %vm2300, %v2814, %v2824
        %v2826 = vrot.slane %v2794, 5
        %v2827 = vsel %vm2300, %v2815, %v2826
        %v2828 = vrot.slane %v2795, 5
        %v2829 = vsel %vm2300, %v2816, %v2828
        %v2830 = vrot.slane %v2796, 5
        %v2831 = vsel %vm2300, %v2817, %v2830
        %2832 = vrot.lane.b32.xlu0 %v2811, 68
        %v2833 = vpop.permute.xlu0 %2832
        %2834 = vrot.lane.b32.xlu0 %v2812, 68
        %v2835 = vpop.permute.xlu0 %2834
        %2836 = vrot.lane.b32.xlu0 %v2813, 68
        %v2837 = vpop.permute.xlu0 %2836
        %2838 = vrot.lane.b32.xlu0 %v2814, 68
        %v2839 = vpop.permute.xlu0 %2838
        %2840 = vrot.lane.b32.xlu0 %v2815, 68
        %v2841 = vpop.permute.xlu0 %2840
        %2842 = vrot.lane.b32.xlu0 %v2816, 68
        %v2843 = vpop.permute.xlu0 %2842
        %2844 = vrot.lane.b32.xlu0 %v2817, 68
        %v2845 = vpop.permute.xlu0 %2844
        %2846 = vrot.lane.b32.xlu0 %v2819, 68
        %v2847 = vpop.permute.xlu0 %2846
        %2848 = vrot.lane.b32.xlu0 %v2821, 68
        %v2849 = vpop.permute.xlu0 %2848
        %2850 = vrot.lane.b32.xlu0 %v2823, 68
        %v2851 = vpop.permute.xlu0 %2850
        %2852 = vrot.lane.b32.xlu0 %v2825, 68
        %v2853 = vpop.permute.xlu0 %2852
        %2854 = vrot.lane.b32.xlu0 %v2827, 68
        %v2855 = vpop.permute.xlu0 %2854
        %2856 = vrot.lane.b32.xlu0 %v2829, 68
        %v2857 = vpop.permute.xlu0 %2856
        %2858 = vrot.lane.b32.xlu0 %v2831, 68
        %v2859 = vpop.permute.xlu0 %2858
        %vm2860 = vcmask 556032
        %v2861 = vsel %vm2860, %v2833, %v2835
        %v2862 = vsel %vm2860, %v2835, %v2837
        %v2863 = vsel %vm2860, %v2837, %v2839
        %v2864 = vsel %vm2860, %v2839, %v2841
        %v2865 = vsel %vm2860, %v2841, %v2843
        %v2866 = vsel %vm2860, %v2843, %v2845
        %v2867 = vsel %vm2860, %v2847, %v2849
        %v2868 = vsel %vm2860, %v2849, %v2851
        %v2869 = vsel %vm2860, %v2851, %v2853
        %v2870 = vsel %vm2860, %v2853, %v2855
        %v2871 = vsel %vm2860, %v2855, %v2857
        %v2872 = vsel %vm2860, %v2857, %v2859
        %2887 = vst [vmem:[#allocation4 + $0x150] sm:$0xf8] %v2861
        %2888 = vst [vmem:[#allocation4 + $0x158] sm:$0xf8] %v2862
        %2889 = vst [vmem:[#allocation4 + $0x160] sm:$0xf8] %v2863
        %2890 = vst [vmem:[#allocation4 + $0x168] sm:$0xf8] %v2864
        %2891 = vst [vmem:[#allocation4 + $0x170] sm:$0xf8] %v2865
        %2892 = vst [vmem:[#allocation4 + $0x178] sm:$0xf8] %v2866
        %2893 = vst.msk [vmem:[#allocation4 + $0x180] sm:$0xf8] %vm2382, %v2845
        %2894 = vst [vmem:[#allocation4 + $0x188] sm:$0x1f] %v2867
        %2895 = vst [vmem:[#allocation4 + $0x190] sm:$0x1f] %v2868
        %2896 = vst [vmem:[#allocation4 + $0x198] sm:$0x1f] %v2869
        %2897 = vst [vmem:[#allocation4 + $0x1a0] sm:$0x1f] %v2870
        %2898 = vst [vmem:[#allocation4 + $0x1a8] sm:$0x1f] %v2871
        %2899 = vst [vmem:[#allocation4 + $0x1b0] sm:$0x1f] %v2872
        %2900 = vst.msk [vmem:[#allocation4 + $0x1b8] sm:$0x1f] %vm2390, %v2859
        %v2901 = vld [vmem:[#allocation2] sm:$0xff]
        %v2902 = vld [vmem:[#allocation2 + $0x8] sm:$0xff]
        %v2903 = vld [vmem:[#allocation2 + $0x10] sm:$0xff]
        %v2904 = vld [vmem:[#allocation2 + $0x18] sm:$0xff]
        %v2905 = vld [vmem:[#allocation2 + $0x20] sm:$0xff]
        %v2906 = vld [vmem:[#allocation2 + $0x28] sm:$0xff]
        %v2907 = vld [vmem:[#allocation2 + $0x30] sm:$0xff]
        %v2908 = vld [vmem:[#allocation2 + $0x40] sm:$0x3]
        %v2909 = vld [vmem:[#allocation2 + $0x48] sm:$0x3]
        %v2910 = vld [vmem:[#allocation2 + $0x50] sm:$0x3]
        %v2911 = vld [vmem:[#allocation2 + $0x58] sm:$0x3]
        %v2912 = vld [vmem:[#allocation2 + $0x60] sm:$0x3]
        %v2913 = vld [vmem:[#allocation2 + $0x68] sm:$0x3]
        %v2914 = vld [vmem:[#allocation2 + $0x70] sm:$0x3]
        %v2929 = vrot.slane %v2901, 3
        %v2930 = vrot.slane %v2902, 3
        %v2931 = vrot.slane %v2903, 3
        %v2932 = vrot.slane %v2904, 3
        %v2933 = vrot.slane %v2905, 3
        %v2934 = vrot.slane %v2906, 3
        %v2935 = vrot.slane %v2907, 3
        %v2936 = vrot.slane %v2908, 3
        %v2937 = vsel %vm2420, %v2929, %v2936
        %v2938 = vrot.slane %v2909, 3
        %v2939 = vsel %vm2420, %v2930, %v2938
        %v2940 = vrot.slane %v2910, 3
        %v2941 = vsel %vm2420, %v2931, %v2940
        %v2942 = vrot.slane %v2911, 3
        %v2943 = vsel %vm2420, %v2932, %v2942
        %v2944 = vrot.slane %v2912, 3
        %v2945 = vsel %vm2420, %v2933, %v2944
        %v2946 = vrot.slane %v2913, 3
        %v2947 = vsel %vm2420, %v2934, %v2946
        %v2948 = vrot.slane %v2914, 3
        %v2949 = vsel %vm2420, %v2935, %v2948
        %2950 = vrot.lane.b32.xlu0 %v2929, 16
        %v2951 = vpop.permute.xlu0 %2950
        %2952 = vrot.lane.b32.xlu0 %v2930, 16
        %v2953 = vpop.permute.xlu0 %2952
        %2954 = vrot.lane.b32.xlu0 %v2931, 16
        %v2955 = vpop.permute.xlu0 %2954
        %2956 = vrot.lane.b32.xlu0 %v2932, 16
        %v2957 = vpop.permute.xlu0 %2956
        %2958 = vrot.lane.b32.xlu0 %v2933, 16
        %v2959 = vpop.permute.xlu0 %2958
        %2960 = vrot.lane.b32.xlu0 %v2934, 16
        %v2961 = vpop.permute.xlu0 %2960
        %2962 = vrot.lane.b32.xlu0 %v2935, 16
        %v2963 = vpop.permute.xlu0 %2962
        %2964 = vrot.lane.b32.xlu0 %v2937, 16
        %v2965 = vpop.permute.xlu0 %2964
        %2966 = vrot.lane.b32.xlu0 %v2939, 16
        %v2967 = vpop.permute.xlu0 %2966
        %2968 = vrot.lane.b32.xlu0 %v2941, 16
        %v2969 = vpop.permute.xlu0 %2968
        %2970 = vrot.lane.b32.xlu0 %v2943, 16
        %v2971 = vpop.permute.xlu0 %2970
        %2972 = vrot.lane.b32.xlu0 %v2945, 16
        %v2973 = vpop.permute.xlu0 %2972
        %2974 = vrot.lane.b32.xlu0 %v2947, 16
        %v2975 = vpop.permute.xlu0 %2974
        %2976 = vrot.lane.b32.xlu0 %v2949, 16
        %v2977 = vpop.permute.xlu0 %2976
        %v2978 = vsel %vm172, %v2951, %v2953
        %v2979 = vsel %vm172, %v2953, %v2955
        %v2980 = vsel %vm172, %v2955, %v2957
        %v2981 = vsel %vm172, %v2957, %v2959
        %v2982 = vsel %vm172, %v2959, %v2961
        %v2983 = vsel %vm172, %v2961, %v2963
        %v2984 = vsel %vm172, %v2965, %v2967
        %v2985 = vsel %vm172, %v2967, %v2969
        %v2986 = vsel %vm172, %v2969, %v2971
        %v2987 = vsel %vm172, %v2971, %v2973
        %v2988 = vsel %vm172, %v2973, %v2975
        %v2989 = vsel %vm172, %v2975, %v2977
        %3004 = vst [vmem:[#allocation4 + $0x188] sm:$0xe0] %v2978
        %3005 = vst [vmem:[#allocation4 + $0x190] sm:$0xe0] %v2979
        %3006 = vst [vmem:[#allocation4 + $0x198] sm:$0xe0] %v2980
        %3007 = vst [vmem:[#allocation4 + $0x1a0] sm:$0xe0] %v2981
        %3008 = vst [vmem:[#allocation4 + $0x1a8] sm:$0xe0] %v2982
        %3009 = vst [vmem:[#allocation4 + $0x1b0] sm:$0xe0] %v2983
        %3010 = vst.msk [vmem:[#allocation4 + $0x1b8] sm:$0xe0] %vm2503, %v2963
        %3011 = vst [vmem:[#allocation4 + $0x1c0] sm:$0x7f] %v2984
        %3012 = vst [vmem:[#allocation4 + $0x1c8] sm:$0x7f] %v2985
        %3013 = vst [vmem:[#allocation4 + $0x1d0] sm:$0x7f] %v2986
        %3014 = vst [vmem:[#allocation4 + $0x1d8] sm:$0x7f] %v2987
        %3015 = vst [vmem:[#allocation4 + $0x1e0] sm:$0x7f] %v2988
        %3016 = vst [vmem:[#allocation4 + $0x1e8] sm:$0x7f] %v2989
        %3017 = vst.msk [vmem:[#allocation4 + $0x1f0] sm:$0x7f] %vm2511, %v2977
        %v3018 = vld [vmem:[#allocation2] sm:$0xff]
        %v3019 = vld [vmem:[#allocation2 + $0x8] sm:$0xff]
        %v3020 = vld [vmem:[#allocation2 + $0x10] sm:$0xff]
        %v3021 = vld [vmem:[#allocation2 + $0x18] sm:$0xff]
        %v3022 = vld [vmem:[#allocation2 + $0x20] sm:$0xff]
        %v3023 = vld [vmem:[#allocation2 + $0x28] sm:$0xff]
        %v3024 = vld [vmem:[#allocation2 + $0x30] sm:$0xff]
        %v3025 = vld [vmem:[#allocation2 + $0x38] sm:$0xff]
        %v3026 = vld [vmem:[#allocation2 + $0x40] sm:$0x3]
        %v3027 = vld [vmem:[#allocation2 + $0x48] sm:$0x3]
        %v3028 = vld [vmem:[#allocation2 + $0x50] sm:$0x3]
        %v3029 = vld [vmem:[#allocation2 + $0x58] sm:$0x3]
        %v3030 = vld [vmem:[#allocation2 + $0x60] sm:$0x3]
        %v3031 = vld [vmem:[#allocation2 + $0x68] sm:$0x3]
        %v3032 = vld [vmem:[#allocation2 + $0x70] sm:$0x3]
        %v3033 = vld [vmem:[#allocation2 + $0x78] sm:$0x3]
        %v3050 = vrot.slane %v3018, 1
        %v3051 = vrot.slane %v3019, 1
        %v3052 = vrot.slane %v3020, 1
        %v3053 = vrot.slane %v3021, 1
        %v3054 = vrot.slane %v3022, 1
        %v3055 = vrot.slane %v3023, 1
        %v3056 = vrot.slane %v3024, 1
        %v3057 = vrot.slane %v3025, 1
        %v3058 = vrot.slane %v3026, 1
        %v3059 = vsel %vm2541, %v3050, %v3058
        %v3060 = vrot.slane %v3027, 1
        %v3061 = vsel %vm2541, %v3051, %v3060
        %v3062 = vrot.slane %v3028, 1
        %v3063 = vsel %vm2541, %v3052, %v3062
        %v3064 = vrot.slane %v3029, 1
        %v3065 = vsel %vm2541, %v3053, %v3064
        %v3066 = vrot.slane %v3030, 1
        %v3067 = vsel %vm2541, %v3054, %v3066
        %v3068 = vrot.slane %v3031, 1
        %v3069 = vsel %vm2541, %v3055, %v3068
        %v3070 = vrot.slane %v3032, 1
        %v3071 = vsel %vm2541, %v3056, %v3070
        %v3072 = vrot.slane %v3033, 1
        %v3073 = vsel %vm2541, %v3057, %v3072
        %3074 = vrot.lane.b32.xlu0 %v3050, 14
        %v3075 = vpop.permute.xlu0 %3074
        %3076 = vrot.lane.b32.xlu0 %v3051, 14
        %v3077 = vpop.permute.xlu0 %3076
        %3078 = vrot.lane.b32.xlu0 %v3052, 14
        %v3079 = vpop.permute.xlu0 %3078
        %3080 = vrot.lane.b32.xlu0 %v3053, 14
        %v3081 = vpop.permute.xlu0 %3080
        %3082 = vrot.lane.b32.xlu0 %v3054, 14
        %v3083 = vpop.permute.xlu0 %3082
        %3084 = vrot.lane.b32.xlu0 %v3055, 14
        %v3085 = vpop.permute.xlu0 %3084
        %3086 = vrot.lane.b32.xlu0 %v3056, 14
        %v3087 = vpop.permute.xlu0 %3086
        %3088 = vrot.lane.b32.xlu0 %v3057, 14
        %v3089 = vpop.permute.xlu0 %3088
        %3090 = vrot.lane.b32.xlu0 %v3059, 14
        %v3091 = vpop.permute.xlu0 %3090
        %3092 = vrot.lane.b32.xlu0 %v3061, 14
        %v3093 = vpop.permute.xlu0 %3092
        %3094 = vrot.lane.b32.xlu0 %v3063, 14
        %v3095 = vpop.permute.xlu0 %3094
        %3096 = vrot.lane.b32.xlu0 %v3065, 14
        %v3097 = vpop.permute.xlu0 %3096
        %3098 = vrot.lane.b32.xlu0 %v3067, 14
        %v3099 = vpop.permute.xlu0 %3098
        %3100 = vrot.lane.b32.xlu0 %v3069, 14
        %v3101 = vpop.permute.xlu0 %3100
        %3102 = vrot.lane.b32.xlu0 %v3071, 14
        %v3103 = vpop.permute.xlu0 %3102
        %3104 = vrot.lane.b32.xlu0 %v3073, 14
        %v3105 = vpop.permute.xlu0 %3104
        %3106 = vrot.lane.b32.xlu0 %v3058, 14
        %v3107 = vpop.permute.xlu0 %3106
        %3108 = vrot.lane.b32.xlu0 %v3060, 14
        %v3109 = vpop.permute.xlu0 %3108
        %3110 = vrot.lane.b32.xlu0 %v3062, 14
        %v3111 = vpop.permute.xlu0 %3110
        %3112 = vrot.lane.b32.xlu0 %v3064, 14
        %v3113 = vpop.permute.xlu0 %3112
        %3114 = vrot.lane.b32.xlu0 %v3066, 14
        %v3115 = vpop.permute.xlu0 %3114
        %3116 = vrot.lane.b32.xlu0 %v3068, 14
        %v3117 = vpop.permute.xlu0 %3116
        %3118 = vrot.lane.b32.xlu0 %v3070, 14
        %v3119 = vpop.permute.xlu0 %3118
        %3120 = vrot.lane.b32.xlu0 %v3072, 14
        %v3121 = vpop.permute.xlu0 %3120
        %vm3122 = vcmask 113664
        %v3123 = vsel %vm3122, %v3075, %v3077
        %v3124 = vsel %vm3122, %v3077, %v3079
        %v3125 = vsel %vm3122, %v3079, %v3081
        %v3126 = vsel %vm3122, %v3081, %v3083
        %v3127 = vsel %vm3122, %v3083, %v3085
        %v3128 = vsel %vm3122, %v3085, %v3087
        %v3129 = vsel %vm3122, %v3087, %v3089
        %v3130 = vsel %vm3122, %v3091, %v3093
        %v3131 = vsel %vm3122, %v3093, %v3095
        %v3132 = vsel %vm3122, %v3095, %v3097
        %v3133 = vsel %vm3122, %v3097, %v3099
        %v3134 = vsel %vm3122, %v3099, %v3101
        %v3135 = vsel %vm3122, %v3101, %v3103
        %v3136 = vsel %vm3122, %v3103, %v3105
        %v3137 = vsel %vm3122, %v3107, %v3109
        %v3138 = vsel %vm3122, %v3109, %v3111
        %v3139 = vsel %vm3122, %v3111, %v3113
        %v3140 = vsel %vm3122, %v3113, %v3115
        %v3141 = vsel %vm3122, %v3115, %v3117
        %v3142 = vsel %vm3122, %v3117, %v3119
        %v3143 = vsel %vm3122, %v3119, %v3121
        %3165 = vst [vmem:[#allocation4 + $0x1c0] sm:$0x80] %v3123
        %3166 = vst [vmem:[#allocation4 + $0x1c8] sm:$0x80] %v3124
        %3167 = vst [vmem:[#allocation4 + $0x1d0] sm:$0x80] %v3125
        %3168 = vst [vmem:[#allocation4 + $0x1d8] sm:$0x80] %v3126
        %3169 = vst [vmem:[#allocation4 + $0x1e0] sm:$0x80] %v3127
        %3170 = vst [vmem:[#allocation4 + $0x1e8] sm:$0x80] %v3128
        %3171 = vst.msk [vmem:[#allocation4 + $0x1f0] sm:$0x80] %vm2650, %v3129
        %3172 = vst [vmem:[#allocation4 + $0x1f8] sm:$0xff] %v3130
        %3173 = vst [vmem:[#allocation4 + $0x200] sm:$0xff] %v3131
        %3174 = vst [vmem:[#allocation4 + $0x208] sm:$0xff] %v3132
        %3175 = vst [vmem:[#allocation4 + $0x210] sm:$0xff] %v3133
        %3176 = vst [vmem:[#allocation4 + $0x218] sm:$0xff] %v3134
        %3177 = vst [vmem:[#allocation4 + $0x220] sm:$0xff] %v3135
        %3178 = vst.msk [vmem:[#allocation4 + $0x228] sm:$0xff] %vm172, %v3136
        %3179 = vst [vmem:[#allocation4 + $0x230] sm:$0x1] %v3137
        %3180 = vst [vmem:[#allocation4 + $0x238] sm:$0x1] %v3138
        %3181 = vst [vmem:[#allocation4 + $0x240] sm:$0x1] %v3139
        %3182 = vst [vmem:[#allocation4 + $0x248] sm:$0x1] %v3140
        %3183 = vst [vmem:[#allocation4 + $0x250] sm:$0x1] %v3141
        %3184 = vst [vmem:[#allocation4 + $0x258] sm:$0x1] %v3142
        %3185 = vst.msk [vmem:[#allocation4 + $0x260] sm:$0x1] %vm697, %v3143
        %v3186 = vld [vmem:[#allocation2] sm:$0xff]
        %v3187 = vld [vmem:[#allocation2 + $0x8] sm:$0xff]
        %v3188 = vld [vmem:[#allocation2 + $0x10] sm:$0xff]
        %v3189 = vld [vmem:[#allocation2 + $0x18] sm:$0xff]
        %v3190 = vld [vmem:[#allocation2 + $0x20] sm:$0xff]
        %v3191 = vld [vmem:[#allocation2 + $0x28] sm:$0xff]
        %v3192 = vld [vmem:[#allocation2 + $0x30] sm:$0xff]
        %v3193 = vld [vmem:[#allocation2 + $0x38] sm:$0xff]
        %v3194 = vld [vmem:[#allocation2 + $0x40] sm:$0x3]
        %v3195 = vld [vmem:[#allocation2 + $0x48] sm:$0x3]
        %v3196 = vld [vmem:[#allocation2 + $0x50] sm:$0x3]
        %v3197 = vld [vmem:[#allocation2 + $0x58] sm:$0x3]
        %v3198 = vld [vmem:[#allocation2 + $0x60] sm:$0x3]
        %v3199 = vld [vmem:[#allocation2 + $0x68] sm:$0x3]
        %v3200 = vld [vmem:[#allocation2 + $0x70] sm:$0x3]
        %v3201 = vld [vmem:[#allocation2 + $0x78] sm:$0x3]
        %v3218 = vrot.slane %v3186, 7
        %v3219 = vrot.slane %v3187, 7
        %v3220 = vrot.slane %v3188, 7
        %v3221 = vrot.slane %v3189, 7
        %v3222 = vrot.slane %v3190, 7
        %v3223 = vrot.slane %v3191, 7
        %v3224 = vrot.slane %v3192, 7
        %v3225 = vrot.slane %v3193, 7
        %v3226 = vrot.slane %v3194, 7
        %v3227 = vsel %vm1278, %v3218, %v3226
        %v3228 = vrot.slane %v3195, 7
        %v3229 = vsel %vm1278, %v3219, %v3228
        %v3230 = vrot.slane %v3196, 7
        %v3231 = vsel %vm1278, %v3220, %v3230
        %v3232 = vrot.slane %v3197, 7
        %v3233 = vsel %vm1278, %v3221, %v3232
        %v3234 = vrot.slane %v3198, 7
        %v3235 = vsel %vm1278, %v3222, %v3234
        %v3236 = vrot.slane %v3199, 7
        %v3237 = vsel %vm1278, %v3223, %v3236
        %v3238 = vrot.slane %v3200, 7
        %v3239 = vsel %vm1278, %v3224, %v3238
        %v3240 = vrot.slane %v3201, 7
        %v3241 = vsel %vm1278, %v3225, %v3240
        %3242 = vrot.lane.b32.xlu0 %v3218, 12
        %v3243 = vpop.permute.xlu0 %3242
        %3244 = vrot.lane.b32.xlu0 %v3219, 12
        %v3245 = vpop.permute.xlu0 %3244
        %3246 = vrot.lane.b32.xlu0 %v3220, 12
        %v3247 = vpop.permute.xlu0 %3246
        %3248 = vrot.lane.b32.xlu0 %v3221, 12
        %v3249 = vpop.permute.xlu0 %3248
        %3250 = vrot.lane.b32.xlu0 %v3222, 12
        %v3251 = vpop.permute.xlu0 %3250
        %3252 = vrot.lane.b32.xlu0 %v3223, 12
        %v3253 = vpop.permute.xlu0 %3252
        %3254 = vrot.lane.b32.xlu0 %v3224, 12
        %v3255 = vpop.permute.xlu0 %3254
        %3256 = vrot.lane.b32.xlu0 %v3225, 12
        %v3257 = vpop.permute.xlu0 %3256
        %3258 = vrot.lane.b32.xlu0 %v3227, 12
        %v3259 = vpop.permute.xlu0 %3258
        %3260 = vrot.lane.b32.xlu0 %v3229, 12
        %v3261 = vpop.permute.xlu0 %3260
        %3262 = vrot.lane.b32.xlu0 %v3231, 12
        %v3263 = vpop.permute.xlu0 %3262
        %3264 = vrot.lane.b32.xlu0 %v3233, 12
        %v3265 = vpop.permute.xlu0 %3264
        %3266 = vrot.lane.b32.xlu0 %v3235, 12
        %v3267 = vpop.permute.xlu0 %3266
        %3268 = vrot.lane.b32.xlu0 %v3237, 12
        %v3269 = vpop.permute.xlu0 %3268
        %3270 = vrot.lane.b32.xlu0 %v3239, 12
        %v3271 = vpop.permute.xlu0 %3270
        %3272 = vrot.lane.b32.xlu0 %v3241, 12
        %v3273 = vpop.permute.xlu0 %3272
        %vm3274 = vcmask 97280
        %v3275 = vsel %vm3274, %v3243, %v3245
        %v3276 = vsel %vm3274, %v3245, %v3247
        %v3277 = vsel %vm3274, %v3247, %v3249
        %v3278 = vsel %vm3274, %v3249, %v3251
        %v3279 = vsel %vm3274, %v3251, %v3253
        %v3280 = vsel %vm3274, %v3253, %v3255
        %v3281 = vsel %vm3274, %v3255, %v3257
        %v3282 = vsel %vm3274, %v3259, %v3261
        %v3283 = vsel %vm3274, %v3261, %v3263
        %v3284 = vsel %vm3274, %v3263, %v3265
        %v3285 = vsel %vm3274, %v3265, %v3267
        %v3286 = vsel %vm3274, %v3267, %v3269
        %v3287 = vsel %vm3274, %v3269, %v3271
        %v3288 = vsel %vm3274, %v3271, %v3273
        %3303 = vst [vmem:[#allocation4 + $0x230] sm:$0xfe] %v3275
        %3304 = vst [vmem:[#allocation4 + $0x238] sm:$0xfe] %v3276
        %3305 = vst [vmem:[#allocation4 + $0x240] sm:$0xfe] %v3277
        %3306 = vst [vmem:[#allocation4 + $0x248] sm:$0xfe] %v3278
        %3307 = vst [vmem:[#allocation4 + $0x250] sm:$0xfe] %v3279
        %3308 = vst [vmem:[#allocation4 + $0x258] sm:$0xfe] %v3280
        %3309 = vst.msk [vmem:[#allocation4 + $0x260] sm:$0xfe] %vm689, %v3281
        %3310 = vst [vmem:[#allocation4 + $0x268] sm:$0x7] %v3282
        %3311 = vst [vmem:[#allocation4 + $0x270] sm:$0x7] %v3283
        %3312 = vst [vmem:[#allocation4 + $0x278] sm:$0x7] %v3284
        %3313 = vst [vmem:[#allocation4 + $0x280] sm:$0x7] %v3285
        %3314 = vst [vmem:[#allocation4 + $0x288] sm:$0x7] %v3286
        %3315 = vst [vmem:[#allocation4 + $0x290] sm:$0x7] %v3287
        %3316 = vst.msk [vmem:[#allocation4 + $0x298] sm:$0x7] %vm2270, %v3288
        %v3317 = vld [vmem:[%s1] sm:$0xff]
        %v3318 = vld [vmem:[%s1 + $0x8] sm:$0xff]
        %v3319 = vld [vmem:[%s1 + $0x28] sm:$0xf]
        %v3320 = vld [vmem:[%s1 + $0x30] sm:$0xf]
        %v3321 = vld [vmem:[#allocation4] sm:$0xff]
        %v3322 = vld [vmem:[#allocation4 + $0x8] sm:$0xff]
        %v3323 = vld [vmem:[#allocation4 + $0x10] sm:$0xff]
        %v3324 = vld [vmem:[#allocation4 + $0x18] sm:$0xff]
        %v3325 = vld [vmem:[#allocation4 + $0x20] sm:$0xff]
        %v3326 = vld [vmem:[#allocation4 + $0x28] sm:$0xff]
        %v3327 = vld [vmem:[#allocation4 + $0x30] sm:$0xff]
        %v3328 = vld [vmem:[#allocation4 + $0x38] sm:$0xff]
        %v3329 = vld [vmem:[#allocation4 + $0x40] sm:$0xff]
        %v3330 = vld [vmem:[#allocation4 + $0x48] sm:$0xff]
        %v3331 = vld [vmem:[#allocation4 + $0x50] sm:$0xff]
        %v3332 = vld [vmem:[#allocation4 + $0x58] sm:$0xff]
        %v3333 = vld [vmem:[#allocation4 + $0x60] sm:$0xff]
        %v3334 = vld [vmem:[#allocation4 + $0x68] sm:$0xff]
        %v3335 = vld [vmem:[#allocation4 + $0x70] sm:$0xff]
        %v3336 = vld [vmem:[#allocation4 + $0x78] sm:$0xff]
        %v3337 = vld [vmem:[#allocation4 + $0x80] sm:$0xff]
        %v3338 = vld [vmem:[#allocation4 + $0x88] sm:$0xff]
        %v3339 = vld [vmem:[#allocation4 + $0x90] sm:$0xff]
        %v3340 = vld [vmem:[#allocation4 + $0x98] sm:$0xff]
        %v3341 = vld [vmem:[#allocation4 + $0xa0] sm:$0xff]
        %v3342 = vld [vmem:[#allocation4 + $0xa8] sm:$0xff]
        %v3343 = vld [vmem:[#allocation4 + $0xb0] sm:$0xff]
        %v3344 = vld [vmem:[#allocation4 + $0xb8] sm:$0xff]
        %v3345 = vld [vmem:[#allocation4 + $0xc0] sm:$0xff]
        %v3346 = vld [vmem:[#allocation4 + $0xc8] sm:$0xff]
        %v3347 = vld [vmem:[#allocation4 + $0xd0] sm:$0xff]
        %v3348 = vld [vmem:[#allocation4 + $0xd8] sm:$0xff]
        %v3349 = vld [vmem:[#allocation4 + $0xe0] sm:$0xff]
        %v3350 = vld [vmem:[#allocation4 + $0xe8] sm:$0xff]
        %v3351 = vld [vmem:[#allocation4 + $0xf0] sm:$0xff]
        %v3352 = vld [vmem:[#allocation4 + $0xf8] sm:$0xff]
        %v3353 = vld [vmem:[#allocation4 + $0x100] sm:$0xff]
        %v3354 = vld [vmem:[#allocation4 + $0x108] sm:$0xff]
        %v3355 = vld [vmem:[#allocation4 + $0x110] sm:$0xff]
        %v3356 = vld [vmem:[#allocation4 + $0x118] sm:$0xff]
        %v3357 = vld [vmem:[#allocation4 + $0x120] sm:$0xff]
        %v3358 = vld [vmem:[#allocation4 + $0x128] sm:$0xff]
        %v3359 = vld [vmem:[#allocation4 + $0x130] sm:$0xff]
        %v3360 = vld [vmem:[#allocation4 + $0x138] sm:$0xff]
        %v3361 = vld [vmem:[#allocation4 + $0x140] sm:$0xff]
        %v3362 = vld [vmem:[#allocation4 + $0x148] sm:$0xff]
        %v3363 = vld [vmem:[#allocation4 + $0x150] sm:$0xff]
        %v3364 = vld [vmem:[#allocation4 + $0x158] sm:$0xff]
        %v3365 = vld [vmem:[#allocation4 + $0x160] sm:$0xff]
        %v3366 = vld [vmem:[#allocation4 + $0x168] sm:$0xff]
        %v3367 = vld [vmem:[#allocation4 + $0x170] sm:$0xff]
        %v3368 = vld [vmem:[#allocation4 + $0x178] sm:$0xff]
        %v3369 = vld [vmem:[#allocation4 + $0x180] sm:$0xff]
        %v3370 = vld [vmem:[#allocation4 + $0x188] sm:$0xff]
        %v3371 = vld [vmem:[#allocation4 + $0x190] sm:$0xff]
        %v3372 = vld [vmem:[#allocation4 + $0x198] sm:$0xff]
        %v3373 = vld [vmem:[#allocation4 + $0x1a0] sm:$0xff]
        %v3374 = vld [vmem:[#allocation4 + $0x1a8] sm:$0xff]
        %v3375 = vld [vmem:[#allocation4 + $0x1b0] sm:$0xff]
        %v3376 = vld [vmem:[#allocation4 + $0x1b8] sm:$0xff]
        %v3377 = vld [vmem:[#allocation4 + $0x1c0] sm:$0xff]
        %v3378 = vld [vmem:[#allocation4 + $0x1c8] sm:$0xff]
        %v3379 = vld [vmem:[#allocation4 + $0x1d0] sm:$0xff]
        %v3380 = vld [vmem:[#allocation4 + $0x1d8] sm:$0xff]
        %v3381 = vld [vmem:[#allocation4 + $0x1e0] sm:$0xff]
        %v3382 = vld [vmem:[#allocation4 + $0x1e8] sm:$0xff]
        %v3383 = vld [vmem:[#allocation4 + $0x1f0] sm:$0xff]
        %v3384 = vld [vmem:[#allocation4 + $0x1f8] sm:$0xff]
        %v3385 = vld [vmem:[#allocation4 + $0x200] sm:$0xff]
        %v3386 = vld [vmem:[#allocation4 + $0x208] sm:$0xff]
        %v3387 = vld [vmem:[#allocation4 + $0x210] sm:$0xff]
        %v3388 = vld [vmem:[#allocation4 + $0x218] sm:$0xff]
        %v3389 = vld [vmem:[#allocation4 + $0x220] sm:$0xff]
        %v3390 = vld [vmem:[#allocation4 + $0x228] sm:$0xff]
        %v3391 = vld [vmem:[#allocation4 + $0x230] sm:$0xff]
        %v3392 = vld [vmem:[#allocation4 + $0x238] sm:$0xff]
        %v3393 = vld [vmem:[#allocation4 + $0x240] sm:$0xff]
        %v3394 = vld [vmem:[#allocation4 + $0x248] sm:$0xff]
        %v3395 = vld [vmem:[#allocation4 + $0x250] sm:$0xff]
        %v3396 = vld [vmem:[#allocation4 + $0x258] sm:$0xff]
        %v3397 = vld [vmem:[#allocation4 + $0x260] sm:$0xff]
        %v3398 = vld [vmem:[#allocation4 + $0x268] sm:$0x7]
        %v3399 = vld [vmem:[#allocation4 + $0x270] sm:$0x7]
        %v3400 = vld [vmem:[#allocation4 + $0x278] sm:$0x7]
        %v3401 = vld [vmem:[#allocation4 + $0x280] sm:$0x7]
        %v3402 = vld [vmem:[#allocation4 + $0x288] sm:$0x7]
        %v3403 = vld [vmem:[#allocation4 + $0x290] sm:$0x7]
        %v3404 = vld [vmem:[#allocation4 + $0x298] sm:$0x7]
        %3409 = vrot.lane.b32.xlu0 %v3317, 34
        %v3410 = vpop.permute.xlu0 %3409
        %3411 = vrot.lane.b32.xlu0 %v3318, 34
        %v3412 = vpop.permute.xlu0 %3411
        %3413 = vrot.lane.b32.xlu0 %v3319, 34
        %v3414 = vpop.permute.xlu0 %3413
        %3415 = vrot.lane.b32.xlu0 %v3320, 34
        %v3416 = vpop.permute.xlu0 %3415
        %vm3417 = vcmask 277504
        %v3418 = vsel %vm3417, %v3410, %v3412
        %v3419 = vsel %vm3417, %v3414, %v3416
        %vm3420 = vcmask 744448
        %v3421 = vsel %vm3420, %v3418, 0
        %v3423 = vsel %vm3420, %v3419, 0
        %v3426 = vsel %vm2300, %v3398, 0
        %v3429 = vsel %vm2300, %v3399, 0
        %v3432 = vsel %vm2300, %v3400, 0
        %v3435 = vsel %vm2300, %v3401, 0
        %v3438 = vsel %vm2300, %v3402, 0
        %v3441 = vsel %vm2300, %v3403, 0
        %v3444 = vsel %vm2300, %v3404, 0
        %3446 = vmatprep.subr.mxu0 0.0
        %3447 = vmatpush1.msra.mxu0 0.0
        %3448 = vmatprep.subr.mxu0 0.0
        %3449 = vmatpush1.msra.mxu0 0.0
        %3450 = vmatprep.subr.mxu0 0.0
        %3451 = vmatpush1.msra.mxu0 0.0
        %3452 = vmatprep.subr.mxu0 0.0
        %3453 = vmatpush1.msra.mxu0 0.0
        %3454 = vmatprep.subr.mxu0 %v3429
        %3455 = vmatpush1.msra.mxu0 %v3426
        %3456 = vmatprep.subr.mxu0 %v3392
        %3457 = vmatpush1.msra.mxu0 %v3391
        %3458 = vmatprep.subr.mxu0 %v3385
        %3459 = vmatpush1.msra.mxu0 %v3384
        %3460 = vmatprep.subr.mxu0 %v3378
        %3461 = vmatpush1.msra.mxu0 %v3377
        %3462 = vmatprep.subr.mxu0 %v3371
        %3463 = vmatpush1.msra.mxu0 %v3370
        %3464 = vmatprep.subr.mxu0 %v3364
        %3465 = vmatpush1.msra.mxu0 %v3363
        %3466 = vmatprep.subr.mxu0 %v3357
        %3467 = vmatpush1.msra.mxu0 %v3356
        %3468 = vmatprep.subr.mxu0 %v3350
        %3469 = vmatpush1.msra.mxu0 %v3349
        %3470 = vmatprep.subr.mxu0 %v3343
        %3471 = vmatpush1.msra.mxu0 %v3342
        %3472 = vmatprep.subr.mxu0 %v3336
        %3473 = vmatpush1.msra.mxu0 %v3335
        %3474 = vmatprep.subr.mxu0 %v3329
        %3475 = vmatpush1.msra.mxu0 %v3328
        %3476 = vmatprep.subr.mxu0 %v3322
        %3477 = vmatpush1.msra.mxu0 %v3321
        %3478 = vmatprep.subr.mxu0 0.0
        %3479 = vmatpush2.msra.mxu0 0.0
        %3480 = vmatprep.subr.mxu0 0.0
        %3481 = vmatpush2.msra.mxu0 0.0
        %3482 = vmatprep.subr.mxu0 0.0
        %3483 = vmatpush2.msra.mxu0 0.0
        %3484 = vmatprep.subr.mxu0 0.0
        %3485 = vmatpush2.msra.mxu0 0.0
        %3486 = vmatprep.subr.mxu0 0.0
        %3487 = vmatpush2.msra.mxu0 0.0
        %3488 = vmatprep.subr.mxu0 0.0
        %3489 = vmatpush2.msra.mxu0 0.0
        %3490 = vmatprep.subr.mxu0 0.0
        %3491 = vmatpush2.msra.mxu0 0.0
        %3492 = vmatprep.subr.mxu0 0.0
        %3493 = vmatpush2.msra.mxu0 0.0
        %3494 = vmatprep.subr.mxu0 0.0
        %3495 = vmatpush2.msra.mxu0 0.0
        %3496 = vmatprep.subr.mxu0 0.0
        %3497 = vmatpush2.msra.mxu0 0.0
        %3498 = vmatprep.subr.mxu0 0.0
        %3499 = vmatpush2.msra.mxu0 0.0
        %3500 = vmatprep.subr.mxu0 0.0
        %3501 = vmatpush2.msra.mxu0 0.0
        %3502 = vmatprep.subr.mxu0 0.0
        %3503 = vmatpush2.msra.mxu0 0.0
        %3504 = vmatprep.subr.mxu0 0.0
        %3505 = vmatpush2.msra.mxu0 0.0
        %3506 = vmatprep.subr.mxu0 0.0
        %3507 = vmatpush2.msra.mxu0 0.0
        %3508 = vmatprep.subr.mxu0 0.0
        %3509 = vmatpush2.msra.mxu0 0.0
        %3510 = vmatprep.mubr.f32.mxu0 0.0
        %3511 = vmatmul.mubr.f32.gmra.mxu0 %v3421
        %v3512 = vpop.f32.mrf.mxu0
        %v3513 = vadd.f32 0.0, %v3512
        %v3514 = vpop.f32.mrf.mxu0
        %v3515 = vadd.f32 0.0, %v3514
        %3516 = vmatprep.mubr.f32.mxu0 0.0
        %3517 = vmatmul.mubr.f32.gmra.mxu0 %v3423
        %v3518 = vpop.f32.mrf.mxu0
        %v3519 = vadd.f32 0.0, %v3518
        %v3520 = vpop.f32.mrf.mxu0
        %v3521 = vadd.f32 0.0, %v3520
        %3522 = vdwg.mxu0
        %3523 = vmatprep.subr.mxu0 0.0
        %3524 = vmatpush1.msra.mxu0 0.0
        %3525 = vmatprep.subr.mxu0 0.0
        %3526 = vmatpush1.msra.mxu0 0.0
        %3527 = vmatprep.subr.mxu0 0.0
        %3528 = vmatpush1.msra.mxu0 0.0
        %3529 = vmatprep.subr.mxu0 0.0
        %3530 = vmatpush1.msra.mxu0 0.0
        %3531 = vmatprep.subr.mxu0 %v3435
        %3532 = vmatpush1.msra.mxu0 %v3432
        %3533 = vmatprep.subr.mxu0 %v3394
        %3534 = vmatpush1.msra.mxu0 %v3393
        %3535 = vmatprep.subr.mxu0 %v3387
        %3536 = vmatpush1.msra.mxu0 %v3386
        %3537 = vmatprep.subr.mxu0 %v3380
        %3538 = vmatpush1.msra.mxu0 %v3379
        %3539 = vmatprep.subr.mxu0 %v3373
        %3540 = vmatpush1.msra.mxu0 %v3372
        %3541 = vmatprep.subr.mxu0 %v3366
        %3542 = vmatpush1.msra.mxu0 %v3365
        %3543 = vmatprep.subr.mxu0 %v3359
        %3544 = vmatpush1.msra.mxu0 %v3358
        %3545 = vmatprep.subr.mxu0 %v3352
        %3546 = vmatpush1.msra.mxu0 %v3351
        %3547 = vmatprep.subr.mxu0 %v3345
        %3548 = vmatpush1.msra.mxu0 %v3344
        %3549 = vmatprep.subr.mxu0 %v3338
        %3550 = vmatpush1.msra.mxu0 %v3337
        %3551 = vmatprep.subr.mxu0 %v3331
        %3552 = vmatpush1.msra.mxu0 %v3330
        %3553 = vmatprep.subr.mxu0 %v3324
        %3554 = vmatpush1.msra.mxu0 %v3323
        %3555 = vmatprep.subr.mxu0 0.0
        %3556 = vmatpush2.msra.mxu0 0.0
        %3557 = vmatprep.subr.mxu0 0.0
        %3558 = vmatpush2.msra.mxu0 0.0
        %3559 = vmatprep.subr.mxu0 0.0
        %3560 = vmatpush2.msra.mxu0 0.0
        %3561 = vmatprep.subr.mxu0 0.0
        %3562 = vmatpush2.msra.mxu0 0.0
        %3563 = vmatprep.subr.mxu0 0.0
        %3564 = vmatpush2.msra.mxu0 0.0
        %3565 = vmatprep.subr.mxu0 0.0
        %3566 = vmatpush2.msra.mxu0 0.0
        %3567 = vmatprep.subr.mxu0 0.0
        %3568 = vmatpush2.msra.mxu0 0.0
        %3569 = vmatprep.subr.mxu0 0.0
        %3570 = vmatpush2.msra.mxu0 0.0
        %3571 = vmatprep.subr.mxu0 0.0
        %3572 = vmatpush2.msra.mxu0 0.0
        %3573 = vmatprep.subr.mxu0 0.0
        %3574 = vmatpush2.msra.mxu0 0.0
        %3575 = vmatprep.subr.mxu0 0.0
        %3576 = vmatpush2.msra.mxu0 0.0
        %3577 = vmatprep.subr.mxu0 0.0
        %3578 = vmatpush2.msra.mxu0 0.0
        %3579 = vmatprep.subr.mxu0 0.0
        %3580 = vmatpush2.msra.mxu0 0.0
        %3581 = vmatprep.subr.mxu0 0.0
        %3582 = vmatpush2.msra.mxu0 0.0
        %3583 = vmatprep.subr.mxu0 0.0
        %3584 = vmatpush2.msra.mxu0 0.0
        %3585 = vmatprep.subr.mxu0 0.0
        %3586 = vmatpush2.msra.mxu0 0.0
        %3587 = vmatprep.mubr.f32.mxu0 0.0
        %3588 = vmatmul.mubr.f32.gmra.mxu0 %v3421
        %v3589 = vpop.f32.mrf.mxu0
        %v3590 = vadd.f32 0.0, %v3589
        %v3591 = vpop.f32.mrf.mxu0
        %v3592 = vadd.f32 0.0, %v3591
        %3593 = vmatprep.mubr.f32.mxu0 0.0
        %3594 = vmatmul.mubr.f32.gmra.mxu0 %v3423
        %v3595 = vpop.f32.mrf.mxu0
        %v3596 = vadd.f32 0.0, %v3595
        %v3597 = vpop.f32.mrf.mxu0
        %v3598 = vadd.f32 0.0, %v3597
        %3599 = vdwg.mxu0
        %3600 = vmatprep.subr.mxu0 0.0
        %3601 = vmatpush1.msra.mxu0 0.0
        %3602 = vmatprep.subr.mxu0 0.0
        %3603 = vmatpush1.msra.mxu0 0.0
        %3604 = vmatprep.subr.mxu0 0.0
        %3605 = vmatpush1.msra.mxu0 0.0
        %3606 = vmatprep.subr.mxu0 0.0
        %3607 = vmatpush1.msra.mxu0 0.0
        %3608 = vmatprep.subr.mxu0 %v3441
        %3609 = vmatpush1.msra.mxu0 %v3438
        %3610 = vmatprep.subr.mxu0 %v3396
        %3611 = vmatpush1.msra.mxu0 %v3395
        %3612 = vmatprep.subr.mxu0 %v3389
        %3613 = vmatpush1.msra.mxu0 %v3388
        %3614 = vmatprep.subr.mxu0 %v3382
        %3615 = vmatpush1.msra.mxu0 %v3381
        %3616 = vmatprep.subr.mxu0 %v3375
        %3617 = vmatpush1.msra.mxu0 %v3374
        %3618 = vmatprep.subr.mxu0 %v3368
        %3619 = vmatpush1.msra.mxu0 %v3367
        %3620 = vmatprep.subr.mxu0 %v3361
        %3621 = vmatpush1.msra.mxu0 %v3360
        %3622 = vmatprep.subr.mxu0 %v3354
        %3623 = vmatpush1.msra.mxu0 %v3353
        %3624 = vmatprep.subr.mxu0 %v3347
        %3625 = vmatpush1.msra.mxu0 %v3346
        %3626 = vmatprep.subr.mxu0 %v3340
        %3627 = vmatpush1.msra.mxu0 %v3339
        %3628 = vmatprep.subr.mxu0 %v3333
        %3629 = vmatpush1.msra.mxu0 %v3332
        %3630 = vmatprep.subr.mxu0 %v3326
        %3631 = vmatpush1.msra.mxu0 %v3325
        %3632 = vmatprep.subr.mxu0 0.0
        %3633 = vmatpush2.msra.mxu0 0.0
        %3634 = vmatprep.subr.mxu0 0.0
        %3635 = vmatpush2.msra.mxu0 0.0
        %3636 = vmatprep.subr.mxu0 0.0
        %3637 = vmatpush2.msra.mxu0 0.0
        %3638 = vmatprep.subr.mxu0 0.0
        %3639 = vmatpush2.msra.mxu0 0.0
        %3640 = vmatprep.subr.mxu0 0.0
        %3641 = vmatpush2.msra.mxu0 0.0
        %3642 = vmatprep.subr.mxu0 0.0
        %3643 = vmatpush2.msra.mxu0 0.0
        %3644 = vmatprep.subr.mxu0 0.0
        %3645 = vmatpush2.msra.mxu0 0.0
        %3646 = vmatprep.subr.mxu0 0.0
        %3647 = vmatpush2.msra.mxu0 0.0
        %3648 = vmatprep.subr.mxu0 0.0
        %3649 = vmatpush2.msra.mxu0 0.0
        %3650 = vmatprep.subr.mxu0 0.0
        %3651 = vmatpush2.msra.mxu0 0.0
        %3652 = vmatprep.subr.mxu0 0.0
        %3653 = vmatpush2.msra.mxu0 0.0
        %3654 = vmatprep.subr.mxu0 0.0
        %3655 = vmatpush2.msra.mxu0 0.0
        %3656 = vmatprep.subr.mxu0 0.0
        %3657 = vmatpush2.msra.mxu0 0.0
        %3658 = vmatprep.subr.mxu0 0.0
        %3659 = vmatpush2.msra.mxu0 0.0
        %3660 = vmatprep.subr.mxu0 0.0
        %3661 = vmatpush2.msra.mxu0 0.0
        %3662 = vmatprep.subr.mxu0 0.0
        %3663 = vmatpush2.msra.mxu0 0.0
        %3664 = vmatprep.mubr.f32.mxu0 0.0
        %3665 = vmatmul.mubr.f32.gmra.mxu0 %v3421
        %v3666 = vpop.f32.mrf.mxu0
        %v3667 = vadd.f32 0.0, %v3666
        %v3668 = vpop.f32.mrf.mxu0
        %v3669 = vadd.f32 0.0, %v3668
        %3670 = vmatprep.mubr.f32.mxu0 0.0
        %3671 = vmatmul.mubr.f32.gmra.mxu0 %v3423
        %v3672 = vpop.f32.mrf.mxu0
        %v3673 = vadd.f32 0.0, %v3672
        %v3674 = vpop.f32.mrf.mxu0
        %v3675 = vadd.f32 0.0, %v3674
        %3676 = vdwg.mxu0
        %3677 = vmatprep.subr.mxu0 0.0
        %3678 = vmatpush1.msra.mxu0 0.0
        %3679 = vmatprep.subr.mxu0 0.0
        %3680 = vmatpush1.msra.mxu0 0.0
        %3681 = vmatprep.subr.mxu0 0.0
        %3682 = vmatpush1.msra.mxu0 0.0
        %3683 = vmatprep.subr.mxu0 0.0
        %3684 = vmatpush1.msra.mxu0 0.0
        %3685 = vmatprep.subr.mxu0 0.0
        %3686 = vmatpush1.msra.mxu0 %v3444
        %3687 = vmatprep.subr.mxu0 0.0
        %3688 = vmatpush1.msra.mxu0 %v3397
        %3689 = vmatprep.subr.mxu0 0.0
        %3690 = vmatpush1.msra.mxu0 %v3390
        %3691 = vmatprep.subr.mxu0 0.0
        %3692 = vmatpush1.msra.mxu0 %v3383
        %3693 = vmatprep.subr.mxu0 0.0
        %3694 = vmatpush1.msra.mxu0 %v3376
        %3695 = vmatprep.subr.mxu0 0.0
        %3696 = vmatpush1.msra.mxu0 %v3369
        %3697 = vmatprep.subr.mxu0 0.0
        %3698 = vmatpush1.msra.mxu0 %v3362
        %3699 = vmatprep.subr.mxu0 0.0
        %3700 = vmatpush1.msra.mxu0 %v3355
        %3701 = vmatprep.subr.mxu0 0.0
        %3702 = vmatpush1.msra.mxu0 %v3348
        %3703 = vmatprep.subr.mxu0 0.0
        %3704 = vmatpush1.msra.mxu0 %v3341
        %3705 = vmatprep.subr.mxu0 0.0
        %3706 = vmatpush1.msra.mxu0 %v3334
        %3707 = vmatprep.subr.mxu0 0.0
        %3708 = vmatpush1.msra.mxu0 %v3327
        %3709 = vmatprep.subr.mxu0 0.0
        %3710 = vmatpush2.msra.mxu0 0.0
        %3711 = vmatprep.subr.mxu0 0.0
        %3712 = vmatpush2.msra.mxu0 0.0
        %3713 = vmatprep.subr.mxu0 0.0
        %3714 = vmatpush2.msra.mxu0 0.0
        %3715 = vmatprep.subr.mxu0 0.0
        %3716 = vmatpush2.msra.mxu0 0.0
        %3717 = vmatprep.subr.mxu0 0.0
        %3718 = vmatpush2.msra.mxu0 0.0
        %3719 = vmatprep.subr.mxu0 0.0
        %3720 = vmatpush2.msra.mxu0 0.0
        %3721 = vmatprep.subr.mxu0 0.0
        %3722 = vmatpush2.msra.mxu0 0.0
        %3723 = vmatprep.subr.mxu0 0.0
        %3724 = vmatpush2.msra.mxu0 0.0
        %3725 = vmatprep.subr.mxu0 0.0
        %3726 = vmatpush2.msra.mxu0 0.0
        %3727 = vmatprep.subr.mxu0 0.0
        %3728 = vmatpush2.msra.mxu0 0.0
        %3729 = vmatprep.subr.mxu0 0.0
        %3730 = vmatpush2.msra.mxu0 0.0
        %3731 = vmatprep.subr.mxu0 0.0
        %3732 = vmatpush2.msra.mxu0 0.0
        %3733 = vmatprep.subr.mxu0 0.0
        %3734 = vmatpush2.msra.mxu0 0.0
        %3735 = vmatprep.subr.mxu0 0.0
        %3736 = vmatpush2.msra.mxu0 0.0
        %3737 = vmatprep.subr.mxu0 0.0
        %3738 = vmatpush2.msra.mxu0 0.0
        %3739 = vmatprep.subr.mxu0 0.0
        %3740 = vmatpush2.msra.mxu0 0.0
        %3741 = vmatprep.mubr.f32.mxu0 0.0
        %3742 = vmatmul.mubr.f32.gmra.mxu0 %v3421
        %v3743 = vpop.f32.mrf.mxu0
        %v3744 = vadd.f32 0.0, %v3743
        %v3745 = vpop.f32.mrf.mxu0
        %3746 = vmatprep.mubr.f32.mxu0 0.0
        %3747 = vmatmul.mubr.f32.gmra.mxu0 %v3423
        %v3748 = vpop.f32.mrf.mxu0
        %v3749 = vadd.f32 0.0, %v3748
        %v3750 = vpop.f32.mrf.mxu0
        %3751 = vdwg.mxu0
        %v3752 = vmax.f32 %v3513, 0.0
        %v3753 = vmax.f32 %v3515, 0.0
        %v3754 = vmax.f32 %v3590, 0.0
        %v3755 = vmax.f32 %v3592, 0.0
        %v3756 = vmax.f32 %v3667, 0.0
        %v3757 = vmax.f32 %v3669, 0.0
        %v3758 = vmax.f32 %v3744, 0.0
        %v3759 = vmax.f32 %v3519, 0.0
        %v3760 = vmax.f32 %v3521, 0.0
        %v3761 = vmax.f32 %v3596, 0.0
        %v3762 = vmax.f32 %v3598, 0.0
        %v3763 = vmax.f32 %v3673, 0.0
        %v3764 = vmax.f32 %v3675, 0.0
        %v3765 = vmax.f32 %v3749, 0.0
        %3766 = vst [vmem:[#allocation3] sm:$0xff] %v3752
        %3767 = vst [vmem:[#allocation3 + $0x8] sm:$0xff] %v3753
        %3768 = vst [vmem:[#allocation3 + $0x10] sm:$0xff] %v3754
        %3769 = vst [vmem:[#allocation3 + $0x18] sm:$0xff] %v3755
        %3770 = vst [vmem:[#allocation3 + $0x20] sm:$0xff] %v3756
        %3771 = vst [vmem:[#allocation3 + $0x28] sm:$0xff] %v3757
        %3772 = vst.msk [vmem:[#allocation3 + $0x30] sm:$0xff] %vm172, %v3758
        %3773 = vst [vmem:[#allocation3 + $0x40] sm:$0xf] %v3759
        %3774 = vst [vmem:[#allocation3 + $0x48] sm:$0xf] %v3760
        %3775 = vst [vmem:[#allocation3 + $0x50] sm:$0xf] %v3761
        %3776 = vst [vmem:[#allocation3 + $0x58] sm:$0xf] %v3762
        %3777 = vst [vmem:[#allocation3 + $0x60] sm:$0xf] %v3763
        %3778 = vst [vmem:[#allocation3 + $0x68] sm:$0xf] %v3764
        %vm3779 = vcmask 125952
        %3780 = vst.msk [vmem:[#allocation3 + $0x70] sm:$0xf] %vm3779, %v3765
        %v3781 = vld [vmem:[#allocation3] sm:$0xff]
        %v3782 = vld [vmem:[#allocation3 + $0x8] sm:$0xff]
        %v3783 = vld [vmem:[#allocation3 + $0x10] sm:$0xff]
        %v3784 = vld [vmem:[#allocation3 + $0x18] sm:$0xff]
        %v3785 = vld [vmem:[#allocation3 + $0x20] sm:$0xff]
        %v3786 = vld [vmem:[#allocation3 + $0x28] sm:$0xff]
        %v3787 = vld [vmem:[#allocation3 + $0x30] sm:$0xff]
        %v3788 = vld [vmem:[#allocation3 + $0x40] sm:$0xf]
        %v3789 = vld [vmem:[#allocation3 + $0x48] sm:$0xf]
        %v3790 = vld [vmem:[#allocation3 + $0x50] sm:$0xf]
        %v3791 = vld [vmem:[#allocation3 + $0x58] sm:$0xf]
        %v3792 = vld [vmem:[#allocation3 + $0x60] sm:$0xf]
        %v3793 = vld [vmem:[#allocation3 + $0x68] sm:$0xf]
        %v3794 = vld [vmem:[#allocation3 + $0x70] sm:$0xf]
        %v3809 = vrot.slane %v3781, 7
        %v3810 = vrot.slane %v3782, 7
        %v3811 = vrot.slane %v3783, 7
        %v3812 = vrot.slane %v3784, 7
        %v3813 = vrot.slane %v3785, 7
        %v3814 = vrot.slane %v3786, 7
        %v3815 = vrot.slane %v3787, 7
        %v3816 = vrot.slane %v3788, 7
        %v3817 = vsel %vm1278, %v3809, %v3816
        %v3818 = vrot.slane %v3789, 7
        %v3819 = vsel %vm1278, %v3810, %v3818
        %v3820 = vrot.slane %v3790, 7
        %v3821 = vsel %vm1278, %v3811, %v3820
        %v3822 = vrot.slane %v3791, 7
        %v3823 = vsel %vm1278, %v3812, %v3822
        %v3824 = vrot.slane %v3792, 7
        %v3825 = vsel %vm1278, %v3813, %v3824
        %v3826 = vrot.slane %v3793, 7
        %v3827 = vsel %vm1278, %v3814, %v3826
        %v3828 = vrot.slane %v3794, 7
        %v3829 = vsel %vm1278, %v3815, %v3828
        %3844 = vst [vmem:[#allocation4] sm:$0xfe] %v3809
        %3845 = vst [vmem:[#allocation4 + $0x8] sm:$0xfe] %v3810
        %3846 = vst [vmem:[#allocation4 + $0x10] sm:$0xfe] %v3811
        %3847 = vst [vmem:[#allocation4 + $0x18] sm:$0xfe] %v3812
        %3848 = vst [vmem:[#allocation4 + $0x20] sm:$0xfe] %v3813
        %3849 = vst [vmem:[#allocation4 + $0x28] sm:$0xfe] %v3814
        %3850 = vst.msk [vmem:[#allocation4 + $0x30] sm:$0xfe] %vm689, %v3815
        %3851 = vst [vmem:[#allocation4 + $0x38] sm:$0x1f] %v3817
        %3852 = vst [vmem:[#allocation4 + $0x40] sm:$0x1f] %v3819
        %3853 = vst [vmem:[#allocation4 + $0x48] sm:$0x1f] %v3821
        %3854 = vst [vmem:[#allocation4 + $0x50] sm:$0x1f] %v3823
        %3855 = vst [vmem:[#allocation4 + $0x58] sm:$0x1f] %v3825
        %3856 = vst [vmem:[#allocation4 + $0x60] sm:$0x1f] %v3827
        %3857 = vst.msk [vmem:[#allocation4 + $0x68] sm:$0x1f] %vm2390, %v3829
        %v3858 = vld [vmem:[#allocation3] sm:$0xff]
        %v3859 = vld [vmem:[#allocation3 + $0x8] sm:$0xff]
        %v3860 = vld [vmem:[#allocation3 + $0x10] sm:$0xff]
        %v3861 = vld [vmem:[#allocation3 + $0x18] sm:$0xff]
        %v3862 = vld [vmem:[#allocation3 + $0x20] sm:$0xff]
        %v3863 = vld [vmem:[#allocation3 + $0x28] sm:$0xff]
        %v3864 = vld [vmem:[#allocation3 + $0x30] sm:$0xff]
        %v3865 = vld [vmem:[#allocation3 + $0x40] sm:$0xf]
        %v3866 = vld [vmem:[#allocation3 + $0x48] sm:$0xf]
        %v3867 = vld [vmem:[#allocation3 + $0x50] sm:$0xf]
        %v3868 = vld [vmem:[#allocation3 + $0x58] sm:$0xf]
        %v3869 = vld [vmem:[#allocation3 + $0x60] sm:$0xf]
        %v3870 = vld [vmem:[#allocation3 + $0x68] sm:$0xf]
        %v3871 = vld [vmem:[#allocation3 + $0x70] sm:$0xf]
        %v3886 = vrot.slane %v3858, 3
        %v3887 = vrot.slane %v3859, 3
        %v3888 = vrot.slane %v3860, 3
        %v3889 = vrot.slane %v3861, 3
        %v3890 = vrot.slane %v3862, 3
        %v3891 = vrot.slane %v3863, 3
        %v3892 = vrot.slane %v3864, 3
        %v3893 = vrot.slane %v3865, 3
        %v3894 = vsel %vm2420, %v3886, %v3893
        %v3895 = vrot.slane %v3866, 3
        %v3896 = vsel %vm2420, %v3887, %v3895
        %v3897 = vrot.slane %v3867, 3
        %v3898 = vsel %vm2420, %v3888, %v3897
        %v3899 = vrot.slane %v3868, 3
        %v3900 = vsel %vm2420, %v3889, %v3899
        %v3901 = vrot.slane %v3869, 3
        %v3902 = vsel %vm2420, %v3890, %v3901
        %v3903 = vrot.slane %v3870, 3
        %v3904 = vsel %vm2420, %v3891, %v3903
        %v3905 = vrot.slane %v3871, 3
        %v3906 = vsel %vm2420, %v3892, %v3905
        %3907 = vrot.lane.b32.xlu0 %v3886, 126
        %v3908 = vpop.permute.xlu0 %3907
        %3909 = vrot.lane.b32.xlu0 %v3887, 126
        %v3910 = vpop.permute.xlu0 %3909
        %3911 = vrot.lane.b32.xlu0 %v3888, 126
        %v3912 = vpop.permute.xlu0 %3911
        %3913 = vrot.lane.b32.xlu0 %v3889, 126
        %v3914 = vpop.permute.xlu0 %3913
        %3915 = vrot.lane.b32.xlu0 %v3890, 126
        %v3916 = vpop.permute.xlu0 %3915
        %3917 = vrot.lane.b32.xlu0 %v3891, 126
        %v3918 = vpop.permute.xlu0 %3917
        %3919 = vrot.lane.b32.xlu0 %v3892, 126
        %v3920 = vpop.permute.xlu0 %3919
        %3921 = vrot.lane.b32.xlu0 %v3894, 126
        %v3922 = vpop.permute.xlu0 %3921
        %3923 = vrot.lane.b32.xlu0 %v3896, 126
        %v3924 = vpop.permute.xlu0 %3923
        %3925 = vrot.lane.b32.xlu0 %v3898, 126
        %v3926 = vpop.permute.xlu0 %3925
        %3927 = vrot.lane.b32.xlu0 %v3900, 126
        %v3928 = vpop.permute.xlu0 %3927
        %3929 = vrot.lane.b32.xlu0 %v3902, 126
        %v3930 = vpop.permute.xlu0 %3929
        %3931 = vrot.lane.b32.xlu0 %v3904, 126
        %v3932 = vpop.permute.xlu0 %3931
        %3933 = vrot.lane.b32.xlu0 %v3906, 126
        %v3934 = vpop.permute.xlu0 %3933
        %3935 = vrot.lane.b32.xlu0 %v3893, 126
        %v3936 = vpop.permute.xlu0 %3935
        %3937 = vrot.lane.b32.xlu0 %v3895, 126
        %v3938 = vpop.permute.xlu0 %3937
        %3939 = vrot.lane.b32.xlu0 %v3897, 126
        %v3940 = vpop.permute.xlu0 %3939
        %3941 = vrot.lane.b32.xlu0 %v3899, 126
        %v3942 = vpop.permute.xlu0 %3941
        %3943 = vrot.lane.b32.xlu0 %v3901, 126
        %v3944 = vpop.permute.xlu0 %3943
        %3945 = vrot.lane.b32.xlu0 %v3903, 126
        %v3946 = vpop.permute.xlu0 %3945
        %3947 = vrot.lane.b32.xlu0 %v3905, 126
        %v3948 = vpop.permute.xlu0 %3947
        %v3949 = vsel %vm233, %v3908, %v3910
        %v3950 = vsel %vm233, %v3910, %v3912
        %v3951 = vsel %vm233, %v3912, %v3914
        %v3952 = vsel %vm233, %v3914, %v3916
        %v3953 = vsel %vm233, %v3916, %v3918
        %v3954 = vsel %vm233, %v3918, %v3920
        %v3955 = vsel %vm233, %v3922, %v3924
        %v3956 = vsel %vm233, %v3924, %v3926
        %v3957 = vsel %vm233, %v3926, %v3928
        %v3958 = vsel %vm233, %v3928, %v3930
        %v3959 = vsel %vm233, %v3930, %v3932
        %v3960 = vsel %vm233, %v3932, %v3934
        %v3961 = vsel %vm233, %v3936, %v3938
        %v3962 = vsel %vm233, %v3938, %v3940
        %v3963 = vsel %vm233, %v3940, %v3942
        %v3964 = vsel %vm233, %v3942, %v3944
        %v3965 = vsel %vm233, %v3944, %v3946
        %v3966 = vsel %vm233, %v3946, %v3948
        %3988 = vst [vmem:[#allocation4 + $0x38] sm:$0xe0] %v3949
        %3989 = vst [vmem:[#allocation4 + $0x40] sm:$0xe0] %v3950
        %3990 = vst [vmem:[#allocation4 + $0x48] sm:$0xe0] %v3951
        %3991 = vst [vmem:[#allocation4 + $0x50] sm:$0xe0] %v3952
        %3992 = vst [vmem:[#allocation4 + $0x58] sm:$0xe0] %v3953
        %3993 = vst [vmem:[#allocation4 + $0x60] sm:$0xe0] %v3954
        %3994 = vst.msk [vmem:[#allocation4 + $0x68] sm:$0xe0] %vm2503, %v3920
        %3995 = vst [vmem:[#allocation4 + $0x70] sm:$0xff] %v3955
        %3996 = vst [vmem:[#allocation4 + $0x78] sm:$0xff] %v3956
        %3997 = vst [vmem:[#allocation4 + $0x80] sm:$0xff] %v3957
        %3998 = vst [vmem:[#allocation4 + $0x88] sm:$0xff] %v3958
        %3999 = vst [vmem:[#allocation4 + $0x90] sm:$0xff] %v3959
        %4000 = vst [vmem:[#allocation4 + $0x98] sm:$0xff] %v3960
        %4001 = vst.msk [vmem:[#allocation4 + $0xa0] sm:$0xff] %vm172, %v3934
        %4002 = vst [vmem:[#allocation4 + $0xa8] sm:$0x1] %v3961
        %4003 = vst [vmem:[#allocation4 + $0xb0] sm:$0x1] %v3962
        %4004 = vst [vmem:[#allocation4 + $0xb8] sm:$0x1] %v3963
        %4005 = vst [vmem:[#allocation4 + $0xc0] sm:$0x1] %v3964
        %4006 = vst [vmem:[#allocation4 + $0xc8] sm:$0x1] %v3965
        %4007 = vst [vmem:[#allocation4 + $0xd0] sm:$0x1] %v3966
        %4008 = vst.msk [vmem:[#allocation4 + $0xd8] sm:$0x1] %vm697, %v3948
        %v4009 = vld [vmem:[#allocation3] sm:$0xff]
        %v4010 = vld [vmem:[#allocation3 + $0x8] sm:$0xff]
        %v4011 = vld [vmem:[#allocation3 + $0x10] sm:$0xff]
        %v4012 = vld [vmem:[#allocation3 + $0x18] sm:$0xff]
        %v4013 = vld [vmem:[#allocation3 + $0x20] sm:$0xff]
        %v4014 = vld [vmem:[#allocation3 + $0x28] sm:$0xff]
        %v4015 = vld [vmem:[#allocation3 + $0x30] sm:$0xff]
        %v4016 = vld [vmem:[#allocation3 + $0x40] sm:$0xf]
        %v4017 = vld [vmem:[#allocation3 + $0x48] sm:$0xf]
        %v4018 = vld [vmem:[#allocation3 + $0x50] sm:$0xf]
        %v4019 = vld [vmem:[#allocation3 + $0x58] sm:$0xf]
        %v4020 = vld [vmem:[#allocation3 + $0x60] sm:$0xf]
        %v4021 = vld [vmem:[#allocation3 + $0x68] sm:$0xf]
        %v4022 = vld [vmem:[#allocation3 + $0x70] sm:$0xf]
        %v4037 = vrot.slane %v4009, 7
        %v4038 = vrot.slane %v4010, 7
        %v4039 = vrot.slane %v4011, 7
        %v4040 = vrot.slane %v4012, 7
        %v4041 = vrot.slane %v4013, 7
        %v4042 = vrot.slane %v4014, 7
        %v4043 = vrot.slane %v4015, 7
        %v4044 = vrot.slane %v4016, 7
        %v4045 = vsel %vm1278, %v4037, %v4044
        %v4046 = vrot.slane %v4017, 7
        %v4047 = vsel %vm1278, %v4038, %v4046
        %v4048 = vrot.slane %v4018, 7
        %v4049 = vsel %vm1278, %v4039, %v4048
        %v4050 = vrot.slane %v4019, 7
        %v4051 = vsel %vm1278, %v4040, %v4050
        %v4052 = vrot.slane %v4020, 7
        %v4053 = vsel %vm1278, %v4041, %v4052
        %v4054 = vrot.slane %v4021, 7
        %v4055 = vsel %vm1278, %v4042, %v4054
        %v4056 = vrot.slane %v4022, 7
        %v4057 = vsel %vm1278, %v4043, %v4056
        %4058 = vrot.lane.b32.xlu0 %v4037, 124
        %v4059 = vpop.permute.xlu0 %4058
        %4060 = vrot.lane.b32.xlu0 %v4038, 124
        %v4061 = vpop.permute.xlu0 %4060
        %4062 = vrot.lane.b32.xlu0 %v4039, 124
        %v4063 = vpop.permute.xlu0 %4062
        %4064 = vrot.lane.b32.xlu0 %v4040, 124
        %v4065 = vpop.permute.xlu0 %4064
        %4066 = vrot.lane.b32.xlu0 %v4041, 124
        %v4067 = vpop.permute.xlu0 %4066
        %4068 = vrot.lane.b32.xlu0 %v4042, 124
        %v4069 = vpop.permute.xlu0 %4068
        %4070 = vrot.lane.b32.xlu0 %v4043, 124
        %v4071 = vpop.permute.xlu0 %4070
        %4072 = vrot.lane.b32.xlu0 %v4045, 124
        %v4073 = vpop.permute.xlu0 %4072
        %4074 = vrot.lane.b32.xlu0 %v4047, 124
        %v4075 = vpop.permute.xlu0 %4074
        %4076 = vrot.lane.b32.xlu0 %v4049, 124
        %v4077 = vpop.permute.xlu0 %4076
        %4078 = vrot.lane.b32.xlu0 %v4051, 124
        %v4079 = vpop.permute.xlu0 %4078
        %4080 = vrot.lane.b32.xlu0 %v4053, 124
        %v4081 = vpop.permute.xlu0 %4080
        %4082 = vrot.lane.b32.xlu0 %v4055, 124
        %v4083 = vpop.permute.xlu0 %4082
        %4084 = vrot.lane.b32.xlu0 %v4057, 124
        %v4085 = vpop.permute.xlu0 %4084
        %v4086 = vsel %vm2470, %v4059, %v4061
        %v4087 = vsel %vm2470, %v4061, %v4063
        %v4088 = vsel %vm2470, %v4063, %v4065
        %v4089 = vsel %vm2470, %v4065, %v4067
        %v4090 = vsel %vm2470, %v4067, %v4069
        %v4091 = vsel %vm2470, %v4069, %v4071
        %v4092 = vsel %vm2470, %v4073, %v4075
        %v4093 = vsel %vm2470, %v4075, %v4077
        %v4094 = vsel %vm2470, %v4077, %v4079
        %v4095 = vsel %vm2470, %v4079, %v4081
        %v4096 = vsel %vm2470, %v4081, %v4083
        %v4097 = vsel %vm2470, %v4083, %v4085
        %4112 = vst [vmem:[#allocation4 + $0xa8] sm:$0xfe] %v4086
        %4113 = vst [vmem:[#allocation4 + $0xb0] sm:$0xfe] %v4087
        %4114 = vst [vmem:[#allocation4 + $0xb8] sm:$0xfe] %v4088
        %4115 = vst [vmem:[#allocation4 + $0xc0] sm:$0xfe] %v4089
        %4116 = vst [vmem:[#allocation4 + $0xc8] sm:$0xfe] %v4090
        %4117 = vst [vmem:[#allocation4 + $0xd0] sm:$0xfe] %v4091
        %4118 = vst.msk [vmem:[#allocation4 + $0xd8] sm:$0xfe] %vm689, %v4071
        %4119 = vst [vmem:[#allocation4 + $0xe0] sm:$0x1f] %v4092
        %4120 = vst [vmem:[#allocation4 + $0xe8] sm:$0x1f] %v4093
        %4121 = vst [vmem:[#allocation4 + $0xf0] sm:$0x1f] %v4094
        %4122 = vst [vmem:[#allocation4 + $0xf8] sm:$0x1f] %v4095
        %4123 = vst [vmem:[#allocation4 + $0x100] sm:$0x1f] %v4096
        %4124 = vst [vmem:[#allocation4 + $0x108] sm:$0x1f] %v4097
        %4125 = vst.msk [vmem:[#allocation4 + $0x110] sm:$0x1f] %vm2390, %v4085
        %v4126 = vld [vmem:[#allocation3] sm:$0xff]
        %v4127 = vld [vmem:[#allocation3 + $0x8] sm:$0xff]
        %v4128 = vld [vmem:[#allocation3 + $0x10] sm:$0xff]
        %v4129 = vld [vmem:[#allocation3 + $0x18] sm:$0xff]
        %v4130 = vld [vmem:[#allocation3 + $0x20] sm:$0xff]
        %v4131 = vld [vmem:[#allocation3 + $0x28] sm:$0xff]
        %v4132 = vld [vmem:[#allocation3 + $0x30] sm:$0xff]
        %v4133 = vld [vmem:[#allocation3 + $0x40] sm:$0xf]
        %v4134 = vld [vmem:[#allocation3 + $0x48] sm:$0xf]
        %v4135 = vld [vmem:[#allocation3 + $0x50] sm:$0xf]
        %v4136 = vld [vmem:[#allocation3 + $0x58] sm:$0xf]
        %v4137 = vld [vmem:[#allocation3 + $0x60] sm:$0xf]
        %v4138 = vld [vmem:[#allocation3 + $0x68] sm:$0xf]
        %v4139 = vld [vmem:[#allocation3 + $0x70] sm:$0xf]
        %v4154 = vrot.slane %v4126, 3
        %v4155 = vrot.slane %v4127, 3
        %v4156 = vrot.slane %v4128, 3
        %v4157 = vrot.slane %v4129, 3
        %v4158 = vrot.slane %v4130, 3
        %v4159 = vrot.slane %v4131, 3
        %v4160 = vrot.slane %v4132, 3
        %v4161 = vrot.slane %v4133, 3
        %v4162 = vsel %vm2420, %v4154, %v4161
        %v4163 = vrot.slane %v4134, 3
        %v4164 = vsel %vm2420, %v4155, %v4163
        %v4165 = vrot.slane %v4135, 3
        %v4166 = vsel %vm2420, %v4156, %v4165
        %v4167 = vrot.slane %v4136, 3
        %v4168 = vsel %vm2420, %v4157, %v4167
        %v4169 = vrot.slane %v4137, 3
        %v4170 = vsel %vm2420, %v4158, %v4169
        %v4171 = vrot.slane %v4138, 3
        %v4172 = vsel %vm2420, %v4159, %v4171
        %v4173 = vrot.slane %v4139, 3
        %v4174 = vsel %vm2420, %v4160, %v4173
        %4175 = vrot.lane.b32.xlu0 %v4154, 72
        %v4176 = vpop.permute.xlu0 %4175
        %4177 = vrot.lane.b32.xlu0 %v4155, 72
        %v4178 = vpop.permute.xlu0 %4177
        %4179 = vrot.lane.b32.xlu0 %v4156, 72
        %v4180 = vpop.permute.xlu0 %4179
        %4181 = vrot.lane.b32.xlu0 %v4157, 72
        %v4182 = vpop.permute.xlu0 %4181
        %4183 = vrot.lane.b32.xlu0 %v4158, 72
        %v4184 = vpop.permute.xlu0 %4183
        %4185 = vrot.lane.b32.xlu0 %v4159, 72
        %v4186 = vpop.permute.xlu0 %4185
        %4187 = vrot.lane.b32.xlu0 %v4160, 72
        %v4188 = vpop.permute.xlu0 %4187
        %4189 = vrot.lane.b32.xlu0 %v4162, 72
        %v4190 = vpop.permute.xlu0 %4189
        %4191 = vrot.lane.b32.xlu0 %v4164, 72
        %v4192 = vpop.permute.xlu0 %4191
        %4193 = vrot.lane.b32.xlu0 %v4166, 72
        %v4194 = vpop.permute.xlu0 %4193
        %4195 = vrot.lane.b32.xlu0 %v4168, 72
        %v4196 = vpop.permute.xlu0 %4195
        %4197 = vrot.lane.b32.xlu0 %v4170, 72
        %v4198 = vpop.permute.xlu0 %4197
        %4199 = vrot.lane.b32.xlu0 %v4172, 72
        %v4200 = vpop.permute.xlu0 %4199
        %4201 = vrot.lane.b32.xlu0 %v4174, 72
        %v4202 = vpop.permute.xlu0 %4201
        %4203 = vrot.lane.b32.xlu0 %v4161, 72
        %v4204 = vpop.permute.xlu0 %4203
        %4205 = vrot.lane.b32.xlu0 %v4163, 72
        %v4206 = vpop.permute.xlu0 %4205
        %4207 = vrot.lane.b32.xlu0 %v4165, 72
        %v4208 = vpop.permute.xlu0 %4207
        %4209 = vrot.lane.b32.xlu0 %v4167, 72
        %v4210 = vpop.permute.xlu0 %4209
        %4211 = vrot.lane.b32.xlu0 %v4169, 72
        %v4212 = vpop.permute.xlu0 %4211
        %4213 = vrot.lane.b32.xlu0 %v4171, 72
        %v4214 = vpop.permute.xlu0 %4213
        %4215 = vrot.lane.b32.xlu0 %v4173, 72
        %v4216 = vpop.permute.xlu0 %4215
        %v4217 = vsel %vm285, %v4176, %v4178
        %v4218 = vsel %vm285, %v4178, %v4180
        %v4219 = vsel %vm285, %v4180, %v4182
        %v4220 = vsel %vm285, %v4182, %v4184
        %v4221 = vsel %vm285, %v4184, %v4186
        %v4222 = vsel %vm285, %v4186, %v4188
        %v4223 = vsel %vm285, %v4190, %v4192
        %v4224 = vsel %vm285, %v4192, %v4194
        %v4225 = vsel %vm285, %v4194, %v4196
        %v4226 = vsel %vm285, %v4196, %v4198
        %v4227 = vsel %vm285, %v4198, %v4200
        %v4228 = vsel %vm285, %v4200, %v4202
        %v4229 = vsel %vm285, %v4204, %v4206
        %v4230 = vsel %vm285, %v4206, %v4208
        %v4231 = vsel %vm285, %v4208, %v4210
        %v4232 = vsel %vm285, %v4210, %v4212
        %v4233 = vsel %vm285, %v4212, %v4214
        %v4234 = vsel %vm285, %v4214, %v4216
        %4256 = vst [vmem:[#allocation4 + $0xe0] sm:$0xe0] %v4217
        %4257 = vst [vmem:[#allocation4 + $0xe8] sm:$0xe0] %v4218
        %4258 = vst [vmem:[#allocation4 + $0xf0] sm:$0xe0] %v4219
        %4259 = vst [vmem:[#allocation4 + $0xf8] sm:$0xe0] %v4220
        %4260 = vst [vmem:[#allocation4 + $0x100] sm:$0xe0] %v4221
        %4261 = vst [vmem:[#allocation4 + $0x108] sm:$0xe0] %v4222
        %4262 = vst.msk [vmem:[#allocation4 + $0x110] sm:$0xe0] %vm2503, %v4188
        %4263 = vst [vmem:[#allocation4 + $0x118] sm:$0xff] %v4223
        %4264 = vst [vmem:[#allocation4 + $0x120] sm:$0xff] %v4224
        %4265 = vst [vmem:[#allocation4 + $0x128] sm:$0xff] %v4225
        %4266 = vst [vmem:[#allocation4 + $0x130] sm:$0xff] %v4226
        %4267 = vst [vmem:[#allocation4 + $0x138] sm:$0xff] %v4227
        %4268 = vst [vmem:[#allocation4 + $0x140] sm:$0xff] %v4228
        %4269 = vst.msk [vmem:[#allocation4 + $0x148] sm:$0xff] %vm172, %v4202
        %4270 = vst [vmem:[#allocation4 + $0x150] sm:$0x1] %v4229
        %4271 = vst [vmem:[#allocation4 + $0x158] sm:$0x1] %v4230
        %4272 = vst [vmem:[#allocation4 + $0x160] sm:$0x1] %v4231
        %4273 = vst [vmem:[#allocation4 + $0x168] sm:$0x1] %v4232
        %4274 = vst [vmem:[#allocation4 + $0x170] sm:$0x1] %v4233
        %4275 = vst [vmem:[#allocation4 + $0x178] sm:$0x1] %v4234
        %4276 = vst.msk [vmem:[#allocation4 + $0x180] sm:$0x1] %vm697, %v4216
        %v4277 = vld [vmem:[#allocation3] sm:$0xff]
        %v4278 = vld [vmem:[#allocation3 + $0x8] sm:$0xff]
        %v4279 = vld [vmem:[#allocation3 + $0x10] sm:$0xff]
        %v4280 = vld [vmem:[#allocation3 + $0x18] sm:$0xff]
        %v4281 = vld [vmem:[#allocation3 + $0x20] sm:$0xff]
        %v4282 = vld [vmem:[#allocation3 + $0x28] sm:$0xff]
        %v4283 = vld [vmem:[#allocation3 + $0x30] sm:$0xff]
        %v4284 = vld [vmem:[#allocation3 + $0x40] sm:$0xf]
        %v4285 = vld [vmem:[#allocation3 + $0x48] sm:$0xf]
        %v4286 = vld [vmem:[#allocation3 + $0x50] sm:$0xf]
        %v4287 = vld [vmem:[#allocation3 + $0x58] sm:$0xf]
        %v4288 = vld [vmem:[#allocation3 + $0x60] sm:$0xf]
        %v4289 = vld [vmem:[#allocation3 + $0x68] sm:$0xf]
        %v4290 = vld [vmem:[#allocation3 + $0x70] sm:$0xf]
        %v4305 = vrot.slane %v4277, 7
        %v4306 = vrot.slane %v4278, 7
        %v4307 = vrot.slane %v4279, 7
        %v4308 = vrot.slane %v4280, 7
        %v4309 = vrot.slane %v4281, 7
        %v4310 = vrot.slane %v4282, 7
        %v4311 = vrot.slane %v4283, 7
        %v4312 = vrot.slane %v4284, 7
        %v4313 = vsel %vm1278, %v4305, %v4312
        %v4314 = vrot.slane %v4285, 7
        %v4315 = vsel %vm1278, %v4306, %v4314
        %v4316 = vrot.slane %v4286, 7
        %v4317 = vsel %vm1278, %v4307, %v4316
        %v4318 = vrot.slane %v4287, 7
        %v4319 = vsel %vm1278, %v4308, %v4318
        %v4320 = vrot.slane %v4288, 7
        %v4321 = vsel %vm1278, %v4309, %v4320
        %v4322 = vrot.slane %v4289, 7
        %v4323 = vsel %vm1278, %v4310, %v4322
        %v4324 = vrot.slane %v4290, 7
        %v4325 = vsel %vm1278, %v4311, %v4324
        %4326 = vrot.lane.b32.xlu0 %v4305, 70
        %v4327 = vpop.permute.xlu0 %4326
        %4328 = vrot.lane.b32.xlu0 %v4306, 70
        %v4329 = vpop.permute.xlu0 %4328
        %4330 = vrot.lane.b32.xlu0 %v4307, 70
        %v4331 = vpop.permute.xlu0 %4330
        %4332 = vrot.lane.b32.xlu0 %v4308, 70
        %v4333 = vpop.permute.xlu0 %4332
        %4334 = vrot.lane.b32.xlu0 %v4309, 70
        %v4335 = vpop.permute.xlu0 %4334
        %4336 = vrot.lane.b32.xlu0 %v4310, 70
        %v4337 = vpop.permute.xlu0 %4336
        %4338 = vrot.lane.b32.xlu0 %v4311, 70
        %v4339 = vpop.permute.xlu0 %4338
        %4340 = vrot.lane.b32.xlu0 %v4313, 70
        %v4341 = vpop.permute.xlu0 %4340
        %4342 = vrot.lane.b32.xlu0 %v4315, 70
        %v4343 = vpop.permute.xlu0 %4342
        %4344 = vrot.lane.b32.xlu0 %v4317, 70
        %v4345 = vpop.permute.xlu0 %4344
        %4346 = vrot.lane.b32.xlu0 %v4319, 70
        %v4347 = vpop.permute.xlu0 %4346
        %4348 = vrot.lane.b32.xlu0 %v4321, 70
        %v4349 = vpop.permute.xlu0 %4348
        %4350 = vrot.lane.b32.xlu0 %v4323, 70
        %v4351 = vpop.permute.xlu0 %4350
        %4352 = vrot.lane.b32.xlu0 %v4325, 70
        %v4353 = vpop.permute.xlu0 %4352
        %v4354 = vsel %vm311, %v4327, %v4329
        %v4355 = vsel %vm311, %v4329, %v4331
        %v4356 = vsel %vm311, %v4331, %v4333
        %v4357 = vsel %vm311, %v4333, %v4335
        %v4358 = vsel %vm311, %v4335, %v4337
        %v4359 = vsel %vm311, %v4337, %v4339
        %v4360 = vsel %vm311, %v4341, %v4343
        %v4361 = vsel %vm311, %v4343, %v4345
        %v4362 = vsel %vm311, %v4345, %v4347
        %v4363 = vsel %vm311, %v4347, %v4349
        %v4364 = vsel %vm311, %v4349, %v4351
        %v4365 = vsel %vm311, %v4351, %v4353
        %4380 = vst [vmem:[#allocation4 + $0x150] sm:$0xfe] %v4354
        %4381 = vst [vmem:[#allocation4 + $0x158] sm:$0xfe] %v4355
        %4382 = vst [vmem:[#allocation4 + $0x160] sm:$0xfe] %v4356
        %4383 = vst [vmem:[#allocation4 + $0x168] sm:$0xfe] %v4357
        %4384 = vst [vmem:[#allocation4 + $0x170] sm:$0xfe] %v4358
        %4385 = vst [vmem:[#allocation4 + $0x178] sm:$0xfe] %v4359
        %4386 = vst.msk [vmem:[#allocation4 + $0x180] sm:$0xfe] %vm689, %v4339
        %4387 = vst [vmem:[#allocation4 + $0x188] sm:$0x1f] %v4360
        %4388 = vst [vmem:[#allocation4 + $0x190] sm:$0x1f] %v4361
        %4389 = vst [vmem:[#allocation4 + $0x198] sm:$0x1f] %v4362
        %4390 = vst [vmem:[#allocation4 + $0x1a0] sm:$0x1f] %v4363
        %4391 = vst [vmem:[#allocation4 + $0x1a8] sm:$0x1f] %v4364
        %4392 = vst [vmem:[#allocation4 + $0x1b0] sm:$0x1f] %v4365
        %4393 = vst.msk [vmem:[#allocation4 + $0x1b8] sm:$0x1f] %vm2390, %v4353
        %v4394 = vld [vmem:[#allocation3] sm:$0xff]
        %v4395 = vld [vmem:[#allocation3 + $0x8] sm:$0xff]
        %v4396 = vld [vmem:[#allocation3 + $0x10] sm:$0xff]
        %v4397 = vld [vmem:[#allocation3 + $0x18] sm:$0xff]
        %v4398 = vld [vmem:[#allocation3 + $0x20] sm:$0xff]
        %v4399 = vld [vmem:[#allocation3 + $0x28] sm:$0xff]
        %v4400 = vld [vmem:[#allocation3 + $0x30] sm:$0xff]
        %v4401 = vld [vmem:[#allocation3 + $0x40] sm:$0xf]
        %v4402 = vld [vmem:[#allocation3 + $0x48] sm:$0xf]
        %v4403 = vld [vmem:[#allocation3 + $0x50] sm:$0xf]
        %v4404 = vld [vmem:[#allocation3 + $0x58] sm:$0xf]
        %v4405 = vld [vmem:[#allocation3 + $0x60] sm:$0xf]
        %v4406 = vld [vmem:[#allocation3 + $0x68] sm:$0xf]
        %v4407 = vld [vmem:[#allocation3 + $0x70] sm:$0xf]
        %v4422 = vrot.slane %v4394, 3
        %v4423 = vrot.slane %v4395, 3
        %v4424 = vrot.slane %v4396, 3
        %v4425 = vrot.slane %v4397, 3
        %v4426 = vrot.slane %v4398, 3
        %v4427 = vrot.slane %v4399, 3
        %v4428 = vrot.slane %v4400, 3
        %v4429 = vrot.slane %v4401, 3
        %v4430 = vsel %vm2420, %v4422, %v4429
        %v4431 = vrot.slane %v4402, 3
        %v4432 = vsel %vm2420, %v4423, %v4431
        %v4433 = vrot.slane %v4403, 3
        %v4434 = vsel %vm2420, %v4424, %v4433
        %v4435 = vrot.slane %v4404, 3
        %v4436 = vsel %vm2420, %v4425, %v4435
        %v4437 = vrot.slane %v4405, 3
        %v4438 = vsel %vm2420, %v4426, %v4437
        %v4439 = vrot.slane %v4406, 3
        %v4440 = vsel %vm2420, %v4427, %v4439
        %v4441 = vrot.slane %v4407, 3
        %v4442 = vsel %vm2420, %v4428, %v4441
        %4443 = vrot.lane.b32.xlu0 %v4422, 68
        %v4444 = vpop.permute.xlu0 %4443
        %4445 = vrot.lane.b32.xlu0 %v4423, 68
        %v4446 = vpop.permute.xlu0 %4445
        %4447 = vrot.lane.b32.xlu0 %v4424, 68
        %v4448 = vpop.permute.xlu0 %4447
        %4449 = vrot.lane.b32.xlu0 %v4425, 68
        %v4450 = vpop.permute.xlu0 %4449
        %4451 = vrot.lane.b32.xlu0 %v4426, 68
        %v4452 = vpop.permute.xlu0 %4451
        %4453 = vrot.lane.b32.xlu0 %v4427, 68
        %v4454 = vpop.permute.xlu0 %4453
        %4455 = vrot.lane.b32.xlu0 %v4428, 68
        %v4456 = vpop.permute.xlu0 %4455
        %4457 = vrot.lane.b32.xlu0 %v4430, 68
        %v4458 = vpop.permute.xlu0 %4457
        %4459 = vrot.lane.b32.xlu0 %v4432, 68
        %v4460 = vpop.permute.xlu0 %4459
        %4461 = vrot.lane.b32.xlu0 %v4434, 68
        %v4462 = vpop.permute.xlu0 %4461
        %4463 = vrot.lane.b32.xlu0 %v4436, 68
        %v4464 = vpop.permute.xlu0 %4463
        %4465 = vrot.lane.b32.xlu0 %v4438, 68
        %v4466 = vpop.permute.xlu0 %4465
        %4467 = vrot.lane.b32.xlu0 %v4440, 68
        %v4468 = vpop.permute.xlu0 %4467
        %4469 = vrot.lane.b32.xlu0 %v4442, 68
        %v4470 = vpop.permute.xlu0 %4469
        %4471 = vrot.lane.b32.xlu0 %v4429, 68
        %v4472 = vpop.permute.xlu0 %4471
        %4473 = vrot.lane.b32.xlu0 %v4431, 68
        %v4474 = vpop.permute.xlu0 %4473
        %4475 = vrot.lane.b32.xlu0 %v4433, 68
        %v4476 = vpop.permute.xlu0 %4475
        %4477 = vrot.lane.b32.xlu0 %v4435, 68
        %v4478 = vpop.permute.xlu0 %4477
        %4479 = vrot.lane.b32.xlu0 %v4437, 68
        %v4480 = vpop.permute.xlu0 %4479
        %4481 = vrot.lane.b32.xlu0 %v4439, 68
        %v4482 = vpop.permute.xlu0 %4481
        %4483 = vrot.lane.b32.xlu0 %v4441, 68
        %v4484 = vpop.permute.xlu0 %4483
        %v4485 = vsel %vm2860, %v4444, %v4446
        %v4486 = vsel %vm2860, %v4446, %v4448
        %v4487 = vsel %vm2860, %v4448, %v4450
        %v4488 = vsel %vm2860, %v4450, %v4452
        %v4489 = vsel %vm2860, %v4452, %v4454
        %v4490 = vsel %vm2860, %v4454, %v4456
        %v4491 = vsel %vm2860, %v4458, %v4460
        %v4492 = vsel %vm2860, %v4460, %v4462
        %v4493 = vsel %vm2860, %v4462, %v4464
        %v4494 = vsel %vm2860, %v4464, %v4466
        %v4495 = vsel %vm2860, %v4466, %v4468
        %v4496 = vsel %vm2860, %v4468, %v4470
        %v4497 = vsel %vm2860, %v4472, %v4474
        %v4498 = vsel %vm2860, %v4474, %v4476
        %v4499 = vsel %vm2860, %v4476, %v4478
        %v4500 = vsel %vm2860, %v4478, %v4480
        %v4501 = vsel %vm2860, %v4480, %v4482
        %v4502 = vsel %vm2860, %v4482, %v4484
        %4524 = vst [vmem:[#allocation4 + $0x188] sm:$0xe0] %v4485
        %4525 = vst [vmem:[#allocation4 + $0x190] sm:$0xe0] %v4486
        %4526 = vst [vmem:[#allocation4 + $0x198] sm:$0xe0] %v4487
        %4527 = vst [vmem:[#allocation4 + $0x1a0] sm:$0xe0] %v4488
        %4528 = vst [vmem:[#allocation4 + $0x1a8] sm:$0xe0] %v4489
        %4529 = vst [vmem:[#allocation4 + $0x1b0] sm:$0xe0] %v4490
        %4530 = vst.msk [vmem:[#allocation4 + $0x1b8] sm:$0xe0] %vm2503, %v4456
        %4531 = vst [vmem:[#allocation4 + $0x1c0] sm:$0xff] %v4491
        %4532 = vst [vmem:[#allocation4 + $0x1c8] sm:$0xff] %v4492
        %4533 = vst [vmem:[#allocation4 + $0x1d0] sm:$0xff] %v4493
        %4534 = vst [vmem:[#allocation4 + $0x1d8] sm:$0xff] %v4494
        %4535 = vst [vmem:[#allocation4 + $0x1e0] sm:$0xff] %v4495
        %4536 = vst [vmem:[#allocation4 + $0x1e8] sm:$0xff] %v4496
        %4537 = vst.msk [vmem:[#allocation4 + $0x1f0] sm:$0xff] %vm172, %v4470
        %4538 = vst [vmem:[#allocation4 + $0x1f8] sm:$0x1] %v4497
        %4539 = vst [vmem:[#allocation4 + $0x200] sm:$0x1] %v4498
        %4540 = vst [vmem:[#allocation4 + $0x208] sm:$0x1] %v4499
        %4541 = vst [vmem:[#allocation4 + $0x210] sm:$0x1] %v4500
        %4542 = vst [vmem:[#allocation4 + $0x218] sm:$0x1] %v4501
        %4543 = vst [vmem:[#allocation4 + $0x220] sm:$0x1] %v4502
        %4544 = vst.msk [vmem:[#allocation4 + $0x228] sm:$0x1] %vm697, %v4484
        %v4545 = vld [vmem:[#allocation3] sm:$0xff]
        %v4546 = vld [vmem:[#allocation3 + $0x8] sm:$0xff]
        %v4547 = vld [vmem:[#allocation3 + $0x10] sm:$0xff]
        %v4548 = vld [vmem:[#allocation3 + $0x18] sm:$0xff]
        %v4549 = vld [vmem:[#allocation3 + $0x20] sm:$0xff]
        %v4550 = vld [vmem:[#allocation3 + $0x28] sm:$0xff]
        %v4551 = vld [vmem:[#allocation3 + $0x30] sm:$0xff]
        %v4552 = vld [vmem:[#allocation3 + $0x40] sm:$0xf]
        %v4553 = vld [vmem:[#allocation3 + $0x48] sm:$0xf]
        %v4554 = vld [vmem:[#allocation3 + $0x50] sm:$0xf]
        %v4555 = vld [vmem:[#allocation3 + $0x58] sm:$0xf]
        %v4556 = vld [vmem:[#allocation3 + $0x60] sm:$0xf]
        %v4557 = vld [vmem:[#allocation3 + $0x68] sm:$0xf]
        %v4558 = vld [vmem:[#allocation3 + $0x70] sm:$0xf]
        %v4573 = vrot.slane %v4545, 7
        %v4574 = vrot.slane %v4546, 7
        %v4575 = vrot.slane %v4547, 7
        %v4576 = vrot.slane %v4548, 7
        %v4577 = vrot.slane %v4549, 7
        %v4578 = vrot.slane %v4550, 7
        %v4579 = vrot.slane %v4551, 7
        %v4580 = vrot.slane %v4552, 7
        %v4581 = vsel %vm1278, %v4573, %v4580
        %v4582 = vrot.slane %v4553, 7
        %v4583 = vsel %vm1278, %v4574, %v4582
        %v4584 = vrot.slane %v4554, 7
        %v4585 = vsel %vm1278, %v4575, %v4584
        %v4586 = vrot.slane %v4555, 7
        %v4587 = vsel %vm1278, %v4576, %v4586
        %v4588 = vrot.slane %v4556, 7
        %v4589 = vsel %vm1278, %v4577, %v4588
        %v4590 = vrot.slane %v4557, 7
        %v4591 = vsel %vm1278, %v4578, %v4590
        %v4592 = vrot.slane %v4558, 7
        %v4593 = vsel %vm1278, %v4579, %v4592
        %4594 = vrot.lane.b32.xlu0 %v4573, 16
        %v4595 = vpop.permute.xlu0 %4594
        %4596 = vrot.lane.b32.xlu0 %v4574, 16
        %v4597 = vpop.permute.xlu0 %4596
        %4598 = vrot.lane.b32.xlu0 %v4575, 16
        %v4599 = vpop.permute.xlu0 %4598
        %4600 = vrot.lane.b32.xlu0 %v4576, 16
        %v4601 = vpop.permute.xlu0 %4600
        %4602 = vrot.lane.b32.xlu0 %v4577, 16
        %v4603 = vpop.permute.xlu0 %4602
        %4604 = vrot.lane.b32.xlu0 %v4578, 16
        %v4605 = vpop.permute.xlu0 %4604
        %4606 = vrot.lane.b32.xlu0 %v4579, 16
        %v4607 = vpop.permute.xlu0 %4606
        %4608 = vrot.lane.b32.xlu0 %v4581, 16
        %v4609 = vpop.permute.xlu0 %4608
        %4610 = vrot.lane.b32.xlu0 %v4583, 16
        %v4611 = vpop.permute.xlu0 %4610
        %4612 = vrot.lane.b32.xlu0 %v4585, 16
        %v4613 = vpop.permute.xlu0 %4612
        %4614 = vrot.lane.b32.xlu0 %v4587, 16
        %v4615 = vpop.permute.xlu0 %4614
        %4616 = vrot.lane.b32.xlu0 %v4589, 16
        %v4617 = vpop.permute.xlu0 %4616
        %4618 = vrot.lane.b32.xlu0 %v4591, 16
        %v4619 = vpop.permute.xlu0 %4618
        %4620 = vrot.lane.b32.xlu0 %v4593, 16
        %v4621 = vpop.permute.xlu0 %4620
        %v4622 = vsel %vm172, %v4595, %v4597
        %v4623 = vsel %vm172, %v4597, %v4599
        %v4624 = vsel %vm172, %v4599, %v4601
        %v4625 = vsel %vm172, %v4601, %v4603
        %v4626 = vsel %vm172, %v4603, %v4605
        %v4627 = vsel %vm172, %v4605, %v4607
        %v4628 = vsel %vm172, %v4609, %v4611
        %v4629 = vsel %vm172, %v4611, %v4613
        %v4630 = vsel %vm172, %v4613, %v4615
        %v4631 = vsel %vm172, %v4615, %v4617
        %v4632 = vsel %vm172, %v4617, %v4619
        %v4633 = vsel %vm172, %v4619, %v4621
        %4648 = vst [vmem:[#allocation4 + $0x1f8] sm:$0xfe] %v4622
        %4649 = vst [vmem:[#allocation4 + $0x200] sm:$0xfe] %v4623
        %4650 = vst [vmem:[#allocation4 + $0x208] sm:$0xfe] %v4624
        %4651 = vst [vmem:[#allocation4 + $0x210] sm:$0xfe] %v4625
        %4652 = vst [vmem:[#allocation4 + $0x218] sm:$0xfe] %v4626
        %4653 = vst [vmem:[#allocation4 + $0x220] sm:$0xfe] %v4627
        %4654 = vst.msk [vmem:[#allocation4 + $0x228] sm:$0xfe] %vm689, %v4607
        %4655 = vst [vmem:[#allocation4 + $0x230] sm:$0x1f] %v4628
        %4656 = vst [vmem:[#allocation4 + $0x238] sm:$0x1f] %v4629
        %4657 = vst [vmem:[#allocation4 + $0x240] sm:$0x1f] %v4630
        %4658 = vst [vmem:[#allocation4 + $0x248] sm:$0x1f] %v4631
        %4659 = vst [vmem:[#allocation4 + $0x250] sm:$0x1f] %v4632
        %4660 = vst [vmem:[#allocation4 + $0x258] sm:$0x1f] %v4633
        %4661 = vst.msk [vmem:[#allocation4 + $0x260] sm:$0x1f] %vm2390, %v4621
        %v4662 = vld [vmem:[#allocation3] sm:$0xff]
        %v4663 = vld [vmem:[#allocation3 + $0x8] sm:$0xff]
        %v4664 = vld [vmem:[#allocation3 + $0x10] sm:$0xff]
        %v4665 = vld [vmem:[#allocation3 + $0x18] sm:$0xff]
        %v4666 = vld [vmem:[#allocation3 + $0x20] sm:$0xff]
        %v4667 = vld [vmem:[#allocation3 + $0x28] sm:$0xff]
        %v4668 = vld [vmem:[#allocation3 + $0x30] sm:$0xff]
        %v4669 = vld [vmem:[#allocation3 + $0x38] sm:$0xff]
        %v4670 = vld [vmem:[#allocation3 + $0x40] sm:$0xf]
        %v4671 = vld [vmem:[#allocation3 + $0x48] sm:$0xf]
        %v4672 = vld [vmem:[#allocation3 + $0x50] sm:$0xf]
        %v4673 = vld [vmem:[#allocation3 + $0x58] sm:$0xf]
        %v4674 = vld [vmem:[#allocation3 + $0x60] sm:$0xf]
        %v4675 = vld [vmem:[#allocation3 + $0x68] sm:$0xf]
        %v4676 = vld [vmem:[#allocation3 + $0x70] sm:$0xf]
        %v4677 = vld [vmem:[#allocation3 + $0x78] sm:$0xf]
        %v4694 = vrot.slane %v4662, 3
        %v4695 = vrot.slane %v4663, 3
        %v4696 = vrot.slane %v4664, 3
        %v4697 = vrot.slane %v4665, 3
        %v4698 = vrot.slane %v4666, 3
        %v4699 = vrot.slane %v4667, 3
        %v4700 = vrot.slane %v4668, 3
        %v4701 = vrot.slane %v4669, 3
        %v4702 = vrot.slane %v4670, 3
        %v4703 = vsel %vm2420, %v4694, %v4702
        %v4704 = vrot.slane %v4671, 3
        %v4705 = vsel %vm2420, %v4695, %v4704
        %v4706 = vrot.slane %v4672, 3
        %v4707 = vsel %vm2420, %v4696, %v4706
        %v4708 = vrot.slane %v4673, 3
        %v4709 = vsel %vm2420, %v4697, %v4708
        %v4710 = vrot.slane %v4674, 3
        %v4711 = vsel %vm2420, %v4698, %v4710
        %v4712 = vrot.slane %v4675, 3
        %v4713 = vsel %vm2420, %v4699, %v4712
        %v4714 = vrot.slane %v4676, 3
        %v4715 = vsel %vm2420, %v4700, %v4714
        %v4716 = vrot.slane %v4677, 3
        %v4717 = vsel %vm2420, %v4701, %v4716
        %4718 = vrot.lane.b32.xlu0 %v4694, 14
        %v4719 = vpop.permute.xlu0 %4718
        %4720 = vrot.lane.b32.xlu0 %v4695, 14
        %v4721 = vpop.permute.xlu0 %4720
        %4722 = vrot.lane.b32.xlu0 %v4696, 14
        %v4723 = vpop.permute.xlu0 %4722
        %4724 = vrot.lane.b32.xlu0 %v4697, 14
        %v4725 = vpop.permute.xlu0 %4724
        %4726 = vrot.lane.b32.xlu0 %v4698, 14
        %v4727 = vpop.permute.xlu0 %4726
        %4728 = vrot.lane.b32.xlu0 %v4699, 14
        %v4729 = vpop.permute.xlu0 %4728
        %4730 = vrot.lane.b32.xlu0 %v4700, 14
        %v4731 = vpop.permute.xlu0 %4730
        %4732 = vrot.lane.b32.xlu0 %v4701, 14
        %v4733 = vpop.permute.xlu0 %4732
        %4734 = vrot.lane.b32.xlu0 %v4703, 14
        %v4735 = vpop.permute.xlu0 %4734
        %4736 = vrot.lane.b32.xlu0 %v4705, 14
        %v4737 = vpop.permute.xlu0 %4736
        %4738 = vrot.lane.b32.xlu0 %v4707, 14
        %v4739 = vpop.permute.xlu0 %4738
        %4740 = vrot.lane.b32.xlu0 %v4709, 14
        %v4741 = vpop.permute.xlu0 %4740
        %4742 = vrot.lane.b32.xlu0 %v4711, 14
        %v4743 = vpop.permute.xlu0 %4742
        %4744 = vrot.lane.b32.xlu0 %v4713, 14
        %v4745 = vpop.permute.xlu0 %4744
        %4746 = vrot.lane.b32.xlu0 %v4715, 14
        %v4747 = vpop.permute.xlu0 %4746
        %4748 = vrot.lane.b32.xlu0 %v4717, 14
        %v4749 = vpop.permute.xlu0 %4748
        %4750 = vrot.lane.b32.xlu0 %v4702, 14
        %v4751 = vpop.permute.xlu0 %4750
        %4752 = vrot.lane.b32.xlu0 %v4704, 14
        %v4753 = vpop.permute.xlu0 %4752
        %4754 = vrot.lane.b32.xlu0 %v4706, 14
        %v4755 = vpop.permute.xlu0 %4754
        %4756 = vrot.lane.b32.xlu0 %v4708, 14
        %v4757 = vpop.permute.xlu0 %4756
        %4758 = vrot.lane.b32.xlu0 %v4710, 14
        %v4759 = vpop.permute.xlu0 %4758
        %4760 = vrot.lane.b32.xlu0 %v4712, 14
        %v4761 = vpop.permute.xlu0 %4760
        %4762 = vrot.lane.b32.xlu0 %v4714, 14
        %v4763 = vpop.permute.xlu0 %4762
        %4764 = vrot.lane.b32.xlu0 %v4716, 14
        %v4765 = vpop.permute.xlu0 %4764
        %v4766 = vsel %vm3122, %v4719, %v4721
        %v4767 = vsel %vm3122, %v4721, %v4723
        %v4768 = vsel %vm3122, %v4723, %v4725
        %v4769 = vsel %vm3122, %v4725, %v4727
        %v4770 = vsel %vm3122, %v4727, %v4729
        %v4771 = vsel %vm3122, %v4729, %v4731
        %v4772 = vsel %vm3122, %v4731, %v4733
        %v4773 = vsel %vm3122, %v4735, %v4737
        %v4774 = vsel %vm3122, %v4737, %v4739
        %v4775 = vsel %vm3122, %v4739, %v4741
        %v4776 = vsel %vm3122, %v4741, %v4743
        %v4777 = vsel %vm3122, %v4743, %v4745
        %v4778 = vsel %vm3122, %v4745, %v4747
        %v4779 = vsel %vm3122, %v4747, %v4749
        %v4780 = vsel %vm3122, %v4751, %v4753
        %v4781 = vsel %vm3122, %v4753, %v4755
        %v4782 = vsel %vm3122, %v4755, %v4757
        %v4783 = vsel %vm3122, %v4757, %v4759
        %v4784 = vsel %vm3122, %v4759, %v4761
        %v4785 = vsel %vm3122, %v4761, %v4763
        %v4786 = vsel %vm3122, %v4763, %v4765
        %4808 = vst [vmem:[#allocation4 + $0x230] sm:$0xe0] %v4766
        %4809 = vst [vmem:[#allocation4 + $0x238] sm:$0xe0] %v4767
        %4810 = vst [vmem:[#allocation4 + $0x240] sm:$0xe0] %v4768
        %4811 = vst [vmem:[#allocation4 + $0x248] sm:$0xe0] %v4769
        %4812 = vst [vmem:[#allocation4 + $0x250] sm:$0xe0] %v4770
        %4813 = vst [vmem:[#allocation4 + $0x258] sm:$0xe0] %v4771
        %4814 = vst.msk [vmem:[#allocation4 + $0x260] sm:$0xe0] %vm2503, %v4772
        %4815 = vst [vmem:[#allocation4 + $0x268] sm:$0xff] %v4773
        %4816 = vst [vmem:[#allocation4 + $0x270] sm:$0xff] %v4774
        %4817 = vst [vmem:[#allocation4 + $0x278] sm:$0xff] %v4775
        %4818 = vst [vmem:[#allocation4 + $0x280] sm:$0xff] %v4776
        %4819 = vst [vmem:[#allocation4 + $0x288] sm:$0xff] %v4777
        %4820 = vst [vmem:[#allocation4 + $0x290] sm:$0xff] %v4778
        %4821 = vst.msk [vmem:[#allocation4 + $0x298] sm:$0xff] %vm172, %v4779
        %4822 = vst [vmem:[#allocation4 + $0x2a0] sm:$0x1] %v4780
        %4823 = vst [vmem:[#allocation4 + $0x2a8] sm:$0x1] %v4781
        %4824 = vst [vmem:[#allocation4 + $0x2b0] sm:$0x1] %v4782
        %4825 = vst [vmem:[#allocation4 + $0x2b8] sm:$0x1] %v4783
        %4826 = vst [vmem:[#allocation4 + $0x2c0] sm:$0x1] %v4784
        %4827 = vst [vmem:[#allocation4 + $0x2c8] sm:$0x1] %v4785
        %4828 = vst.msk [vmem:[#allocation4 + $0x2d0] sm:$0x1] %vm697, %v4786
        %v4829 = vld [vmem:[#allocation3] sm:$0xff]
        %v4830 = vld [vmem:[#allocation3 + $0x8] sm:$0xff]
        %v4831 = vld [vmem:[#allocation3 + $0x10] sm:$0xff]
        %v4832 = vld [vmem:[#allocation3 + $0x18] sm:$0xff]
        %v4833 = vld [vmem:[#allocation3 + $0x20] sm:$0xff]
        %v4834 = vld [vmem:[#allocation3 + $0x28] sm:$0xff]
        %v4835 = vld [vmem:[#allocation3 + $0x30] sm:$0xff]
        %v4836 = vld [vmem:[#allocation3 + $0x38] sm:$0xff]
        %v4837 = vld [vmem:[#allocation3 + $0x40] sm:$0xf]
        %v4838 = vld [vmem:[#allocation3 + $0x48] sm:$0xf]
        %v4839 = vld [vmem:[#allocation3 + $0x50] sm:$0xf]
        %v4840 = vld [vmem:[#allocation3 + $0x58] sm:$0xf]
        %v4841 = vld [vmem:[#allocation3 + $0x60] sm:$0xf]
        %v4842 = vld [vmem:[#allocation3 + $0x68] sm:$0xf]
        %v4843 = vld [vmem:[#allocation3 + $0x70] sm:$0xf]
        %v4844 = vld [vmem:[#allocation3 + $0x78] sm:$0xf]
        %v4861 = vrot.slane %v4829, 7
        %v4862 = vrot.slane %v4830, 7
        %v4863 = vrot.slane %v4831, 7
        %v4864 = vrot.slane %v4832, 7
        %v4865 = vrot.slane %v4833, 7
        %v4866 = vrot.slane %v4834, 7
        %v4867 = vrot.slane %v4835, 7
        %v4868 = vrot.slane %v4836, 7
        %v4869 = vrot.slane %v4837, 7
        %v4870 = vsel %vm1278, %v4861, %v4869
        %v4871 = vrot.slane %v4838, 7
        %v4872 = vsel %vm1278, %v4862, %v4871
        %v4873 = vrot.slane %v4839, 7
        %v4874 = vsel %vm1278, %v4863, %v4873
        %v4875 = vrot.slane %v4840, 7
        %v4876 = vsel %vm1278, %v4864, %v4875
        %v4877 = vrot.slane %v4841, 7
        %v4878 = vsel %vm1278, %v4865, %v4877
        %v4879 = vrot.slane %v4842, 7
        %v4880 = vsel %vm1278, %v4866, %v4879
        %v4881 = vrot.slane %v4843, 7
        %v4882 = vsel %vm1278, %v4867, %v4881
        %v4883 = vrot.slane %v4844, 7
        %v4884 = vsel %vm1278, %v4868, %v4883
        %4885 = vrot.lane.b32.xlu0 %v4861, 12
        %v4886 = vpop.permute.xlu0 %4885
        %4887 = vrot.lane.b32.xlu0 %v4862, 12
        %v4888 = vpop.permute.xlu0 %4887
        %4889 = vrot.lane.b32.xlu0 %v4863, 12
        %v4890 = vpop.permute.xlu0 %4889
        %4891 = vrot.lane.b32.xlu0 %v4864, 12
        %v4892 = vpop.permute.xlu0 %4891
        %4893 = vrot.lane.b32.xlu0 %v4865, 12
        %v4894 = vpop.permute.xlu0 %4893
        %4895 = vrot.lane.b32.xlu0 %v4866, 12
        %v4896 = vpop.permute.xlu0 %4895
        %4897 = vrot.lane.b32.xlu0 %v4867, 12
        %v4898 = vpop.permute.xlu0 %4897
        %4899 = vrot.lane.b32.xlu0 %v4868, 12
        %v4900 = vpop.permute.xlu0 %4899
        %4901 = vrot.lane.b32.xlu0 %v4870, 12
        %v4902 = vpop.permute.xlu0 %4901
        %4903 = vrot.lane.b32.xlu0 %v4872, 12
        %v4904 = vpop.permute.xlu0 %4903
        %4905 = vrot.lane.b32.xlu0 %v4874, 12
        %v4906 = vpop.permute.xlu0 %4905
        %4907 = vrot.lane.b32.xlu0 %v4876, 12
        %v4908 = vpop.permute.xlu0 %4907
        %4909 = vrot.lane.b32.xlu0 %v4878, 12
        %v4910 = vpop.permute.xlu0 %4909
        %4911 = vrot.lane.b32.xlu0 %v4880, 12
        %v4912 = vpop.permute.xlu0 %4911
        %4913 = vrot.lane.b32.xlu0 %v4882, 12
        %v4914 = vpop.permute.xlu0 %4913
        %4915 = vrot.lane.b32.xlu0 %v4884, 12
        %v4916 = vpop.permute.xlu0 %4915
        %v4917 = vsel %vm3274, %v4886, %v4888
        %v4918 = vsel %vm3274, %v4888, %v4890
        %v4919 = vsel %vm3274, %v4890, %v4892
        %v4920 = vsel %vm3274, %v4892, %v4894
        %v4921 = vsel %vm3274, %v4894, %v4896
        %v4922 = vsel %vm3274, %v4896, %v4898
        %v4923 = vsel %vm3274, %v4898, %v4900
        %v4924 = vsel %vm3274, %v4902, %v4904
        %v4925 = vsel %vm3274, %v4904, %v4906
        %v4926 = vsel %vm3274, %v4906, %v4908
        %v4927 = vsel %vm3274, %v4908, %v4910
        %v4928 = vsel %vm3274, %v4910, %v4912
        %v4929 = vsel %vm3274, %v4912, %v4914
        %v4930 = vsel %vm3274, %v4914, %v4916
        %4945 = vst [vmem:[#allocation4 + $0x2a0] sm:$0xfe] %v4917
        %4946 = vst [vmem:[#allocation4 + $0x2a8] sm:$0xfe] %v4918
        %4947 = vst [vmem:[#allocation4 + $0x2b0] sm:$0xfe] %v4919
        %4948 = vst [vmem:[#allocation4 + $0x2b8] sm:$0xfe] %v4920
        %4949 = vst [vmem:[#allocation4 + $0x2c0] sm:$0xfe] %v4921
        %4950 = vst [vmem:[#allocation4 + $0x2c8] sm:$0xfe] %v4922
        %4951 = vst.msk [vmem:[#allocation4 + $0x2d0] sm:$0xfe] %vm689, %v4923
        %4952 = vst [vmem:[#allocation4 + $0x2d8] sm:$0x1f] %v4924
        %4953 = vst [vmem:[#allocation4 + $0x2e0] sm:$0x1f] %v4925
        %4954 = vst [vmem:[#allocation4 + $0x2e8] sm:$0x1f] %v4926
        %4955 = vst [vmem:[#allocation4 + $0x2f0] sm:$0x1f] %v4927
        %4956 = vst [vmem:[#allocation4 + $0x2f8] sm:$0x1f] %v4928
        %4957 = vst [vmem:[#allocation4 + $0x300] sm:$0x1f] %v4929
        %4958 = vst.msk [vmem:[#allocation4 + $0x308] sm:$0x1f] %vm2390, %v4930
        %v4959 = vld [vmem:[%s1 + $0x8] sm:$0xff]
        %v4960 = vld [vmem:[%s1 + $0x10] sm:$0xff]
        %v4961 = vld [vmem:[%s1 + $0x30] sm:$0x3f]
        %v4962 = vld [vmem:[%s1 + $0x38] sm:$0x3f]
        %v4963 = vld [vmem:[#allocation4] sm:$0xff]
        %v4964 = vld [vmem:[#allocation4 + $0x8] sm:$0xff]
        %v4965 = vld [vmem:[#allocation4 + $0x10] sm:$0xff]
        %v4966 = vld [vmem:[#allocation4 + $0x18] sm:$0xff]
        %v4967 = vld [vmem:[#allocation4 + $0x20] sm:$0xff]
        %v4968 = vld [vmem:[#allocation4 + $0x28] sm:$0xff]
        %v4969 = vld [vmem:[#allocation4 + $0x30] sm:$0xff]
        %v4970 = vld [vmem:[#allocation4 + $0x38] sm:$0xff]
        %v4971 = vld [vmem:[#allocation4 + $0x40] sm:$0xff]
        %v4972 = vld [vmem:[#allocation4 + $0x48] sm:$0xff]
        %v4973 = vld [vmem:[#allocation4 + $0x50] sm:$0xff]
        %v4974 = vld [vmem:[#allocation4 + $0x58] sm:$0xff]
        %v4975 = vld [vmem:[#allocation4 + $0x60] sm:$0xff]
        %v4976 = vld [vmem:[#allocation4 + $0x68] sm:$0xff]
        %v4977 = vld [vmem:[#allocation4 + $0x70] sm:$0xff]
        %v4978 = vld [vmem:[#allocation4 + $0x78] sm:$0xff]
        %v4979 = vld [vmem:[#allocation4 + $0x80] sm:$0xff]
        %v4980 = vld [vmem:[#allocation4 + $0x88] sm:$0xff]
        %v4981 = vld [vmem:[#allocation4 + $0x90] sm:$0xff]
        %v4982 = vld [vmem:[#allocation4 + $0x98] sm:$0xff]
        %v4983 = vld [vmem:[#allocation4 + $0xa0] sm:$0xff]
        %v4984 = vld [vmem:[#allocation4 + $0xa8] sm:$0xff]
        %v4985 = vld [vmem:[#allocation4 + $0xb0] sm:$0xff]
        %v4986 = vld [vmem:[#allocation4 + $0xb8] sm:$0xff]
        %v4987 = vld [vmem:[#allocation4 + $0xc0] sm:$0xff]
        %v4988 = vld [vmem:[#allocation4 + $0xc8] sm:$0xff]
        %v4989 = vld [vmem:[#allocation4 + $0xd0] sm:$0xff]
        %v4990 = vld [vmem:[#allocation4 + $0xd8] sm:$0xff]
        %v4991 = vld [vmem:[#allocation4 + $0xe0] sm:$0xff]
        %v4992 = vld [vmem:[#allocation4 + $0xe8] sm:$0xff]
        %v4993 = vld [vmem:[#allocation4 + $0xf0] sm:$0xff]
        %v4994 = vld [vmem:[#allocation4 + $0xf8] sm:$0xff]
        %v4995 = vld [vmem:[#allocation4 + $0x100] sm:$0xff]
        %v4996 = vld [vmem:[#allocation4 + $0x108] sm:$0xff]
        %v4997 = vld [vmem:[#allocation4 + $0x110] sm:$0xff]
        %v4998 = vld [vmem:[#allocation4 + $0x118] sm:$0xff]
        %v4999 = vld [vmem:[#allocation4 + $0x120] sm:$0xff]
        %v5000 = vld [vmem:[#allocation4 + $0x128] sm:$0xff]
        %v5001 = vld [vmem:[#allocation4 + $0x130] sm:$0xff]
        %v5002 = vld [vmem:[#allocation4 + $0x138] sm:$0xff]
        %v5003 = vld [vmem:[#allocation4 + $0x140] sm:$0xff]
        %v5004 = vld [vmem:[#allocation4 + $0x148] sm:$0xff]
        %v5005 = vld [vmem:[#allocation4 + $0x150] sm:$0xff]
        %v5006 = vld [vmem:[#allocation4 + $0x158] sm:$0xff]
        %v5007 = vld [vmem:[#allocation4 + $0x160] sm:$0xff]
        %v5008 = vld [vmem:[#allocation4 + $0x168] sm:$0xff]
        %v5009 = vld [vmem:[#allocation4 + $0x170] sm:$0xff]
        %v5010 = vld [vmem:[#allocation4 + $0x178] sm:$0xff]
        %v5011 = vld [vmem:[#allocation4 + $0x180] sm:$0xff]
        %v5012 = vld [vmem:[#allocation4 + $0x188] sm:$0xff]
        %v5013 = vld [vmem:[#allocation4 + $0x190] sm:$0xff]
        %v5014 = vld [vmem:[#allocation4 + $0x198] sm:$0xff]
        %v5015 = vld [vmem:[#allocation4 + $0x1a0] sm:$0xff]
        %v5016 = vld [vmem:[#allocation4 + $0x1a8] sm:$0xff]
        %v5017 = vld [vmem:[#allocation4 + $0x1b0] sm:$0xff]
        %v5018 = vld [vmem:[#allocation4 + $0x1b8] sm:$0xff]
        %v5019 = vld [vmem:[#allocation4 + $0x1c0] sm:$0xff]
        %v5020 = vld [vmem:[#allocation4 + $0x1c8] sm:$0xff]
        %v5021 = vld [vmem:[#allocation4 + $0x1d0] sm:$0xff]
        %v5022 = vld [vmem:[#allocation4 + $0x1d8] sm:$0xff]
        %v5023 = vld [vmem:[#allocation4 + $0x1e0] sm:$0xff]
        %v5024 = vld [vmem:[#allocation4 + $0x1e8] sm:$0xff]
        %v5025 = vld [vmem:[#allocation4 + $0x1f0] sm:$0xff]
        %v5026 = vld [vmem:[#allocation4 + $0x1f8] sm:$0xff]
        %v5027 = vld [vmem:[#allocation4 + $0x200] sm:$0xff]
        %v5028 = vld [vmem:[#allocation4 + $0x208] sm:$0xff]
        %v5029 = vld [vmem:[#allocation4 + $0x210] sm:$0xff]
        %v5030 = vld [vmem:[#allocation4 + $0x218] sm:$0xff]
        %v5031 = vld [vmem:[#allocation4 + $0x220] sm:$0xff]
        %v5032 = vld [vmem:[#allocation4 + $0x228] sm:$0xff]
        %v5033 = vld [vmem:[#allocation4 + $0x230] sm:$0xff]
        %v5034 = vld [vmem:[#allocation4 + $0x238] sm:$0xff]
        %v5035 = vld [vmem:[#allocation4 + $0x240] sm:$0xff]
        %v5036 = vld [vmem:[#allocation4 + $0x248] sm:$0xff]
        %v5037 = vld [vmem:[#allocation4 + $0x250] sm:$0xff]
        %v5038 = vld [vmem:[#allocation4 + $0x258] sm:$0xff]
        %v5039 = vld [vmem:[#allocation4 + $0x260] sm:$0xff]
        %v5040 = vld [vmem:[#allocation4 + $0x268] sm:$0xff]
        %v5041 = vld [vmem:[#allocation4 + $0x270] sm:$0xff]
        %v5042 = vld [vmem:[#allocation4 + $0x278] sm:$0xff]
        %v5043 = vld [vmem:[#allocation4 + $0x280] sm:$0xff]
        %v5044 = vld [vmem:[#allocation4 + $0x288] sm:$0xff]
        %v5045 = vld [vmem:[#allocation4 + $0x290] sm:$0xff]
        %v5046 = vld [vmem:[#allocation4 + $0x298] sm:$0xff]
        %v5047 = vld [vmem:[#allocation4 + $0x2a0] sm:$0xff]
        %v5048 = vld [vmem:[#allocation4 + $0x2a8] sm:$0xff]
        %v5049 = vld [vmem:[#allocation4 + $0x2b0] sm:$0xff]
        %v5050 = vld [vmem:[#allocation4 + $0x2b8] sm:$0xff]
        %v5051 = vld [vmem:[#allocation4 + $0x2c0] sm:$0xff]
        %v5052 = vld [vmem:[#allocation4 + $0x2c8] sm:$0xff]
        %v5053 = vld [vmem:[#allocation4 + $0x2d0] sm:$0xff]
        %v5054 = vld [vmem:[#allocation4 + $0x2d8] sm:$0x1f]
        %v5055 = vld [vmem:[#allocation4 + $0x2e0] sm:$0x1f]
        %v5056 = vld [vmem:[#allocation4 + $0x2e8] sm:$0x1f]
        %v5057 = vld [vmem:[#allocation4 + $0x2f0] sm:$0x1f]
        %v5058 = vld [vmem:[#allocation4 + $0x2f8] sm:$0x1f]
        %v5059 = vld [vmem:[#allocation4 + $0x300] sm:$0x1f]
        %v5060 = vld [vmem:[#allocation4 + $0x308] sm:$0x1f]
        %5065 = vrot.lane.b32.xlu0 %v4959, 71
        %v5066 = vpop.permute.xlu0 %5065
        %5067 = vrot.lane.b32.xlu0 %v4960, 71
        %v5068 = vpop.permute.xlu0 %5067
        %5069 = vrot.lane.b32.xlu0 %v4961, 71
        %v5070 = vpop.permute.xlu0 %5069
        %5071 = vrot.lane.b32.xlu0 %v4962, 71
        %v5072 = vpop.permute.xlu0 %5071
        %v5073 = vsel %vm298, %v5066, %v5068
        %v5074 = vsel %vm298, %v5070, %v5072
        %vm5075 = vcmask 891904
        %v5076 = vsel %vm5075, %v5073, 0
        %v5078 = vsel %vm5075, %v5074, 0
        %v5081 = vsel %vm2420, %v5054, 0
        %v5084 = vsel %vm2420, %v5055, 0
        %v5087 = vsel %vm2420, %v5056, 0
        %v5090 = vsel %vm2420, %v5057, 0
        %v5093 = vsel %vm2420, %v5058, 0
        %v5096 = vsel %vm2420, %v5059, 0
        %v5099 = vsel %vm2420, %v5060, 0
        %5101 = vmatprep.subr.mxu0 0.0
        %5102 = vmatpush1.msra.mxu0 0.0
        %5103 = vmatprep.subr.mxu0 0.0
        %5104 = vmatpush1.msra.mxu0 0.0
        %5105 = vmatprep.subr.mxu0 %v5084
        %5106 = vmatpush1.msra.mxu0 %v5081
        %5107 = vmatprep.subr.mxu0 %v5048
        %5108 = vmatpush1.msra.mxu0 %v5047
        %5109 = vmatprep.subr.mxu0 %v5041
        %5110 = vmatpush1.msra.mxu0 %v5040
        %5111 = vmatprep.subr.mxu0 %v5034
        %5112 = vmatpush1.msra.mxu0 %v5033
        %5113 = vmatprep.subr.mxu0 %v5027
        %5114 = vmatpush1.msra.mxu0 %v5026
        %5115 = vmatprep.subr.mxu0 %v5020
        %5116 = vmatpush1.msra.mxu0 %v5019
        %5117 = vmatprep.subr.mxu0 %v5013
        %5118 = vmatpush1.msra.mxu0 %v5012
        %5119 = vmatprep.subr.mxu0 %v5006
        %5120 = vmatpush1.msra.mxu0 %v5005
        %5121 = vmatprep.subr.mxu0 %v4999
        %5122 = vmatpush1.msra.mxu0 %v4998
        %5123 = vmatprep.subr.mxu0 %v4992
        %5124 = vmatpush1.msra.mxu0 %v4991
        %5125 = vmatprep.subr.mxu0 %v4985
        %5126 = vmatpush1.msra.mxu0 %v4984
        %5127 = vmatprep.subr.mxu0 %v4978
        %5128 = vmatpush1.msra.mxu0 %v4977
        %5129 = vmatprep.subr.mxu0 %v4971
        %5130 = vmatpush1.msra.mxu0 %v4970
        %5131 = vmatprep.subr.mxu0 %v4964
        %5132 = vmatpush1.msra.mxu0 %v4963
        %5133 = vmatprep.subr.mxu0 0.0
        %5134 = vmatpush2.msra.mxu0 0.0
        %5135 = vmatprep.subr.mxu0 0.0
        %5136 = vmatpush2.msra.mxu0 0.0
        %5137 = vmatprep.subr.mxu0 0.0
        %5138 = vmatpush2.msra.mxu0 0.0
        %5139 = vmatprep.subr.mxu0 0.0
        %5140 = vmatpush2.msra.mxu0 0.0
        %5141 = vmatprep.subr.mxu0 0.0
        %5142 = vmatpush2.msra.mxu0 0.0
        %5143 = vmatprep.subr.mxu0 0.0
        %5144 = vmatpush2.msra.mxu0 0.0
        %5145 = vmatprep.subr.mxu0 0.0
        %5146 = vmatpush2.msra.mxu0 0.0
        %5147 = vmatprep.subr.mxu0 0.0
        %5148 = vmatpush2.msra.mxu0 0.0
        %5149 = vmatprep.subr.mxu0 0.0
        %5150 = vmatpush2.msra.mxu0 0.0
        %5151 = vmatprep.subr.mxu0 0.0
        %5152 = vmatpush2.msra.mxu0 0.0
        %5153 = vmatprep.subr.mxu0 0.0
        %5154 = vmatpush2.msra.mxu0 0.0
        %5155 = vmatprep.subr.mxu0 0.0
        %5156 = vmatpush2.msra.mxu0 0.0
        %5157 = vmatprep.subr.mxu0 0.0
        %5158 = vmatpush2.msra.mxu0 0.0
        %5159 = vmatprep.subr.mxu0 0.0
        %5160 = vmatpush2.msra.mxu0 0.0
        %5161 = vmatprep.subr.mxu0 0.0
        %5162 = vmatpush2.msra.mxu0 0.0
        %5163 = vmatprep.subr.mxu0 0.0
        %5164 = vmatpush2.msra.mxu0 0.0
        %5165 = vmatprep.mubr.f32.mxu0 0.0
        %5166 = vmatmul.mubr.f32.gmra.mxu0 %v5076
        %v5167 = vpop.f32.mrf.mxu0
        %v5168 = vadd.f32 0.0, %v5167
        %v5169 = vpop.f32.mrf.mxu0
        %v5170 = vadd.f32 0.0, %v5169
        %5171 = vmatprep.mubr.f32.mxu0 0.0
        %5172 = vmatmul.mubr.f32.gmra.mxu0 %v5078
        %v5173 = vpop.f32.mrf.mxu0
        %v5174 = vadd.f32 0.0, %v5173
        %v5175 = vpop.f32.mrf.mxu0
        %v5176 = vadd.f32 0.0, %v5175
        %5177 = vdwg.mxu0
        %5178 = vmatprep.subr.mxu0 0.0
        %5179 = vmatpush1.msra.mxu0 0.0
        %5180 = vmatprep.subr.mxu0 0.0
        %5181 = vmatpush1.msra.mxu0 0.0
        %5182 = vmatprep.subr.mxu0 %v5090
        %5183 = vmatpush1.msra.mxu0 %v5087
        %5184 = vmatprep.subr.mxu0 %v5050
        %5185 = vmatpush1.msra.mxu0 %v5049
        %5186 = vmatprep.subr.mxu0 %v5043
        %5187 = vmatpush1.msra.mxu0 %v5042
        %5188 = vmatprep.subr.mxu0 %v5036
        %5189 = vmatpush1.msra.mxu0 %v5035
        %5190 = vmatprep.subr.mxu0 %v5029
        %5191 = vmatpush1.msra.mxu0 %v5028
        %5192 = vmatprep.subr.mxu0 %v5022
        %5193 = vmatpush1.msra.mxu0 %v5021
        %5194 = vmatprep.subr.mxu0 %v5015
        %5195 = vmatpush1.msra.mxu0 %v5014
        %5196 = vmatprep.subr.mxu0 %v5008
        %5197 = vmatpush1.msra.mxu0 %v5007
        %5198 = vmatprep.subr.mxu0 %v5001
        %5199 = vmatpush1.msra.mxu0 %v5000
        %5200 = vmatprep.subr.mxu0 %v4994
        %5201 = vmatpush1.msra.mxu0 %v4993
        %5202 = vmatprep.subr.mxu0 %v4987
        %5203 = vmatpush1.msra.mxu0 %v4986
        %5204 = vmatprep.subr.mxu0 %v4980
        %5205 = vmatpush1.msra.mxu0 %v4979
        %5206 = vmatprep.subr.mxu0 %v4973
        %5207 = vmatpush1.msra.mxu0 %v4972
        %5208 = vmatprep.subr.mxu0 %v4966
        %5209 = vmatpush1.msra.mxu0 %v4965
        %5210 = vmatprep.subr.mxu0 0.0
        %5211 = vmatpush2.msra.mxu0 0.0
        %5212 = vmatprep.subr.mxu0 0.0
        %5213 = vmatpush2.msra.mxu0 0.0
        %5214 = vmatprep.subr.mxu0 0.0
        %5215 = vmatpush2.msra.mxu0 0.0
        %5216 = vmatprep.subr.mxu0 0.0
        %5217 = vmatpush2.msra.mxu0 0.0
        %5218 = vmatprep.subr.mxu0 0.0
        %5219 = vmatpush2.msra.mxu0 0.0
        %5220 = vmatprep.subr.mxu0 0.0
        %5221 = vmatpush2.msra.mxu0 0.0
        %5222 = vmatprep.subr.mxu0 0.0
        %5223 = vmatpush2.msra.mxu0 0.0
        %5224 = vmatprep.subr.mxu0 0.0
        %5225 = vmatpush2.msra.mxu0 0.0
        %5226 = vmatprep.subr.mxu0 0.0
        %5227 = vmatpush2.msra.mxu0 0.0
        %5228 = vmatprep.subr.mxu0 0.0
        %5229 = vmatpush2.msra.mxu0 0.0
        %5230 = vmatprep.subr.mxu0 0.0
        %5231 = vmatpush2.msra.mxu0 0.0
        %5232 = vmatprep.subr.mxu0 0.0
        %5233 = vmatpush2.msra.mxu0 0.0
        %5234 = vmatprep.subr.mxu0 0.0
        %5235 = vmatpush2.msra.mxu0 0.0
        %5236 = vmatprep.subr.mxu0 0.0
        %5237 = vmatpush2.msra.mxu0 0.0
        %5238 = vmatprep.subr.mxu0 0.0
        %5239 = vmatpush2.msra.mxu0 0.0
        %5240 = vmatprep.subr.mxu0 0.0
        %5241 = vmatpush2.msra.mxu0 0.0
        %5242 = vmatprep.mubr.f32.mxu0 0.0
        %5243 = vmatmul.mubr.f32.gmra.mxu0 %v5076
        %v5244 = vpop.f32.mrf.mxu0
        %v5245 = vadd.f32 0.0, %v5244
        %v5246 = vpop.f32.mrf.mxu0
        %v5247 = vadd.f32 0.0, %v5246
        %5248 = vmatprep.mubr.f32.mxu0 0.0
        %5249 = vmatmul.mubr.f32.gmra.mxu0 %v5078
        %v5250 = vpop.f32.mrf.mxu0
        %v5251 = vadd.f32 0.0, %v5250
        %v5252 = vpop.f32.mrf.mxu0
        %v5253 = vadd.f32 0.0, %v5252
        %5254 = vdwg.mxu0
        %5255 = vmatprep.subr.mxu0 0.0
        %5256 = vmatpush1.msra.mxu0 0.0
        %5257 = vmatprep.subr.mxu0 0.0
        %5258 = vmatpush1.msra.mxu0 0.0
        %5259 = vmatprep.subr.mxu0 %v5096
        %5260 = vmatpush1.msra.mxu0 %v5093
        %5261 = vmatprep.subr.mxu0 %v5052
        %5262 = vmatpush1.msra.mxu0 %v5051
        %5263 = vmatprep.subr.mxu0 %v5045
        %5264 = vmatpush1.msra.mxu0 %v5044
        %5265 = vmatprep.subr.mxu0 %v5038
        %5266 = vmatpush1.msra.mxu0 %v5037
        %5267 = vmatprep.subr.mxu0 %v5031
        %5268 = vmatpush1.msra.mxu0 %v5030
        %5269 = vmatprep.subr.mxu0 %v5024
        %5270 = vmatpush1.msra.mxu0 %v5023
        %5271 = vmatprep.subr.mxu0 %v5017
        %5272 = vmatpush1.msra.mxu0 %v5016
        %5273 = vmatprep.subr.mxu0 %v5010
        %5274 = vmatpush1.msra.mxu0 %v5009
        %5275 = vmatprep.subr.mxu0 %v5003
        %5276 = vmatpush1.msra.mxu0 %v5002
        %5277 = vmatprep.subr.mxu0 %v4996
        %5278 = vmatpush1.msra.mxu0 %v4995
        %5279 = vmatprep.subr.mxu0 %v4989
        %5280 = vmatpush1.msra.mxu0 %v4988
        %5281 = vmatprep.subr.mxu0 %v4982
        %5282 = vmatpush1.msra.mxu0 %v4981
        %5283 = vmatprep.subr.mxu0 %v4975
        %5284 = vmatpush1.msra.mxu0 %v4974
        %5285 = vmatprep.subr.mxu0 %v4968
        %5286 = vmatpush1.msra.mxu0 %v4967
        %5287 = vmatprep.subr.mxu0 0.0
        %5288 = vmatpush2.msra.mxu0 0.0
        %5289 = vmatprep.subr.mxu0 0.0
        %5290 = vmatpush2.msra.mxu0 0.0
        %5291 = vmatprep.subr.mxu0 0.0
        %5292 = vmatpush2.msra.mxu0 0.0
        %5293 = vmatprep.subr.mxu0 0.0
        %5294 = vmatpush2.msra.mxu0 0.0
        %5295 = vmatprep.subr.mxu0 0.0
        %5296 = vmatpush2.msra.mxu0 0.0
        %5297 = vmatprep.subr.mxu0 0.0
        %5298 = vmatpush2.msra.mxu0 0.0
        %5299 = vmatprep.subr.mxu0 0.0
        %5300 = vmatpush2.msra.mxu0 0.0
        %5301 = vmatprep.subr.mxu0 0.0
        %5302 = vmatpush2.msra.mxu0 0.0
        %5303 = vmatprep.subr.mxu0 0.0
        %5304 = vmatpush2.msra.mxu0 0.0
        %5305 = vmatprep.subr.mxu0 0.0
        %5306 = vmatpush2.msra.mxu0 0.0
        %5307 = vmatprep.subr.mxu0 0.0
        %5308 = vmatpush2.msra.mxu0 0.0
        %5309 = vmatprep.subr.mxu0 0.0
        %5310 = vmatpush2.msra.mxu0 0.0
        %5311 = vmatprep.subr.mxu0 0.0
        %5312 = vmatpush2.msra.mxu0 0.0
        %5313 = vmatprep.subr.mxu0 0.0
        %5314 = vmatpush2.msra.mxu0 0.0
        %5315 = vmatprep.subr.mxu0 0.0
        %5316 = vmatpush2.msra.mxu0 0.0
        %5317 = vmatprep.subr.mxu0 0.0
        %5318 = vmatpush2.msra.mxu0 0.0
        %5319 = vmatprep.mubr.f32.mxu0 0.0
        %5320 = vmatmul.mubr.f32.gmra.mxu0 %v5076
        %v5321 = vpop.f32.mrf.mxu0
        %v5322 = vadd.f32 0.0, %v5321
        %v5323 = vpop.f32.mrf.mxu0
        %v5324 = vadd.f32 0.0, %v5323
        %5325 = vmatprep.mubr.f32.mxu0 0.0
        %5326 = vmatmul.mubr.f32.gmra.mxu0 %v5078
        %v5327 = vpop.f32.mrf.mxu0
        %v5328 = vadd.f32 0.0, %v5327
        %v5329 = vpop.f32.mrf.mxu0
        %v5330 = vadd.f32 0.0, %v5329
        %5331 = vdwg.mxu0
        %5332 = vmatprep.subr.mxu0 0.0
        %5333 = vmatpush1.msra.mxu0 0.0
        %5334 = vmatprep.subr.mxu0 0.0
        %5335 = vmatpush1.msra.mxu0 0.0
        %5336 = vmatprep.subr.mxu0 0.0
        %5337 = vmatpush1.msra.mxu0 %v5099
        %5338 = vmatprep.subr.mxu0 0.0
        %5339 = vmatpush1.msra.mxu0 %v5053
        %5340 = vmatprep.subr.mxu0 0.0
        %5341 = vmatpush1.msra.mxu0 %v5046
        %5342 = vmatprep.subr.mxu0 0.0
        %5343 = vmatpush1.msra.mxu0 %v5039
        %5344 = vmatprep.subr.mxu0 0.0
        %5345 = vmatpush1.msra.mxu0 %v5032
        %5346 = vmatprep.subr.mxu0 0.0
        %5347 = vmatpush1.msra.mxu0 %v5025
        %5348 = vmatprep.subr.mxu0 0.0
        %5349 = vmatpush1.msra.mxu0 %v5018
        %5350 = vmatprep.subr.mxu0 0.0
        %5351 = vmatpush1.msra.mxu0 %v5011
        %5352 = vmatprep.subr.mxu0 0.0
        %5353 = vmatpush1.msra.mxu0 %v5004
        %5354 = vmatprep.subr.mxu0 0.0
        %5355 = vmatpush1.msra.mxu0 %v4997
        %5356 = vmatprep.subr.mxu0 0.0
        %5357 = vmatpush1.msra.mxu0 %v4990
        %5358 = vmatprep.subr.mxu0 0.0
        %5359 = vmatpush1.msra.mxu0 %v4983
        %5360 = vmatprep.subr.mxu0 0.0
        %5361 = vmatpush1.msra.mxu0 %v4976
        %5362 = vmatprep.subr.mxu0 0.0
        %5363 = vmatpush1.msra.mxu0 %v4969
        %5364 = vmatprep.subr.mxu0 0.0
        %5365 = vmatpush2.msra.mxu0 0.0
        %5366 = vmatprep.subr.mxu0 0.0
        %5367 = vmatpush2.msra.mxu0 0.0
        %5368 = vmatprep.subr.mxu0 0.0
        %5369 = vmatpush2.msra.mxu0 0.0
        %5370 = vmatprep.subr.mxu0 0.0
        %5371 = vmatpush2.msra.mxu0 0.0
        %5372 = vmatprep.subr.mxu0 0.0
        %5373 = vmatpush2.msra.mxu0 0.0
        %5374 = vmatprep.subr.mxu0 0.0
        %5375 = vmatpush2.msra.mxu0 0.0
        %5376 = vmatprep.subr.mxu0 0.0
        %5377 = vmatpush2.msra.mxu0 0.0
        %5378 = vmatprep.subr.mxu0 0.0
        %5379 = vmatpush2.msra.mxu0 0.0
        %5380 = vmatprep.subr.mxu0 0.0
        %5381 = vmatpush2.msra.mxu0 0.0
        %5382 = vmatprep.subr.mxu0 0.0
        %5383 = vmatpush2.msra.mxu0 0.0
        %5384 = vmatprep.subr.mxu0 0.0
        %5385 = vmatpush2.msra.mxu0 0.0
        %5386 = vmatprep.subr.mxu0 0.0
        %5387 = vmatpush2.msra.mxu0 0.0
        %5388 = vmatprep.subr.mxu0 0.0
        %5389 = vmatpush2.msra.mxu0 0.0
        %5390 = vmatprep.subr.mxu0 0.0
        %5391 = vmatpush2.msra.mxu0 0.0
        %5392 = vmatprep.subr.mxu0 0.0
        %5393 = vmatpush2.msra.mxu0 0.0
        %5394 = vmatprep.subr.mxu0 0.0
        %5395 = vmatpush2.msra.mxu0 0.0
        %5396 = vmatprep.mubr.f32.mxu0 0.0
        %5397 = vmatmul.mubr.f32.gmra.mxu0 %v5076
        %v5398 = vpop.f32.mrf.mxu0
        %v5399 = vadd.f32 0.0, %v5398
        %v5400 = vpop.f32.mrf.mxu0
        %5401 = vmatprep.mubr.f32.mxu0 0.0
        %5402 = vmatmul.mubr.f32.gmra.mxu0 %v5078
        %v5403 = vpop.f32.mrf.mxu0
        %v5404 = vadd.f32 0.0, %v5403
        %v5405 = vpop.f32.mrf.mxu0
        %5406 = vdwg.mxu0
        %v5407 = vmax.f32 %v5168, 0.0
        %v5408 = vmax.f32 %v5170, 0.0
        %v5409 = vmax.f32 %v5245, 0.0
        %v5410 = vmax.f32 %v5247, 0.0
        %v5411 = vmax.f32 %v5322, 0.0
        %v5412 = vmax.f32 %v5324, 0.0
        %v5413 = vmax.f32 %v5399, 0.0
        %v5414 = vmax.f32 %v5174, 0.0
        %v5415 = vmax.f32 %v5176, 0.0
        %v5416 = vmax.f32 %v5251, 0.0
        %v5417 = vmax.f32 %v5253, 0.0
        %v5418 = vmax.f32 %v5328, 0.0
        %v5419 = vmax.f32 %v5330, 0.0
        %v5420 = vmax.f32 %v5404, 0.0
        %5421 = vst [vmem:[#allocation2] sm:$0xff] %v5407
        %5422 = vst [vmem:[#allocation2 + $0x8] sm:$0xff] %v5408
        %5423 = vst [vmem:[#allocation2 + $0x10] sm:$0xff] %v5409
        %5424 = vst [vmem:[#allocation2 + $0x18] sm:$0xff] %v5410
        %5425 = vst [vmem:[#allocation2 + $0x20] sm:$0xff] %v5411
        %5426 = vst [vmem:[#allocation2 + $0x28] sm:$0xff] %v5412
        %5427 = vst.msk [vmem:[#allocation2 + $0x30] sm:$0xff] %vm172, %v5413
        %5428 = vst [vmem:[#allocation2 + $0x40] sm:$0x3f] %v5414
        %5429 = vst [vmem:[#allocation2 + $0x48] sm:$0x3f] %v5415
        %5430 = vst [vmem:[#allocation2 + $0x50] sm:$0x3f] %v5416
        %5431 = vst [vmem:[#allocation2 + $0x58] sm:$0x3f] %v5417
        %5432 = vst [vmem:[#allocation2 + $0x60] sm:$0x3f] %v5418
        %5433 = vst [vmem:[#allocation2 + $0x68] sm:$0x3f] %v5419
        %vm5434 = vcmask 128000
        %5435 = vst.msk [vmem:[#allocation2 + $0x70] sm:$0x3f] %vm5434, %v5420
        %v5436 = vld [vmem:[#allocation2] sm:$0xff]
        %v5437 = vld [vmem:[#allocation2 + $0x8] sm:$0xff]
        %v5438 = vld [vmem:[#allocation2 + $0x10] sm:$0xff]
        %v5439 = vld [vmem:[#allocation2 + $0x18] sm:$0xff]
        %v5440 = vld [vmem:[#allocation2 + $0x20] sm:$0xff]
        %v5441 = vld [vmem:[#allocation2 + $0x28] sm:$0xff]
        %v5442 = vld [vmem:[#allocation2 + $0x30] sm:$0xff]
        %v5443 = vld [vmem:[#allocation2 + $0x40] sm:$0x3f]
        %v5444 = vld [vmem:[#allocation2 + $0x48] sm:$0x3f]
        %v5445 = vld [vmem:[#allocation2 + $0x50] sm:$0x3f]
        %v5446 = vld [vmem:[#allocation2 + $0x58] sm:$0x3f]
        %v5447 = vld [vmem:[#allocation2 + $0x60] sm:$0x3f]
        %v5448 = vld [vmem:[#allocation2 + $0x68] sm:$0x3f]
        %v5449 = vld [vmem:[#allocation2 + $0x70] sm:$0x3f]
        %v5464 = vrot.slane %v5436, 7
        %v5465 = vrot.slane %v5437, 7
        %v5466 = vrot.slane %v5438, 7
        %v5467 = vrot.slane %v5439, 7
        %v5468 = vrot.slane %v5440, 7
        %v5469 = vrot.slane %v5441, 7
        %v5470 = vrot.slane %v5442, 7
        %v5471 = vrot.slane %v5443, 7
        %v5472 = vsel %vm1278, %v5464, %v5471
        %v5473 = vrot.slane %v5444, 7
        %v5474 = vsel %vm1278, %v5465, %v5473
        %v5475 = vrot.slane %v5445, 7
        %v5476 = vsel %vm1278, %v5466, %v5475
        %v5477 = vrot.slane %v5446, 7
        %v5478 = vsel %vm1278, %v5467, %v5477
        %v5479 = vrot.slane %v5447, 7
        %v5480 = vsel %vm1278, %v5468, %v5479
        %v5481 = vrot.slane %v5448, 7
        %v5482 = vsel %vm1278, %v5469, %v5481
        %v5483 = vrot.slane %v5449, 7
        %v5484 = vsel %vm1278, %v5470, %v5483
        %5499 = vst [vmem:[#allocation4] sm:$0xfe] %v5464
        %5500 = vst [vmem:[#allocation4 + $0x8] sm:$0xfe] %v5465
        %5501 = vst [vmem:[#allocation4 + $0x10] sm:$0xfe] %v5466
        %5502 = vst [vmem:[#allocation4 + $0x18] sm:$0xfe] %v5467
        %5503 = vst [vmem:[#allocation4 + $0x20] sm:$0xfe] %v5468
        %5504 = vst [vmem:[#allocation4 + $0x28] sm:$0xfe] %v5469
        %5505 = vst.msk [vmem:[#allocation4 + $0x30] sm:$0xfe] %vm689, %v5470
        %5506 = vst [vmem:[#allocation4 + $0x38] sm:$0x7f] %v5472
        %5507 = vst [vmem:[#allocation4 + $0x40] sm:$0x7f] %v5474
        %5508 = vst [vmem:[#allocation4 + $0x48] sm:$0x7f] %v5476
        %5509 = vst [vmem:[#allocation4 + $0x50] sm:$0x7f] %v5478
        %5510 = vst [vmem:[#allocation4 + $0x58] sm:$0x7f] %v5480
        %5511 = vst [vmem:[#allocation4 + $0x60] sm:$0x7f] %v5482
        %5512 = vst.msk [vmem:[#allocation4 + $0x68] sm:$0x7f] %vm2511, %v5484
        %v5513 = vld [vmem:[#allocation2] sm:$0xff]
        %v5514 = vld [vmem:[#allocation2 + $0x8] sm:$0xff]
        %v5515 = vld [vmem:[#allocation2 + $0x10] sm:$0xff]
        %v5516 = vld [vmem:[#allocation2 + $0x18] sm:$0xff]
        %v5517 = vld [vmem:[#allocation2 + $0x20] sm:$0xff]
        %v5518 = vld [vmem:[#allocation2 + $0x28] sm:$0xff]
        %v5519 = vld [vmem:[#allocation2 + $0x30] sm:$0xff]
        %v5520 = vld [vmem:[#allocation2 + $0x40] sm:$0x3f]
        %v5521 = vld [vmem:[#allocation2 + $0x48] sm:$0x3f]
        %v5522 = vld [vmem:[#allocation2 + $0x50] sm:$0x3f]
        %v5523 = vld [vmem:[#allocation2 + $0x58] sm:$0x3f]
        %v5524 = vld [vmem:[#allocation2 + $0x60] sm:$0x3f]
        %v5525 = vld [vmem:[#allocation2 + $0x68] sm:$0x3f]
        %v5526 = vld [vmem:[#allocation2 + $0x70] sm:$0x3f]
        %v5541 = vrot.slane %v5513, 1
        %v5542 = vrot.slane %v5514, 1
        %v5543 = vrot.slane %v5515, 1
        %v5544 = vrot.slane %v5516, 1
        %v5545 = vrot.slane %v5517, 1
        %v5546 = vrot.slane %v5518, 1
        %v5547 = vrot.slane %v5519, 1
        %v5548 = vrot.slane %v5520, 1
        %v5549 = vsel %vm2541, %v5541, %v5548
        %v5550 = vrot.slane %v5521, 1
        %v5551 = vsel %vm2541, %v5542, %v5550
        %v5552 = vrot.slane %v5522, 1
        %v5553 = vsel %vm2541, %v5543, %v5552
        %v5554 = vrot.slane %v5523, 1
        %v5555 = vsel %vm2541, %v5544, %v5554
        %v5556 = vrot.slane %v5524, 1
        %v5557 = vsel %vm2541, %v5545, %v5556
        %v5558 = vrot.slane %v5525, 1
        %v5559 = vsel %vm2541, %v5546, %v5558
        %v5560 = vrot.slane %v5526, 1
        %v5561 = vsel %vm2541, %v5547, %v5560
        %5562 = vrot.lane.b32.xlu0 %v5541, 126
        %v5563 = vpop.permute.xlu0 %5562
        %5564 = vrot.lane.b32.xlu0 %v5542, 126
        %v5565 = vpop.permute.xlu0 %5564
        %5566 = vrot.lane.b32.xlu0 %v5543, 126
        %v5567 = vpop.permute.xlu0 %5566
        %5568 = vrot.lane.b32.xlu0 %v5544, 126
        %v5569 = vpop.permute.xlu0 %5568
        %5570 = vrot.lane.b32.xlu0 %v5545, 126
        %v5571 = vpop.permute.xlu0 %5570
        %5572 = vrot.lane.b32.xlu0 %v5546, 126
        %v5573 = vpop.permute.xlu0 %5572
        %5574 = vrot.lane.b32.xlu0 %v5547, 126
        %v5575 = vpop.permute.xlu0 %5574
        %5576 = vrot.lane.b32.xlu0 %v5549, 126
        %v5577 = vpop.permute.xlu0 %5576
        %5578 = vrot.lane.b32.xlu0 %v5551, 126
        %v5579 = vpop.permute.xlu0 %5578
        %5580 = vrot.lane.b32.xlu0 %v5553, 126
        %v5581 = vpop.permute.xlu0 %5580
        %5582 = vrot.lane.b32.xlu0 %v5555, 126
        %v5583 = vpop.permute.xlu0 %5582
        %5584 = vrot.lane.b32.xlu0 %v5557, 126
        %v5585 = vpop.permute.xlu0 %5584
        %5586 = vrot.lane.b32.xlu0 %v5559, 126
        %v5587 = vpop.permute.xlu0 %5586
        %5588 = vrot.lane.b32.xlu0 %v5561, 126
        %v5589 = vpop.permute.xlu0 %5588
        %5590 = vrot.lane.b32.xlu0 %v5548, 126
        %v5591 = vpop.permute.xlu0 %5590
        %5592 = vrot.lane.b32.xlu0 %v5550, 126
        %v5593 = vpop.permute.xlu0 %5592
        %5594 = vrot.lane.b32.xlu0 %v5552, 126
        %v5595 = vpop.permute.xlu0 %5594
        %5596 = vrot.lane.b32.xlu0 %v5554, 126
        %v5597 = vpop.permute.xlu0 %5596
        %5598 = vrot.lane.b32.xlu0 %v5556, 126
        %v5599 = vpop.permute.xlu0 %5598
        %5600 = vrot.lane.b32.xlu0 %v5558, 126
        %v5601 = vpop.permute.xlu0 %5600
        %5602 = vrot.lane.b32.xlu0 %v5560, 126
        %v5603 = vpop.permute.xlu0 %5602
        %v5604 = vsel %vm233, %v5563, %v5565
        %v5605 = vsel %vm233, %v5565, %v5567
        %v5606 = vsel %vm233, %v5567, %v5569
        %v5607 = vsel %vm233, %v5569, %v5571
        %v5608 = vsel %vm233, %v5571, %v5573
        %v5609 = vsel %vm233, %v5573, %v5575
        %v5610 = vsel %vm233, %v5577, %v5579
        %v5611 = vsel %vm233, %v5579, %v5581
        %v5612 = vsel %vm233, %v5581, %v5583
        %v5613 = vsel %vm233, %v5583, %v5585
        %v5614 = vsel %vm233, %v5585, %v5587
        %v5615 = vsel %vm233, %v5587, %v5589
        %v5616 = vsel %vm233, %v5591, %v5593
        %v5617 = vsel %vm233, %v5593, %v5595
        %v5618 = vsel %vm233, %v5595, %v5597
        %v5619 = vsel %vm233, %v5597, %v5599
        %v5620 = vsel %vm233, %v5599, %v5601
        %v5621 = vsel %vm233, %v5601, %v5603
        %5643 = vst [vmem:[#allocation4 + $0x38] sm:$0x80] %v5604
        %5644 = vst [vmem:[#allocation4 + $0x40] sm:$0x80] %v5605
        %5645 = vst [vmem:[#allocation4 + $0x48] sm:$0x80] %v5606
        %5646 = vst [vmem:[#allocation4 + $0x50] sm:$0x80] %v5607
        %5647 = vst [vmem:[#allocation4 + $0x58] sm:$0x80] %v5608
        %5648 = vst [vmem:[#allocation4 + $0x60] sm:$0x80] %v5609
        %5649 = vst.msk [vmem:[#allocation4 + $0x68] sm:$0x80] %vm2650, %v5575
        %5650 = vst [vmem:[#allocation4 + $0x70] sm:$0xff] %v5610
        %5651 = vst [vmem:[#allocation4 + $0x78] sm:$0xff] %v5611
        %5652 = vst [vmem:[#allocation4 + $0x80] sm:$0xff] %v5612
        %5653 = vst [vmem:[#allocation4 + $0x88] sm:$0xff] %v5613
        %5654 = vst [vmem:[#allocation4 + $0x90] sm:$0xff] %v5614
        %5655 = vst [vmem:[#allocation4 + $0x98] sm:$0xff] %v5615
        %5656 = vst.msk [vmem:[#allocation4 + $0xa0] sm:$0xff] %vm172, %v5589
        %5657 = vst [vmem:[#allocation4 + $0xa8] sm:$0x1f] %v5616
        %5658 = vst [vmem:[#allocation4 + $0xb0] sm:$0x1f] %v5617
        %5659 = vst [vmem:[#allocation4 + $0xb8] sm:$0x1f] %v5618
        %5660 = vst [vmem:[#allocation4 + $0xc0] sm:$0x1f] %v5619
        %5661 = vst [vmem:[#allocation4 + $0xc8] sm:$0x1f] %v5620
        %5662 = vst [vmem:[#allocation4 + $0xd0] sm:$0x1f] %v5621
        %5663 = vst.msk [vmem:[#allocation4 + $0xd8] sm:$0x1f] %vm2390, %v5603
        %v5664 = vld [vmem:[#allocation2] sm:$0xff]
        %v5665 = vld [vmem:[#allocation2 + $0x8] sm:$0xff]
        %v5666 = vld [vmem:[#allocation2 + $0x10] sm:$0xff]
        %v5667 = vld [vmem:[#allocation2 + $0x18] sm:$0xff]
        %v5668 = vld [vmem:[#allocation2 + $0x20] sm:$0xff]
        %v5669 = vld [vmem:[#allocation2 + $0x28] sm:$0xff]
        %v5670 = vld [vmem:[#allocation2 + $0x30] sm:$0xff]
        %v5671 = vld [vmem:[#allocation2 + $0x40] sm:$0x3f]
        %v5672 = vld [vmem:[#allocation2 + $0x48] sm:$0x3f]
        %v5673 = vld [vmem:[#allocation2 + $0x50] sm:$0x3f]
        %v5674 = vld [vmem:[#allocation2 + $0x58] sm:$0x3f]
        %v5675 = vld [vmem:[#allocation2 + $0x60] sm:$0x3f]
        %v5676 = vld [vmem:[#allocation2 + $0x68] sm:$0x3f]
        %v5677 = vld [vmem:[#allocation2 + $0x70] sm:$0x3f]
        %v5692 = vrot.slane %v5664, 3
        %v5693 = vrot.slane %v5665, 3
        %v5694 = vrot.slane %v5666, 3
        %v5695 = vrot.slane %v5667, 3
        %v5696 = vrot.slane %v5668, 3
        %v5697 = vrot.slane %v5669, 3
        %v5698 = vrot.slane %v5670, 3
        %v5699 = vrot.slane %v5671, 3
        %v5700 = vsel %vm2420, %v5692, %v5699
        %v5701 = vrot.slane %v5672, 3
        %v5702 = vsel %vm2420, %v5693, %v5701
        %v5703 = vrot.slane %v5673, 3
        %v5704 = vsel %vm2420, %v5694, %v5703
        %v5705 = vrot.slane %v5674, 3
        %v5706 = vsel %vm2420, %v5695, %v5705
        %v5707 = vrot.slane %v5675, 3
        %v5708 = vsel %vm2420, %v5696, %v5707
        %v5709 = vrot.slane %v5676, 3
        %v5710 = vsel %vm2420, %v5697, %v5709
        %v5711 = vrot.slane %v5677, 3
        %v5712 = vsel %vm2420, %v5698, %v5711
        %5713 = vrot.lane.b32.xlu0 %v5692, 124
        %v5714 = vpop.permute.xlu0 %5713
        %5715 = vrot.lane.b32.xlu0 %v5693, 124
        %v5716 = vpop.permute.xlu0 %5715
        %5717 = vrot.lane.b32.xlu0 %v5694, 124
        %v5718 = vpop.permute.xlu0 %5717
        %5719 = vrot.lane.b32.xlu0 %v5695, 124
        %v5720 = vpop.permute.xlu0 %5719
        %5721 = vrot.lane.b32.xlu0 %v5696, 124
        %v5722 = vpop.permute.xlu0 %5721
        %5723 = vrot.lane.b32.xlu0 %v5697, 124
        %v5724 = vpop.permute.xlu0 %5723
        %5725 = vrot.lane.b32.xlu0 %v5698, 124
        %v5726 = vpop.permute.xlu0 %5725
        %5727 = vrot.lane.b32.xlu0 %v5700, 124
        %v5728 = vpop.permute.xlu0 %5727
        %5729 = vrot.lane.b32.xlu0 %v5702, 124
        %v5730 = vpop.permute.xlu0 %5729
        %5731 = vrot.lane.b32.xlu0 %v5704, 124
        %v5732 = vpop.permute.xlu0 %5731
        %5733 = vrot.lane.b32.xlu0 %v5706, 124
        %v5734 = vpop.permute.xlu0 %5733
        %5735 = vrot.lane.b32.xlu0 %v5708, 124
        %v5736 = vpop.permute.xlu0 %5735
        %5737 = vrot.lane.b32.xlu0 %v5710, 124
        %v5738 = vpop.permute.xlu0 %5737
        %5739 = vrot.lane.b32.xlu0 %v5712, 124
        %v5740 = vpop.permute.xlu0 %5739
        %5741 = vrot.lane.b32.xlu0 %v5699, 124
        %v5742 = vpop.permute.xlu0 %5741
        %5743 = vrot.lane.b32.xlu0 %v5701, 124
        %v5744 = vpop.permute.xlu0 %5743
        %5745 = vrot.lane.b32.xlu0 %v5703, 124
        %v5746 = vpop.permute.xlu0 %5745
        %5747 = vrot.lane.b32.xlu0 %v5705, 124
        %v5748 = vpop.permute.xlu0 %5747
        %5749 = vrot.lane.b32.xlu0 %v5707, 124
        %v5750 = vpop.permute.xlu0 %5749
        %5751 = vrot.lane.b32.xlu0 %v5709, 124
        %v5752 = vpop.permute.xlu0 %5751
        %5753 = vrot.lane.b32.xlu0 %v5711, 124
        %v5754 = vpop.permute.xlu0 %5753
        %v5755 = vsel %vm2470, %v5714, %v5716
        %v5756 = vsel %vm2470, %v5716, %v5718
        %v5757 = vsel %vm2470, %v5718, %v5720
        %v5758 = vsel %vm2470, %v5720, %v5722
        %v5759 = vsel %vm2470, %v5722, %v5724
        %v5760 = vsel %vm2470, %v5724, %v5726
        %v5761 = vsel %vm2470, %v5728, %v5730
        %v5762 = vsel %vm2470, %v5730, %v5732
        %v5763 = vsel %vm2470, %v5732, %v5734
        %v5764 = vsel %vm2470, %v5734, %v5736
        %v5765 = vsel %vm2470, %v5736, %v5738
        %v5766 = vsel %vm2470, %v5738, %v5740
        %v5767 = vsel %vm2470, %v5742, %v5744
        %v5768 = vsel %vm2470, %v5744, %v5746
        %v5769 = vsel %vm2470, %v5746, %v5748
        %v5770 = vsel %vm2470, %v5748, %v5750
        %v5771 = vsel %vm2470, %v5750, %v5752
        %v5772 = vsel %vm2470, %v5752, %v5754
        %5794 = vst [vmem:[#allocation4 + $0xa8] sm:$0xe0] %v5755
        %5795 = vst [vmem:[#allocation4 + $0xb0] sm:$0xe0] %v5756
        %5796 = vst [vmem:[#allocation4 + $0xb8] sm:$0xe0] %v5757
        %5797 = vst [vmem:[#allocation4 + $0xc0] sm:$0xe0] %v5758
        %5798 = vst [vmem:[#allocation4 + $0xc8] sm:$0xe0] %v5759
        %5799 = vst [vmem:[#allocation4 + $0xd0] sm:$0xe0] %v5760
        %5800 = vst.msk [vmem:[#allocation4 + $0xd8] sm:$0xe0] %vm2503, %v5726
        %5801 = vst [vmem:[#allocation4 + $0xe0] sm:$0xff] %v5761
        %5802 = vst [vmem:[#allocation4 + $0xe8] sm:$0xff] %v5762
        %5803 = vst [vmem:[#allocation4 + $0xf0] sm:$0xff] %v5763
        %5804 = vst [vmem:[#allocation4 + $0xf8] sm:$0xff] %v5764
        %5805 = vst [vmem:[#allocation4 + $0x100] sm:$0xff] %v5765
        %5806 = vst [vmem:[#allocation4 + $0x108] sm:$0xff] %v5766
        %5807 = vst.msk [vmem:[#allocation4 + $0x110] sm:$0xff] %vm172, %v5740
        %5808 = vst [vmem:[#allocation4 + $0x118] sm:$0x7] %v5767
        %5809 = vst [vmem:[#allocation4 + $0x120] sm:$0x7] %v5768
        %5810 = vst [vmem:[#allocation4 + $0x128] sm:$0x7] %v5769
        %5811 = vst [vmem:[#allocation4 + $0x130] sm:$0x7] %v5770
        %5812 = vst [vmem:[#allocation4 + $0x138] sm:$0x7] %v5771
        %5813 = vst [vmem:[#allocation4 + $0x140] sm:$0x7] %v5772
        %5814 = vst.msk [vmem:[#allocation4 + $0x148] sm:$0x7] %vm2270, %v5754
        %v5815 = vld [vmem:[#allocation2] sm:$0xff]
        %v5816 = vld [vmem:[#allocation2 + $0x8] sm:$0xff]
        %v5817 = vld [vmem:[#allocation2 + $0x10] sm:$0xff]
        %v5818 = vld [vmem:[#allocation2 + $0x18] sm:$0xff]
        %v5819 = vld [vmem:[#allocation2 + $0x20] sm:$0xff]
        %v5820 = vld [vmem:[#allocation2 + $0x28] sm:$0xff]
        %v5821 = vld [vmem:[#allocation2 + $0x30] sm:$0xff]
        %v5822 = vld [vmem:[#allocation2 + $0x40] sm:$0x3f]
        %v5823 = vld [vmem:[#allocation2 + $0x48] sm:$0x3f]
        %v5824 = vld [vmem:[#allocation2 + $0x50] sm:$0x3f]
        %v5825 = vld [vmem:[#allocation2 + $0x58] sm:$0x3f]
        %v5826 = vld [vmem:[#allocation2 + $0x60] sm:$0x3f]
        %v5827 = vld [vmem:[#allocation2 + $0x68] sm:$0x3f]
        %v5828 = vld [vmem:[#allocation2 + $0x70] sm:$0x3f]
        %v5843 = vrot.slane %v5815, 5
        %v5844 = vrot.slane %v5816, 5
        %v5845 = vrot.slane %v5817, 5
        %v5846 = vrot.slane %v5818, 5
        %v5847 = vrot.slane %v5819, 5
        %v5848 = vrot.slane %v5820, 5
        %v5849 = vrot.slane %v5821, 5
        %v5850 = vrot.slane %v5822, 5
        %v5851 = vsel %vm2300, %v5843, %v5850
        %v5852 = vrot.slane %v5823, 5
        %v5853 = vsel %vm2300, %v5844, %v5852
        %v5854 = vrot.slane %v5824, 5
        %v5855 = vsel %vm2300, %v5845, %v5854
        %v5856 = vrot.slane %v5825, 5
        %v5857 = vsel %vm2300, %v5846, %v5856
        %v5858 = vrot.slane %v5826, 5
        %v5859 = vsel %vm2300, %v5847, %v5858
        %v5860 = vrot.slane %v5827, 5
        %v5861 = vsel %vm2300, %v5848, %v5860
        %v5862 = vrot.slane %v5828, 5
        %v5863 = vsel %vm2300, %v5849, %v5862
        %5864 = vrot.lane.b32.xlu0 %v5843, 72
        %v5865 = vpop.permute.xlu0 %5864
        %5866 = vrot.lane.b32.xlu0 %v5844, 72
        %v5867 = vpop.permute.xlu0 %5866
        %5868 = vrot.lane.b32.xlu0 %v5845, 72
        %v5869 = vpop.permute.xlu0 %5868
        %5870 = vrot.lane.b32.xlu0 %v5846, 72
        %v5871 = vpop.permute.xlu0 %5870
        %5872 = vrot.lane.b32.xlu0 %v5847, 72
        %v5873 = vpop.permute.xlu0 %5872
        %5874 = vrot.lane.b32.xlu0 %v5848, 72
        %v5875 = vpop.permute.xlu0 %5874
        %5876 = vrot.lane.b32.xlu0 %v5849, 72
        %v5877 = vpop.permute.xlu0 %5876
        %5878 = vrot.lane.b32.xlu0 %v5851, 72
        %v5879 = vpop.permute.xlu0 %5878
        %5880 = vrot.lane.b32.xlu0 %v5853, 72
        %v5881 = vpop.permute.xlu0 %5880
        %5882 = vrot.lane.b32.xlu0 %v5855, 72
        %v5883 = vpop.permute.xlu0 %5882
        %5884 = vrot.lane.b32.xlu0 %v5857, 72
        %v5885 = vpop.permute.xlu0 %5884
        %5886 = vrot.lane.b32.xlu0 %v5859, 72
        %v5887 = vpop.permute.xlu0 %5886
        %5888 = vrot.lane.b32.xlu0 %v5861, 72
        %v5889 = vpop.permute.xlu0 %5888
        %5890 = vrot.lane.b32.xlu0 %v5863, 72
        %v5891 = vpop.permute.xlu0 %5890
        %5892 = vrot.lane.b32.xlu0 %v5850, 72
        %v5893 = vpop.permute.xlu0 %5892
        %5894 = vrot.lane.b32.xlu0 %v5852, 72
        %v5895 = vpop.permute.xlu0 %5894
        %5896 = vrot.lane.b32.xlu0 %v5854, 72
        %v5897 = vpop.permute.xlu0 %5896
        %5898 = vrot.lane.b32.xlu0 %v5856, 72
        %v5899 = vpop.permute.xlu0 %5898
        %5900 = vrot.lane.b32.xlu0 %v5858, 72
        %v5901 = vpop.permute.xlu0 %5900
        %5902 = vrot.lane.b32.xlu0 %v5860, 72
        %v5903 = vpop.permute.xlu0 %5902
        %5904 = vrot.lane.b32.xlu0 %v5862, 72
        %v5905 = vpop.permute.xlu0 %5904
        %v5906 = vsel %vm285, %v5865, %v5867
        %v5907 = vsel %vm285, %v5867, %v5869
        %v5908 = vsel %vm285, %v5869, %v5871
        %v5909 = vsel %vm285, %v5871, %v5873
        %v5910 = vsel %vm285, %v5873, %v5875
        %v5911 = vsel %vm285, %v5875, %v5877
        %v5912 = vsel %vm285, %v5879, %v5881
        %v5913 = vsel %vm285, %v5881, %v5883
        %v5914 = vsel %vm285, %v5883, %v5885
        %v5915 = vsel %vm285, %v5885, %v5887
        %v5916 = vsel %vm285, %v5887, %v5889
        %v5917 = vsel %vm285, %v5889, %v5891
        %v5918 = vsel %vm285, %v5893, %v5895
        %v5919 = vsel %vm285, %v5895, %v5897
        %v5920 = vsel %vm285, %v5897, %v5899
        %v5921 = vsel %vm285, %v5899, %v5901
        %v5922 = vsel %vm285, %v5901, %v5903
        %v5923 = vsel %vm285, %v5903, %v5905
        %5945 = vst [vmem:[#allocation4 + $0x118] sm:$0xf8] %v5906
        %5946 = vst [vmem:[#allocation4 + $0x120] sm:$0xf8] %v5907
        %5947 = vst [vmem:[#allocation4 + $0x128] sm:$0xf8] %v5908
        %5948 = vst [vmem:[#allocation4 + $0x130] sm:$0xf8] %v5909
        %5949 = vst [vmem:[#allocation4 + $0x138] sm:$0xf8] %v5910
        %5950 = vst [vmem:[#allocation4 + $0x140] sm:$0xf8] %v5911
        %5951 = vst.msk [vmem:[#allocation4 + $0x148] sm:$0xf8] %vm2382, %v5877
        %5952 = vst [vmem:[#allocation4 + $0x150] sm:$0xff] %v5912
        %5953 = vst [vmem:[#allocation4 + $0x158] sm:$0xff] %v5913
        %5954 = vst [vmem:[#allocation4 + $0x160] sm:$0xff] %v5914
        %5955 = vst [vmem:[#allocation4 + $0x168] sm:$0xff] %v5915
        %5956 = vst [vmem:[#allocation4 + $0x170] sm:$0xff] %v5916
        %5957 = vst [vmem:[#allocation4 + $0x178] sm:$0xff] %v5917
        %5958 = vst.msk [vmem:[#allocation4 + $0x180] sm:$0xff] %vm172, %v5891
        %5959 = vst [vmem:[#allocation4 + $0x188] sm:$0x1] %v5918
        %5960 = vst [vmem:[#allocation4 + $0x190] sm:$0x1] %v5919
        %5961 = vst [vmem:[#allocation4 + $0x198] sm:$0x1] %v5920
        %5962 = vst [vmem:[#allocation4 + $0x1a0] sm:$0x1] %v5921
        %5963 = vst [vmem:[#allocation4 + $0x1a8] sm:$0x1] %v5922
        %5964 = vst [vmem:[#allocation4 + $0x1b0] sm:$0x1] %v5923
        %5965 = vst.msk [vmem:[#allocation4 + $0x1b8] sm:$0x1] %vm697, %v5905
        %v5966 = vld [vmem:[#allocation2] sm:$0xff]
        %v5967 = vld [vmem:[#allocation2 + $0x8] sm:$0xff]
        %v5968 = vld [vmem:[#allocation2 + $0x10] sm:$0xff]
        %v5969 = vld [vmem:[#allocation2 + $0x18] sm:$0xff]
        %v5970 = vld [vmem:[#allocation2 + $0x20] sm:$0xff]
        %v5971 = vld [vmem:[#allocation2 + $0x28] sm:$0xff]
        %v5972 = vld [vmem:[#allocation2 + $0x30] sm:$0xff]
        %v5973 = vld [vmem:[#allocation2 + $0x40] sm:$0x3f]
        %v5974 = vld [vmem:[#allocation2 + $0x48] sm:$0x3f]
        %v5975 = vld [vmem:[#allocation2 + $0x50] sm:$0x3f]
        %v5976 = vld [vmem:[#allocation2 + $0x58] sm:$0x3f]
        %v5977 = vld [vmem:[#allocation2 + $0x60] sm:$0x3f]
        %v5978 = vld [vmem:[#allocation2 + $0x68] sm:$0x3f]
        %v5979 = vld [vmem:[#allocation2 + $0x70] sm:$0x3f]
        %v5994 = vrot.slane %v5966, 7
        %v5995 = vrot.slane %v5967, 7
        %v5996 = vrot.slane %v5968, 7
        %v5997 = vrot.slane %v5969, 7
        %v5998 = vrot.slane %v5970, 7
        %v5999 = vrot.slane %v5971, 7
        %v6000 = vrot.slane %v5972, 7
        %v6001 = vrot.slane %v5973, 7
        %v6002 = vsel %vm1278, %v5994, %v6001
        %v6003 = vrot.slane %v5974, 7
        %v6004 = vsel %vm1278, %v5995, %v6003
        %v6005 = vrot.slane %v5975, 7
        %v6006 = vsel %vm1278, %v5996, %v6005
        %v6007 = vrot.slane %v5976, 7
        %v6008 = vsel %vm1278, %v5997, %v6007
        %v6009 = vrot.slane %v5977, 7
        %v6010 = vsel %vm1278, %v5998, %v6009
        %v6011 = vrot.slane %v5978, 7
        %v6012 = vsel %vm1278, %v5999, %v6011
        %v6013 = vrot.slane %v5979, 7
        %v6014 = vsel %vm1278, %v6000, %v6013
        %6015 = vrot.lane.b32.xlu0 %v5994, 70
        %v6016 = vpop.permute.xlu0 %6015
        %6017 = vrot.lane.b32.xlu0 %v5995, 70
        %v6018 = vpop.permute.xlu0 %6017
        %6019 = vrot.lane.b32.xlu0 %v5996, 70
        %v6020 = vpop.permute.xlu0 %6019
        %6021 = vrot.lane.b32.xlu0 %v5997, 70
        %v6022 = vpop.permute.xlu0 %6021
        %6023 = vrot.lane.b32.xlu0 %v5998, 70
        %v6024 = vpop.permute.xlu0 %6023
        %6025 = vrot.lane.b32.xlu0 %v5999, 70
        %v6026 = vpop.permute.xlu0 %6025
        %6027 = vrot.lane.b32.xlu0 %v6000, 70
        %v6028 = vpop.permute.xlu0 %6027
        %6029 = vrot.lane.b32.xlu0 %v6002, 70
        %v6030 = vpop.permute.xlu0 %6029
        %6031 = vrot.lane.b32.xlu0 %v6004, 70
        %v6032 = vpop.permute.xlu0 %6031
        %6033 = vrot.lane.b32.xlu0 %v6006, 70
        %v6034 = vpop.permute.xlu0 %6033
        %6035 = vrot.lane.b32.xlu0 %v6008, 70
        %v6036 = vpop.permute.xlu0 %6035
        %6037 = vrot.lane.b32.xlu0 %v6010, 70
        %v6038 = vpop.permute.xlu0 %6037
        %6039 = vrot.lane.b32.xlu0 %v6012, 70
        %v6040 = vpop.permute.xlu0 %6039
        %6041 = vrot.lane.b32.xlu0 %v6014, 70
        %v6042 = vpop.permute.xlu0 %6041
        %v6043 = vsel %vm311, %v6016, %v6018
        %v6044 = vsel %vm311, %v6018, %v6020
        %v6045 = vsel %vm311, %v6020, %v6022
        %v6046 = vsel %vm311, %v6022, %v6024
        %v6047 = vsel %vm311, %v6024, %v6026
        %v6048 = vsel %vm311, %v6026, %v6028
        %v6049 = vsel %vm311, %v6030, %v6032
        %v6050 = vsel %vm311, %v6032, %v6034
        %v6051 = vsel %vm311, %v6034, %v6036
        %v6052 = vsel %vm311, %v6036, %v6038
        %v6053 = vsel %vm311, %v6038, %v6040
        %v6054 = vsel %vm311, %v6040, %v6042
        %6069 = vst [vmem:[#allocation4 + $0x188] sm:$0xfe] %v6043
        %6070 = vst [vmem:[#allocation4 + $0x190] sm:$0xfe] %v6044
        %6071 = vst [vmem:[#allocation4 + $0x198] sm:$0xfe] %v6045
        %6072 = vst [vmem:[#allocation4 + $0x1a0] sm:$0xfe] %v6046
        %6073 = vst [vmem:[#allocation4 + $0x1a8] sm:$0xfe] %v6047
        %6074 = vst [vmem:[#allocation4 + $0x1b0] sm:$0xfe] %v6048
        %6075 = vst.msk [vmem:[#allocation4 + $0x1b8] sm:$0xfe] %vm689, %v6028
        %6076 = vst [vmem:[#allocation4 + $0x1c0] sm:$0x7f] %v6049
        %6077 = vst [vmem:[#allocation4 + $0x1c8] sm:$0x7f] %v6050
        %6078 = vst [vmem:[#allocation4 + $0x1d0] sm:$0x7f] %v6051
        %6079 = vst [vmem:[#allocation4 + $0x1d8] sm:$0x7f] %v6052
        %6080 = vst [vmem:[#allocation4 + $0x1e0] sm:$0x7f] %v6053
        %6081 = vst [vmem:[#allocation4 + $0x1e8] sm:$0x7f] %v6054
        %6082 = vst.msk [vmem:[#allocation4 + $0x1f0] sm:$0x7f] %vm2511, %v6042
        %v6083 = vld [vmem:[#allocation2] sm:$0xff]
        %v6084 = vld [vmem:[#allocation2 + $0x8] sm:$0xff]
        %v6085 = vld [vmem:[#allocation2 + $0x10] sm:$0xff]
        %v6086 = vld [vmem:[#allocation2 + $0x18] sm:$0xff]
        %v6087 = vld [vmem:[#allocation2 + $0x20] sm:$0xff]
        %v6088 = vld [vmem:[#allocation2 + $0x28] sm:$0xff]
        %v6089 = vld [vmem:[#allocation2 + $0x30] sm:$0xff]
        %v6090 = vld [vmem:[#allocation2 + $0x40] sm:$0x3f]
        %v6091 = vld [vmem:[#allocation2 + $0x48] sm:$0x3f]
        %v6092 = vld [vmem:[#allocation2 + $0x50] sm:$0x3f]
        %v6093 = vld [vmem:[#allocation2 + $0x58] sm:$0x3f]
        %v6094 = vld [vmem:[#allocation2 + $0x60] sm:$0x3f]
        %v6095 = vld [vmem:[#allocation2 + $0x68] sm:$0x3f]
        %v6096 = vld [vmem:[#allocation2 + $0x70] sm:$0x3f]
        %v6111 = vrot.slane %v6083, 1
        %v6112 = vrot.slane %v6084, 1
        %v6113 = vrot.slane %v6085, 1
        %v6114 = vrot.slane %v6086, 1
        %v6115 = vrot.slane %v6087, 1
        %v6116 = vrot.slane %v6088, 1
        %v6117 = vrot.slane %v6089, 1
        %v6118 = vrot.slane %v6090, 1
        %v6119 = vsel %vm2541, %v6111, %v6118
        %v6120 = vrot.slane %v6091, 1
        %v6121 = vsel %vm2541, %v6112, %v6120
        %v6122 = vrot.slane %v6092, 1
        %v6123 = vsel %vm2541, %v6113, %v6122
        %v6124 = vrot.slane %v6093, 1
        %v6125 = vsel %vm2541, %v6114, %v6124
        %v6126 = vrot.slane %v6094, 1
        %v6127 = vsel %vm2541, %v6115, %v6126
        %v6128 = vrot.slane %v6095, 1
        %v6129 = vsel %vm2541, %v6116, %v6128
        %v6130 = vrot.slane %v6096, 1
        %v6131 = vsel %vm2541, %v6117, %v6130
        %6132 = vrot.lane.b32.xlu0 %v6111, 68
        %v6133 = vpop.permute.xlu0 %6132
        %6134 = vrot.lane.b32.xlu0 %v6112, 68
        %v6135 = vpop.permute.xlu0 %6134
        %6136 = vrot.lane.b32.xlu0 %v6113, 68
        %v6137 = vpop.permute.xlu0 %6136
        %6138 = vrot.lane.b32.xlu0 %v6114, 68
        %v6139 = vpop.permute.xlu0 %6138
        %6140 = vrot.lane.b32.xlu0 %v6115, 68
        %v6141 = vpop.permute.xlu0 %6140
        %6142 = vrot.lane.b32.xlu0 %v6116, 68
        %v6143 = vpop.permute.xlu0 %6142
        %6144 = vrot.lane.b32.xlu0 %v6117, 68
        %v6145 = vpop.permute.xlu0 %6144
        %6146 = vrot.lane.b32.xlu0 %v6119, 68
        %v6147 = vpop.permute.xlu0 %6146
        %6148 = vrot.lane.b32.xlu0 %v6121, 68
        %v6149 = vpop.permute.xlu0 %6148
        %6150 = vrot.lane.b32.xlu0 %v6123, 68
        %v6151 = vpop.permute.xlu0 %6150
        %6152 = vrot.lane.b32.xlu0 %v6125, 68
        %v6153 = vpop.permute.xlu0 %6152
        %6154 = vrot.lane.b32.xlu0 %v6127, 68
        %v6155 = vpop.permute.xlu0 %6154
        %6156 = vrot.lane.b32.xlu0 %v6129, 68
        %v6157 = vpop.permute.xlu0 %6156
        %6158 = vrot.lane.b32.xlu0 %v6131, 68
        %v6159 = vpop.permute.xlu0 %6158
        %6160 = vrot.lane.b32.xlu0 %v6118, 68
        %v6161 = vpop.permute.xlu0 %6160
        %6162 = vrot.lane.b32.xlu0 %v6120, 68
        %v6163 = vpop.permute.xlu0 %6162
        %6164 = vrot.lane.b32.xlu0 %v6122, 68
        %v6165 = vpop.permute.xlu0 %6164
        %6166 = vrot.lane.b32.xlu0 %v6124, 68
        %v6167 = vpop.permute.xlu0 %6166
        %6168 = vrot.lane.b32.xlu0 %v6126, 68
        %v6169 = vpop.permute.xlu0 %6168
        %6170 = vrot.lane.b32.xlu0 %v6128, 68
        %v6171 = vpop.permute.xlu0 %6170
        %6172 = vrot.lane.b32.xlu0 %v6130, 68
        %v6173 = vpop.permute.xlu0 %6172
        %v6174 = vsel %vm2860, %v6133, %v6135
        %v6175 = vsel %vm2860, %v6135, %v6137
        %v6176 = vsel %vm2860, %v6137, %v6139
        %v6177 = vsel %vm2860, %v6139, %v6141
        %v6178 = vsel %vm2860, %v6141, %v6143
        %v6179 = vsel %vm2860, %v6143, %v6145
        %v6180 = vsel %vm2860, %v6147, %v6149
        %v6181 = vsel %vm2860, %v6149, %v6151
        %v6182 = vsel %vm2860, %v6151, %v6153
        %v6183 = vsel %vm2860, %v6153, %v6155
        %v6184 = vsel %vm2860, %v6155, %v6157
        %v6185 = vsel %vm2860, %v6157, %v6159
        %v6186 = vsel %vm2860, %v6161, %v6163
        %v6187 = vsel %vm2860, %v6163, %v6165
        %v6188 = vsel %vm2860, %v6165, %v6167
        %v6189 = vsel %vm2860, %v6167, %v6169
        %v6190 = vsel %vm2860, %v6169, %v6171
        %v6191 = vsel %vm2860, %v6171, %v6173
        %6213 = vst [vmem:[#allocation4 + $0x1c0] sm:$0x80] %v6174
        %6214 = vst [vmem:[#allocation4 + $0x1c8] sm:$0x80] %v6175
        %6215 = vst [vmem:[#allocation4 + $0x1d0] sm:$0x80] %v6176
        %6216 = vst [vmem:[#allocation4 + $0x1d8] sm:$0x80] %v6177
        %6217 = vst [vmem:[#allocation4 + $0x1e0] sm:$0x80] %v6178
        %6218 = vst [vmem:[#allocation4 + $0x1e8] sm:$0x80] %v6179
        %6219 = vst.msk [vmem:[#allocation4 + $0x1f0] sm:$0x80] %vm2650, %v6145
        %6220 = vst [vmem:[#allocation4 + $0x1f8] sm:$0xff] %v6180
        %6221 = vst [vmem:[#allocation4 + $0x200] sm:$0xff] %v6181
        %6222 = vst [vmem:[#allocation4 + $0x208] sm:$0xff] %v6182
        %6223 = vst [vmem:[#allocation4 + $0x210] sm:$0xff] %v6183
        %6224 = vst [vmem:[#allocation4 + $0x218] sm:$0xff] %v6184
        %6225 = vst [vmem:[#allocation4 + $0x220] sm:$0xff] %v6185
        %6226 = vst.msk [vmem:[#allocation4 + $0x228] sm:$0xff] %vm172, %v6159
        %6227 = vst [vmem:[#allocation4 + $0x230] sm:$0x1f] %v6186
        %6228 = vst [vmem:[#allocation4 + $0x238] sm:$0x1f] %v6187
        %6229 = vst [vmem:[#allocation4 + $0x240] sm:$0x1f] %v6188
        %6230 = vst [vmem:[#allocation4 + $0x248] sm:$0x1f] %v6189
        %6231 = vst [vmem:[#allocation4 + $0x250] sm:$0x1f] %v6190
        %6232 = vst [vmem:[#allocation4 + $0x258] sm:$0x1f] %v6191
        %6233 = vst.msk [vmem:[#allocation4 + $0x260] sm:$0x1f] %vm2390, %v6173
        %v6234 = vld [vmem:[#allocation2] sm:$0xff]
        %v6235 = vld [vmem:[#allocation2 + $0x8] sm:$0xff]
        %v6236 = vld [vmem:[#allocation2 + $0x10] sm:$0xff]
        %v6237 = vld [vmem:[#allocation2 + $0x18] sm:$0xff]
        %v6238 = vld [vmem:[#allocation2 + $0x20] sm:$0xff]
        %v6239 = vld [vmem:[#allocation2 + $0x28] sm:$0xff]
        %v6240 = vld [vmem:[#allocation2 + $0x30] sm:$0xff]
        %v6241 = vld [vmem:[#allocation2 + $0x40] sm:$0x3f]
        %v6242 = vld [vmem:[#allocation2 + $0x48] sm:$0x3f]
        %v6243 = vld [vmem:[#allocation2 + $0x50] sm:$0x3f]
        %v6244 = vld [vmem:[#allocation2 + $0x58] sm:$0x3f]
        %v6245 = vld [vmem:[#allocation2 + $0x60] sm:$0x3f]
        %v6246 = vld [vmem:[#allocation2 + $0x68] sm:$0x3f]
        %v6247 = vld [vmem:[#allocation2 + $0x70] sm:$0x3f]
        %v6262 = vrot.slane %v6234, 3
        %v6263 = vrot.slane %v6235, 3
        %v6264 = vrot.slane %v6236, 3
        %v6265 = vrot.slane %v6237, 3
        %v6266 = vrot.slane %v6238, 3
        %v6267 = vrot.slane %v6239, 3
        %v6268 = vrot.slane %v6240, 3
        %v6269 = vrot.slane %v6241, 3
        %v6270 = vsel %vm2420, %v6262, %v6269
        %v6271 = vrot.slane %v6242, 3
        %v6272 = vsel %vm2420, %v6263, %v6271
        %v6273 = vrot.slane %v6243, 3
        %v6274 = vsel %vm2420, %v6264, %v6273
        %v6275 = vrot.slane %v6244, 3
        %v6276 = vsel %vm2420, %v6265, %v6275
        %v6277 = vrot.slane %v6245, 3
        %v6278 = vsel %vm2420, %v6266, %v6277
        %v6279 = vrot.slane %v6246, 3
        %v6280 = vsel %vm2420, %v6267, %v6279
        %v6281 = vrot.slane %v6247, 3
        %v6282 = vsel %vm2420, %v6268, %v6281
        %6283 = vrot.lane.b32.xlu0 %v6262, 16
        %v6284 = vpop.permute.xlu0 %6283
        %6285 = vrot.lane.b32.xlu0 %v6263, 16
        %v6286 = vpop.permute.xlu0 %6285
        %6287 = vrot.lane.b32.xlu0 %v6264, 16
        %v6288 = vpop.permute.xlu0 %6287
        %6289 = vrot.lane.b32.xlu0 %v6265, 16
        %v6290 = vpop.permute.xlu0 %6289
        %6291 = vrot.lane.b32.xlu0 %v6266, 16
        %v6292 = vpop.permute.xlu0 %6291
        %6293 = vrot.lane.b32.xlu0 %v6267, 16
        %v6294 = vpop.permute.xlu0 %6293
        %6295 = vrot.lane.b32.xlu0 %v6268, 16
        %v6296 = vpop.permute.xlu0 %6295
        %6297 = vrot.lane.b32.xlu0 %v6270, 16
        %v6298 = vpop.permute.xlu0 %6297
        %6299 = vrot.lane.b32.xlu0 %v6272, 16
        %v6300 = vpop.permute.xlu0 %6299
        %6301 = vrot.lane.b32.xlu0 %v6274, 16
        %v6302 = vpop.permute.xlu0 %6301
        %6303 = vrot.lane.b32.xlu0 %v6276, 16
        %v6304 = vpop.permute.xlu0 %6303
        %6305 = vrot.lane.b32.xlu0 %v6278, 16
        %v6306 = vpop.permute.xlu0 %6305
        %6307 = vrot.lane.b32.xlu0 %v6280, 16
        %v6308 = vpop.permute.xlu0 %6307
        %6309 = vrot.lane.b32.xlu0 %v6282, 16
        %v6310 = vpop.permute.xlu0 %6309
        %6311 = vrot.lane.b32.xlu0 %v6269, 16
        %v6312 = vpop.permute.xlu0 %6311
        %6313 = vrot.lane.b32.xlu0 %v6271, 16
        %v6314 = vpop.permute.xlu0 %6313
        %6315 = vrot.lane.b32.xlu0 %v6273, 16
        %v6316 = vpop.permute.xlu0 %6315
        %6317 = vrot.lane.b32.xlu0 %v6275, 16
        %v6318 = vpop.permute.xlu0 %6317
        %6319 = vrot.lane.b32.xlu0 %v6277, 16
        %v6320 = vpop.permute.xlu0 %6319
        %6321 = vrot.lane.b32.xlu0 %v6279, 16
        %v6322 = vpop.permute.xlu0 %6321
        %6323 = vrot.lane.b32.xlu0 %v6281, 16
        %v6324 = vpop.permute.xlu0 %6323
        %v6325 = vsel %vm172, %v6284, %v6286
        %v6326 = vsel %vm172, %v6286, %v6288
        %v6327 = vsel %vm172, %v6288, %v6290
        %v6328 = vsel %vm172, %v6290, %v6292
        %v6329 = vsel %vm172, %v6292, %v6294
        %v6330 = vsel %vm172, %v6294, %v6296
        %v6331 = vsel %vm172, %v6298, %v6300
        %v6332 = vsel %vm172, %v6300, %v6302
        %v6333 = vsel %vm172, %v6302, %v6304
        %v6334 = vsel %vm172, %v6304, %v6306
        %v6335 = vsel %vm172, %v6306, %v6308
        %v6336 = vsel %vm172, %v6308, %v6310
        %v6337 = vsel %vm172, %v6312, %v6314
        %v6338 = vsel %vm172, %v6314, %v6316
        %v6339 = vsel %vm172, %v6316, %v6318
        %v6340 = vsel %vm172, %v6318, %v6320
        %v6341 = vsel %vm172, %v6320, %v6322
        %v6342 = vsel %vm172, %v6322, %v6324
        %6364 = vst [vmem:[#allocation4 + $0x230] sm:$0xe0] %v6325
        %6365 = vst [vmem:[#allocation4 + $0x238] sm:$0xe0] %v6326
        %6366 = vst [vmem:[#allocation4 + $0x240] sm:$0xe0] %v6327
        %6367 = vst [vmem:[#allocation4 + $0x248] sm:$0xe0] %v6328
        %6368 = vst [vmem:[#allocation4 + $0x250] sm:$0xe0] %v6329
        %6369 = vst [vmem:[#allocation4 + $0x258] sm:$0xe0] %v6330
        %6370 = vst.msk [vmem:[#allocation4 + $0x260] sm:$0xe0] %vm2503, %v6296
        %6371 = vst [vmem:[#allocation4 + $0x268] sm:$0xff] %v6331
        %6372 = vst [vmem:[#allocation4 + $0x270] sm:$0xff] %v6332
        %6373 = vst [vmem:[#allocation4 + $0x278] sm:$0xff] %v6333
        %6374 = vst [vmem:[#allocation4 + $0x280] sm:$0xff] %v6334
        %6375 = vst [vmem:[#allocation4 + $0x288] sm:$0xff] %v6335
        %6376 = vst [vmem:[#allocation4 + $0x290] sm:$0xff] %v6336
        %6377 = vst.msk [vmem:[#allocation4 + $0x298] sm:$0xff] %vm172, %v6310
        %6378 = vst [vmem:[#allocation4 + $0x2a0] sm:$0x7] %v6337
        %6379 = vst [vmem:[#allocation4 + $0x2a8] sm:$0x7] %v6338
        %6380 = vst [vmem:[#allocation4 + $0x2b0] sm:$0x7] %v6339
        %6381 = vst [vmem:[#allocation4 + $0x2b8] sm:$0x7] %v6340
        %6382 = vst [vmem:[#allocation4 + $0x2c0] sm:$0x7] %v6341
        %6383 = vst [vmem:[#allocation4 + $0x2c8] sm:$0x7] %v6342
        %6384 = vst.msk [vmem:[#allocation4 + $0x2d0] sm:$0x7] %vm2270, %v6324
        %v6385 = vld [vmem:[#allocation2] sm:$0xff]
        %v6386 = vld [vmem:[#allocation2 + $0x8] sm:$0xff]
        %v6387 = vld [vmem:[#allocation2 + $0x10] sm:$0xff]
        %v6388 = vld [vmem:[#allocation2 + $0x18] sm:$0xff]
        %v6389 = vld [vmem:[#allocation2 + $0x20] sm:$0xff]
        %v6390 = vld [vmem:[#allocation2 + $0x28] sm:$0xff]
        %v6391 = vld [vmem:[#allocation2 + $0x30] sm:$0xff]
        %v6392 = vld [vmem:[#allocation2 + $0x38] sm:$0xff]
        %v6393 = vld [vmem:[#allocation2 + $0x40] sm:$0x3f]
        %v6394 = vld [vmem:[#allocation2 + $0x48] sm:$0x3f]
        %v6395 = vld [vmem:[#allocation2 + $0x50] sm:$0x3f]
        %v6396 = vld [vmem:[#allocation2 + $0x58] sm:$0x3f]
        %v6397 = vld [vmem:[#allocation2 + $0x60] sm:$0x3f]
        %v6398 = vld [vmem:[#allocation2 + $0x68] sm:$0x3f]
        %v6399 = vld [vmem:[#allocation2 + $0x70] sm:$0x3f]
        %v6400 = vld [vmem:[#allocation2 + $0x78] sm:$0x3f]
        %v6417 = vrot.slane %v6385, 5
        %v6418 = vrot.slane %v6386, 5
        %v6419 = vrot.slane %v6387, 5
        %v6420 = vrot.slane %v6388, 5
        %v6421 = vrot.slane %v6389, 5
        %v6422 = vrot.slane %v6390, 5
        %v6423 = vrot.slane %v6391, 5
        %v6424 = vrot.slane %v6392, 5
        %v6425 = vrot.slane %v6393, 5
        %v6426 = vsel %vm2300, %v6417, %v6425
        %v6427 = vrot.slane %v6394, 5
        %v6428 = vsel %vm2300, %v6418, %v6427
        %v6429 = vrot.slane %v6395, 5
        %v6430 = vsel %vm2300, %v6419, %v6429
        %v6431 = vrot.slane %v6396, 5
        %v6432 = vsel %vm2300, %v6420, %v6431
        %v6433 = vrot.slane %v6397, 5
        %v6434 = vsel %vm2300, %v6421, %v6433
        %v6435 = vrot.slane %v6398, 5
        %v6436 = vsel %vm2300, %v6422, %v6435
        %v6437 = vrot.slane %v6399, 5
        %v6438 = vsel %vm2300, %v6423, %v6437
        %v6439 = vrot.slane %v6400, 5
        %v6440 = vsel %vm2300, %v6424, %v6439
        %6441 = vrot.lane.b32.xlu0 %v6417, 14
        %v6442 = vpop.permute.xlu0 %6441
        %6443 = vrot.lane.b32.xlu0 %v6418, 14
        %v6444 = vpop.permute.xlu0 %6443
        %6445 = vrot.lane.b32.xlu0 %v6419, 14
        %v6446 = vpop.permute.xlu0 %6445
        %6447 = vrot.lane.b32.xlu0 %v6420, 14
        %v6448 = vpop.permute.xlu0 %6447
        %6449 = vrot.lane.b32.xlu0 %v6421, 14
        %v6450 = vpop.permute.xlu0 %6449
        %6451 = vrot.lane.b32.xlu0 %v6422, 14
        %v6452 = vpop.permute.xlu0 %6451
        %6453 = vrot.lane.b32.xlu0 %v6423, 14
        %v6454 = vpop.permute.xlu0 %6453
        %6455 = vrot.lane.b32.xlu0 %v6424, 14
        %v6456 = vpop.permute.xlu0 %6455
        %6457 = vrot.lane.b32.xlu0 %v6426, 14
        %v6458 = vpop.permute.xlu0 %6457
        %6459 = vrot.lane.b32.xlu0 %v6428, 14
        %v6460 = vpop.permute.xlu0 %6459
        %6461 = vrot.lane.b32.xlu0 %v6430, 14
        %v6462 = vpop.permute.xlu0 %6461
        %6463 = vrot.lane.b32.xlu0 %v6432, 14
        %v6464 = vpop.permute.xlu0 %6463
        %6465 = vrot.lane.b32.xlu0 %v6434, 14
        %v6466 = vpop.permute.xlu0 %6465
        %6467 = vrot.lane.b32.xlu0 %v6436, 14
        %v6468 = vpop.permute.xlu0 %6467
        %6469 = vrot.lane.b32.xlu0 %v6438, 14
        %v6470 = vpop.permute.xlu0 %6469
        %6471 = vrot.lane.b32.xlu0 %v6440, 14
        %v6472 = vpop.permute.xlu0 %6471
        %6473 = vrot.lane.b32.xlu0 %v6425, 14
        %v6474 = vpop.permute.xlu0 %6473
        %6475 = vrot.lane.b32.xlu0 %v6427, 14
        %v6476 = vpop.permute.xlu0 %6475
        %6477 = vrot.lane.b32.xlu0 %v6429, 14
        %v6478 = vpop.permute.xlu0 %6477
        %6479 = vrot.lane.b32.xlu0 %v6431, 14
        %v6480 = vpop.permute.xlu0 %6479
        %6481 = vrot.lane.b32.xlu0 %v6433, 14
        %v6482 = vpop.permute.xlu0 %6481
        %6483 = vrot.lane.b32.xlu0 %v6435, 14
        %v6484 = vpop.permute.xlu0 %6483
        %6485 = vrot.lane.b32.xlu0 %v6437, 14
        %v6486 = vpop.permute.xlu0 %6485
        %6487 = vrot.lane.b32.xlu0 %v6439, 14
        %v6488 = vpop.permute.xlu0 %6487
        %v6489 = vsel %vm3122, %v6442, %v6444
        %v6490 = vsel %vm3122, %v6444, %v6446
        %v6491 = vsel %vm3122, %v6446, %v6448
        %v6492 = vsel %vm3122, %v6448, %v6450
        %v6493 = vsel %vm3122, %v6450, %v6452
        %v6494 = vsel %vm3122, %v6452, %v6454
        %v6495 = vsel %vm3122, %v6454, %v6456
        %v6496 = vsel %vm3122, %v6458, %v6460
        %v6497 = vsel %vm3122, %v6460, %v6462
        %v6498 = vsel %vm3122, %v6462, %v6464
        %v6499 = vsel %vm3122, %v6464, %v6466
        %v6500 = vsel %vm3122, %v6466, %v6468
        %v6501 = vsel %vm3122, %v6468, %v6470
        %v6502 = vsel %vm3122, %v6470, %v6472
        %v6503 = vsel %vm3122, %v6474, %v6476
        %v6504 = vsel %vm3122, %v6476, %v6478
        %v6505 = vsel %vm3122, %v6478, %v6480
        %v6506 = vsel %vm3122, %v6480, %v6482
        %v6507 = vsel %vm3122, %v6482, %v6484
        %v6508 = vsel %vm3122, %v6484, %v6486
        %v6509 = vsel %vm3122, %v6486, %v6488
        %6531 = vst [vmem:[#allocation4 + $0x2a0] sm:$0xf8] %v6489
        %6532 = vst [vmem:[#allocation4 + $0x2a8] sm:$0xf8] %v6490
        %6533 = vst [vmem:[#allocation4 + $0x2b0] sm:$0xf8] %v6491
        %6534 = vst [vmem:[#allocation4 + $0x2b8] sm:$0xf8] %v6492
        %6535 = vst [vmem:[#allocation4 + $0x2c0] sm:$0xf8] %v6493
        %6536 = vst [vmem:[#allocation4 + $0x2c8] sm:$0xf8] %v6494
        %6537 = vst.msk [vmem:[#allocation4 + $0x2d0] sm:$0xf8] %vm2382, %v6495
        %6538 = vst [vmem:[#allocation4 + $0x2d8] sm:$0xff] %v6496
        %6539 = vst [vmem:[#allocation4 + $0x2e0] sm:$0xff] %v6497
        %6540 = vst [vmem:[#allocation4 + $0x2e8] sm:$0xff] %v6498
        %6541 = vst [vmem:[#allocation4 + $0x2f0] sm:$0xff] %v6499
        %6542 = vst [vmem:[#allocation4 + $0x2f8] sm:$0xff] %v6500
        %6543 = vst [vmem:[#allocation4 + $0x300] sm:$0xff] %v6501
        %6544 = vst.msk [vmem:[#allocation4 + $0x308] sm:$0xff] %vm172, %v6502
        %6545 = vst [vmem:[#allocation4 + $0x310] sm:$0x1] %v6503
        %6546 = vst [vmem:[#allocation4 + $0x318] sm:$0x1] %v6504
        %6547 = vst [vmem:[#allocation4 + $0x320] sm:$0x1] %v6505
        %6548 = vst [vmem:[#allocation4 + $0x328] sm:$0x1] %v6506
        %6549 = vst [vmem:[#allocation4 + $0x330] sm:$0x1] %v6507
        %6550 = vst [vmem:[#allocation4 + $0x338] sm:$0x1] %v6508
        %6551 = vst.msk [vmem:[#allocation4 + $0x340] sm:$0x1] %vm697, %v6509
        %v6552 = vld [vmem:[#allocation2] sm:$0xff]
        %v6553 = vld [vmem:[#allocation2 + $0x8] sm:$0xff]
        %v6554 = vld [vmem:[#allocation2 + $0x10] sm:$0xff]
        %v6555 = vld [vmem:[#allocation2 + $0x18] sm:$0xff]
        %v6556 = vld [vmem:[#allocation2 + $0x20] sm:$0xff]
        %v6557 = vld [vmem:[#allocation2 + $0x28] sm:$0xff]
        %v6558 = vld [vmem:[#allocation2 + $0x30] sm:$0xff]
        %v6559 = vld [vmem:[#allocation2 + $0x38] sm:$0xff]
        %v6560 = vld [vmem:[#allocation2 + $0x40] sm:$0x3f]
        %v6561 = vld [vmem:[#allocation2 + $0x48] sm:$0x3f]
        %v6562 = vld [vmem:[#allocation2 + $0x50] sm:$0x3f]
        %v6563 = vld [vmem:[#allocation2 + $0x58] sm:$0x3f]
        %v6564 = vld [vmem:[#allocation2 + $0x60] sm:$0x3f]
        %v6565 = vld [vmem:[#allocation2 + $0x68] sm:$0x3f]
        %v6566 = vld [vmem:[#allocation2 + $0x70] sm:$0x3f]
        %v6567 = vld [vmem:[#allocation2 + $0x78] sm:$0x3f]
        %v6584 = vrot.slane %v6552, 7
        %v6585 = vrot.slane %v6553, 7
        %v6586 = vrot.slane %v6554, 7
        %v6587 = vrot.slane %v6555, 7
        %v6588 = vrot.slane %v6556, 7
        %v6589 = vrot.slane %v6557, 7
        %v6590 = vrot.slane %v6558, 7
        %v6591 = vrot.slane %v6559, 7
        %v6592 = vrot.slane %v6560, 7
        %v6593 = vsel %vm1278, %v6584, %v6592
        %v6594 = vrot.slane %v6561, 7
        %v6595 = vsel %vm1278, %v6585, %v6594
        %v6596 = vrot.slane %v6562, 7
        %v6597 = vsel %vm1278, %v6586, %v6596
        %v6598 = vrot.slane %v6563, 7
        %v6599 = vsel %vm1278, %v6587, %v6598
        %v6600 = vrot.slane %v6564, 7
        %v6601 = vsel %vm1278, %v6588, %v6600
        %v6602 = vrot.slane %v6565, 7
        %v6603 = vsel %vm1278, %v6589, %v6602
        %v6604 = vrot.slane %v6566, 7
        %v6605 = vsel %vm1278, %v6590, %v6604
        %v6606 = vrot.slane %v6567, 7
        %v6607 = vsel %vm1278, %v6591, %v6606
        %6608 = vrot.lane.b32.xlu0 %v6584, 12
        %v6609 = vpop.permute.xlu0 %6608
        %6610 = vrot.lane.b32.xlu0 %v6585, 12
        %v6611 = vpop.permute.xlu0 %6610
        %6612 = vrot.lane.b32.xlu0 %v6586, 12
        %v6613 = vpop.permute.xlu0 %6612
        %6614 = vrot.lane.b32.xlu0 %v6587, 12
        %v6615 = vpop.permute.xlu0 %6614
        %6616 = vrot.lane.b32.xlu0 %v6588, 12
        %v6617 = vpop.permute.xlu0 %6616
        %6618 = vrot.lane.b32.xlu0 %v6589, 12
        %v6619 = vpop.permute.xlu0 %6618
        %6620 = vrot.lane.b32.xlu0 %v6590, 12
        %v6621 = vpop.permute.xlu0 %6620
        %6622 = vrot.lane.b32.xlu0 %v6591, 12
        %v6623 = vpop.permute.xlu0 %6622
        %6624 = vrot.lane.b32.xlu0 %v6593, 12
        %v6625 = vpop.permute.xlu0 %6624
        %6626 = vrot.lane.b32.xlu0 %v6595, 12
        %v6627 = vpop.permute.xlu0 %6626
        %6628 = vrot.lane.b32.xlu0 %v6597, 12
        %v6629 = vpop.permute.xlu0 %6628
        %6630 = vrot.lane.b32.xlu0 %v6599, 12
        %v6631 = vpop.permute.xlu0 %6630
        %6632 = vrot.lane.b32.xlu0 %v6601, 12
        %v6633 = vpop.permute.xlu0 %6632
        %6634 = vrot.lane.b32.xlu0 %v6603, 12
        %v6635 = vpop.permute.xlu0 %6634
        %6636 = vrot.lane.b32.xlu0 %v6605, 12
        %v6637 = vpop.permute.xlu0 %6636
        %6638 = vrot.lane.b32.xlu0 %v6607, 12
        %v6639 = vpop.permute.xlu0 %6638
        %v6640 = vsel %vm3274, %v6609, %v6611
        %v6641 = vsel %vm3274, %v6611, %v6613
        %v6642 = vsel %vm3274, %v6613, %v6615
        %v6643 = vsel %vm3274, %v6615, %v6617
        %v6644 = vsel %vm3274, %v6617, %v6619
        %v6645 = vsel %vm3274, %v6619, %v6621
        %v6646 = vsel %vm3274, %v6621, %v6623
        %v6647 = vsel %vm3274, %v6625, %v6627
        %v6648 = vsel %vm3274, %v6627, %v6629
        %v6649 = vsel %vm3274, %v6629, %v6631
        %v6650 = vsel %vm3274, %v6631, %v6633
        %v6651 = vsel %vm3274, %v6633, %v6635
        %v6652 = vsel %vm3274, %v6635, %v6637
        %v6653 = vsel %vm3274, %v6637, %v6639
        %6668 = vst [vmem:[#allocation4 + $0x310] sm:$0xfe] %v6640
        %6669 = vst [vmem:[#allocation4 + $0x318] sm:$0xfe] %v6641
        %6670 = vst [vmem:[#allocation4 + $0x320] sm:$0xfe] %v6642
        %6671 = vst [vmem:[#allocation4 + $0x328] sm:$0xfe] %v6643
        %6672 = vst [vmem:[#allocation4 + $0x330] sm:$0xfe] %v6644
        %6673 = vst [vmem:[#allocation4 + $0x338] sm:$0xfe] %v6645
        %6674 = vst.msk [vmem:[#allocation4 + $0x340] sm:$0xfe] %vm689, %v6646
        %6675 = vst [vmem:[#allocation4 + $0x348] sm:$0x7f] %v6647
        %6676 = vst [vmem:[#allocation4 + $0x350] sm:$0x7f] %v6648
        %6677 = vst [vmem:[#allocation4 + $0x358] sm:$0x7f] %v6649
        %6678 = vst [vmem:[#allocation4 + $0x360] sm:$0x7f] %v6650
        %6679 = vst [vmem:[#allocation4 + $0x368] sm:$0x7f] %v6651
        %6680 = vst [vmem:[#allocation4 + $0x370] sm:$0x7f] %v6652
        %6681 = vst.msk [vmem:[#allocation4 + $0x378] sm:$0x7f] %vm2511, %v6653
        %v6682 = vld [vmem:[%s1 + $0x10] sm:$0xff]
        %v6683 = vld [vmem:[%s1 + $0x18] sm:$0xff]
        %v6684 = vld [vmem:[%s1 + $0x38] sm:$0xff]
        %v6685 = vld [vmem:[%s1 + $0x40] sm:$0xff]
        %v6686 = vld [vmem:[#allocation4] sm:$0xff]
        %v6687 = vld [vmem:[#allocation4 + $0x8] sm:$0xff]
        %v6688 = vld [vmem:[#allocation4 + $0x10] sm:$0xff]
        %v6689 = vld [vmem:[#allocation4 + $0x18] sm:$0xff]
        %v6690 = vld [vmem:[#allocation4 + $0x20] sm:$0xff]
        %v6691 = vld [vmem:[#allocation4 + $0x28] sm:$0xff]
        %v6692 = vld [vmem:[#allocation4 + $0x30] sm:$0xff]
        %v6693 = vld [vmem:[#allocation4 + $0x38] sm:$0xff]
        %v6694 = vld [vmem:[#allocation4 + $0x40] sm:$0xff]
        %v6695 = vld [vmem:[#allocation4 + $0x48] sm:$0xff]
        %v6696 = vld [vmem:[#allocation4 + $0x50] sm:$0xff]
        %v6697 = vld [vmem:[#allocation4 + $0x58] sm:$0xff]
        %v6698 = vld [vmem:[#allocation4 + $0x60] sm:$0xff]
        %v6699 = vld [vmem:[#allocation4 + $0x68] sm:$0xff]
        %v6700 = vld [vmem:[#allocation4 + $0x70] sm:$0xff]
        %v6701 = vld [vmem:[#allocation4 + $0x78] sm:$0xff]
        %v6702 = vld [vmem:[#allocation4 + $0x80] sm:$0xff]
        %v6703 = vld [vmem:[#allocation4 + $0x88] sm:$0xff]
        %v6704 = vld [vmem:[#allocation4 + $0x90] sm:$0xff]
        %v6705 = vld [vmem:[#allocation4 + $0x98] sm:$0xff]
        %v6706 = vld [vmem:[#allocation4 + $0xa0] sm:$0xff]
        %v6707 = vld [vmem:[#allocation4 + $0xa8] sm:$0xff]
        %v6708 = vld [vmem:[#allocation4 + $0xb0] sm:$0xff]
        %v6709 = vld [vmem:[#allocation4 + $0xb8] sm:$0xff]
        %v6710 = vld [vmem:[#allocation4 + $0xc0] sm:$0xff]
        %v6711 = vld [vmem:[#allocation4 + $0xc8] sm:$0xff]
        %v6712 = vld [vmem:[#allocation4 + $0xd0] sm:$0xff]
        %v6713 = vld [vmem:[#allocation4 + $0xd8] sm:$0xff]
        %v6714 = vld [vmem:[#allocation4 + $0xe0] sm:$0xff]
        %v6715 = vld [vmem:[#allocation4 + $0xe8] sm:$0xff]
        %v6716 = vld [vmem:[#allocation4 + $0xf0] sm:$0xff]
        %v6717 = vld [vmem:[#allocation4 + $0xf8] sm:$0xff]
        %v6718 = vld [vmem:[#allocation4 + $0x100] sm:$0xff]
        %v6719 = vld [vmem:[#allocation4 + $0x108] sm:$0xff]
        %v6720 = vld [vmem:[#allocation4 + $0x110] sm:$0xff]
        %v6721 = vld [vmem:[#allocation4 + $0x118] sm:$0xff]
        %v6722 = vld [vmem:[#allocation4 + $0x120] sm:$0xff]
        %v6723 = vld [vmem:[#allocation4 + $0x128] sm:$0xff]
        %v6724 = vld [vmem:[#allocation4 + $0x130] sm:$0xff]
        %v6725 = vld [vmem:[#allocation4 + $0x138] sm:$0xff]
        %v6726 = vld [vmem:[#allocation4 + $0x140] sm:$0xff]
        %v6727 = vld [vmem:[#allocation4 + $0x148] sm:$0xff]
        %v6728 = vld [vmem:[#allocation4 + $0x150] sm:$0xff]
        %v6729 = vld [vmem:[#allocation4 + $0x158] sm:$0xff]
        %v6730 = vld [vmem:[#allocation4 + $0x160] sm:$0xff]
        %v6731 = vld [vmem:[#allocation4 + $0x168] sm:$0xff]
        %v6732 = vld [vmem:[#allocation4 + $0x170] sm:$0xff]
        %v6733 = vld [vmem:[#allocation4 + $0x178] sm:$0xff]
        %v6734 = vld [vmem:[#allocation4 + $0x180] sm:$0xff]
        %v6735 = vld [vmem:[#allocation4 + $0x188] sm:$0xff]
        %v6736 = vld [vmem:[#allocation4 + $0x190] sm:$0xff]
        %v6737 = vld [vmem:[#allocation4 + $0x198] sm:$0xff]
        %v6738 = vld [vmem:[#allocation4 + $0x1a0] sm:$0xff]
        %v6739 = vld [vmem:[#allocation4 + $0x1a8] sm:$0xff]
        %v6740 = vld [vmem:[#allocation4 + $0x1b0] sm:$0xff]
        %v6741 = vld [vmem:[#allocation4 + $0x1b8] sm:$0xff]
        %v6742 = vld [vmem:[#allocation4 + $0x1c0] sm:$0xff]
        %v6743 = vld [vmem:[#allocation4 + $0x1c8] sm:$0xff]
        %v6744 = vld [vmem:[#allocation4 + $0x1d0] sm:$0xff]
        %v6745 = vld [vmem:[#allocation4 + $0x1d8] sm:$0xff]
        %v6746 = vld [vmem:[#allocation4 + $0x1e0] sm:$0xff]
        %v6747 = vld [vmem:[#allocation4 + $0x1e8] sm:$0xff]
        %v6748 = vld [vmem:[#allocation4 + $0x1f0] sm:$0xff]
        %v6749 = vld [vmem:[#allocation4 + $0x1f8] sm:$0xff]
        %v6750 = vld [vmem:[#allocation4 + $0x200] sm:$0xff]
        %v6751 = vld [vmem:[#allocation4 + $0x208] sm:$0xff]
        %v6752 = vld [vmem:[#allocation4 + $0x210] sm:$0xff]
        %v6753 = vld [vmem:[#allocation4 + $0x218] sm:$0xff]
        %v6754 = vld [vmem:[#allocation4 + $0x220] sm:$0xff]
        %v6755 = vld [vmem:[#allocation4 + $0x228] sm:$0xff]
        %v6756 = vld [vmem:[#allocation4 + $0x230] sm:$0xff]
        %v6757 = vld [vmem:[#allocation4 + $0x238] sm:$0xff]
        %v6758 = vld [vmem:[#allocation4 + $0x240] sm:$0xff]
        %v6759 = vld [vmem:[#allocation4 + $0x248] sm:$0xff]
        %v6760 = vld [vmem:[#allocation4 + $0x250] sm:$0xff]
        %v6761 = vld [vmem:[#allocation4 + $0x258] sm:$0xff]
        %v6762 = vld [vmem:[#allocation4 + $0x260] sm:$0xff]
        %v6763 = vld [vmem:[#allocation4 + $0x268] sm:$0xff]
        %v6764 = vld [vmem:[#allocation4 + $0x270] sm:$0xff]
        %v6765 = vld [vmem:[#allocation4 + $0x278] sm:$0xff]
        %v6766 = vld [vmem:[#allocation4 + $0x280] sm:$0xff]
        %v6767 = vld [vmem:[#allocation4 + $0x288] sm:$0xff]
        %v6768 = vld [vmem:[#allocation4 + $0x290] sm:$0xff]
        %v6769 = vld [vmem:[#allocation4 + $0x298] sm:$0xff]
        %v6770 = vld [vmem:[#allocation4 + $0x2a0] sm:$0xff]
        %v6771 = vld [vmem:[#allocation4 + $0x2a8] sm:$0xff]
        %v6772 = vld [vmem:[#allocation4 + $0x2b0] sm:$0xff]
        %v6773 = vld [vmem:[#allocation4 + $0x2b8] sm:$0xff]
        %v6774 = vld [vmem:[#allocation4 + $0x2c0] sm:$0xff]
        %v6775 = vld [vmem:[#allocation4 + $0x2c8] sm:$0xff]
        %v6776 = vld [vmem:[#allocation4 + $0x2d0] sm:$0xff]
        %v6777 = vld [vmem:[#allocation4 + $0x2d8] sm:$0xff]
        %v6778 = vld [vmem:[#allocation4 + $0x2e0] sm:$0xff]
        %v6779 = vld [vmem:[#allocation4 + $0x2e8] sm:$0xff]
        %v6780 = vld [vmem:[#allocation4 + $0x2f0] sm:$0xff]
        %v6781 = vld [vmem:[#allocation4 + $0x2f8] sm:$0xff]
        %v6782 = vld [vmem:[#allocation4 + $0x300] sm:$0xff]
        %v6783 = vld [vmem:[#allocation4 + $0x308] sm:$0xff]
        %v6784 = vld [vmem:[#allocation4 + $0x310] sm:$0xff]
        %v6785 = vld [vmem:[#allocation4 + $0x318] sm:$0xff]
        %v6786 = vld [vmem:[#allocation4 + $0x320] sm:$0xff]
        %v6787 = vld [vmem:[#allocation4 + $0x328] sm:$0xff]
        %v6788 = vld [vmem:[#allocation4 + $0x330] sm:$0xff]
        %v6789 = vld [vmem:[#allocation4 + $0x338] sm:$0xff]
        %v6790 = vld [vmem:[#allocation4 + $0x340] sm:$0xff]
        %v6791 = vld [vmem:[#allocation4 + $0x348] sm:$0x7f]
        %v6792 = vld [vmem:[#allocation4 + $0x350] sm:$0x7f]
        %v6793 = vld [vmem:[#allocation4 + $0x358] sm:$0x7f]
        %v6794 = vld [vmem:[#allocation4 + $0x360] sm:$0x7f]
        %v6795 = vld [vmem:[#allocation4 + $0x368] sm:$0x7f]
        %v6796 = vld [vmem:[#allocation4 + $0x370] sm:$0x7f]
        %v6797 = vld [vmem:[#allocation4 + $0x378] sm:$0x7f]
        %6802 = vrot.lane.b32.xlu0 %v6682, 90
        %v6803 = vpop.permute.xlu0 %6802
        %6804 = vrot.lane.b32.xlu0 %v6683, 90
        %v6805 = vpop.permute.xlu0 %6804
        %6806 = vrot.lane.b32.xlu0 %v6684, 90
        %v6807 = vpop.permute.xlu0 %6806
        %6808 = vrot.lane.b32.xlu0 %v6685, 90
        %v6809 = vpop.permute.xlu0 %6808
        %vm6810 = vcmask 736256
        %v6811 = vsel %vm6810, %v6803, %v6805
        %v6812 = vsel %vm6810, %v6807, %v6809
        %v6813 = vsel %vm220, %v6811, 0
        %v6815 = vsel %vm220, %v6812, 0
        %v6818 = vsel %vm2541, %v6791, 0
        %v6821 = vsel %vm2541, %v6792, 0
        %v6824 = vsel %vm2541, %v6793, 0
        %v6827 = vsel %vm2541, %v6794, 0
        %v6830 = vsel %vm2541, %v6795, 0
        %v6833 = vsel %vm2541, %v6796, 0
        %v6836 = vsel %vm2541, %v6797, 0
        %6838 = vmatprep.subr.mxu0 %v6821
        %6839 = vmatpush1.msra.mxu0 %v6818
        %6840 = vmatprep.subr.mxu0 %v6785
        %6841 = vmatpush1.msra.mxu0 %v6784
        %6842 = vmatprep.subr.mxu0 %v6778
        %6843 = vmatpush1.msra.mxu0 %v6777
        %6844 = vmatprep.subr.mxu0 %v6771
        %6845 = vmatpush1.msra.mxu0 %v6770
        %6846 = vmatprep.subr.mxu0 %v6764
        %6847 = vmatpush1.msra.mxu0 %v6763
        %6848 = vmatprep.subr.mxu0 %v6757
        %6849 = vmatpush1.msra.mxu0 %v6756
        %6850 = vmatprep.subr.mxu0 %v6750
        %6851 = vmatpush1.msra.mxu0 %v6749
        %6852 = vmatprep.subr.mxu0 %v6743
        %6853 = vmatpush1.msra.mxu0 %v6742
        %6854 = vmatprep.subr.mxu0 %v6736
        %6855 = vmatpush1.msra.mxu0 %v6735
        %6856 = vmatprep.subr.mxu0 %v6729
        %6857 = vmatpush1.msra.mxu0 %v6728
        %6858 = vmatprep.subr.mxu0 %v6722
        %6859 = vmatpush1.msra.mxu0 %v6721
        %6860 = vmatprep.subr.mxu0 %v6715
        %6861 = vmatpush1.msra.mxu0 %v6714
        %6862 = vmatprep.subr.mxu0 %v6708
        %6863 = vmatpush1.msra.mxu0 %v6707
        %6864 = vmatprep.subr.mxu0 %v6701
        %6865 = vmatpush1.msra.mxu0 %v6700
        %6866 = vmatprep.subr.mxu0 %v6694
        %6867 = vmatpush1.msra.mxu0 %v6693
        %6868 = vmatprep.subr.mxu0 %v6687
        %6869 = vmatpush1.msra.mxu0 %v6686
        %6870 = vmatprep.subr.mxu0 0.0
        %6871 = vmatpush2.msra.mxu0 0.0
        %6872 = vmatprep.subr.mxu0 0.0
        %6873 = vmatpush2.msra.mxu0 0.0
        %6874 = vmatprep.subr.mxu0 0.0
        %6875 = vmatpush2.msra.mxu0 0.0
        %6876 = vmatprep.subr.mxu0 0.0
        %6877 = vmatpush2.msra.mxu0 0.0
        %6878 = vmatprep.subr.mxu0 0.0
        %6879 = vmatpush2.msra.mxu0 0.0
        %6880 = vmatprep.subr.mxu0 0.0
        %6881 = vmatpush2.msra.mxu0 0.0
        %6882 = vmatprep.subr.mxu0 0.0
        %6883 = vmatpush2.msra.mxu0 0.0
        %6884 = vmatprep.subr.mxu0 0.0
        %6885 = vmatpush2.msra.mxu0 0.0
        %6886 = vmatprep.subr.mxu0 0.0
        %6887 = vmatpush2.msra.mxu0 0.0
        %6888 = vmatprep.subr.mxu0 0.0
        %6889 = vmatpush2.msra.mxu0 0.0
        %6890 = vmatprep.subr.mxu0 0.0
        %6891 = vmatpush2.msra.mxu0 0.0
        %6892 = vmatprep.subr.mxu0 0.0
        %6893 = vmatpush2.msra.mxu0 0.0
        %6894 = vmatprep.subr.mxu0 0.0
        %6895 = vmatpush2.msra.mxu0 0.0
        %6896 = vmatprep.subr.mxu0 0.0
        %6897 = vmatpush2.msra.mxu0 0.0
        %6898 = vmatprep.subr.mxu0 0.0
        %6899 = vmatpush2.msra.mxu0 0.0
        %6900 = vmatprep.subr.mxu0 0.0
        %6901 = vmatpush2.msra.mxu0 0.0
        %6902 = vmatprep.mubr.f32.mxu0 0.0
        %6903 = vmatmul.mubr.f32.gmra.mxu0 %v6813
        %v6904 = vpop.f32.mrf.mxu0
        %v6905 = vadd.f32 0.0, %v6904
        %v6906 = vpop.f32.mrf.mxu0
        %v6907 = vadd.f32 0.0, %v6906
        %6908 = vmatprep.mubr.f32.mxu0 0.0
        %6909 = vmatmul.mubr.f32.gmra.mxu0 %v6815
        %v6910 = vpop.f32.mrf.mxu0
        %v6911 = vadd.f32 0.0, %v6910
        %v6912 = vpop.f32.mrf.mxu0
        %v6913 = vadd.f32 0.0, %v6912
        %6914 = vdwg.mxu0
        %6915 = vmatprep.subr.mxu0 %v6827
        %6916 = vmatpush1.msra.mxu0 %v6824
        %6917 = vmatprep.subr.mxu0 %v6787
        %6918 = vmatpush1.msra.mxu0 %v6786
        %6919 = vmatprep.subr.mxu0 %v6780
        %6920 = vmatpush1.msra.mxu0 %v6779
        %6921 = vmatprep.subr.mxu0 %v6773
        %6922 = vmatpush1.msra.mxu0 %v6772
        %6923 = vmatprep.subr.mxu0 %v6766
        %6924 = vmatpush1.msra.mxu0 %v6765
        %6925 = vmatprep.subr.mxu0 %v6759
        %6926 = vmatpush1.msra.mxu0 %v6758
        %6927 = vmatprep.subr.mxu0 %v6752
        %6928 = vmatpush1.msra.mxu0 %v6751
        %6929 = vmatprep.subr.mxu0 %v6745
        %6930 = vmatpush1.msra.mxu0 %v6744
        %6931 = vmatprep.subr.mxu0 %v6738
        %6932 = vmatpush1.msra.mxu0 %v6737
        %6933 = vmatprep.subr.mxu0 %v6731
        %6934 = vmatpush1.msra.mxu0 %v6730
        %6935 = vmatprep.subr.mxu0 %v6724
        %6936 = vmatpush1.msra.mxu0 %v6723
        %6937 = vmatprep.subr.mxu0 %v6717
        %6938 = vmatpush1.msra.mxu0 %v6716
        %6939 = vmatprep.subr.mxu0 %v6710
        %6940 = vmatpush1.msra.mxu0 %v6709
        %6941 = vmatprep.subr.mxu0 %v6703
        %6942 = vmatpush1.msra.mxu0 %v6702
        %6943 = vmatprep.subr.mxu0 %v6696
        %6944 = vmatpush1.msra.mxu0 %v6695
        %6945 = vmatprep.subr.mxu0 %v6689
        %6946 = vmatpush1.msra.mxu0 %v6688
        %6947 = vmatprep.subr.mxu0 0.0
        %6948 = vmatpush2.msra.mxu0 0.0
        %6949 = vmatprep.subr.mxu0 0.0
        %6950 = vmatpush2.msra.mxu0 0.0
        %6951 = vmatprep.subr.mxu0 0.0
        %6952 = vmatpush2.msra.mxu0 0.0
        %6953 = vmatprep.subr.mxu0 0.0
        %6954 = vmatpush2.msra.mxu0 0.0
        %6955 = vmatprep.subr.mxu0 0.0
        %6956 = vmatpush2.msra.mxu0 0.0
        %6957 = vmatprep.subr.mxu0 0.0
        %6958 = vmatpush2.msra.mxu0 0.0
        %6959 = vmatprep.subr.mxu0 0.0
        %6960 = vmatpush2.msra.mxu0 0.0
        %6961 = vmatprep.subr.mxu0 0.0
        %6962 = vmatpush2.msra.mxu0 0.0
        %6963 = vmatprep.subr.mxu0 0.0
        %6964 = vmatpush2.msra.mxu0 0.0
        %6965 = vmatprep.subr.mxu0 0.0
        %6966 = vmatpush2.msra.mxu0 0.0
        %6967 = vmatprep.subr.mxu0 0.0
        %6968 = vmatpush2.msra.mxu0 0.0
        %6969 = vmatprep.subr.mxu0 0.0
        %6970 = vmatpush2.msra.mxu0 0.0
        %6971 = vmatprep.subr.mxu0 0.0
        %6972 = vmatpush2.msra.mxu0 0.0
        %6973 = vmatprep.subr.mxu0 0.0
        %6974 = vmatpush2.msra.mxu0 0.0
        %6975 = vmatprep.subr.mxu0 0.0
        %6976 = vmatpush2.msra.mxu0 0.0
        %6977 = vmatprep.subr.mxu0 0.0
        %6978 = vmatpush2.msra.mxu0 0.0
        %6979 = vmatprep.mubr.f32.mxu0 0.0
        %6980 = vmatmul.mubr.f32.gmra.mxu0 %v6813
        %v6981 = vpop.f32.mrf.mxu0
        %v6982 = vadd.f32 0.0, %v6981
        %v6983 = vpop.f32.mrf.mxu0
        %v6984 = vadd.f32 0.0, %v6983
        %6985 = vmatprep.mubr.f32.mxu0 0.0
        %6986 = vmatmul.mubr.f32.gmra.mxu0 %v6815
        %v6987 = vpop.f32.mrf.mxu0
        %v6988 = vadd.f32 0.0, %v6987
        %v6989 = vpop.f32.mrf.mxu0
        %v6990 = vadd.f32 0.0, %v6989
        %6991 = vdwg.mxu0
        %6992 = vmatprep.subr.mxu0 %v6833
        %6993 = vmatpush1.msra.mxu0 %v6830
        %6994 = vmatprep.subr.mxu0 %v6789
        %6995 = vmatpush1.msra.mxu0 %v6788
        %6996 = vmatprep.subr.mxu0 %v6782
        %6997 = vmatpush1.msra.mxu0 %v6781
        %6998 = vmatprep.subr.mxu0 %v6775
        %6999 = vmatpush1.msra.mxu0 %v6774
        %7000 = vmatprep.subr.mxu0 %v6768
        %7001 = vmatpush1.msra.mxu0 %v6767
        %7002 = vmatprep.subr.mxu0 %v6761
        %7003 = vmatpush1.msra.mxu0 %v6760
        %7004 = vmatprep.subr.mxu0 %v6754
        %7005 = vmatpush1.msra.mxu0 %v6753
        %7006 = vmatprep.subr.mxu0 %v6747
        %7007 = vmatpush1.msra.mxu0 %v6746
        %7008 = vmatprep.subr.mxu0 %v6740
        %7009 = vmatpush1.msra.mxu0 %v6739
        %7010 = vmatprep.subr.mxu0 %v6733
        %7011 = vmatpush1.msra.mxu0 %v6732
        %7012 = vmatprep.subr.mxu0 %v6726
        %7013 = vmatpush1.msra.mxu0 %v6725
        %7014 = vmatprep.subr.mxu0 %v6719
        %7015 = vmatpush1.msra.mxu0 %v6718
        %7016 = vmatprep.subr.mxu0 %v6712
        %7017 = vmatpush1.msra.mxu0 %v6711
        %7018 = vmatprep.subr.mxu0 %v6705
        %7019 = vmatpush1.msra.mxu0 %v6704
        %7020 = vmatprep.subr.mxu0 %v6698
        %7021 = vmatpush1.msra.mxu0 %v6697
        %7022 = vmatprep.subr.mxu0 %v6691
        %7023 = vmatpush1.msra.mxu0 %v6690
        %7024 = vmatprep.subr.mxu0 0.0
        %7025 = vmatpush2.msra.mxu0 0.0
        %7026 = vmatprep.subr.mxu0 0.0
        %7027 = vmatpush2.msra.mxu0 0.0
        %7028 = vmatprep.subr.mxu0 0.0
        %7029 = vmatpush2.msra.mxu0 0.0
        %7030 = vmatprep.subr.mxu0 0.0
        %7031 = vmatpush2.msra.mxu0 0.0
        %7032 = vmatprep.subr.mxu0 0.0
        %7033 = vmatpush2.msra.mxu0 0.0
        %7034 = vmatprep.subr.mxu0 0.0
        %7035 = vmatpush2.msra.mxu0 0.0
        %7036 = vmatprep.subr.mxu0 0.0
        %7037 = vmatpush2.msra.mxu0 0.0
        %7038 = vmatprep.subr.mxu0 0.0
        %7039 = vmatpush2.msra.mxu0 0.0
        %7040 = vmatprep.subr.mxu0 0.0
        %7041 = vmatpush2.msra.mxu0 0.0
        %7042 = vmatprep.subr.mxu0 0.0
        %7043 = vmatpush2.msra.mxu0 0.0
        %7044 = vmatprep.subr.mxu0 0.0
        %7045 = vmatpush2.msra.mxu0 0.0
        %7046 = vmatprep.subr.mxu0 0.0
        %7047 = vmatpush2.msra.mxu0 0.0
        %7048 = vmatprep.subr.mxu0 0.0
        %7049 = vmatpush2.msra.mxu0 0.0
        %7050 = vmatprep.subr.mxu0 0.0
        %7051 = vmatpush2.msra.mxu0 0.0
        %7052 = vmatprep.subr.mxu0 0.0
        %7053 = vmatpush2.msra.mxu0 0.0
        %7054 = vmatprep.subr.mxu0 0.0
        %7055 = vmatpush2.msra.mxu0 0.0
        %7056 = vmatprep.mubr.f32.mxu0 0.0
        %7057 = vmatmul.mubr.f32.gmra.mxu0 %v6813
        %v7058 = vpop.f32.mrf.mxu0
        %v7059 = vadd.f32 0.0, %v7058
        %v7060 = vpop.f32.mrf.mxu0
        %v7061 = vadd.f32 0.0, %v7060
        %7062 = vmatprep.mubr.f32.mxu0 0.0
        %7063 = vmatmul.mubr.f32.gmra.mxu0 %v6815
        %v7064 = vpop.f32.mrf.mxu0
        %v7065 = vadd.f32 0.0, %v7064
        %v7066 = vpop.f32.mrf.mxu0
        %v7067 = vadd.f32 0.0, %v7066
        %7068 = vdwg.mxu0
        %7069 = vmatprep.subr.mxu0 0.0
        %7070 = vmatpush1.msra.mxu0 %v6836
        %7071 = vmatprep.subr.mxu0 0.0
        %7072 = vmatpush1.msra.mxu0 %v6790
        %7073 = vmatprep.subr.mxu0 0.0
        %7074 = vmatpush1.msra.mxu0 %v6783
        %7075 = vmatprep.subr.mxu0 0.0
        %7076 = vmatpush1.msra.mxu0 %v6776
        %7077 = vmatprep.subr.mxu0 0.0
        %7078 = vmatpush1.msra.mxu0 %v6769
        %7079 = vmatprep.subr.mxu0 0.0
        %7080 = vmatpush1.msra.mxu0 %v6762
        %7081 = vmatprep.subr.mxu0 0.0
        %7082 = vmatpush1.msra.mxu0 %v6755
        %7083 = vmatprep.subr.mxu0 0.0
        %7084 = vmatpush1.msra.mxu0 %v6748
        %7085 = vmatprep.subr.mxu0 0.0
        %7086 = vmatpush1.msra.mxu0 %v6741
        %7087 = vmatprep.subr.mxu0 0.0
        %7088 = vmatpush1.msra.mxu0 %v6734
        %7089 = vmatprep.subr.mxu0 0.0
        %7090 = vmatpush1.msra.mxu0 %v6727
        %7091 = vmatprep.subr.mxu0 0.0
        %7092 = vmatpush1.msra.mxu0 %v6720
        %7093 = vmatprep.subr.mxu0 0.0
        %7094 = vmatpush1.msra.mxu0 %v6713
        %7095 = vmatprep.subr.mxu0 0.0
        %7096 = vmatpush1.msra.mxu0 %v6706
        %7097 = vmatprep.subr.mxu0 0.0
        %7098 = vmatpush1.msra.mxu0 %v6699
        %7099 = vmatprep.subr.mxu0 0.0
        %7100 = vmatpush1.msra.mxu0 %v6692
        %7101 = vmatprep.subr.mxu0 0.0
        %7102 = vmatpush2.msra.mxu0 0.0
        %7103 = vmatprep.subr.mxu0 0.0
        %7104 = vmatpush2.msra.mxu0 0.0
        %7105 = vmatprep.subr.mxu0 0.0
        %7106 = vmatpush2.msra.mxu0 0.0
        %7107 = vmatprep.subr.mxu0 0.0
        %7108 = vmatpush2.msra.mxu0 0.0
        %7109 = vmatprep.subr.mxu0 0.0
        %7110 = vmatpush2.msra.mxu0 0.0
        %7111 = vmatprep.subr.mxu0 0.0
        %7112 = vmatpush2.msra.mxu0 0.0
        %7113 = vmatprep.subr.mxu0 0.0
        %7114 = vmatpush2.msra.mxu0 0.0
        %7115 = vmatprep.subr.mxu0 0.0
        %7116 = vmatpush2.msra.mxu0 0.0
        %7117 = vmatprep.subr.mxu0 0.0
        %7118 = vmatpush2.msra.mxu0 0.0
        %7119 = vmatprep.subr.mxu0 0.0
        %7120 = vmatpush2.msra.mxu0 0.0
        %7121 = vmatprep.subr.mxu0 0.0
        %7122 = vmatpush2.msra.mxu0 0.0
        %7123 = vmatprep.subr.mxu0 0.0
        %7124 = vmatpush2.msra.mxu0 0.0
        %7125 = vmatprep.subr.mxu0 0.0
        %7126 = vmatpush2.msra.mxu0 0.0
        %7127 = vmatprep.subr.mxu0 0.0
        %7128 = vmatpush2.msra.mxu0 0.0
        %7129 = vmatprep.subr.mxu0 0.0
        %7130 = vmatpush2.msra.mxu0 0.0
        %7131 = vmatprep.subr.mxu0 0.0
        %7132 = vmatpush2.msra.mxu0 0.0
        %7133 = vmatprep.mubr.f32.mxu0 0.0
        %7134 = vmatmul.mubr.f32.gmra.mxu0 %v6813
        %v7135 = vpop.f32.mrf.mxu0
        %v7136 = vadd.f32 0.0, %v7135
        %v7137 = vpop.f32.mrf.mxu0
        %7138 = vmatprep.mubr.f32.mxu0 0.0
        %7139 = vmatmul.mubr.f32.gmra.mxu0 %v6815
        %v7140 = vpop.f32.mrf.mxu0
        %v7141 = vadd.f32 0.0, %v7140
        %v7142 = vpop.f32.mrf.mxu0
        %7143 = vdwg.mxu0
        %v7144 = vmax.f32 %v6905, 0.0
        %v7145 = vmax.f32 %v6907, 0.0
        %v7146 = vmax.f32 %v6982, 0.0
        %v7147 = vmax.f32 %v6984, 0.0
        %v7148 = vmax.f32 %v7059, 0.0
        %v7149 = vmax.f32 %v7061, 0.0
        %v7150 = vmax.f32 %v7136, 0.0
        %v7151 = vmax.f32 %v6911, 0.0
        %v7152 = vmax.f32 %v6913, 0.0
        %v7153 = vmax.f32 %v6988, 0.0
        %v7154 = vmax.f32 %v6990, 0.0
        %v7155 = vmax.f32 %v7065, 0.0
        %v7156 = vmax.f32 %v7067, 0.0
        %v7157 = vmax.f32 %v7141, 0.0
        %7158 = vst [vmem:[#allocation3] sm:$0xff] %v7144
        %7159 = vst [vmem:[#allocation3 + $0x8] sm:$0xff] %v7145
        %7160 = vst [vmem:[#allocation3 + $0x10] sm:$0xff] %v7146
        %7161 = vst [vmem:[#allocation3 + $0x18] sm:$0xff] %v7147
        %7162 = vst [vmem:[#allocation3 + $0x20] sm:$0xff] %v7148
        %7163 = vst [vmem:[#allocation3 + $0x28] sm:$0xff] %v7149
        %7164 = vst.msk [vmem:[#allocation3 + $0x30] sm:$0xff] %vm172, %v7150
        %7165 = vst [vmem:[#allocation3 + $0x40] sm:$0xff] %v7151
        %7166 = vst [vmem:[#allocation3 + $0x48] sm:$0xff] %v7152
        %7167 = vst [vmem:[#allocation3 + $0x50] sm:$0xff] %v7153
        %7168 = vst [vmem:[#allocation3 + $0x58] sm:$0xff] %v7154
        %7169 = vst [vmem:[#allocation3 + $0x60] sm:$0xff] %v7155
        %7170 = vst [vmem:[#allocation3 + $0x68] sm:$0xff] %v7156
        %7171 = vst.msk [vmem:[#allocation3 + $0x70] sm:$0xff] %vm172, %v7157
        %v7172 = vld [vmem:[#allocation3] sm:$0xff]
        %v7173 = vld [vmem:[#allocation3 + $0x8] sm:$0xff]
        %v7174 = vld [vmem:[#allocation3 + $0x10] sm:$0xff]
        %v7175 = vld [vmem:[#allocation3 + $0x18] sm:$0xff]
        %v7176 = vld [vmem:[#allocation3 + $0x20] sm:$0xff]
        %v7177 = vld [vmem:[#allocation3 + $0x28] sm:$0xff]
        %v7178 = vld [vmem:[#allocation3 + $0x30] sm:$0xff]
        %v7179 = vld [vmem:[#allocation3 + $0x40] sm:$0xff]
        %v7180 = vld [vmem:[#allocation3 + $0x48] sm:$0xff]
        %v7181 = vld [vmem:[#allocation3 + $0x50] sm:$0xff]
        %v7182 = vld [vmem:[#allocation3 + $0x58] sm:$0xff]
        %v7183 = vld [vmem:[#allocation3 + $0x60] sm:$0xff]
        %v7184 = vld [vmem:[#allocation3 + $0x68] sm:$0xff]
        %v7185 = vld [vmem:[#allocation3 + $0x70] sm:$0xff]
        %v7200 = vrot.slane %v7172, 7
        %v7201 = vrot.slane %v7173, 7
        %v7202 = vrot.slane %v7174, 7
        %v7203 = vrot.slane %v7175, 7
        %v7204 = vrot.slane %v7176, 7
        %v7205 = vrot.slane %v7177, 7
        %v7206 = vrot.slane %v7178, 7
        %v7207 = vrot.slane %v7179, 7
        %v7208 = vsel %vm1278, %v7200, %v7207
        %v7209 = vrot.slane %v7180, 7
        %v7210 = vsel %vm1278, %v7201, %v7209
        %v7211 = vrot.slane %v7181, 7
        %v7212 = vsel %vm1278, %v7202, %v7211
        %v7213 = vrot.slane %v7182, 7
        %v7214 = vsel %vm1278, %v7203, %v7213
        %v7215 = vrot.slane %v7183, 7
        %v7216 = vsel %vm1278, %v7204, %v7215
        %v7217 = vrot.slane %v7184, 7
        %v7218 = vsel %vm1278, %v7205, %v7217
        %v7219 = vrot.slane %v7185, 7
        %v7220 = vsel %vm1278, %v7206, %v7219
        %7242 = vst [vmem:[#allocation4] sm:$0xfe] %v7200
        %7243 = vst [vmem:[#allocation4 + $0x8] sm:$0xfe] %v7201
        %7244 = vst [vmem:[#allocation4 + $0x10] sm:$0xfe] %v7202
        %7245 = vst [vmem:[#allocation4 + $0x18] sm:$0xfe] %v7203
        %7246 = vst [vmem:[#allocation4 + $0x20] sm:$0xfe] %v7204
        %7247 = vst [vmem:[#allocation4 + $0x28] sm:$0xfe] %v7205
        %7248 = vst.msk [vmem:[#allocation4 + $0x30] sm:$0xfe] %vm689, %v7206
        %7249 = vst [vmem:[#allocation4 + $0x38] sm:$0xff] %v7208
        %7250 = vst [vmem:[#allocation4 + $0x40] sm:$0xff] %v7210
        %7251 = vst [vmem:[#allocation4 + $0x48] sm:$0xff] %v7212
        %7252 = vst [vmem:[#allocation4 + $0x50] sm:$0xff] %v7214
        %7253 = vst [vmem:[#allocation4 + $0x58] sm:$0xff] %v7216
        %7254 = vst [vmem:[#allocation4 + $0x60] sm:$0xff] %v7218
        %7255 = vst.msk [vmem:[#allocation4 + $0x68] sm:$0xff] %vm172, %v7220
        %7256 = vst [vmem:[#allocation4 + $0x70] sm:$0x1] %v7207
        %7257 = vst [vmem:[#allocation4 + $0x78] sm:$0x1] %v7209
        %7258 = vst [vmem:[#allocation4 + $0x80] sm:$0x1] %v7211
        %7259 = vst [vmem:[#allocation4 + $0x88] sm:$0x1] %v7213
        %7260 = vst [vmem:[#allocation4 + $0x90] sm:$0x1] %v7215
        %7261 = vst [vmem:[#allocation4 + $0x98] sm:$0x1] %v7217
        %7262 = vst.msk [vmem:[#allocation4 + $0xa0] sm:$0x1] %vm697, %v7219
        %v7263 = vld [vmem:[#allocation3] sm:$0xff]
        %v7264 = vld [vmem:[#allocation3 + $0x8] sm:$0xff]
        %v7265 = vld [vmem:[#allocation3 + $0x10] sm:$0xff]
        %v7266 = vld [vmem:[#allocation3 + $0x18] sm:$0xff]
        %v7267 = vld [vmem:[#allocation3 + $0x20] sm:$0xff]
        %v7268 = vld [vmem:[#allocation3 + $0x28] sm:$0xff]
        %v7269 = vld [vmem:[#allocation3 + $0x30] sm:$0xff]
        %v7270 = vld [vmem:[#allocation3 + $0x40] sm:$0xff]
        %v7271 = vld [vmem:[#allocation3 + $0x48] sm:$0xff]
        %v7272 = vld [vmem:[#allocation3 + $0x50] sm:$0xff]
        %v7273 = vld [vmem:[#allocation3 + $0x58] sm:$0xff]
        %v7274 = vld [vmem:[#allocation3 + $0x60] sm:$0xff]
        %v7275 = vld [vmem:[#allocation3 + $0x68] sm:$0xff]
        %v7276 = vld [vmem:[#allocation3 + $0x70] sm:$0xff]
        %v7291 = vrot.slane %v7263, 7
        %v7292 = vrot.slane %v7264, 7
        %v7293 = vrot.slane %v7265, 7
        %v7294 = vrot.slane %v7266, 7
        %v7295 = vrot.slane %v7267, 7
        %v7296 = vrot.slane %v7268, 7
        %v7297 = vrot.slane %v7269, 7
        %v7298 = vrot.slane %v7270, 7
        %v7299 = vsel %vm1278, %v7291, %v7298
        %v7300 = vrot.slane %v7271, 7
        %v7301 = vsel %vm1278, %v7292, %v7300
        %v7302 = vrot.slane %v7272, 7
        %v7303 = vsel %vm1278, %v7293, %v7302
        %v7304 = vrot.slane %v7273, 7
        %v7305 = vsel %vm1278, %v7294, %v7304
        %v7306 = vrot.slane %v7274, 7
        %v7307 = vsel %vm1278, %v7295, %v7306
        %v7308 = vrot.slane %v7275, 7
        %v7309 = vsel %vm1278, %v7296, %v7308
        %v7310 = vrot.slane %v7276, 7
        %v7311 = vsel %vm1278, %v7297, %v7310
        %7312 = vrot.lane.b32.xlu0 %v7291, 126
        %v7313 = vpop.permute.xlu0 %7312
        %7314 = vrot.lane.b32.xlu0 %v7292, 126
        %v7315 = vpop.permute.xlu0 %7314
        %7316 = vrot.lane.b32.xlu0 %v7293, 126
        %v7317 = vpop.permute.xlu0 %7316
        %7318 = vrot.lane.b32.xlu0 %v7294, 126
        %v7319 = vpop.permute.xlu0 %7318
        %7320 = vrot.lane.b32.xlu0 %v7295, 126
        %v7321 = vpop.permute.xlu0 %7320
        %7322 = vrot.lane.b32.xlu0 %v7296, 126
        %v7323 = vpop.permute.xlu0 %7322
        %7324 = vrot.lane.b32.xlu0 %v7297, 126
        %v7325 = vpop.permute.xlu0 %7324
        %7326 = vrot.lane.b32.xlu0 %v7299, 126
        %v7327 = vpop.permute.xlu0 %7326
        %7328 = vrot.lane.b32.xlu0 %v7301, 126
        %v7329 = vpop.permute.xlu0 %7328
        %7330 = vrot.lane.b32.xlu0 %v7303, 126
        %v7331 = vpop.permute.xlu0 %7330
        %7332 = vrot.lane.b32.xlu0 %v7305, 126
        %v7333 = vpop.permute.xlu0 %7332
        %7334 = vrot.lane.b32.xlu0 %v7307, 126
        %v7335 = vpop.permute.xlu0 %7334
        %7336 = vrot.lane.b32.xlu0 %v7309, 126
        %v7337 = vpop.permute.xlu0 %7336
        %7338 = vrot.lane.b32.xlu0 %v7311, 126
        %v7339 = vpop.permute.xlu0 %7338
        %7340 = vrot.lane.b32.xlu0 %v7298, 126
        %v7341 = vpop.permute.xlu0 %7340
        %7342 = vrot.lane.b32.xlu0 %v7300, 126
        %v7343 = vpop.permute.xlu0 %7342
        %7344 = vrot.lane.b32.xlu0 %v7302, 126
        %v7345 = vpop.permute.xlu0 %7344
        %7346 = vrot.lane.b32.xlu0 %v7304, 126
        %v7347 = vpop.permute.xlu0 %7346
        %7348 = vrot.lane.b32.xlu0 %v7306, 126
        %v7349 = vpop.permute.xlu0 %7348
        %7350 = vrot.lane.b32.xlu0 %v7308, 126
        %v7351 = vpop.permute.xlu0 %7350
        %7352 = vrot.lane.b32.xlu0 %v7310, 126
        %v7353 = vpop.permute.xlu0 %7352
        %v7354 = vsel %vm233, %v7313, %v7315
        %v7355 = vsel %vm233, %v7315, %v7317
        %v7356 = vsel %vm233, %v7317, %v7319
        %v7357 = vsel %vm233, %v7319, %v7321
        %v7358 = vsel %vm233, %v7321, %v7323
        %v7359 = vsel %vm233, %v7323, %v7325
        %v7360 = vsel %vm233, %v7327, %v7329
        %v7361 = vsel %vm233, %v7329, %v7331
        %v7362 = vsel %vm233, %v7331, %v7333
        %v7363 = vsel %vm233, %v7333, %v7335
        %v7364 = vsel %vm233, %v7335, %v7337
        %v7365 = vsel %vm233, %v7337, %v7339
        %v7366 = vsel %vm233, %v7341, %v7343
        %v7367 = vsel %vm233, %v7343, %v7345
        %v7368 = vsel %vm233, %v7345, %v7347
        %v7369 = vsel %vm233, %v7347, %v7349
        %v7370 = vsel %vm233, %v7349, %v7351
        %v7371 = vsel %vm233, %v7351, %v7353
        %7393 = vst [vmem:[#allocation4 + $0x70] sm:$0xfe] %v7354
        %7394 = vst [vmem:[#allocation4 + $0x78] sm:$0xfe] %v7355
        %7395 = vst [vmem:[#allocation4 + $0x80] sm:$0xfe] %v7356
        %7396 = vst [vmem:[#allocation4 + $0x88] sm:$0xfe] %v7357
        %7397 = vst [vmem:[#allocation4 + $0x90] sm:$0xfe] %v7358
        %7398 = vst [vmem:[#allocation4 + $0x98] sm:$0xfe] %v7359
        %7399 = vst.msk [vmem:[#allocation4 + $0xa0] sm:$0xfe] %vm689, %v7325
        %7400 = vst [vmem:[#allocation4 + $0xa8] sm:$0xff] %v7360
        %7401 = vst [vmem:[#allocation4 + $0xb0] sm:$0xff] %v7361
        %7402 = vst [vmem:[#allocation4 + $0xb8] sm:$0xff] %v7362
        %7403 = vst [vmem:[#allocation4 + $0xc0] sm:$0xff] %v7363
        %7404 = vst [vmem:[#allocation4 + $0xc8] sm:$0xff] %v7364
        %7405 = vst [vmem:[#allocation4 + $0xd0] sm:$0xff] %v7365
        %7406 = vst.msk [vmem:[#allocation4 + $0xd8] sm:$0xff] %vm172, %v7339
        %7407 = vst [vmem:[#allocation4 + $0xe0] sm:$0x1] %v7366
        %7408 = vst [vmem:[#allocation4 + $0xe8] sm:$0x1] %v7367
        %7409 = vst [vmem:[#allocation4 + $0xf0] sm:$0x1] %v7368
        %7410 = vst [vmem:[#allocation4 + $0xf8] sm:$0x1] %v7369
        %7411 = vst [vmem:[#allocation4 + $0x100] sm:$0x1] %v7370
        %7412 = vst [vmem:[#allocation4 + $0x108] sm:$0x1] %v7371
        %7413 = vst.msk [vmem:[#allocation4 + $0x110] sm:$0x1] %vm697, %v7353
        %v7414 = vld [vmem:[#allocation3] sm:$0xff]
        %v7415 = vld [vmem:[#allocation3 + $0x8] sm:$0xff]
        %v7416 = vld [vmem:[#allocation3 + $0x10] sm:$0xff]
        %v7417 = vld [vmem:[#allocation3 + $0x18] sm:$0xff]
        %v7418 = vld [vmem:[#allocation3 + $0x20] sm:$0xff]
        %v7419 = vld [vmem:[#allocation3 + $0x28] sm:$0xff]
        %v7420 = vld [vmem:[#allocation3 + $0x30] sm:$0xff]
        %v7421 = vld [vmem:[#allocation3 + $0x40] sm:$0xff]
        %v7422 = vld [vmem:[#allocation3 + $0x48] sm:$0xff]
        %v7423 = vld [vmem:[#allocation3 + $0x50] sm:$0xff]
        %v7424 = vld [vmem:[#allocation3 + $0x58] sm:$0xff]
        %v7425 = vld [vmem:[#allocation3 + $0x60] sm:$0xff]
        %v7426 = vld [vmem:[#allocation3 + $0x68] sm:$0xff]
        %v7427 = vld [vmem:[#allocation3 + $0x70] sm:$0xff]
        %v7442 = vrot.slane %v7414, 7
        %v7443 = vrot.slane %v7415, 7
        %v7444 = vrot.slane %v7416, 7
        %v7445 = vrot.slane %v7417, 7
        %v7446 = vrot.slane %v7418, 7
        %v7447 = vrot.slane %v7419, 7
        %v7448 = vrot.slane %v7420, 7
        %v7449 = vrot.slane %v7421, 7
        %v7450 = vsel %vm1278, %v7442, %v7449
        %v7451 = vrot.slane %v7422, 7
        %v7452 = vsel %vm1278, %v7443, %v7451
        %v7453 = vrot.slane %v7423, 7
        %v7454 = vsel %vm1278, %v7444, %v7453
        %v7455 = vrot.slane %v7424, 7
        %v7456 = vsel %vm1278, %v7445, %v7455
        %v7457 = vrot.slane %v7425, 7
        %v7458 = vsel %vm1278, %v7446, %v7457
        %v7459 = vrot.slane %v7426, 7
        %v7460 = vsel %vm1278, %v7447, %v7459
        %v7461 = vrot.slane %v7427, 7
        %v7462 = vsel %vm1278, %v7448, %v7461
        %7463 = vrot.lane.b32.xlu0 %v7442, 124
        %v7464 = vpop.permute.xlu0 %7463
        %7465 = vrot.lane.b32.xlu0 %v7443, 124
        %v7466 = vpop.permute.xlu0 %7465
        %7467 = vrot.lane.b32.xlu0 %v7444, 124
        %v7468 = vpop.permute.xlu0 %7467
        %7469 = vrot.lane.b32.xlu0 %v7445, 124
        %v7470 = vpop.permute.xlu0 %7469
        %7471 = vrot.lane.b32.xlu0 %v7446, 124
        %v7472 = vpop.permute.xlu0 %7471
        %7473 = vrot.lane.b32.xlu0 %v7447, 124
        %v7474 = vpop.permute.xlu0 %7473
        %7475 = vrot.lane.b32.xlu0 %v7448, 124
        %v7476 = vpop.permute.xlu0 %7475
        %7477 = vrot.lane.b32.xlu0 %v7450, 124
        %v7478 = vpop.permute.xlu0 %7477
        %7479 = vrot.lane.b32.xlu0 %v7452, 124
        %v7480 = vpop.permute.xlu0 %7479
        %7481 = vrot.lane.b32.xlu0 %v7454, 124
        %v7482 = vpop.permute.xlu0 %7481
        %7483 = vrot.lane.b32.xlu0 %v7456, 124
        %v7484 = vpop.permute.xlu0 %7483
        %7485 = vrot.lane.b32.xlu0 %v7458, 124
        %v7486 = vpop.permute.xlu0 %7485
        %7487 = vrot.lane.b32.xlu0 %v7460, 124
        %v7488 = vpop.permute.xlu0 %7487
        %7489 = vrot.lane.b32.xlu0 %v7462, 124
        %v7490 = vpop.permute.xlu0 %7489
        %7491 = vrot.lane.b32.xlu0 %v7449, 124
        %v7492 = vpop.permute.xlu0 %7491
        %7493 = vrot.lane.b32.xlu0 %v7451, 124
        %v7494 = vpop.permute.xlu0 %7493
        %7495 = vrot.lane.b32.xlu0 %v7453, 124
        %v7496 = vpop.permute.xlu0 %7495
        %7497 = vrot.lane.b32.xlu0 %v7455, 124
        %v7498 = vpop.permute.xlu0 %7497
        %7499 = vrot.lane.b32.xlu0 %v7457, 124
        %v7500 = vpop.permute.xlu0 %7499
        %7501 = vrot.lane.b32.xlu0 %v7459, 124
        %v7502 = vpop.permute.xlu0 %7501
        %7503 = vrot.lane.b32.xlu0 %v7461, 124
        %v7504 = vpop.permute.xlu0 %7503
        %v7505 = vsel %vm2470, %v7464, %v7466
        %v7506 = vsel %vm2470, %v7466, %v7468
        %v7507 = vsel %vm2470, %v7468, %v7470
        %v7508 = vsel %vm2470, %v7470, %v7472
        %v7509 = vsel %vm2470, %v7472, %v7474
        %v7510 = vsel %vm2470, %v7474, %v7476
        %v7511 = vsel %vm2470, %v7478, %v7480
        %v7512 = vsel %vm2470, %v7480, %v7482
        %v7513 = vsel %vm2470, %v7482, %v7484
        %v7514 = vsel %vm2470, %v7484, %v7486
        %v7515 = vsel %vm2470, %v7486, %v7488
        %v7516 = vsel %vm2470, %v7488, %v7490
        %v7517 = vsel %vm2470, %v7492, %v7494
        %v7518 = vsel %vm2470, %v7494, %v7496
        %v7519 = vsel %vm2470, %v7496, %v7498
        %v7520 = vsel %vm2470, %v7498, %v7500
        %v7521 = vsel %vm2470, %v7500, %v7502
        %v7522 = vsel %vm2470, %v7502, %v7504
        %7544 = vst [vmem:[#allocation4 + $0xe0] sm:$0xfe] %v7505
        %7545 = vst [vmem:[#allocation4 + $0xe8] sm:$0xfe] %v7506
        %7546 = vst [vmem:[#allocation4 + $0xf0] sm:$0xfe] %v7507
        %7547 = vst [vmem:[#allocation4 + $0xf8] sm:$0xfe] %v7508
        %7548 = vst [vmem:[#allocation4 + $0x100] sm:$0xfe] %v7509
        %7549 = vst [vmem:[#allocation4 + $0x108] sm:$0xfe] %v7510
        %7550 = vst.msk [vmem:[#allocation4 + $0x110] sm:$0xfe] %vm689, %v7476
        %7551 = vst [vmem:[#allocation4 + $0x118] sm:$0xff] %v7511
        %7552 = vst [vmem:[#allocation4 + $0x120] sm:$0xff] %v7512
        %7553 = vst [vmem:[#allocation4 + $0x128] sm:$0xff] %v7513
        %7554 = vst [vmem:[#allocation4 + $0x130] sm:$0xff] %v7514
        %7555 = vst [vmem:[#allocation4 + $0x138] sm:$0xff] %v7515
        %7556 = vst [vmem:[#allocation4 + $0x140] sm:$0xff] %v7516
        %7557 = vst.msk [vmem:[#allocation4 + $0x148] sm:$0xff] %vm172, %v7490
        %7558 = vst [vmem:[#allocation4 + $0x150] sm:$0x1] %v7517
        %7559 = vst [vmem:[#allocation4 + $0x158] sm:$0x1] %v7518
        %7560 = vst [vmem:[#allocation4 + $0x160] sm:$0x1] %v7519
        %7561 = vst [vmem:[#allocation4 + $0x168] sm:$0x1] %v7520
        %7562 = vst [vmem:[#allocation4 + $0x170] sm:$0x1] %v7521
        %7563 = vst [vmem:[#allocation4 + $0x178] sm:$0x1] %v7522
        %7564 = vst.msk [vmem:[#allocation4 + $0x180] sm:$0x1] %vm697, %v7504
        %v7565 = vld [vmem:[#allocation3] sm:$0xff]
        %v7566 = vld [vmem:[#allocation3 + $0x8] sm:$0xff]
        %v7567 = vld [vmem:[#allocation3 + $0x10] sm:$0xff]
        %v7568 = vld [vmem:[#allocation3 + $0x18] sm:$0xff]
        %v7569 = vld [vmem:[#allocation3 + $0x20] sm:$0xff]
        %v7570 = vld [vmem:[#allocation3 + $0x28] sm:$0xff]
        %v7571 = vld [vmem:[#allocation3 + $0x30] sm:$0xff]
        %v7572 = vld [vmem:[#allocation3 + $0x40] sm:$0xff]
        %v7573 = vld [vmem:[#allocation3 + $0x48] sm:$0xff]
        %v7574 = vld [vmem:[#allocation3 + $0x50] sm:$0xff]
        %v7575 = vld [vmem:[#allocation3 + $0x58] sm:$0xff]
        %v7576 = vld [vmem:[#allocation3 + $0x60] sm:$0xff]
        %v7577 = vld [vmem:[#allocation3 + $0x68] sm:$0xff]
        %v7578 = vld [vmem:[#allocation3 + $0x70] sm:$0xff]
        %v7593 = vrot.slane %v7565, 7
        %v7594 = vrot.slane %v7566, 7
        %v7595 = vrot.slane %v7567, 7
        %v7596 = vrot.slane %v7568, 7
        %v7597 = vrot.slane %v7569, 7
        %v7598 = vrot.slane %v7570, 7
        %v7599 = vrot.slane %v7571, 7
        %v7600 = vrot.slane %v7572, 7
        %v7601 = vsel %vm1278, %v7593, %v7600
        %v7602 = vrot.slane %v7573, 7
        %v7603 = vsel %vm1278, %v7594, %v7602
        %v7604 = vrot.slane %v7574, 7
        %v7605 = vsel %vm1278, %v7595, %v7604
        %v7606 = vrot.slane %v7575, 7
        %v7607 = vsel %vm1278, %v7596, %v7606
        %v7608 = vrot.slane %v7576, 7
        %v7609 = vsel %vm1278, %v7597, %v7608
        %v7610 = vrot.slane %v7577, 7
        %v7611 = vsel %vm1278, %v7598, %v7610
        %v7612 = vrot.slane %v7578, 7
        %v7613 = vsel %vm1278, %v7599, %v7612
        %7614 = vrot.lane.b32.xlu0 %v7593, 72
        %v7615 = vpop.permute.xlu0 %7614
        %7616 = vrot.lane.b32.xlu0 %v7594, 72
        %v7617 = vpop.permute.xlu0 %7616
        %7618 = vrot.lane.b32.xlu0 %v7595, 72
        %v7619 = vpop.permute.xlu0 %7618
        %7620 = vrot.lane.b32.xlu0 %v7596, 72
        %v7621 = vpop.permute.xlu0 %7620
        %7622 = vrot.lane.b32.xlu0 %v7597, 72
        %v7623 = vpop.permute.xlu0 %7622
        %7624 = vrot.lane.b32.xlu0 %v7598, 72
        %v7625 = vpop.permute.xlu0 %7624
        %7626 = vrot.lane.b32.xlu0 %v7599, 72
        %v7627 = vpop.permute.xlu0 %7626
        %7628 = vrot.lane.b32.xlu0 %v7601, 72
        %v7629 = vpop.permute.xlu0 %7628
        %7630 = vrot.lane.b32.xlu0 %v7603, 72
        %v7631 = vpop.permute.xlu0 %7630
        %7632 = vrot.lane.b32.xlu0 %v7605, 72
        %v7633 = vpop.permute.xlu0 %7632
        %7634 = vrot.lane.b32.xlu0 %v7607, 72
        %v7635 = vpop.permute.xlu0 %7634
        %7636 = vrot.lane.b32.xlu0 %v7609, 72
        %v7637 = vpop.permute.xlu0 %7636
        %7638 = vrot.lane.b32.xlu0 %v7611, 72
        %v7639 = vpop.permute.xlu0 %7638
        %7640 = vrot.lane.b32.xlu0 %v7613, 72
        %v7641 = vpop.permute.xlu0 %7640
        %7642 = vrot.lane.b32.xlu0 %v7600, 72
        %v7643 = vpop.permute.xlu0 %7642
        %7644 = vrot.lane.b32.xlu0 %v7602, 72
        %v7645 = vpop.permute.xlu0 %7644
        %7646 = vrot.lane.b32.xlu0 %v7604, 72
        %v7647 = vpop.permute.xlu0 %7646
        %7648 = vrot.lane.b32.xlu0 %v7606, 72
        %v7649 = vpop.permute.xlu0 %7648
        %7650 = vrot.lane.b32.xlu0 %v7608, 72
        %v7651 = vpop.permute.xlu0 %7650
        %7652 = vrot.lane.b32.xlu0 %v7610, 72
        %v7653 = vpop.permute.xlu0 %7652
        %7654 = vrot.lane.b32.xlu0 %v7612, 72
        %v7655 = vpop.permute.xlu0 %7654
        %v7656 = vsel %vm285, %v7615, %v7617
        %v7657 = vsel %vm285, %v7617, %v7619
        %v7658 = vsel %vm285, %v7619, %v7621
        %v7659 = vsel %vm285, %v7621, %v7623
        %v7660 = vsel %vm285, %v7623, %v7625
        %v7661 = vsel %vm285, %v7625, %v7627
        %v7662 = vsel %vm285, %v7629, %v7631
        %v7663 = vsel %vm285, %v7631, %v7633
        %v7664 = vsel %vm285, %v7633, %v7635
        %v7665 = vsel %vm285, %v7635, %v7637
        %v7666 = vsel %vm285, %v7637, %v7639
        %v7667 = vsel %vm285, %v7639, %v7641
        %v7668 = vsel %vm285, %v7643, %v7645
        %v7669 = vsel %vm285, %v7645, %v7647
        %v7670 = vsel %vm285, %v7647, %v7649
        %v7671 = vsel %vm285, %v7649, %v7651
        %v7672 = vsel %vm285, %v7651, %v7653
        %v7673 = vsel %vm285, %v7653, %v7655
        %7695 = vst [vmem:[#allocation4 + $0x150] sm:$0xfe] %v7656
        %7696 = vst [vmem:[#allocation4 + $0x158] sm:$0xfe] %v7657
        %7697 = vst [vmem:[#allocation4 + $0x160] sm:$0xfe] %v7658
        %7698 = vst [vmem:[#allocation4 + $0x168] sm:$0xfe] %v7659
        %7699 = vst [vmem:[#allocation4 + $0x170] sm:$0xfe] %v7660
        %7700 = vst [vmem:[#allocation4 + $0x178] sm:$0xfe] %v7661
        %7701 = vst.msk [vmem:[#allocation4 + $0x180] sm:$0xfe] %vm689, %v7627
        %7702 = vst [vmem:[#allocation4 + $0x188] sm:$0xff] %v7662
        %7703 = vst [vmem:[#allocation4 + $0x190] sm:$0xff] %v7663
        %7704 = vst [vmem:[#allocation4 + $0x198] sm:$0xff] %v7664
        %7705 = vst [vmem:[#allocation4 + $0x1a0] sm:$0xff] %v7665
        %7706 = vst [vmem:[#allocation4 + $0x1a8] sm:$0xff] %v7666
        %7707 = vst [vmem:[#allocation4 + $0x1b0] sm:$0xff] %v7667
        %7708 = vst.msk [vmem:[#allocation4 + $0x1b8] sm:$0xff] %vm172, %v7641
        %7709 = vst [vmem:[#allocation4 + $0x1c0] sm:$0x1] %v7668
        %7710 = vst [vmem:[#allocation4 + $0x1c8] sm:$0x1] %v7669
        %7711 = vst [vmem:[#allocation4 + $0x1d0] sm:$0x1] %v7670
        %7712 = vst [vmem:[#allocation4 + $0x1d8] sm:$0x1] %v7671
        %7713 = vst [vmem:[#allocation4 + $0x1e0] sm:$0x1] %v7672
        %7714 = vst [vmem:[#allocation4 + $0x1e8] sm:$0x1] %v7673
        %7715 = vst.msk [vmem:[#allocation4 + $0x1f0] sm:$0x1] %vm697, %v7655
        %v7716 = vld [vmem:[#allocation3] sm:$0xff]
        %v7717 = vld [vmem:[#allocation3 + $0x8] sm:$0xff]
        %v7718 = vld [vmem:[#allocation3 + $0x10] sm:$0xff]
        %v7719 = vld [vmem:[#allocation3 + $0x18] sm:$0xff]
        %v7720 = vld [vmem:[#allocation3 + $0x20] sm:$0xff]
        %v7721 = vld [vmem:[#allocation3 + $0x28] sm:$0xff]
        %v7722 = vld [vmem:[#allocation3 + $0x30] sm:$0xff]
        %v7723 = vld [vmem:[#allocation3 + $0x40] sm:$0xff]
        %v7724 = vld [vmem:[#allocation3 + $0x48] sm:$0xff]
        %v7725 = vld [vmem:[#allocation3 + $0x50] sm:$0xff]
        %v7726 = vld [vmem:[#allocation3 + $0x58] sm:$0xff]
        %v7727 = vld [vmem:[#allocation3 + $0x60] sm:$0xff]
        %v7728 = vld [vmem:[#allocation3 + $0x68] sm:$0xff]
        %v7729 = vld [vmem:[#allocation3 + $0x70] sm:$0xff]
        %v7744 = vrot.slane %v7716, 7
        %v7745 = vrot.slane %v7717, 7
        %v7746 = vrot.slane %v7718, 7
        %v7747 = vrot.slane %v7719, 7
        %v7748 = vrot.slane %v7720, 7
        %v7749 = vrot.slane %v7721, 7
        %v7750 = vrot.slane %v7722, 7
        %v7751 = vrot.slane %v7723, 7
        %v7752 = vsel %vm1278, %v7744, %v7751
        %v7753 = vrot.slane %v7724, 7
        %v7754 = vsel %vm1278, %v7745, %v7753
        %v7755 = vrot.slane %v7725, 7
        %v7756 = vsel %vm1278, %v7746, %v7755
        %v7757 = vrot.slane %v7726, 7
        %v7758 = vsel %vm1278, %v7747, %v7757
        %v7759 = vrot.slane %v7727, 7
        %v7760 = vsel %vm1278, %v7748, %v7759
        %v7761 = vrot.slane %v7728, 7
        %v7762 = vsel %vm1278, %v7749, %v7761
        %v7763 = vrot.slane %v7729, 7
        %v7764 = vsel %vm1278, %v7750, %v7763
        %7765 = vrot.lane.b32.xlu0 %v7744, 70
        %v7766 = vpop.permute.xlu0 %7765
        %7767 = vrot.lane.b32.xlu0 %v7745, 70
        %v7768 = vpop.permute.xlu0 %7767
        %7769 = vrot.lane.b32.xlu0 %v7746, 70
        %v7770 = vpop.permute.xlu0 %7769
        %7771 = vrot.lane.b32.xlu0 %v7747, 70
        %v7772 = vpop.permute.xlu0 %7771
        %7773 = vrot.lane.b32.xlu0 %v7748, 70
        %v7774 = vpop.permute.xlu0 %7773
        %7775 = vrot.lane.b32.xlu0 %v7749, 70
        %v7776 = vpop.permute.xlu0 %7775
        %7777 = vrot.lane.b32.xlu0 %v7750, 70
        %v7778 = vpop.permute.xlu0 %7777
        %7779 = vrot.lane.b32.xlu0 %v7752, 70
        %v7780 = vpop.permute.xlu0 %7779
        %7781 = vrot.lane.b32.xlu0 %v7754, 70
        %v7782 = vpop.permute.xlu0 %7781
        %7783 = vrot.lane.b32.xlu0 %v7756, 70
        %v7784 = vpop.permute.xlu0 %7783
        %7785 = vrot.lane.b32.xlu0 %v7758, 70
        %v7786 = vpop.permute.xlu0 %7785
        %7787 = vrot.lane.b32.xlu0 %v7760, 70
        %v7788 = vpop.permute.xlu0 %7787
        %7789 = vrot.lane.b32.xlu0 %v7762, 70
        %v7790 = vpop.permute.xlu0 %7789
        %7791 = vrot.lane.b32.xlu0 %v7764, 70
        %v7792 = vpop.permute.xlu0 %7791
        %7793 = vrot.lane.b32.xlu0 %v7751, 70
        %v7794 = vpop.permute.xlu0 %7793
        %7795 = vrot.lane.b32.xlu0 %v7753, 70
        %v7796 = vpop.permute.xlu0 %7795
        %7797 = vrot.lane.b32.xlu0 %v7755, 70
        %v7798 = vpop.permute.xlu0 %7797
        %7799 = vrot.lane.b32.xlu0 %v7757, 70
        %v7800 = vpop.permute.xlu0 %7799
        %7801 = vrot.lane.b32.xlu0 %v7759, 70
        %v7802 = vpop.permute.xlu0 %7801
        %7803 = vrot.lane.b32.xlu0 %v7761, 70
        %v7804 = vpop.permute.xlu0 %7803
        %7805 = vrot.lane.b32.xlu0 %v7763, 70
        %v7806 = vpop.permute.xlu0 %7805
        %v7807 = vsel %vm311, %v7766, %v7768
        %v7808 = vsel %vm311, %v7768, %v7770
        %v7809 = vsel %vm311, %v7770, %v7772
        %v7810 = vsel %vm311, %v7772, %v7774
        %v7811 = vsel %vm311, %v7774, %v7776
        %v7812 = vsel %vm311, %v7776, %v7778
        %v7813 = vsel %vm311, %v7780, %v7782
        %v7814 = vsel %vm311, %v7782, %v7784
        %v7815 = vsel %vm311, %v7784, %v7786
        %v7816 = vsel %vm311, %v7786, %v7788
        %v7817 = vsel %vm311, %v7788, %v7790
        %v7818 = vsel %vm311, %v7790, %v7792
        %v7819 = vsel %vm311, %v7794, %v7796
        %v7820 = vsel %vm311, %v7796, %v7798
        %v7821 = vsel %vm311, %v7798, %v7800
        %v7822 = vsel %vm311, %v7800, %v7802
        %v7823 = vsel %vm311, %v7802, %v7804
        %v7824 = vsel %vm311, %v7804, %v7806
        %7846 = vst [vmem:[#allocation4 + $0x1c0] sm:$0xfe] %v7807
        %7847 = vst [vmem:[#allocation4 + $0x1c8] sm:$0xfe] %v7808
        %7848 = vst [vmem:[#allocation4 + $0x1d0] sm:$0xfe] %v7809
        %7849 = vst [vmem:[#allocation4 + $0x1d8] sm:$0xfe] %v7810
        %7850 = vst [vmem:[#allocation4 + $0x1e0] sm:$0xfe] %v7811
        %7851 = vst [vmem:[#allocation4 + $0x1e8] sm:$0xfe] %v7812
        %7852 = vst.msk [vmem:[#allocation4 + $0x1f0] sm:$0xfe] %vm689, %v7778
        %7853 = vst [vmem:[#allocation4 + $0x1f8] sm:$0xff] %v7813
        %7854 = vst [vmem:[#allocation4 + $0x200] sm:$0xff] %v7814
        %7855 = vst [vmem:[#allocation4 + $0x208] sm:$0xff] %v7815
        %7856 = vst [vmem:[#allocation4 + $0x210] sm:$0xff] %v7816
        %7857 = vst [vmem:[#allocation4 + $0x218] sm:$0xff] %v7817
        %7858 = vst [vmem:[#allocation4 + $0x220] sm:$0xff] %v7818
        %7859 = vst.msk [vmem:[#allocation4 + $0x228] sm:$0xff] %vm172, %v7792
        %7860 = vst [vmem:[#allocation4 + $0x230] sm:$0x1] %v7819
        %7861 = vst [vmem:[#allocation4 + $0x238] sm:$0x1] %v7820
        %7862 = vst [vmem:[#allocation4 + $0x240] sm:$0x1] %v7821
        %7863 = vst [vmem:[#allocation4 + $0x248] sm:$0x1] %v7822
        %7864 = vst [vmem:[#allocation4 + $0x250] sm:$0x1] %v7823
        %7865 = vst [vmem:[#allocation4 + $0x258] sm:$0x1] %v7824
        %7866 = vst.msk [vmem:[#allocation4 + $0x260] sm:$0x1] %vm697, %v7806
        %v7867 = vld [vmem:[#allocation3] sm:$0xff]
        %v7868 = vld [vmem:[#allocation3 + $0x8] sm:$0xff]
        %v7869 = vld [vmem:[#allocation3 + $0x10] sm:$0xff]
        %v7870 = vld [vmem:[#allocation3 + $0x18] sm:$0xff]
        %v7871 = vld [vmem:[#allocation3 + $0x20] sm:$0xff]
        %v7872 = vld [vmem:[#allocation3 + $0x28] sm:$0xff]
        %v7873 = vld [vmem:[#allocation3 + $0x30] sm:$0xff]
        %v7874 = vld [vmem:[#allocation3 + $0x40] sm:$0xff]
        %v7875 = vld [vmem:[#allocation3 + $0x48] sm:$0xff]
        %v7876 = vld [vmem:[#allocation3 + $0x50] sm:$0xff]
        %v7877 = vld [vmem:[#allocation3 + $0x58] sm:$0xff]
        %v7878 = vld [vmem:[#allocation3 + $0x60] sm:$0xff]
        %v7879 = vld [vmem:[#allocation3 + $0x68] sm:$0xff]
        %v7880 = vld [vmem:[#allocation3 + $0x70] sm:$0xff]
        %v7895 = vrot.slane %v7867, 7
        %v7896 = vrot.slane %v7868, 7
        %v7897 = vrot.slane %v7869, 7
        %v7898 = vrot.slane %v7870, 7
        %v7899 = vrot.slane %v7871, 7
        %v7900 = vrot.slane %v7872, 7
        %v7901 = vrot.slane %v7873, 7
        %v7902 = vrot.slane %v7874, 7
        %v7903 = vsel %vm1278, %v7895, %v7902
        %v7904 = vrot.slane %v7875, 7
        %v7905 = vsel %vm1278, %v7896, %v7904
        %v7906 = vrot.slane %v7876, 7
        %v7907 = vsel %vm1278, %v7897, %v7906
        %v7908 = vrot.slane %v7877, 7
        %v7909 = vsel %vm1278, %v7898, %v7908
        %v7910 = vrot.slane %v7878, 7
        %v7911 = vsel %vm1278, %v7899, %v7910
        %v7912 = vrot.slane %v7879, 7
        %v7913 = vsel %vm1278, %v7900, %v7912
        %v7914 = vrot.slane %v7880, 7
        %v7915 = vsel %vm1278, %v7901, %v7914
        %7916 = vrot.lane.b32.xlu0 %v7895, 68
        %v7917 = vpop.permute.xlu0 %7916
        %7918 = vrot.lane.b32.xlu0 %v7896, 68
        %v7919 = vpop.permute.xlu0 %7918
        %7920 = vrot.lane.b32.xlu0 %v7897, 68
        %v7921 = vpop.permute.xlu0 %7920
        %7922 = vrot.lane.b32.xlu0 %v7898, 68
        %v7923 = vpop.permute.xlu0 %7922
        %7924 = vrot.lane.b32.xlu0 %v7899, 68
        %v7925 = vpop.permute.xlu0 %7924
        %7926 = vrot.lane.b32.xlu0 %v7900, 68
        %v7927 = vpop.permute.xlu0 %7926
        %7928 = vrot.lane.b32.xlu0 %v7901, 68
        %v7929 = vpop.permute.xlu0 %7928
        %7930 = vrot.lane.b32.xlu0 %v7903, 68
        %v7931 = vpop.permute.xlu0 %7930
        %7932 = vrot.lane.b32.xlu0 %v7905, 68
        %v7933 = vpop.permute.xlu0 %7932
        %7934 = vrot.lane.b32.xlu0 %v7907, 68
        %v7935 = vpop.permute.xlu0 %7934
        %7936 = vrot.lane.b32.xlu0 %v7909, 68
        %v7937 = vpop.permute.xlu0 %7936
        %7938 = vrot.lane.b32.xlu0 %v7911, 68
        %v7939 = vpop.permute.xlu0 %7938
        %7940 = vrot.lane.b32.xlu0 %v7913, 68
        %v7941 = vpop.permute.xlu0 %7940
        %7942 = vrot.lane.b32.xlu0 %v7915, 68
        %v7943 = vpop.permute.xlu0 %7942
        %7944 = vrot.lane.b32.xlu0 %v7902, 68
        %v7945 = vpop.permute.xlu0 %7944
        %7946 = vrot.lane.b32.xlu0 %v7904, 68
        %v7947 = vpop.permute.xlu0 %7946
        %7948 = vrot.lane.b32.xlu0 %v7906, 68
        %v7949 = vpop.permute.xlu0 %7948
        %7950 = vrot.lane.b32.xlu0 %v7908, 68
        %v7951 = vpop.permute.xlu0 %7950
        %7952 = vrot.lane.b32.xlu0 %v7910, 68
        %v7953 = vpop.permute.xlu0 %7952
        %7954 = vrot.lane.b32.xlu0 %v7912, 68
        %v7955 = vpop.permute.xlu0 %7954
        %7956 = vrot.lane.b32.xlu0 %v7914, 68
        %v7957 = vpop.permute.xlu0 %7956
        %v7958 = vsel %vm2860, %v7917, %v7919
        %v7959 = vsel %vm2860, %v7919, %v7921
        %v7960 = vsel %vm2860, %v7921, %v7923
        %v7961 = vsel %vm2860, %v7923, %v7925
        %v7962 = vsel %vm2860, %v7925, %v7927
        %v7963 = vsel %vm2860, %v7927, %v7929
        %v7964 = vsel %vm2860, %v7931, %v7933
        %v7965 = vsel %vm2860, %v7933, %v7935
        %v7966 = vsel %vm2860, %v7935, %v7937
        %v7967 = vsel %vm2860, %v7937, %v7939
        %v7968 = vsel %vm2860, %v7939, %v7941
        %v7969 = vsel %vm2860, %v7941, %v7943
        %v7970 = vsel %vm2860, %v7945, %v7947
        %v7971 = vsel %vm2860, %v7947, %v7949
        %v7972 = vsel %vm2860, %v7949, %v7951
        %v7973 = vsel %vm2860, %v7951, %v7953
        %v7974 = vsel %vm2860, %v7953, %v7955
        %v7975 = vsel %vm2860, %v7955, %v7957
        %7997 = vst [vmem:[#allocation4 + $0x230] sm:$0xfe] %v7958
        %7998 = vst [vmem:[#allocation4 + $0x238] sm:$0xfe] %v7959
        %7999 = vst [vmem:[#allocation4 + $0x240] sm:$0xfe] %v7960
        %8000 = vst [vmem:[#allocation4 + $0x248] sm:$0xfe] %v7961
        %8001 = vst [vmem:[#allocation4 + $0x250] sm:$0xfe] %v7962
        %8002 = vst [vmem:[#allocation4 + $0x258] sm:$0xfe] %v7963
        %8003 = vst.msk [vmem:[#allocation4 + $0x260] sm:$0xfe] %vm689, %v7929
        %8004 = vst [vmem:[#allocation4 + $0x268] sm:$0xff] %v7964
        %8005 = vst [vmem:[#allocation4 + $0x270] sm:$0xff] %v7965
        %8006 = vst [vmem:[#allocation4 + $0x278] sm:$0xff] %v7966
        %8007 = vst [vmem:[#allocation4 + $0x280] sm:$0xff] %v7967
        %8008 = vst [vmem:[#allocation4 + $0x288] sm:$0xff] %v7968
        %8009 = vst [vmem:[#allocation4 + $0x290] sm:$0xff] %v7969
        %8010 = vst.msk [vmem:[#allocation4 + $0x298] sm:$0xff] %vm172, %v7943
        %8011 = vst [vmem:[#allocation4 + $0x2a0] sm:$0x1] %v7970
        %8012 = vst [vmem:[#allocation4 + $0x2a8] sm:$0x1] %v7971
        %8013 = vst [vmem:[#allocation4 + $0x2b0] sm:$0x1] %v7972
        %8014 = vst [vmem:[#allocation4 + $0x2b8] sm:$0x1] %v7973
        %8015 = vst [vmem:[#allocation4 + $0x2c0] sm:$0x1] %v7974
        %8016 = vst [vmem:[#allocation4 + $0x2c8] sm:$0x1] %v7975
        %8017 = vst.msk [vmem:[#allocation4 + $0x2d0] sm:$0x1] %vm697, %v7957
        %v8018 = vld [vmem:[#allocation3] sm:$0xff]
        %v8019 = vld [vmem:[#allocation3 + $0x8] sm:$0xff]
        %v8020 = vld [vmem:[#allocation3 + $0x10] sm:$0xff]
        %v8021 = vld [vmem:[#allocation3 + $0x18] sm:$0xff]
        %v8022 = vld [vmem:[#allocation3 + $0x20] sm:$0xff]
        %v8023 = vld [vmem:[#allocation3 + $0x28] sm:$0xff]
        %v8024 = vld [vmem:[#allocation3 + $0x30] sm:$0xff]
        %v8025 = vld [vmem:[#allocation3 + $0x40] sm:$0xff]
        %v8026 = vld [vmem:[#allocation3 + $0x48] sm:$0xff]
        %v8027 = vld [vmem:[#allocation3 + $0x50] sm:$0xff]
        %v8028 = vld [vmem:[#allocation3 + $0x58] sm:$0xff]
        %v8029 = vld [vmem:[#allocation3 + $0x60] sm:$0xff]
        %v8030 = vld [vmem:[#allocation3 + $0x68] sm:$0xff]
        %v8031 = vld [vmem:[#allocation3 + $0x70] sm:$0xff]
        %v8046 = vrot.slane %v8018, 7
        %v8047 = vrot.slane %v8019, 7
        %v8048 = vrot.slane %v8020, 7
        %v8049 = vrot.slane %v8021, 7
        %v8050 = vrot.slane %v8022, 7
        %v8051 = vrot.slane %v8023, 7
        %v8052 = vrot.slane %v8024, 7
        %v8053 = vrot.slane %v8025, 7
        %v8054 = vsel %vm1278, %v8046, %v8053
        %v8055 = vrot.slane %v8026, 7
        %v8056 = vsel %vm1278, %v8047, %v8055
        %v8057 = vrot.slane %v8027, 7
        %v8058 = vsel %vm1278, %v8048, %v8057
        %v8059 = vrot.slane %v8028, 7
        %v8060 = vsel %vm1278, %v8049, %v8059
        %v8061 = vrot.slane %v8029, 7
        %v8062 = vsel %vm1278, %v8050, %v8061
        %v8063 = vrot.slane %v8030, 7
        %v8064 = vsel %vm1278, %v8051, %v8063
        %v8065 = vrot.slane %v8031, 7
        %v8066 = vsel %vm1278, %v8052, %v8065
        %8067 = vrot.lane.b32.xlu0 %v8046, 16
        %v8068 = vpop.permute.xlu0 %8067
        %8069 = vrot.lane.b32.xlu0 %v8047, 16
        %v8070 = vpop.permute.xlu0 %8069
        %8071 = vrot.lane.b32.xlu0 %v8048, 16
        %v8072 = vpop.permute.xlu0 %8071
        %8073 = vrot.lane.b32.xlu0 %v8049, 16
        %v8074 = vpop.permute.xlu0 %8073
        %8075 = vrot.lane.b32.xlu0 %v8050, 16
        %v8076 = vpop.permute.xlu0 %8075
        %8077 = vrot.lane.b32.xlu0 %v8051, 16
        %v8078 = vpop.permute.xlu0 %8077
        %8079 = vrot.lane.b32.xlu0 %v8052, 16
        %v8080 = vpop.permute.xlu0 %8079
        %8081 = vrot.lane.b32.xlu0 %v8054, 16
        %v8082 = vpop.permute.xlu0 %8081
        %8083 = vrot.lane.b32.xlu0 %v8056, 16
        %v8084 = vpop.permute.xlu0 %8083
        %8085 = vrot.lane.b32.xlu0 %v8058, 16
        %v8086 = vpop.permute.xlu0 %8085
        %8087 = vrot.lane.b32.xlu0 %v8060, 16
        %v8088 = vpop.permute.xlu0 %8087
        %8089 = vrot.lane.b32.xlu0 %v8062, 16
        %v8090 = vpop.permute.xlu0 %8089
        %8091 = vrot.lane.b32.xlu0 %v8064, 16
        %v8092 = vpop.permute.xlu0 %8091
        %8093 = vrot.lane.b32.xlu0 %v8066, 16
        %v8094 = vpop.permute.xlu0 %8093
        %8095 = vrot.lane.b32.xlu0 %v8053, 16
        %v8096 = vpop.permute.xlu0 %8095
        %8097 = vrot.lane.b32.xlu0 %v8055, 16
        %v8098 = vpop.permute.xlu0 %8097
        %8099 = vrot.lane.b32.xlu0 %v8057, 16
        %v8100 = vpop.permute.xlu0 %8099
        %8101 = vrot.lane.b32.xlu0 %v8059, 16
        %v8102 = vpop.permute.xlu0 %8101
        %8103 = vrot.lane.b32.xlu0 %v8061, 16
        %v8104 = vpop.permute.xlu0 %8103
        %8105 = vrot.lane.b32.xlu0 %v8063, 16
        %v8106 = vpop.permute.xlu0 %8105
        %8107 = vrot.lane.b32.xlu0 %v8065, 16
        %v8108 = vpop.permute.xlu0 %8107
        %v8109 = vsel %vm172, %v8068, %v8070
        %v8110 = vsel %vm172, %v8070, %v8072
        %v8111 = vsel %vm172, %v8072, %v8074
        %v8112 = vsel %vm172, %v8074, %v8076
        %v8113 = vsel %vm172, %v8076, %v8078
        %v8114 = vsel %vm172, %v8078, %v8080
        %v8115 = vsel %vm172, %v8082, %v8084
        %v8116 = vsel %vm172, %v8084, %v8086
        %v8117 = vsel %vm172, %v8086, %v8088
        %v8118 = vsel %vm172, %v8088, %v8090
        %v8119 = vsel %vm172, %v8090, %v8092
        %v8120 = vsel %vm172, %v8092, %v8094
        %v8121 = vsel %vm172, %v8096, %v8098
        %v8122 = vsel %vm172, %v8098, %v8100
        %v8123 = vsel %vm172, %v8100, %v8102
        %v8124 = vsel %vm172, %v8102, %v8104
        %v8125 = vsel %vm172, %v8104, %v8106
        %v8126 = vsel %vm172, %v8106, %v8108
        %8148 = vst [vmem:[#allocation4 + $0x2a0] sm:$0xfe] %v8109
        %8149 = vst [vmem:[#allocation4 + $0x2a8] sm:$0xfe] %v8110
        %8150 = vst [vmem:[#allocation4 + $0x2b0] sm:$0xfe] %v8111
        %8151 = vst [vmem:[#allocation4 + $0x2b8] sm:$0xfe] %v8112
        %8152 = vst [vmem:[#allocation4 + $0x2c0] sm:$0xfe] %v8113
        %8153 = vst [vmem:[#allocation4 + $0x2c8] sm:$0xfe] %v8114
        %8154 = vst.msk [vmem:[#allocation4 + $0x2d0] sm:$0xfe] %vm689, %v8080
        %8155 = vst [vmem:[#allocation4 + $0x2d8] sm:$0xff] %v8115
        %8156 = vst [vmem:[#allocation4 + $0x2e0] sm:$0xff] %v8116
        %8157 = vst [vmem:[#allocation4 + $0x2e8] sm:$0xff] %v8117
        %8158 = vst [vmem:[#allocation4 + $0x2f0] sm:$0xff] %v8118
        %8159 = vst [vmem:[#allocation4 + $0x2f8] sm:$0xff] %v8119
        %8160 = vst [vmem:[#allocation4 + $0x300] sm:$0xff] %v8120
        %8161 = vst.msk [vmem:[#allocation4 + $0x308] sm:$0xff] %vm172, %v8094
        %8162 = vst [vmem:[#allocation4 + $0x310] sm:$0x1] %v8121
        %8163 = vst [vmem:[#allocation4 + $0x318] sm:$0x1] %v8122
        %8164 = vst [vmem:[#allocation4 + $0x320] sm:$0x1] %v8123
        %8165 = vst [vmem:[#allocation4 + $0x328] sm:$0x1] %v8124
        %8166 = vst [vmem:[#allocation4 + $0x330] sm:$0x1] %v8125
        %8167 = vst [vmem:[#allocation4 + $0x338] sm:$0x1] %v8126
        %8168 = vst.msk [vmem:[#allocation4 + $0x340] sm:$0x1] %vm697, %v8108
        %v8169 = vld [vmem:[#allocation3] sm:$0xff]
        %v8170 = vld [vmem:[#allocation3 + $0x8] sm:$0xff]
        %v8171 = vld [vmem:[#allocation3 + $0x10] sm:$0xff]
        %v8172 = vld [vmem:[#allocation3 + $0x18] sm:$0xff]
        %v8173 = vld [vmem:[#allocation3 + $0x20] sm:$0xff]
        %v8174 = vld [vmem:[#allocation3 + $0x28] sm:$0xff]
        %v8175 = vld [vmem:[#allocation3 + $0x30] sm:$0xff]
        %v8176 = vld [vmem:[#allocation3 + $0x38] sm:$0xff]
        %v8177 = vld [vmem:[#allocation3 + $0x40] sm:$0xff]
        %v8178 = vld [vmem:[#allocation3 + $0x48] sm:$0xff]
        %v8179 = vld [vmem:[#allocation3 + $0x50] sm:$0xff]
        %v8180 = vld [vmem:[#allocation3 + $0x58] sm:$0xff]
        %v8181 = vld [vmem:[#allocation3 + $0x60] sm:$0xff]
        %v8182 = vld [vmem:[#allocation3 + $0x68] sm:$0xff]
        %v8183 = vld [vmem:[#allocation3 + $0x70] sm:$0xff]
        %v8184 = vld [vmem:[#allocation3 + $0x78] sm:$0xff]
        %v8201 = vrot.slane %v8169, 7
        %v8202 = vrot.slane %v8170, 7
        %v8203 = vrot.slane %v8171, 7
        %v8204 = vrot.slane %v8172, 7
        %v8205 = vrot.slane %v8173, 7
        %v8206 = vrot.slane %v8174, 7
        %v8207 = vrot.slane %v8175, 7
        %v8208 = vrot.slane %v8176, 7
        %v8209 = vrot.slane %v8177, 7
        %v8210 = vsel %vm1278, %v8201, %v8209
        %v8211 = vrot.slane %v8178, 7
        %v8212 = vsel %vm1278, %v8202, %v8211
        %v8213 = vrot.slane %v8179, 7
        %v8214 = vsel %vm1278, %v8203, %v8213
        %v8215 = vrot.slane %v8180, 7
        %v8216 = vsel %vm1278, %v8204, %v8215
        %v8217 = vrot.slane %v8181, 7
        %v8218 = vsel %vm1278, %v8205, %v8217
        %v8219 = vrot.slane %v8182, 7
        %v8220 = vsel %vm1278, %v8206, %v8219
        %v8221 = vrot.slane %v8183, 7
        %v8222 = vsel %vm1278, %v8207, %v8221
        %v8223 = vrot.slane %v8184, 7
        %v8224 = vsel %vm1278, %v8208, %v8223
        %8225 = vrot.lane.b32.xlu0 %v8201, 14
        %v8226 = vpop.permute.xlu0 %8225
        %8227 = vrot.lane.b32.xlu0 %v8202, 14
        %v8228 = vpop.permute.xlu0 %8227
        %8229 = vrot.lane.b32.xlu0 %v8203, 14
        %v8230 = vpop.permute.xlu0 %8229
        %8231 = vrot.lane.b32.xlu0 %v8204, 14
        %v8232 = vpop.permute.xlu0 %8231
        %8233 = vrot.lane.b32.xlu0 %v8205, 14
        %v8234 = vpop.permute.xlu0 %8233
        %8235 = vrot.lane.b32.xlu0 %v8206, 14
        %v8236 = vpop.permute.xlu0 %8235
        %8237 = vrot.lane.b32.xlu0 %v8207, 14
        %v8238 = vpop.permute.xlu0 %8237
        %8239 = vrot.lane.b32.xlu0 %v8208, 14
        %v8240 = vpop.permute.xlu0 %8239
        %8241 = vrot.lane.b32.xlu0 %v8210, 14
        %v8242 = vpop.permute.xlu0 %8241
        %8243 = vrot.lane.b32.xlu0 %v8212, 14
        %v8244 = vpop.permute.xlu0 %8243
        %8245 = vrot.lane.b32.xlu0 %v8214, 14
        %v8246 = vpop.permute.xlu0 %8245
        %8247 = vrot.lane.b32.xlu0 %v8216, 14
        %v8248 = vpop.permute.xlu0 %8247
        %8249 = vrot.lane.b32.xlu0 %v8218, 14
        %v8250 = vpop.permute.xlu0 %8249
        %8251 = vrot.lane.b32.xlu0 %v8220, 14
        %v8252 = vpop.permute.xlu0 %8251
        %8253 = vrot.lane.b32.xlu0 %v8222, 14
        %v8254 = vpop.permute.xlu0 %8253
        %8255 = vrot.lane.b32.xlu0 %v8224, 14
        %v8256 = vpop.permute.xlu0 %8255
        %8257 = vrot.lane.b32.xlu0 %v8209, 14
        %v8258 = vpop.permute.xlu0 %8257
        %8259 = vrot.lane.b32.xlu0 %v8211, 14
        %v8260 = vpop.permute.xlu0 %8259
        %8261 = vrot.lane.b32.xlu0 %v8213, 14
        %v8262 = vpop.permute.xlu0 %8261
        %8263 = vrot.lane.b32.xlu0 %v8215, 14
        %v8264 = vpop.permute.xlu0 %8263
        %8265 = vrot.lane.b32.xlu0 %v8217, 14
        %v8266 = vpop.permute.xlu0 %8265
        %8267 = vrot.lane.b32.xlu0 %v8219, 14
        %v8268 = vpop.permute.xlu0 %8267
        %8269 = vrot.lane.b32.xlu0 %v8221, 14
        %v8270 = vpop.permute.xlu0 %8269
        %8271 = vrot.lane.b32.xlu0 %v8223, 14
        %v8272 = vpop.permute.xlu0 %8271
        %v8273 = vsel %vm3122, %v8226, %v8228
        %v8274 = vsel %vm3122, %v8228, %v8230
        %v8275 = vsel %vm3122, %v8230, %v8232
        %v8276 = vsel %vm3122, %v8232, %v8234
        %v8277 = vsel %vm3122, %v8234, %v8236
        %v8278 = vsel %vm3122, %v8236, %v8238
        %v8279 = vsel %vm3122, %v8238, %v8240
        %v8280 = vsel %vm3122, %v8242, %v8244
        %v8281 = vsel %vm3122, %v8244, %v8246
        %v8282 = vsel %vm3122, %v8246, %v8248
        %v8283 = vsel %vm3122, %v8248, %v8250
        %v8284 = vsel %vm3122, %v8250, %v8252
        %v8285 = vsel %vm3122, %v8252, %v8254
        %v8286 = vsel %vm3122, %v8254, %v8256
        %v8287 = vsel %vm3122, %v8258, %v8260
        %v8288 = vsel %vm3122, %v8260, %v8262
        %v8289 = vsel %vm3122, %v8262, %v8264
        %v8290 = vsel %vm3122, %v8264, %v8266
        %v8291 = vsel %vm3122, %v8266, %v8268
        %v8292 = vsel %vm3122, %v8268, %v8270
        %v8293 = vsel %vm3122, %v8270, %v8272
        %8315 = vst [vmem:[#allocation4 + $0x310] sm:$0xfe] %v8273
        %8316 = vst [vmem:[#allocation4 + $0x318] sm:$0xfe] %v8274
        %8317 = vst [vmem:[#allocation4 + $0x320] sm:$0xfe] %v8275
        %8318 = vst [vmem:[#allocation4 + $0x328] sm:$0xfe] %v8276
        %8319 = vst [vmem:[#allocation4 + $0x330] sm:$0xfe] %v8277
        %8320 = vst [vmem:[#allocation4 + $0x338] sm:$0xfe] %v8278
        %8321 = vst.msk [vmem:[#allocation4 + $0x340] sm:$0xfe] %vm689, %v8279
        %8322 = vst [vmem:[#allocation4 + $0x348] sm:$0xff] %v8280
        %8323 = vst [vmem:[#allocation4 + $0x350] sm:$0xff] %v8281
        %8324 = vst [vmem:[#allocation4 + $0x358] sm:$0xff] %v8282
        %8325 = vst [vmem:[#allocation4 + $0x360] sm:$0xff] %v8283
        %8326 = vst [vmem:[#allocation4 + $0x368] sm:$0xff] %v8284
        %8327 = vst [vmem:[#allocation4 + $0x370] sm:$0xff] %v8285
        %8328 = vst.msk [vmem:[#allocation4 + $0x378] sm:$0xff] %vm172, %v8286
        %8329 = vst [vmem:[#allocation4 + $0x380] sm:$0x1] %v8287
        %8330 = vst [vmem:[#allocation4 + $0x388] sm:$0x1] %v8288
        %8331 = vst [vmem:[#allocation4 + $0x390] sm:$0x1] %v8289
        %8332 = vst [vmem:[#allocation4 + $0x398] sm:$0x1] %v8290
        %8333 = vst [vmem:[#allocation4 + $0x3a0] sm:$0x1] %v8291
        %8334 = vst [vmem:[#allocation4 + $0x3a8] sm:$0x1] %v8292
        %8335 = vst.msk [vmem:[#allocation4 + $0x3b0] sm:$0x1] %vm697, %v8293
        %v8336 = vld [vmem:[#allocation3] sm:$0xff]
        %v8337 = vld [vmem:[#allocation3 + $0x8] sm:$0xff]
        %v8338 = vld [vmem:[#allocation3 + $0x10] sm:$0xff]
        %v8339 = vld [vmem:[#allocation3 + $0x18] sm:$0xff]
        %v8340 = vld [vmem:[#allocation3 + $0x20] sm:$0xff]
        %v8341 = vld [vmem:[#allocation3 + $0x28] sm:$0xff]
        %v8342 = vld [vmem:[#allocation3 + $0x30] sm:$0xff]
        %v8343 = vld [vmem:[#allocation3 + $0x38] sm:$0xff]
        %v8344 = vld [vmem:[#allocation3 + $0x40] sm:$0xff]
        %v8345 = vld [vmem:[#allocation3 + $0x48] sm:$0xff]
        %v8346 = vld [vmem:[#allocation3 + $0x50] sm:$0xff]
        %v8347 = vld [vmem:[#allocation3 + $0x58] sm:$0xff]
        %v8348 = vld [vmem:[#allocation3 + $0x60] sm:$0xff]
        %v8349 = vld [vmem:[#allocation3 + $0x68] sm:$0xff]
        %v8350 = vld [vmem:[#allocation3 + $0x70] sm:$0xff]
        %v8351 = vld [vmem:[#allocation3 + $0x78] sm:$0xff]
        %v8368 = vrot.slane %v8336, 7
        %v8369 = vrot.slane %v8337, 7
        %v8370 = vrot.slane %v8338, 7
        %v8371 = vrot.slane %v8339, 7
        %v8372 = vrot.slane %v8340, 7
        %v8373 = vrot.slane %v8341, 7
        %v8374 = vrot.slane %v8342, 7
        %v8375 = vrot.slane %v8343, 7
        %v8376 = vrot.slane %v8344, 7
        %v8377 = vsel %vm1278, %v8368, %v8376
        %v8378 = vrot.slane %v8345, 7
        %v8379 = vsel %vm1278, %v8369, %v8378
        %v8380 = vrot.slane %v8346, 7
        %v8381 = vsel %vm1278, %v8370, %v8380
        %v8382 = vrot.slane %v8347, 7
        %v8383 = vsel %vm1278, %v8371, %v8382
        %v8384 = vrot.slane %v8348, 7
        %v8385 = vsel %vm1278, %v8372, %v8384
        %v8386 = vrot.slane %v8349, 7
        %v8387 = vsel %vm1278, %v8373, %v8386
        %v8388 = vrot.slane %v8350, 7
        %v8389 = vsel %vm1278, %v8374, %v8388
        %v8390 = vrot.slane %v8351, 7
        %v8391 = vsel %vm1278, %v8375, %v8390
        %8392 = vrot.lane.b32.xlu0 %v8368, 12
        %v8393 = vpop.permute.xlu0 %8392
        %8394 = vrot.lane.b32.xlu0 %v8369, 12
        %v8395 = vpop.permute.xlu0 %8394
        %8396 = vrot.lane.b32.xlu0 %v8370, 12
        %v8397 = vpop.permute.xlu0 %8396
        %8398 = vrot.lane.b32.xlu0 %v8371, 12
        %v8399 = vpop.permute.xlu0 %8398
        %8400 = vrot.lane.b32.xlu0 %v8372, 12
        %v8401 = vpop.permute.xlu0 %8400
        %8402 = vrot.lane.b32.xlu0 %v8373, 12
        %v8403 = vpop.permute.xlu0 %8402
        %8404 = vrot.lane.b32.xlu0 %v8374, 12
        %v8405 = vpop.permute.xlu0 %8404
        %8406 = vrot.lane.b32.xlu0 %v8375, 12
        %v8407 = vpop.permute.xlu0 %8406
        %8408 = vrot.lane.b32.xlu0 %v8377, 12
        %v8409 = vpop.permute.xlu0 %8408
        %8410 = vrot.lane.b32.xlu0 %v8379, 12
        %v8411 = vpop.permute.xlu0 %8410
        %8412 = vrot.lane.b32.xlu0 %v8381, 12
        %v8413 = vpop.permute.xlu0 %8412
        %8414 = vrot.lane.b32.xlu0 %v8383, 12
        %v8415 = vpop.permute.xlu0 %8414
        %8416 = vrot.lane.b32.xlu0 %v8385, 12
        %v8417 = vpop.permute.xlu0 %8416
        %8418 = vrot.lane.b32.xlu0 %v8387, 12
        %v8419 = vpop.permute.xlu0 %8418
        %8420 = vrot.lane.b32.xlu0 %v8389, 12
        %v8421 = vpop.permute.xlu0 %8420
        %8422 = vrot.lane.b32.xlu0 %v8391, 12
        %v8423 = vpop.permute.xlu0 %8422
        %8424 = vrot.lane.b32.xlu0 %v8376, 12
        %v8425 = vpop.permute.xlu0 %8424
        %8426 = vrot.lane.b32.xlu0 %v8378, 12
        %v8427 = vpop.permute.xlu0 %8426
        %8428 = vrot.lane.b32.xlu0 %v8380, 12
        %v8429 = vpop.permute.xlu0 %8428
        %8430 = vrot.lane.b32.xlu0 %v8382, 12
        %v8431 = vpop.permute.xlu0 %8430
        %8432 = vrot.lane.b32.xlu0 %v8384, 12
        %v8433 = vpop.permute.xlu0 %8432
        %8434 = vrot.lane.b32.xlu0 %v8386, 12
        %v8435 = vpop.permute.xlu0 %8434
        %8436 = vrot.lane.b32.xlu0 %v8388, 12
        %v8437 = vpop.permute.xlu0 %8436
        %8438 = vrot.lane.b32.xlu0 %v8390, 12
        %v8439 = vpop.permute.xlu0 %8438
        %v8440 = vsel %vm3274, %v8393, %v8395
        %v8441 = vsel %vm3274, %v8395, %v8397
        %v8442 = vsel %vm3274, %v8397, %v8399
        %v8443 = vsel %vm3274, %v8399, %v8401
        %v8444 = vsel %vm3274, %v8401, %v8403
        %v8445 = vsel %vm3274, %v8403, %v8405
        %v8446 = vsel %vm3274, %v8405, %v8407
        %v8447 = vsel %vm3274, %v8409, %v8411
        %v8448 = vsel %vm3274, %v8411, %v8413
        %v8449 = vsel %vm3274, %v8413, %v8415
        %v8450 = vsel %vm3274, %v8415, %v8417
        %v8451 = vsel %vm3274, %v8417, %v8419
        %v8452 = vsel %vm3274, %v8419, %v8421
        %v8453 = vsel %vm3274, %v8421, %v8423
        %v8454 = vsel %vm3274, %v8425, %v8427
        %v8455 = vsel %vm3274, %v8427, %v8429
        %v8456 = vsel %vm3274, %v8429, %v8431
        %v8457 = vsel %vm3274, %v8431, %v8433
        %v8458 = vsel %vm3274, %v8433, %v8435
        %v8459 = vsel %vm3274, %v8435, %v8437
        %v8460 = vsel %vm3274, %v8437, %v8439
        %8482 = vst [vmem:[#allocation4 + $0x380] sm:$0xfe] %v8440
        %8483 = vst [vmem:[#allocation4 + $0x388] sm:$0xfe] %v8441
        %8484 = vst [vmem:[#allocation4 + $0x390] sm:$0xfe] %v8442
        %8485 = vst [vmem:[#allocation4 + $0x398] sm:$0xfe] %v8443
        %8486 = vst [vmem:[#allocation4 + $0x3a0] sm:$0xfe] %v8444
        %8487 = vst [vmem:[#allocation4 + $0x3a8] sm:$0xfe] %v8445
        %8488 = vst.msk [vmem:[#allocation4 + $0x3b0] sm:$0xfe] %vm689, %v8446
        %8489 = vst [vmem:[#allocation4 + $0x3b8] sm:$0xff] %v8447
        %8490 = vst [vmem:[#allocation4 + $0x3c0] sm:$0xff] %v8448
        %8491 = vst [vmem:[#allocation4 + $0x3c8] sm:$0xff] %v8449
        %8492 = vst [vmem:[#allocation4 + $0x3d0] sm:$0xff] %v8450
        %8493 = vst [vmem:[#allocation4 + $0x3d8] sm:$0xff] %v8451
        %8494 = vst [vmem:[#allocation4 + $0x3e0] sm:$0xff] %v8452
        %8495 = vst.msk [vmem:[#allocation4 + $0x3e8] sm:$0xff] %vm172, %v8453
        %8496 = vst [vmem:[#allocation4 + $0x3f0] sm:$0x1] %v8454
        %8497 = vst [vmem:[#allocation4 + $0x3f8] sm:$0x1] %v8455
        %8498 = vst [vmem:[#allocation4 + $0x400] sm:$0x1] %v8456
        %8499 = vst [vmem:[#allocation4 + $0x408] sm:$0x1] %v8457
        %8500 = vst [vmem:[#allocation4 + $0x410] sm:$0x1] %v8458
        %8501 = vst [vmem:[#allocation4 + $0x418] sm:$0x1] %v8459
        %8502 = vst.msk [vmem:[#allocation4 + $0x420] sm:$0x1] %vm697, %v8460
        %v8503 = vld [vmem:[%s1 + $0x18] sm:$0xff]
        %v8504 = vld [vmem:[%s1 + $0x20] sm:$0xff]
        %v8505 = vld [vmem:[%s1 + $0x40] sm:$0xff]
        %v8506 = vld [vmem:[%s1 + $0x48] sm:$0xff]
        %v8507 = vld [vmem:[#allocation4] sm:$0xff]
        %v8508 = vld [vmem:[#allocation4 + $0x8] sm:$0xff]
        %v8509 = vld [vmem:[#allocation4 + $0x10] sm:$0xff]
        %v8510 = vld [vmem:[#allocation4 + $0x18] sm:$0xff]
        %v8511 = vld [vmem:[#allocation4 + $0x20] sm:$0xff]
        %v8512 = vld [vmem:[#allocation4 + $0x28] sm:$0xff]
        %v8513 = vld [vmem:[#allocation4 + $0x30] sm:$0xff]
        %v8514 = vld [vmem:[#allocation4 + $0x38] sm:$0xff]
        %v8515 = vld [vmem:[#allocation4 + $0x40] sm:$0xff]
        %v8516 = vld [vmem:[#allocation4 + $0x48] sm:$0xff]
        %v8517 = vld [vmem:[#allocation4 + $0x50] sm:$0xff]
        %v8518 = vld [vmem:[#allocation4 + $0x58] sm:$0xff]
        %v8519 = vld [vmem:[#allocation4 + $0x60] sm:$0xff]
        %v8520 = vld [vmem:[#allocation4 + $0x68] sm:$0xff]
        %v8521 = vld [vmem:[#allocation4 + $0x70] sm:$0xff]
        %v8522 = vld [vmem:[#allocation4 + $0x78] sm:$0xff]
        %v8523 = vld [vmem:[#allocation4 + $0x80] sm:$0xff]
        %v8524 = vld [vmem:[#allocation4 + $0x88] sm:$0xff]
        %v8525 = vld [vmem:[#allocation4 + $0x90] sm:$0xff]
        %v8526 = vld [vmem:[#allocation4 + $0x98] sm:$0xff]
        %v8527 = vld [vmem:[#allocation4 + $0xa0] sm:$0xff]
        %v8528 = vld [vmem:[#allocation4 + $0xa8] sm:$0xff]
        %v8529 = vld [vmem:[#allocation4 + $0xb0] sm:$0xff]
        %v8530 = vld [vmem:[#allocation4 + $0xb8] sm:$0xff]
        %v8531 = vld [vmem:[#allocation4 + $0xc0] sm:$0xff]
        %v8532 = vld [vmem:[#allocation4 + $0xc8] sm:$0xff]
        %v8533 = vld [vmem:[#allocation4 + $0xd0] sm:$0xff]
        %v8534 = vld [vmem:[#allocation4 + $0xd8] sm:$0xff]
        %v8535 = vld [vmem:[#allocation4 + $0xe0] sm:$0xff]
        %v8536 = vld [vmem:[#allocation4 + $0xe8] sm:$0xff]
        %v8537 = vld [vmem:[#allocation4 + $0xf0] sm:$0xff]
        %v8538 = vld [vmem:[#allocation4 + $0xf8] sm:$0xff]
        %v8539 = vld [vmem:[#allocation4 + $0x100] sm:$0xff]
        %v8540 = vld [vmem:[#allocation4 + $0x108] sm:$0xff]
        %v8541 = vld [vmem:[#allocation4 + $0x110] sm:$0xff]
        %v8542 = vld [vmem:[#allocation4 + $0x118] sm:$0xff]
        %v8543 = vld [vmem:[#allocation4 + $0x120] sm:$0xff]
        %v8544 = vld [vmem:[#allocation4 + $0x128] sm:$0xff]
        %v8545 = vld [vmem:[#allocation4 + $0x130] sm:$0xff]
        %v8546 = vld [vmem:[#allocation4 + $0x138] sm:$0xff]
        %v8547 = vld [vmem:[#allocation4 + $0x140] sm:$0xff]
        %v8548 = vld [vmem:[#allocation4 + $0x148] sm:$0xff]
        %v8549 = vld [vmem:[#allocation4 + $0x150] sm:$0xff]
        %v8550 = vld [vmem:[#allocation4 + $0x158] sm:$0xff]
        %v8551 = vld [vmem:[#allocation4 + $0x160] sm:$0xff]
        %v8552 = vld [vmem:[#allocation4 + $0x168] sm:$0xff]
        %v8553 = vld [vmem:[#allocation4 + $0x170] sm:$0xff]
        %v8554 = vld [vmem:[#allocation4 + $0x178] sm:$0xff]
        %v8555 = vld [vmem:[#allocation4 + $0x180] sm:$0xff]
        %v8556 = vld [vmem:[#allocation4 + $0x188] sm:$0xff]
        %v8557 = vld [vmem:[#allocation4 + $0x190] sm:$0xff]
        %v8558 = vld [vmem:[#allocation4 + $0x198] sm:$0xff]
        %v8559 = vld [vmem:[#allocation4 + $0x1a0] sm:$0xff]
        %v8560 = vld [vmem:[#allocation4 + $0x1a8] sm:$0xff]
        %v8561 = vld [vmem:[#allocation4 + $0x1b0] sm:$0xff]
        %v8562 = vld [vmem:[#allocation4 + $0x1b8] sm:$0xff]
        %v8563 = vld [vmem:[#allocation4 + $0x1c0] sm:$0xff]
        %v8564 = vld [vmem:[#allocation4 + $0x1c8] sm:$0xff]
        %v8565 = vld [vmem:[#allocation4 + $0x1d0] sm:$0xff]
        %v8566 = vld [vmem:[#allocation4 + $0x1d8] sm:$0xff]
        %v8567 = vld [vmem:[#allocation4 + $0x1e0] sm:$0xff]
        %v8568 = vld [vmem:[#allocation4 + $0x1e8] sm:$0xff]
        %v8569 = vld [vmem:[#allocation4 + $0x1f0] sm:$0xff]
        %v8570 = vld [vmem:[#allocation4 + $0x1f8] sm:$0xff]
        %v8571 = vld [vmem:[#allocation4 + $0x200] sm:$0xff]
        %v8572 = vld [vmem:[#allocation4 + $0x208] sm:$0xff]
        %v8573 = vld [vmem:[#allocation4 + $0x210] sm:$0xff]
        %v8574 = vld [vmem:[#allocation4 + $0x218] sm:$0xff]
        %v8575 = vld [vmem:[#allocation4 + $0x220] sm:$0xff]
        %v8576 = vld [vmem:[#allocation4 + $0x228] sm:$0xff]
        %v8577 = vld [vmem:[#allocation4 + $0x230] sm:$0xff]
        %v8578 = vld [vmem:[#allocation4 + $0x238] sm:$0xff]
        %v8579 = vld [vmem:[#allocation4 + $0x240] sm:$0xff]
        %v8580 = vld [vmem:[#allocation4 + $0x248] sm:$0xff]
        %v8581 = vld [vmem:[#allocation4 + $0x250] sm:$0xff]
        %v8582 = vld [vmem:[#allocation4 + $0x258] sm:$0xff]
        %v8583 = vld [vmem:[#allocation4 + $0x260] sm:$0xff]
        %v8584 = vld [vmem:[#allocation4 + $0x268] sm:$0xff]
        %v8585 = vld [vmem:[#allocation4 + $0x270] sm:$0xff]
        %v8586 = vld [vmem:[#allocation4 + $0x278] sm:$0xff]
        %v8587 = vld [vmem:[#allocation4 + $0x280] sm:$0xff]
        %v8588 = vld [vmem:[#allocation4 + $0x288] sm:$0xff]
        %v8589 = vld [vmem:[#allocation4 + $0x290] sm:$0xff]
        %v8590 = vld [vmem:[#allocation4 + $0x298] sm:$0xff]
        %v8591 = vld [vmem:[#allocation4 + $0x2a0] sm:$0xff]
        %v8592 = vld [vmem:[#allocation4 + $0x2a8] sm:$0xff]
        %v8593 = vld [vmem:[#allocation4 + $0x2b0] sm:$0xff]
        %v8594 = vld [vmem:[#allocation4 + $0x2b8] sm:$0xff]
        %v8595 = vld [vmem:[#allocation4 + $0x2c0] sm:$0xff]
        %v8596 = vld [vmem:[#allocation4 + $0x2c8] sm:$0xff]
        %v8597 = vld [vmem:[#allocation4 + $0x2d0] sm:$0xff]
        %v8598 = vld [vmem:[#allocation4 + $0x2d8] sm:$0xff]
        %v8599 = vld [vmem:[#allocation4 + $0x2e0] sm:$0xff]
        %v8600 = vld [vmem:[#allocation4 + $0x2e8] sm:$0xff]
        %v8601 = vld [vmem:[#allocation4 + $0x2f0] sm:$0xff]
        %v8602 = vld [vmem:[#allocation4 + $0x2f8] sm:$0xff]
        %v8603 = vld [vmem:[#allocation4 + $0x300] sm:$0xff]
        %v8604 = vld [vmem:[#allocation4 + $0x308] sm:$0xff]
        %v8605 = vld [vmem:[#allocation4 + $0x310] sm:$0xff]
        %v8606 = vld [vmem:[#allocation4 + $0x318] sm:$0xff]
        %v8607 = vld [vmem:[#allocation4 + $0x320] sm:$0xff]
        %v8608 = vld [vmem:[#allocation4 + $0x328] sm:$0xff]
        %v8609 = vld [vmem:[#allocation4 + $0x330] sm:$0xff]
        %v8610 = vld [vmem:[#allocation4 + $0x338] sm:$0xff]
        %v8611 = vld [vmem:[#allocation4 + $0x340] sm:$0xff]
        %v8612 = vld [vmem:[#allocation4 + $0x348] sm:$0xff]
        %v8613 = vld [vmem:[#allocation4 + $0x350] sm:$0xff]
        %v8614 = vld [vmem:[#allocation4 + $0x358] sm:$0xff]
        %v8615 = vld [vmem:[#allocation4 + $0x360] sm:$0xff]
        %v8616 = vld [vmem:[#allocation4 + $0x368] sm:$0xff]
        %v8617 = vld [vmem:[#allocation4 + $0x370] sm:$0xff]
        %v8618 = vld [vmem:[#allocation4 + $0x378] sm:$0xff]
        %v8619 = vld [vmem:[#allocation4 + $0x380] sm:$0xff]
        %v8620 = vld [vmem:[#allocation4 + $0x388] sm:$0xff]
        %v8621 = vld [vmem:[#allocation4 + $0x390] sm:$0xff]
        %v8622 = vld [vmem:[#allocation4 + $0x398] sm:$0xff]
        %v8623 = vld [vmem:[#allocation4 + $0x3a0] sm:$0xff]
        %v8624 = vld [vmem:[#allocation4 + $0x3a8] sm:$0xff]
        %v8625 = vld [vmem:[#allocation4 + $0x3b0] sm:$0xff]
        %v8626 = vld [vmem:[#allocation4 + $0x3b8] sm:$0xff]
        %v8627 = vld [vmem:[#allocation4 + $0x3c0] sm:$0xff]
        %v8628 = vld [vmem:[#allocation4 + $0x3c8] sm:$0xff]
        %v8629 = vld [vmem:[#allocation4 + $0x3d0] sm:$0xff]
        %v8630 = vld [vmem:[#allocation4 + $0x3d8] sm:$0xff]
        %v8631 = vld [vmem:[#allocation4 + $0x3e0] sm:$0xff]
        %v8632 = vld [vmem:[#allocation4 + $0x3e8] sm:$0xff]
        %v8633 = vld [vmem:[#allocation4 + $0x3f0] sm:$0x1]
        %v8634 = vld [vmem:[#allocation4 + $0x3f8] sm:$0x1]
        %v8635 = vld [vmem:[#allocation4 + $0x400] sm:$0x1]
        %v8636 = vld [vmem:[#allocation4 + $0x408] sm:$0x1]
        %v8637 = vld [vmem:[#allocation4 + $0x410] sm:$0x1]
        %v8638 = vld [vmem:[#allocation4 + $0x418] sm:$0x1]
        %v8639 = vld [vmem:[#allocation4 + $0x420] sm:$0x1]
        %8644 = vrot.lane.b32.xlu0 %v8503, 91
        %v8645 = vpop.permute.xlu0 %8644
        %8646 = vrot.lane.b32.xlu0 %v8504, 91
        %v8647 = vpop.permute.xlu0 %8646
        %8648 = vrot.lane.b32.xlu0 %v8505, 91
        %v8649 = vpop.permute.xlu0 %8648
        %8650 = vrot.lane.b32.xlu0 %v8506, 91
        %v8651 = vpop.permute.xlu0 %8650
        %v8652 = vsel %vm3420, %v8645, %v8647
        %v8653 = vsel %vm3420, %v8649, %v8651
        %vm8656 = vcmask 138240
        %v8657 = vsel %vm8656, %v8647, 0
        %v8659 = vsel %vm8656, %v8651, 0
        %v8662 = vsel %vm1278, %v8633, 0
        %v8665 = vsel %vm1278, %v8634, 0
        %v8668 = vsel %vm1278, %v8635, 0
        %v8671 = vsel %vm1278, %v8636, 0
        %v8674 = vsel %vm1278, %v8637, 0
        %v8677 = vsel %vm1278, %v8638, 0
        %v8680 = vsel %vm1278, %v8639, 0
        %8682 = vmatprep.subr.mxu0 %v8613
        %8683 = vmatpush1.msra.mxu0 %v8612
        %8684 = vmatprep.subr.mxu0 %v8606
        %8685 = vmatpush1.msra.mxu0 %v8605
        %8686 = vmatprep.subr.mxu0 %v8599
        %8687 = vmatpush1.msra.mxu0 %v8598
        %8688 = vmatprep.subr.mxu0 %v8592
        %8689 = vmatpush1.msra.mxu0 %v8591
        %8690 = vmatprep.subr.mxu0 %v8585
        %8691 = vmatpush1.msra.mxu0 %v8584
        %8692 = vmatprep.subr.mxu0 %v8578
        %8693 = vmatpush1.msra.mxu0 %v8577
        %8694 = vmatprep.subr.mxu0 %v8571
        %8695 = vmatpush1.msra.mxu0 %v8570
        %8696 = vmatprep.subr.mxu0 %v8564
        %8697 = vmatpush1.msra.mxu0 %v8563
        %8698 = vmatprep.subr.mxu0 %v8557
        %8699 = vmatpush1.msra.mxu0 %v8556
        %8700 = vmatprep.subr.mxu0 %v8550
        %8701 = vmatpush1.msra.mxu0 %v8549
        %8702 = vmatprep.subr.mxu0 %v8543
        %8703 = vmatpush1.msra.mxu0 %v8542
        %8704 = vmatprep.subr.mxu0 %v8536
        %8705 = vmatpush1.msra.mxu0 %v8535
        %8706 = vmatprep.subr.mxu0 %v8529
        %8707 = vmatpush1.msra.mxu0 %v8528
        %8708 = vmatprep.subr.mxu0 %v8522
        %8709 = vmatpush1.msra.mxu0 %v8521
        %8710 = vmatprep.subr.mxu0 %v8515
        %8711 = vmatpush1.msra.mxu0 %v8514
        %8712 = vmatprep.subr.mxu0 %v8508
        %8713 = vmatpush1.msra.mxu0 %v8507
        %8714 = vmatprep.subr.mxu0 0.0
        %8715 = vmatpush2.msra.mxu0 0.0
        %8716 = vmatprep.subr.mxu0 0.0
        %8717 = vmatpush2.msra.mxu0 0.0
        %8718 = vmatprep.subr.mxu0 0.0
        %8719 = vmatpush2.msra.mxu0 0.0
        %8720 = vmatprep.subr.mxu0 0.0
        %8721 = vmatpush2.msra.mxu0 0.0
        %8722 = vmatprep.subr.mxu0 0.0
        %8723 = vmatpush2.msra.mxu0 0.0
        %8724 = vmatprep.subr.mxu0 0.0
        %8725 = vmatpush2.msra.mxu0 0.0
        %8726 = vmatprep.subr.mxu0 0.0
        %8727 = vmatpush2.msra.mxu0 0.0
        %8728 = vmatprep.subr.mxu0 0.0
        %8729 = vmatpush2.msra.mxu0 0.0
        %8730 = vmatprep.subr.mxu0 0.0
        %8731 = vmatpush2.msra.mxu0 0.0
        %8732 = vmatprep.subr.mxu0 0.0
        %8733 = vmatpush2.msra.mxu0 0.0
        %8734 = vmatprep.subr.mxu0 0.0
        %8735 = vmatpush2.msra.mxu0 0.0
        %8736 = vmatprep.subr.mxu0 0.0
        %8737 = vmatpush2.msra.mxu0 0.0
        %8738 = vmatprep.subr.mxu0 0.0
        %8739 = vmatpush2.msra.mxu0 0.0
        %8740 = vmatprep.subr.mxu0 %v8665
        %8741 = vmatpush2.msra.mxu0 %v8662
        %8742 = vmatprep.subr.mxu0 %v8627
        %8743 = vmatpush2.msra.mxu0 %v8626
        %8744 = vmatprep.subr.mxu0 %v8620
        %8745 = vmatpush2.msra.mxu0 %v8619
        %8746 = vmatprep.mubr.f32.mxu0 %v8657
        %8747 = vmatmul.mubr.f32.gmra.mxu0 %v8652
        %v8748 = vpop.f32.mrf.mxu0
        %v8749 = vadd.f32 0.0, %v8748
        %v8750 = vpop.f32.mrf.mxu0
        %v8751 = vadd.f32 0.0, %v8750
        %8752 = vmatprep.mubr.f32.mxu0 %v8659
        %8753 = vmatmul.mubr.f32.gmra.mxu0 %v8653
        %v8754 = vpop.f32.mrf.mxu0
        %v8755 = vadd.f32 0.0, %v8754
        %v8756 = vpop.f32.mrf.mxu0
        %v8757 = vadd.f32 0.0, %v8756
        %8758 = vdwg.mxu0
        %8759 = vmatprep.subr.mxu0 %v8615
        %8760 = vmatpush1.msra.mxu0 %v8614
        %8761 = vmatprep.subr.mxu0 %v8608
        %8762 = vmatpush1.msra.mxu0 %v8607
        %8763 = vmatprep.subr.mxu0 %v8601
        %8764 = vmatpush1.msra.mxu0 %v8600
        %8765 = vmatprep.subr.mxu0 %v8594
        %8766 = vmatpush1.msra.mxu0 %v8593
        %8767 = vmatprep.subr.mxu0 %v8587
        %8768 = vmatpush1.msra.mxu0 %v8586
        %8769 = vmatprep.subr.mxu0 %v8580
        %8770 = vmatpush1.msra.mxu0 %v8579
        %8771 = vmatprep.subr.mxu0 %v8573
        %8772 = vmatpush1.msra.mxu0 %v8572
        %8773 = vmatprep.subr.mxu0 %v8566
        %8774 = vmatpush1.msra.mxu0 %v8565
        %8775 = vmatprep.subr.mxu0 %v8559
        %8776 = vmatpush1.msra.mxu0 %v8558
        %8777 = vmatprep.subr.mxu0 %v8552
        %8778 = vmatpush1.msra.mxu0 %v8551
        %8779 = vmatprep.subr.mxu0 %v8545
        %8780 = vmatpush1.msra.mxu0 %v8544
        %8781 = vmatprep.subr.mxu0 %v8538
        %8782 = vmatpush1.msra.mxu0 %v8537
        %8783 = vmatprep.subr.mxu0 %v8531
        %8784 = vmatpush1.msra.mxu0 %v8530
        %8785 = vmatprep.subr.mxu0 %v8524
        %8786 = vmatpush1.msra.mxu0 %v8523
        %8787 = vmatprep.subr.mxu0 %v8517
        %8788 = vmatpush1.msra.mxu0 %v8516
        %8789 = vmatprep.subr.mxu0 %v8510
        %8790 = vmatpush1.msra.mxu0 %v8509
        %8791 = vmatprep.subr.mxu0 0.0
        %8792 = vmatpush2.msra.mxu0 0.0
        %8793 = vmatprep.subr.mxu0 0.0
        %8794 = vmatpush2.msra.mxu0 0.0
        %8795 = vmatprep.subr.mxu0 0.0
        %8796 = vmatpush2.msra.mxu0 0.0
        %8797 = vmatprep.subr.mxu0 0.0
        %8798 = vmatpush2.msra.mxu0 0.0
        %8799 = vmatprep.subr.mxu0 0.0
        %8800 = vmatpush2.msra.mxu0 0.0
        %8801 = vmatprep.subr.mxu0 0.0
        %8802 = vmatpush2.msra.mxu0 0.0
        %8803 = vmatprep.subr.mxu0 0.0
        %8804 = vmatpush2.msra.mxu0 0.0
        %8805 = vmatprep.subr.mxu0 0.0
        %8806 = vmatpush2.msra.mxu0 0.0
        %8807 = vmatprep.subr.mxu0 0.0
        %8808 = vmatpush2.msra.mxu0 0.0
        %8809 = vmatprep.subr.mxu0 0.0
        %8810 = vmatpush2.msra.mxu0 0.0
        %8811 = vmatprep.subr.mxu0 0.0
        %8812 = vmatpush2.msra.mxu0 0.0
        %8813 = vmatprep.subr.mxu0 0.0
        %8814 = vmatpush2.msra.mxu0 0.0
        %8815 = vmatprep.subr.mxu0 0.0
        %8816 = vmatpush2.msra.mxu0 0.0
        %8817 = vmatprep.subr.mxu0 %v8671
        %8818 = vmatpush2.msra.mxu0 %v8668
        %8819 = vmatprep.subr.mxu0 %v8629
        %8820 = vmatpush2.msra.mxu0 %v8628
        %8821 = vmatprep.subr.mxu0 %v8622
        %8822 = vmatpush2.msra.mxu0 %v8621
        %8823 = vmatprep.mubr.f32.mxu0 %v8657
        %8824 = vmatmul.mubr.f32.gmra.mxu0 %v8652
        %v8825 = vpop.f32.mrf.mxu0
        %v8826 = vadd.f32 0.0, %v8825
        %v8827 = vpop.f32.mrf.mxu0
        %v8828 = vadd.f32 0.0, %v8827
        %8829 = vmatprep.mubr.f32.mxu0 %v8659
        %8830 = vmatmul.mubr.f32.gmra.mxu0 %v8653
        %v8831 = vpop.f32.mrf.mxu0
        %v8832 = vadd.f32 0.0, %v8831
        %v8833 = vpop.f32.mrf.mxu0
        %v8834 = vadd.f32 0.0, %v8833
        %8835 = vdwg.mxu0
        %8836 = vmatprep.subr.mxu0 %v8617
        %8837 = vmatpush1.msra.mxu0 %v8616
        %8838 = vmatprep.subr.mxu0 %v8610
        %8839 = vmatpush1.msra.mxu0 %v8609
        %8840 = vmatprep.subr.mxu0 %v8603
        %8841 = vmatpush1.msra.mxu0 %v8602
        %8842 = vmatprep.subr.mxu0 %v8596
        %8843 = vmatpush1.msra.mxu0 %v8595
        %8844 = vmatprep.subr.mxu0 %v8589
        %8845 = vmatpush1.msra.mxu0 %v8588
        %8846 = vmatprep.subr.mxu0 %v8582
        %8847 = vmatpush1.msra.mxu0 %v8581
        %8848 = vmatprep.subr.mxu0 %v8575
        %8849 = vmatpush1.msra.mxu0 %v8574
        %8850 = vmatprep.subr.mxu0 %v8568
        %8851 = vmatpush1.msra.mxu0 %v8567
        %8852 = vmatprep.subr.mxu0 %v8561
        %8853 = vmatpush1.msra.mxu0 %v8560
        %8854 = vmatprep.subr.mxu0 %v8554
        %8855 = vmatpush1.msra.mxu0 %v8553
        %8856 = vmatprep.subr.mxu0 %v8547
        %8857 = vmatpush1.msra.mxu0 %v8546
        %8858 = vmatprep.subr.mxu0 %v8540
        %8859 = vmatpush1.msra.mxu0 %v8539
        %8860 = vmatprep.subr.mxu0 %v8533
        %8861 = vmatpush1.msra.mxu0 %v8532
        %8862 = vmatprep.subr.mxu0 %v8526
        %8863 = vmatpush1.msra.mxu0 %v8525
        %8864 = vmatprep.subr.mxu0 %v8519
        %8865 = vmatpush1.msra.mxu0 %v8518
        %8866 = vmatprep.subr.mxu0 %v8512
        %8867 = vmatpush1.msra.mxu0 %v8511
        %8868 = vmatprep.subr.mxu0 0.0
        %8869 = vmatpush2.msra.mxu0 0.0
        %8870 = vmatprep.subr.mxu0 0.0
        %8871 = vmatpush2.msra.mxu0 0.0
        %8872 = vmatprep.subr.mxu0 0.0
        %8873 = vmatpush2.msra.mxu0 0.0
        %8874 = vmatprep.subr.mxu0 0.0
        %8875 = vmatpush2.msra.mxu0 0.0
        %8876 = vmatprep.subr.mxu0 0.0
        %8877 = vmatpush2.msra.mxu0 0.0
        %8878 = vmatprep.subr.mxu0 0.0
        %8879 = vmatpush2.msra.mxu0 0.0
        %8880 = vmatprep.subr.mxu0 0.0
        %8881 = vmatpush2.msra.mxu0 0.0
        %8882 = vmatprep.subr.mxu0 0.0
        %8883 = vmatpush2.msra.mxu0 0.0
        %8884 = vmatprep.subr.mxu0 0.0
        %8885 = vmatpush2.msra.mxu0 0.0
        %8886 = vmatprep.subr.mxu0 0.0
        %8887 = vmatpush2.msra.mxu0 0.0
        %8888 = vmatprep.subr.mxu0 0.0
        %8889 = vmatpush2.msra.mxu0 0.0
        %8890 = vmatprep.subr.mxu0 0.0
        %8891 = vmatpush2.msra.mxu0 0.0
        %8892 = vmatprep.subr.mxu0 0.0
        %8893 = vmatpush2.msra.mxu0 0.0
        %8894 = vmatprep.subr.mxu0 %v8677
        %8895 = vmatpush2.msra.mxu0 %v8674
        %8896 = vmatprep.subr.mxu0 %v8631
        %8897 = vmatpush2.msra.mxu0 %v8630
        %8898 = vmatprep.subr.mxu0 %v8624
        %8899 = vmatpush2.msra.mxu0 %v8623
        %8900 = vmatprep.mubr.f32.mxu0 %v8657
        %8901 = vmatmul.mubr.f32.gmra.mxu0 %v8652
        %v8902 = vpop.f32.mrf.mxu0
        %v8903 = vadd.f32 0.0, %v8902
        %v8904 = vpop.f32.mrf.mxu0
        %v8905 = vadd.f32 0.0, %v8904
        %8906 = vmatprep.mubr.f32.mxu0 %v8659
        %8907 = vmatmul.mubr.f32.gmra.mxu0 %v8653
        %v8908 = vpop.f32.mrf.mxu0
        %v8909 = vadd.f32 0.0, %v8908
        %v8910 = vpop.f32.mrf.mxu0
        %v8911 = vadd.f32 0.0, %v8910
        %8912 = vdwg.mxu0
        %8913 = vmatprep.subr.mxu0 0.0
        %8914 = vmatpush1.msra.mxu0 %v8618
        %8915 = vmatprep.subr.mxu0 0.0
        %8916 = vmatpush1.msra.mxu0 %v8611
        %8917 = vmatprep.subr.mxu0 0.0
        %8918 = vmatpush1.msra.mxu0 %v8604
        %8919 = vmatprep.subr.mxu0 0.0
        %8920 = vmatpush1.msra.mxu0 %v8597
        %8921 = vmatprep.subr.mxu0 0.0
        %8922 = vmatpush1.msra.mxu0 %v8590
        %8923 = vmatprep.subr.mxu0 0.0
        %8924 = vmatpush1.msra.mxu0 %v8583
        %8925 = vmatprep.subr.mxu0 0.0
        %8926 = vmatpush1.msra.mxu0 %v8576
        %8927 = vmatprep.subr.mxu0 0.0
        %8928 = vmatpush1.msra.mxu0 %v8569
        %8929 = vmatprep.subr.mxu0 0.0
        %8930 = vmatpush1.msra.mxu0 %v8562
        %8931 = vmatprep.subr.mxu0 0.0
        %8932 = vmatpush1.msra.mxu0 %v8555
        %8933 = vmatprep.subr.mxu0 0.0
        %8934 = vmatpush1.msra.mxu0 %v8548
        %8935 = vmatprep.subr.mxu0 0.0
        %8936 = vmatpush1.msra.mxu0 %v8541
        %8937 = vmatprep.subr.mxu0 0.0
        %8938 = vmatpush1.msra.mxu0 %v8534
        %8939 = vmatprep.subr.mxu0 0.0
        %8940 = vmatpush1.msra.mxu0 %v8527
        %8941 = vmatprep.subr.mxu0 0.0
        %8942 = vmatpush1.msra.mxu0 %v8520
        %8943 = vmatprep.subr.mxu0 0.0
        %8944 = vmatpush1.msra.mxu0 %v8513
        %8945 = vmatprep.subr.mxu0 0.0
        %8946 = vmatpush2.msra.mxu0 0.0
        %8947 = vmatprep.subr.mxu0 0.0
        %8948 = vmatpush2.msra.mxu0 0.0
        %8949 = vmatprep.subr.mxu0 0.0
        %8950 = vmatpush2.msra.mxu0 0.0
        %8951 = vmatprep.subr.mxu0 0.0
        %8952 = vmatpush2.msra.mxu0 0.0
        %8953 = vmatprep.subr.mxu0 0.0
        %8954 = vmatpush2.msra.mxu0 0.0
        %8955 = vmatprep.subr.mxu0 0.0
        %8956 = vmatpush2.msra.mxu0 0.0
        %8957 = vmatprep.subr.mxu0 0.0
        %8958 = vmatpush2.msra.mxu0 0.0
        %8959 = vmatprep.subr.mxu0 0.0
        %8960 = vmatpush2.msra.mxu0 0.0
        %8961 = vmatprep.subr.mxu0 0.0
        %8962 = vmatpush2.msra.mxu0 0.0
        %8963 = vmatprep.subr.mxu0 0.0
        %8964 = vmatpush2.msra.mxu0 0.0
        %8965 = vmatprep.subr.mxu0 0.0
        %8966 = vmatpush2.msra.mxu0 0.0
        %8967 = vmatprep.subr.mxu0 0.0
        %8968 = vmatpush2.msra.mxu0 0.0
        %8969 = vmatprep.subr.mxu0 0.0
        %8970 = vmatpush2.msra.mxu0 0.0
        %8971 = vmatprep.subr.mxu0 0.0
        %8972 = vmatpush2.msra.mxu0 %v8680
        %8973 = vmatprep.subr.mxu0 0.0
        %8974 = vmatpush2.msra.mxu0 %v8632
        %8975 = vmatprep.subr.mxu0 0.0
        %8976 = vmatpush2.msra.mxu0 %v8625
        %8977 = vmatprep.mubr.f32.mxu0 %v8657
        %8978 = vmatmul.mubr.f32.gmra.mxu0 %v8652
        %v8979 = vpop.f32.mrf.mxu0
        %v8980 = vadd.f32 0.0, %v8979
        %v8981 = vpop.f32.mrf.mxu0
        %8982 = vmatprep.mubr.f32.mxu0 %v8659
        %8983 = vmatmul.mubr.f32.gmra.mxu0 %v8653
        %v8984 = vpop.f32.mrf.mxu0
        %v8985 = vadd.f32 0.0, %v8984
        %v8986 = vpop.f32.mrf.mxu0
        %8987 = vdwg.mxu0
        %v8988 = vmax.f32 %v8749, 0.0
        %v8989 = vmax.f32 %v8751, 0.0
        %v8990 = vmax.f32 %v8826, 0.0
        %v8991 = vmax.f32 %v8828, 0.0
        %v8992 = vmax.f32 %v8903, 0.0
        %v8993 = vmax.f32 %v8905, 0.0
        %v8994 = vmax.f32 %v8980, 0.0
        %v8995 = vmax.f32 %v8755, 0.0
        %v8996 = vmax.f32 %v8757, 0.0
        %v8997 = vmax.f32 %v8832, 0.0
        %v8998 = vmax.f32 %v8834, 0.0
        %v8999 = vmax.f32 %v8909, 0.0
        %v9000 = vmax.f32 %v8911, 0.0
        %v9001 = vmax.f32 %v8985, 0.0
        %9002 = vst [vmem:[#allocation2] sm:$0xff] %v8988
        %9003 = vst [vmem:[#allocation2 + $0x8] sm:$0xff] %v8989
        %9004 = vst [vmem:[#allocation2 + $0x10] sm:$0xff] %v8990
        %9005 = vst [vmem:[#allocation2 + $0x18] sm:$0xff] %v8991
        %9006 = vst [vmem:[#allocation2 + $0x20] sm:$0xff] %v8992
        %9007 = vst [vmem:[#allocation2 + $0x28] sm:$0xff] %v8993
        %9008 = vst.msk [vmem:[#allocation2 + $0x30] sm:$0xff] %vm172, %v8994
        %9009 = vst [vmem:[#allocation2 + $0x40] sm:$0xff] %v8995
        %9010 = vst [vmem:[#allocation2 + $0x48] sm:$0xff] %v8996
        %9011 = vst [vmem:[#allocation2 + $0x50] sm:$0xff] %v8997
        %9012 = vst [vmem:[#allocation2 + $0x58] sm:$0xff] %v8998
        %9013 = vst [vmem:[#allocation2 + $0x60] sm:$0xff] %v8999
        %9014 = vst [vmem:[#allocation2 + $0x68] sm:$0xff] %v9000
        %9015 = vst.msk [vmem:[#allocation2 + $0x70] sm:$0xff] %vm172, %v9001
        %v9016 = vld [vmem:[%s1 + $0x20] sm:$0xff]
        %v9017 = vld [vmem:[%s1 + $0x48] sm:$0x3]
        %v9018 = vld [vmem:[#allocation2] sm:$0xff]
        %v9019 = vld [vmem:[#allocation2 + $0x8] sm:$0xff]
        %v9020 = vld [vmem:[#allocation2 + $0x10] sm:$0xff]
        %v9021 = vld [vmem:[#allocation2 + $0x18] sm:$0xff]
        %v9022 = vld [vmem:[#allocation2 + $0x20] sm:$0xff]
        %v9023 = vld [vmem:[#allocation2 + $0x28] sm:$0xff]
        %v9024 = vld [vmem:[#allocation2 + $0x30] sm:$0xff]
        %v9025 = vld [vmem:[#allocation2 + $0x40] sm:$0xff]
        %v9026 = vld [vmem:[#allocation2 + $0x48] sm:$0xff]
        %v9027 = vld [vmem:[#allocation2 + $0x50] sm:$0xff]
        %v9028 = vld [vmem:[#allocation2 + $0x58] sm:$0xff]
        %v9029 = vld [vmem:[#allocation2 + $0x60] sm:$0xff]
        %v9030 = vld [vmem:[#allocation2 + $0x68] sm:$0xff]
        %v9031 = vld [vmem:[#allocation2 + $0x70] sm:$0xff]
        %9034 = vrot.lane.b32.xlu0 %v9016, 73
        %v9035 = vpop.permute.xlu0 %9034
        %9036 = vrot.lane.b32.xlu0 %v9017, 73
        %v9037 = vpop.permute.xlu0 %9036
        %v9038 = vsel %vm172, %v9035, 0
        %v9040 = vsel %vm172, %v9037, 0
        %9042 = vmatprep.subr.mxu0 0.0
        %9043 = vmatpush1.msra.mxu0 0.0
        %9044 = vmatprep.subr.mxu0 0.0
        %9045 = vmatpush1.msra.mxu0 0.0
        %9046 = vmatprep.subr.mxu0 0.0
        %9047 = vmatpush1.msra.mxu0 0.0
        %9048 = vmatprep.subr.mxu0 0.0
        %9049 = vmatpush1.msra.mxu0 0.0
        %9050 = vmatprep.subr.mxu0 0.0
        %9051 = vmatpush1.msra.mxu0 0.0
        %9052 = vmatprep.subr.mxu0 0.0
        %9053 = vmatpush1.msra.mxu0 0.0
        %9054 = vmatprep.subr.mxu0 0.0
        %9055 = vmatpush1.msra.mxu0 0.0
        %9056 = vmatprep.subr.mxu0 0.0
        %9057 = vmatpush1.msra.mxu0 0.0
        %9058 = vmatprep.subr.mxu0 0.0
        %9059 = vmatpush1.msra.mxu0 0.0
        %9060 = vmatprep.subr.mxu0 0.0
        %9061 = vmatpush1.msra.mxu0 0.0
        %9062 = vmatprep.subr.mxu0 0.0
        %9063 = vmatpush1.msra.mxu0 0.0
        %9064 = vmatprep.subr.mxu0 0.0
        %9065 = vmatpush1.msra.mxu0 0.0
        %9066 = vmatprep.subr.mxu0 0.0
        %9067 = vmatpush1.msra.mxu0 0.0
        %9068 = vmatprep.subr.mxu0 0.0
        %9069 = vmatpush1.msra.mxu0 0.0
        %9070 = vmatprep.subr.mxu0 %v9026
        %9071 = vmatpush1.msra.mxu0 %v9025
        %9072 = vmatprep.subr.mxu0 %v9019
        %9073 = vmatpush1.msra.mxu0 %v9018
        %9074 = vmatprep.subr.mxu0 0.0
        %9075 = vmatpush2.msra.mxu0 0.0
        %9076 = vmatprep.subr.mxu0 0.0
        %9077 = vmatpush2.msra.mxu0 0.0
        %9078 = vmatprep.subr.mxu0 0.0
        %9079 = vmatpush2.msra.mxu0 0.0
        %9080 = vmatprep.subr.mxu0 0.0
        %9081 = vmatpush2.msra.mxu0 0.0
        %9082 = vmatprep.subr.mxu0 0.0
        %9083 = vmatpush2.msra.mxu0 0.0
        %9084 = vmatprep.subr.mxu0 0.0
        %9085 = vmatpush2.msra.mxu0 0.0
        %9086 = vmatprep.subr.mxu0 0.0
        %9087 = vmatpush2.msra.mxu0 0.0
        %9088 = vmatprep.subr.mxu0 0.0
        %9089 = vmatpush2.msra.mxu0 0.0
        %9090 = vmatprep.subr.mxu0 0.0
        %9091 = vmatpush2.msra.mxu0 0.0
        %9092 = vmatprep.subr.mxu0 0.0
        %9093 = vmatpush2.msra.mxu0 0.0
        %9094 = vmatprep.subr.mxu0 0.0
        %9095 = vmatpush2.msra.mxu0 0.0
        %9096 = vmatprep.subr.mxu0 0.0
        %9097 = vmatpush2.msra.mxu0 0.0
        %9098 = vmatprep.subr.mxu0 0.0
        %9099 = vmatpush2.msra.mxu0 0.0
        %9100 = vmatprep.subr.mxu0 0.0
        %9101 = vmatpush2.msra.mxu0 0.0
        %9102 = vmatprep.subr.mxu0 0.0
        %9103 = vmatpush2.msra.mxu0 0.0
        %9104 = vmatprep.subr.mxu0 0.0
        %9105 = vmatpush2.msra.mxu0 0.0
        %9106 = vmatprep.mubr.f32.mxu0 0.0
        %9107 = vmatmul.mubr.f32.gmra.mxu0 %v9038
        %v9108 = vpop.f32.mrf.mxu0
        %v9109 = vadd.f32 0.0, %v9108
        %v9110 = vpop.f32.mrf.mxu0
        %v9111 = vadd.f32 0.0, %v9110
        %9112 = vmatprep.mubr.f32.mxu0 0.0
        %9113 = vmatmul.mubr.f32.gmra.mxu0 %v9040
        %v9114 = vpop.f32.mrf.mxu0
        %v9115 = vadd.f32 0.0, %v9114
        %v9116 = vpop.f32.mrf.mxu0
        %v9117 = vadd.f32 0.0, %v9116
        %9118 = vdwg.mxu0
        %9119 = vmatprep.subr.mxu0 0.0
        %9120 = vmatpush1.msra.mxu0 0.0
        %9121 = vmatprep.subr.mxu0 0.0
        %9122 = vmatpush1.msra.mxu0 0.0
        %9123 = vmatprep.subr.mxu0 0.0
        %9124 = vmatpush1.msra.mxu0 0.0
        %9125 = vmatprep.subr.mxu0 0.0
        %9126 = vmatpush1.msra.mxu0 0.0
        %9127 = vmatprep.subr.mxu0 0.0
        %9128 = vmatpush1.msra.mxu0 0.0
        %9129 = vmatprep.subr.mxu0 0.0
        %9130 = vmatpush1.msra.mxu0 0.0
        %9131 = vmatprep.subr.mxu0 0.0
        %9132 = vmatpush1.msra.mxu0 0.0
        %9133 = vmatprep.subr.mxu0 0.0
        %9134 = vmatpush1.msra.mxu0 0.0
        %9135 = vmatprep.subr.mxu0 0.0
        %9136 = vmatpush1.msra.mxu0 0.0
        %9137 = vmatprep.subr.mxu0 0.0
        %9138 = vmatpush1.msra.mxu0 0.0
        %9139 = vmatprep.subr.mxu0 0.0
        %9140 = vmatpush1.msra.mxu0 0.0
        %9141 = vmatprep.subr.mxu0 0.0
        %9142 = vmatpush1.msra.mxu0 0.0
        %9143 = vmatprep.subr.mxu0 0.0
        %9144 = vmatpush1.msra.mxu0 0.0
        %9145 = vmatprep.subr.mxu0 0.0
        %9146 = vmatpush1.msra.mxu0 0.0
        %9147 = vmatprep.subr.mxu0 %v9028
        %9148 = vmatpush1.msra.mxu0 %v9027
        %9149 = vmatprep.subr.mxu0 %v9021
        %9150 = vmatpush1.msra.mxu0 %v9020
        %9151 = vmatprep.subr.mxu0 0.0
        %9152 = vmatpush2.msra.mxu0 0.0
        %9153 = vmatprep.subr.mxu0 0.0
        %9154 = vmatpush2.msra.mxu0 0.0
        %9155 = vmatprep.subr.mxu0 0.0
        %9156 = vmatpush2.msra.mxu0 0.0
        %9157 = vmatprep.subr.mxu0 0.0
        %9158 = vmatpush2.msra.mxu0 0.0
        %9159 = vmatprep.subr.mxu0 0.0
        %9160 = vmatpush2.msra.mxu0 0.0
        %9161 = vmatprep.subr.mxu0 0.0
        %9162 = vmatpush2.msra.mxu0 0.0
        %9163 = vmatprep.subr.mxu0 0.0
        %9164 = vmatpush2.msra.mxu0 0.0
        %9165 = vmatprep.subr.mxu0 0.0
        %9166 = vmatpush2.msra.mxu0 0.0
        %9167 = vmatprep.subr.mxu0 0.0
        %9168 = vmatpush2.msra.mxu0 0.0
        %9169 = vmatprep.subr.mxu0 0.0
        %9170 = vmatpush2.msra.mxu0 0.0
        %9171 = vmatprep.subr.mxu0 0.0
        %9172 = vmatpush2.msra.mxu0 0.0
        %9173 = vmatprep.subr.mxu0 0.0
        %9174 = vmatpush2.msra.mxu0 0.0
        %9175 = vmatprep.subr.mxu0 0.0
        %9176 = vmatpush2.msra.mxu0 0.0
        %9177 = vmatprep.subr.mxu0 0.0
        %9178 = vmatpush2.msra.mxu0 0.0
        %9179 = vmatprep.subr.mxu0 0.0
        %9180 = vmatpush2.msra.mxu0 0.0
        %9181 = vmatprep.subr.mxu0 0.0
        %9182 = vmatpush2.msra.mxu0 0.0
        %9183 = vmatprep.mubr.f32.mxu0 0.0
        %9184 = vmatmul.mubr.f32.gmra.mxu0 %v9038
        %v9185 = vpop.f32.mrf.mxu0
        %v9186 = vadd.f32 0.0, %v9185
        %v9187 = vpop.f32.mrf.mxu0
        %v9188 = vadd.f32 0.0, %v9187
        %9189 = vmatprep.mubr.f32.mxu0 0.0
        %9190 = vmatmul.mubr.f32.gmra.mxu0 %v9040
        %v9191 = vpop.f32.mrf.mxu0
        %v9192 = vadd.f32 0.0, %v9191
        %v9193 = vpop.f32.mrf.mxu0
        %v9194 = vadd.f32 0.0, %v9193
        %9195 = vdwg.mxu0
        %9196 = vmatprep.subr.mxu0 0.0
        %9197 = vmatpush1.msra.mxu0 0.0
        %9198 = vmatprep.subr.mxu0 0.0
        %9199 = vmatpush1.msra.mxu0 0.0
        %9200 = vmatprep.subr.mxu0 0.0
        %9201 = vmatpush1.msra.mxu0 0.0
        %9202 = vmatprep.subr.mxu0 0.0
        %9203 = vmatpush1.msra.mxu0 0.0
        %9204 = vmatprep.subr.mxu0 0.0
        %9205 = vmatpush1.msra.mxu0 0.0
        %9206 = vmatprep.subr.mxu0 0.0
        %9207 = vmatpush1.msra.mxu0 0.0
        %9208 = vmatprep.subr.mxu0 0.0
        %9209 = vmatpush1.msra.mxu0 0.0
        %9210 = vmatprep.subr.mxu0 0.0
        %9211 = vmatpush1.msra.mxu0 0.0
        %9212 = vmatprep.subr.mxu0 0.0
        %9213 = vmatpush1.msra.mxu0 0.0
        %9214 = vmatprep.subr.mxu0 0.0
        %9215 = vmatpush1.msra.mxu0 0.0
        %9216 = vmatprep.subr.mxu0 0.0
        %9217 = vmatpush1.msra.mxu0 0.0
        %9218 = vmatprep.subr.mxu0 0.0
        %9219 = vmatpush1.msra.mxu0 0.0
        %9220 = vmatprep.subr.mxu0 0.0
        %9221 = vmatpush1.msra.mxu0 0.0
        %9222 = vmatprep.subr.mxu0 0.0
        %9223 = vmatpush1.msra.mxu0 0.0
        %9224 = vmatprep.subr.mxu0 %v9030
        %9225 = vmatpush1.msra.mxu0 %v9029
        %9226 = vmatprep.subr.mxu0 %v9023
        %9227 = vmatpush1.msra.mxu0 %v9022
        %9228 = vmatprep.subr.mxu0 0.0
        %9229 = vmatpush2.msra.mxu0 0.0
        %9230 = vmatprep.subr.mxu0 0.0
        %9231 = vmatpush2.msra.mxu0 0.0
        %9232 = vmatprep.subr.mxu0 0.0
        %9233 = vmatpush2.msra.mxu0 0.0
        %9234 = vmatprep.subr.mxu0 0.0
        %9235 = vmatpush2.msra.mxu0 0.0
        %9236 = vmatprep.subr.mxu0 0.0
        %9237 = vmatpush2.msra.mxu0 0.0
        %9238 = vmatprep.subr.mxu0 0.0
        %9239 = vmatpush2.msra.mxu0 0.0
        %9240 = vmatprep.subr.mxu0 0.0
        %9241 = vmatpush2.msra.mxu0 0.0
        %9242 = vmatprep.subr.mxu0 0.0
        %9243 = vmatpush2.msra.mxu0 0.0
        %9244 = vmatprep.subr.mxu0 0.0
        %9245 = vmatpush2.msra.mxu0 0.0
        %9246 = vmatprep.subr.mxu0 0.0
        %9247 = vmatpush2.msra.mxu0 0.0
        %9248 = vmatprep.subr.mxu0 0.0
        %9249 = vmatpush2.msra.mxu0 0.0
        %9250 = vmatprep.subr.mxu0 0.0
        %9251 = vmatpush2.msra.mxu0 0.0
        %9252 = vmatprep.subr.mxu0 0.0
        %9253 = vmatpush2.msra.mxu0 0.0
        %9254 = vmatprep.subr.mxu0 0.0
        %9255 = vmatpush2.msra.mxu0 0.0
        %9256 = vmatprep.subr.mxu0 0.0
        %9257 = vmatpush2.msra.mxu0 0.0
        %9258 = vmatprep.subr.mxu0 0.0
        %9259 = vmatpush2.msra.mxu0 0.0
        %9260 = vmatprep.mubr.f32.mxu0 0.0
        %9261 = vmatmul.mubr.f32.gmra.mxu0 %v9038
        %v9262 = vpop.f32.mrf.mxu0
        %v9263 = vadd.f32 0.0, %v9262
        %v9264 = vpop.f32.mrf.mxu0
        %v9265 = vadd.f32 0.0, %v9264
        %9266 = vmatprep.mubr.f32.mxu0 0.0
        %9267 = vmatmul.mubr.f32.gmra.mxu0 %v9040
        %v9268 = vpop.f32.mrf.mxu0
        %v9269 = vadd.f32 0.0, %v9268
        %v9270 = vpop.f32.mrf.mxu0
        %v9271 = vadd.f32 0.0, %v9270
        %9272 = vdwg.mxu0
        %9273 = vmatprep.subr.mxu0 0.0
        %9274 = vmatpush1.msra.mxu0 0.0
        %9275 = vmatprep.subr.mxu0 0.0
        %9276 = vmatpush1.msra.mxu0 0.0
        %9277 = vmatprep.subr.mxu0 0.0
        %9278 = vmatpush1.msra.mxu0 0.0
        %9279 = vmatprep.subr.mxu0 0.0
        %9280 = vmatpush1.msra.mxu0 0.0
        %9281 = vmatprep.subr.mxu0 0.0
        %9282 = vmatpush1.msra.mxu0 0.0
        %9283 = vmatprep.subr.mxu0 0.0
        %9284 = vmatpush1.msra.mxu0 0.0
        %9285 = vmatprep.subr.mxu0 0.0
        %9286 = vmatpush1.msra.mxu0 0.0
        %9287 = vmatprep.subr.mxu0 0.0
        %9288 = vmatpush1.msra.mxu0 0.0
        %9289 = vmatprep.subr.mxu0 0.0
        %9290 = vmatpush1.msra.mxu0 0.0
        %9291 = vmatprep.subr.mxu0 0.0
        %9292 = vmatpush1.msra.mxu0 0.0
        %9293 = vmatprep.subr.mxu0 0.0
        %9294 = vmatpush1.msra.mxu0 0.0
        %9295 = vmatprep.subr.mxu0 0.0
        %9296 = vmatpush1.msra.mxu0 0.0
        %9297 = vmatprep.subr.mxu0 0.0
        %9298 = vmatpush1.msra.mxu0 0.0
        %9299 = vmatprep.subr.mxu0 0.0
        %9300 = vmatpush1.msra.mxu0 0.0
        %9301 = vmatprep.subr.mxu0 0.0
        %9302 = vmatpush1.msra.mxu0 %v9031
        %9303 = vmatprep.subr.mxu0 0.0
        %9304 = vmatpush1.msra.mxu0 %v9024
        %9305 = vmatprep.subr.mxu0 0.0
        %9306 = vmatpush2.msra.mxu0 0.0
        %9307 = vmatprep.subr.mxu0 0.0
        %9308 = vmatpush2.msra.mxu0 0.0
        %9309 = vmatprep.subr.mxu0 0.0
        %9310 = vmatpush2.msra.mxu0 0.0
        %9311 = vmatprep.subr.mxu0 0.0
        %9312 = vmatpush2.msra.mxu0 0.0
        %9313 = vmatprep.subr.mxu0 0.0
        %9314 = vmatpush2.msra.mxu0 0.0
        %9315 = vmatprep.subr.mxu0 0.0
        %9316 = vmatpush2.msra.mxu0 0.0
        %9317 = vmatprep.subr.mxu0 0.0
        %9318 = vmatpush2.msra.mxu0 0.0
        %9319 = vmatprep.subr.mxu0 0.0
        %9320 = vmatpush2.msra.mxu0 0.0
        %9321 = vmatprep.subr.mxu0 0.0
        %9322 = vmatpush2.msra.mxu0 0.0
        %9323 = vmatprep.subr.mxu0 0.0
        %9324 = vmatpush2.msra.mxu0 0.0
        %9325 = vmatprep.subr.mxu0 0.0
        %9326 = vmatpush2.msra.mxu0 0.0
        %9327 = vmatprep.subr.mxu0 0.0
        %9328 = vmatpush2.msra.mxu0 0.0
        %9329 = vmatprep.subr.mxu0 0.0
        %9330 = vmatpush2.msra.mxu0 0.0
        %9331 = vmatprep.subr.mxu0 0.0
        %9332 = vmatpush2.msra.mxu0 0.0
        %9333 = vmatprep.subr.mxu0 0.0
        %9334 = vmatpush2.msra.mxu0 0.0
        %9335 = vmatprep.subr.mxu0 0.0
        %9336 = vmatpush2.msra.mxu0 0.0
        %9337 = vmatprep.mubr.f32.mxu0 0.0
        %9338 = vmatmul.mubr.f32.gmra.mxu0 %v9038
        %v9339 = vpop.f32.mrf.mxu0
        %v9340 = vadd.f32 0.0, %v9339
        %v9341 = vpop.f32.mrf.mxu0
        %9342 = vmatprep.mubr.f32.mxu0 0.0
        %9343 = vmatmul.mubr.f32.gmra.mxu0 %v9040
        %v9344 = vpop.f32.mrf.mxu0
        %v9345 = vadd.f32 0.0, %v9344
        %v9346 = vpop.f32.mrf.mxu0
        %9347 = vdwg.mxu0
        %v9348 = vld [vmem:[%s2] sm:$0x7f]
        %v9350 = vlaneseq
        %v9351 = vshrl.u32 %v9350, 7
        %v9352 = vsub.s32 0, %v9351
        %v9353 = vrot.slane %v9348, %v9352
        %v9354 = vlaneseq
        %v9355 = vshrl.u32 %v9354, 7
        %v9356 = vsub.s32 1, %v9355
        %v9357 = vrot.slane %v9348, %v9356
        %v9358 = vlaneseq
        %v9359 = vshrl.u32 %v9358, 7
        %v9360 = vsub.s32 2, %v9359
        %v9361 = vrot.slane %v9348, %v9360
        %v9362 = vlaneseq
        %v9363 = vshrl.u32 %v9362, 7
        %v9364 = vsub.s32 3, %v9363
        %v9365 = vrot.slane %v9348, %v9364
        %v9366 = vlaneseq
        %v9367 = vshrl.u32 %v9366, 7
        %v9368 = vsub.s32 4, %v9367
        %v9369 = vrot.slane %v9348, %v9368
        %v9370 = vlaneseq
        %v9371 = vshrl.u32 %v9370, 7
        %v9372 = vsub.s32 5, %v9371
        %v9373 = vrot.slane %v9348, %v9372
        %v9374 = vlaneseq
        %v9375 = vshrl.u32 %v9374, 7
        %v9376 = vsub.s32 6, %v9375
        %v9377 = vrot.slane %v9348, %v9376
        %v9384 = vsel %vm172, %v9377, 0
        %v9387 = vsel %vm172, %v9340, 0
        %v9390 = vsel %vm172, %v9345, 0
        %9392 = vmatprep.subr.mxu0 0.0
        %9393 = vmatpush1.xpose.msra.mxu0 0.0
        %9394 = vmatprep.subr.mxu0 0.0
        %9395 = vmatpush1.xpose.msra.mxu0 0.0
        %9396 = vmatprep.subr.mxu0 0.0
        %9397 = vmatpush1.xpose.msra.mxu0 0.0
        %9398 = vmatprep.subr.mxu0 0.0
        %9399 = vmatpush1.xpose.msra.mxu0 0.0
        %9400 = vmatprep.subr.mxu0 0.0
        %9401 = vmatpush1.xpose.msra.mxu0 0.0
        %9402 = vmatprep.subr.mxu0 0.0
        %9403 = vmatpush1.xpose.msra.mxu0 0.0
        %9404 = vmatprep.subr.mxu0 0.0
        %9405 = vmatpush1.xpose.msra.mxu0 0.0
        %9406 = vmatprep.subr.mxu0 0.0
        %9407 = vmatpush1.xpose.msra.mxu0 0.0
        %9408 = vmatprep.subr.mxu0 0.0
        %9409 = vmatpush1.xpose.msra.mxu0 0.0
        %9410 = vmatprep.subr.mxu0 0.0
        %9411 = vmatpush1.xpose.msra.mxu0 0.0
        %9412 = vmatprep.subr.mxu0 0.0
        %9413 = vmatpush1.xpose.msra.mxu0 0.0
        %9414 = vmatprep.subr.mxu0 0.0
        %9415 = vmatpush1.xpose.msra.mxu0 0.0
        %9416 = vmatprep.subr.mxu0 0.0
        %9417 = vmatpush1.xpose.msra.mxu0 0.0
        %9418 = vmatprep.subr.mxu0 0.0
        %9419 = vmatpush1.xpose.msra.mxu0 0.0
        %9420 = vmatprep.subr.mxu0 %v9117
        %9421 = vmatpush1.xpose.msra.mxu0 %v9115
        %9422 = vmatprep.subr.mxu0 %v9111
        %9423 = vmatpush1.xpose.msra.mxu0 %v9109
        %9424 = vmatprep.subr.mxu0 0.0
        %9425 = vmatpush2.xpose.msra.mxu0 0.0
        %9426 = vmatprep.subr.mxu0 0.0
        %9427 = vmatpush2.xpose.msra.mxu0 0.0
        %9428 = vmatprep.subr.mxu0 0.0
        %9429 = vmatpush2.xpose.msra.mxu0 0.0
        %9430 = vmatprep.subr.mxu0 0.0
        %9431 = vmatpush2.xpose.msra.mxu0 0.0
        %9432 = vmatprep.subr.mxu0 0.0
        %9433 = vmatpush2.xpose.msra.mxu0 0.0
        %9434 = vmatprep.subr.mxu0 0.0
        %9435 = vmatpush2.xpose.msra.mxu0 0.0
        %9436 = vmatprep.subr.mxu0 0.0
        %9437 = vmatpush2.xpose.msra.mxu0 0.0
        %9438 = vmatprep.subr.mxu0 0.0
        %9439 = vmatpush2.xpose.msra.mxu0 0.0
        %9440 = vmatprep.subr.mxu0 0.0
        %9441 = vmatpush2.xpose.msra.mxu0 0.0
        %9442 = vmatprep.subr.mxu0 0.0
        %9443 = vmatpush2.xpose.msra.mxu0 0.0
        %9444 = vmatprep.subr.mxu0 0.0
        %9445 = vmatpush2.xpose.msra.mxu0 0.0
        %9446 = vmatprep.subr.mxu0 0.0
        %9447 = vmatpush2.xpose.msra.mxu0 0.0
        %9448 = vmatprep.subr.mxu0 0.0
        %9449 = vmatpush2.xpose.msra.mxu0 0.0
        %9450 = vmatprep.subr.mxu0 0.0
        %9451 = vmatpush2.xpose.msra.mxu0 0.0
        %9452 = vmatprep.subr.mxu0 0.0
        %9453 = vmatpush2.xpose.msra.mxu0 0.0
        %9454 = vmatprep.subr.mxu0 0.0
        %9455 = vmatpush2.xpose.msra.mxu0 0.0
        %9456 = vmatprep.mubr.f32.mxu0 %v9357
        %9457 = vmatmul.mubr.f32.gmra.mxu0 %v9353
        %v9458 = vpop.f32.mrf.mxu0
        %v9459 = vadd.f32 0.0, %v9458
        %v9460 = vpop.f32.mrf.mxu0
        %9461 = vdwg.mxu0
        %9462 = vmatprep.subr.mxu0 0.0
        %9463 = vmatpush1.xpose.msra.mxu0 0.0
        %9464 = vmatprep.subr.mxu0 0.0
        %9465 = vmatpush1.xpose.msra.mxu0 0.0
        %9466 = vmatprep.subr.mxu0 0.0
        %9467 = vmatpush1.xpose.msra.mxu0 0.0
        %9468 = vmatprep.subr.mxu0 0.0
        %9469 = vmatpush1.xpose.msra.mxu0 0.0
        %9470 = vmatprep.subr.mxu0 0.0
        %9471 = vmatpush1.xpose.msra.mxu0 0.0
        %9472 = vmatprep.subr.mxu0 0.0
        %9473 = vmatpush1.xpose.msra.mxu0 0.0
        %9474 = vmatprep.subr.mxu0 0.0
        %9475 = vmatpush1.xpose.msra.mxu0 0.0
        %9476 = vmatprep.subr.mxu0 0.0
        %9477 = vmatpush1.xpose.msra.mxu0 0.0
        %9478 = vmatprep.subr.mxu0 0.0
        %9479 = vmatpush1.xpose.msra.mxu0 0.0
        %9480 = vmatprep.subr.mxu0 0.0
        %9481 = vmatpush1.xpose.msra.mxu0 0.0
        %9482 = vmatprep.subr.mxu0 0.0
        %9483 = vmatpush1.xpose.msra.mxu0 0.0
        %9484 = vmatprep.subr.mxu0 0.0
        %9485 = vmatpush1.xpose.msra.mxu0 0.0
        %9486 = vmatprep.subr.mxu0 0.0
        %9487 = vmatpush1.xpose.msra.mxu0 0.0
        %9488 = vmatprep.subr.mxu0 0.0
        %9489 = vmatpush1.xpose.msra.mxu0 0.0
        %9490 = vmatprep.subr.mxu0 %v9194
        %9491 = vmatpush1.xpose.msra.mxu0 %v9192
        %9492 = vmatprep.subr.mxu0 %v9188
        %9493 = vmatpush1.xpose.msra.mxu0 %v9186
        %9494 = vmatprep.subr.mxu0 0.0
        %9495 = vmatpush2.xpose.msra.mxu0 0.0
        %9496 = vmatprep.subr.mxu0 0.0
        %9497 = vmatpush2.xpose.msra.mxu0 0.0
        %9498 = vmatprep.subr.mxu0 0.0
        %9499 = vmatpush2.xpose.msra.mxu0 0.0
        %9500 = vmatprep.subr.mxu0 0.0
        %9501 = vmatpush2.xpose.msra.mxu0 0.0
        %9502 = vmatprep.subr.mxu0 0.0
        %9503 = vmatpush2.xpose.msra.mxu0 0.0
        %9504 = vmatprep.subr.mxu0 0.0
        %9505 = vmatpush2.xpose.msra.mxu0 0.0
        %9506 = vmatprep.subr.mxu0 0.0
        %9507 = vmatpush2.xpose.msra.mxu0 0.0
        %9508 = vmatprep.subr.mxu0 0.0
        %9509 = vmatpush2.xpose.msra.mxu0 0.0
        %9510 = vmatprep.subr.mxu0 0.0
        %9511 = vmatpush2.xpose.msra.mxu0 0.0
        %9512 = vmatprep.subr.mxu0 0.0
        %9513 = vmatpush2.xpose.msra.mxu0 0.0
        %9514 = vmatprep.subr.mxu0 0.0
        %9515 = vmatpush2.xpose.msra.mxu0 0.0
        %9516 = vmatprep.subr.mxu0 0.0
        %9517 = vmatpush2.xpose.msra.mxu0 0.0
        %9518 = vmatprep.subr.mxu0 0.0
        %9519 = vmatpush2.xpose.msra.mxu0 0.0
        %9520 = vmatprep.subr.mxu0 0.0
        %9521 = vmatpush2.xpose.msra.mxu0 0.0
        %9522 = vmatprep.subr.mxu0 0.0
        %9523 = vmatpush2.xpose.msra.mxu0 0.0
        %9524 = vmatprep.subr.mxu0 0.0
        %9525 = vmatpush2.xpose.msra.mxu0 0.0
        %9526 = vmatprep.mubr.f32.mxu0 %v9365
        %9527 = vmatmul.mubr.f32.gmra.mxu0 %v9361
        %v9528 = vpop.f32.mrf.mxu0
        %v9529 = vadd.f32 %v9459, %v9528
        %v9530 = vpop.f32.mrf.mxu0
        %9531 = vdwg.mxu0
        %9532 = vmatprep.subr.mxu0 0.0
        %9533 = vmatpush1.xpose.msra.mxu0 0.0
        %9534 = vmatprep.subr.mxu0 0.0
        %9535 = vmatpush1.xpose.msra.mxu0 0.0
        %9536 = vmatprep.subr.mxu0 0.0
        %9537 = vmatpush1.xpose.msra.mxu0 0.0
        %9538 = vmatprep.subr.mxu0 0.0
        %9539 = vmatpush1.xpose.msra.mxu0 0.0
        %9540 = vmatprep.subr.mxu0 0.0
        %9541 = vmatpush1.xpose.msra.mxu0 0.0
        %9542 = vmatprep.subr.mxu0 0.0
        %9543 = vmatpush1.xpose.msra.mxu0 0.0
        %9544 = vmatprep.subr.mxu0 0.0
        %9545 = vmatpush1.xpose.msra.mxu0 0.0
        %9546 = vmatprep.subr.mxu0 0.0
        %9547 = vmatpush1.xpose.msra.mxu0 0.0
        %9548 = vmatprep.subr.mxu0 0.0
        %9549 = vmatpush1.xpose.msra.mxu0 0.0
        %9550 = vmatprep.subr.mxu0 0.0
        %9551 = vmatpush1.xpose.msra.mxu0 0.0
        %9552 = vmatprep.subr.mxu0 0.0
        %9553 = vmatpush1.xpose.msra.mxu0 0.0
        %9554 = vmatprep.subr.mxu0 0.0
        %9555 = vmatpush1.xpose.msra.mxu0 0.0
        %9556 = vmatprep.subr.mxu0 0.0
        %9557 = vmatpush1.xpose.msra.mxu0 0.0
        %9558 = vmatprep.subr.mxu0 0.0
        %9559 = vmatpush1.xpose.msra.mxu0 0.0
        %9560 = vmatprep.subr.mxu0 %v9271
        %9561 = vmatpush1.xpose.msra.mxu0 %v9269
        %9562 = vmatprep.subr.mxu0 %v9265
        %9563 = vmatpush1.xpose.msra.mxu0 %v9263
        %9564 = vmatprep.subr.mxu0 0.0
        %9565 = vmatpush2.xpose.msra.mxu0 0.0
        %9566 = vmatprep.subr.mxu0 0.0
        %9567 = vmatpush2.xpose.msra.mxu0 0.0
        %9568 = vmatprep.subr.mxu0 0.0
        %9569 = vmatpush2.xpose.msra.mxu0 0.0
        %9570 = vmatprep.subr.mxu0 0.0
        %9571 = vmatpush2.xpose.msra.mxu0 0.0
        %9572 = vmatprep.subr.mxu0 0.0
        %9573 = vmatpush2.xpose.msra.mxu0 0.0
        %9574 = vmatprep.subr.mxu0 0.0
        %9575 = vmatpush2.xpose.msra.mxu0 0.0
        %9576 = vmatprep.subr.mxu0 0.0
        %9577 = vmatpush2.xpose.msra.mxu0 0.0
        %9578 = vmatprep.subr.mxu0 0.0
        %9579 = vmatpush2.xpose.msra.mxu0 0.0
        %9580 = vmatprep.subr.mxu0 0.0
        %9581 = vmatpush2.xpose.msra.mxu0 0.0
        %9582 = vmatprep.subr.mxu0 0.0
        %9583 = vmatpush2.xpose.msra.mxu0 0.0
        %9584 = vmatprep.subr.mxu0 0.0
        %9585 = vmatpush2.xpose.msra.mxu0 0.0
        %9586 = vmatprep.subr.mxu0 0.0
        %9587 = vmatpush2.xpose.msra.mxu0 0.0
        %9588 = vmatprep.subr.mxu0 0.0
        %9589 = vmatpush2.xpose.msra.mxu0 0.0
        %9590 = vmatprep.subr.mxu0 0.0
        %9591 = vmatpush2.xpose.msra.mxu0 0.0
        %9592 = vmatprep.subr.mxu0 0.0
        %9593 = vmatpush2.xpose.msra.mxu0 0.0
        %9594 = vmatprep.subr.mxu0 0.0
        %9595 = vmatpush2.xpose.msra.mxu0 0.0
        %9596 = vmatprep.mubr.f32.mxu0 %v9373
        %9597 = vmatmul.mubr.f32.gmra.mxu0 %v9369
        %v9598 = vpop.f32.mrf.mxu0
        %v9599 = vadd.f32 %v9529, %v9598
        %v9600 = vpop.f32.mrf.mxu0
        %9601 = vdwg.mxu0
        %9602 = vmatprep.subr.mxu0 0.0
        %9603 = vmatpush1.xpose.msra.mxu0 0.0
        %9604 = vmatprep.subr.mxu0 0.0
        %9605 = vmatpush1.xpose.msra.mxu0 0.0
        %9606 = vmatprep.subr.mxu0 0.0
        %9607 = vmatpush1.xpose.msra.mxu0 0.0
        %9608 = vmatprep.subr.mxu0 0.0
        %9609 = vmatpush1.xpose.msra.mxu0 0.0
        %9610 = vmatprep.subr.mxu0 0.0
        %9611 = vmatpush1.xpose.msra.mxu0 0.0
        %9612 = vmatprep.subr.mxu0 0.0
        %9613 = vmatpush1.xpose.msra.mxu0 0.0
        %9614 = vmatprep.subr.mxu0 0.0
        %9615 = vmatpush1.xpose.msra.mxu0 0.0
        %9616 = vmatprep.subr.mxu0 0.0
        %9617 = vmatpush1.xpose.msra.mxu0 0.0
        %9618 = vmatprep.subr.mxu0 0.0
        %9619 = vmatpush1.xpose.msra.mxu0 0.0
        %9620 = vmatprep.subr.mxu0 0.0
        %9621 = vmatpush1.xpose.msra.mxu0 0.0
        %9622 = vmatprep.subr.mxu0 0.0
        %9623 = vmatpush1.xpose.msra.mxu0 0.0
        %9624 = vmatprep.subr.mxu0 0.0
        %9625 = vmatpush1.xpose.msra.mxu0 0.0
        %9626 = vmatprep.subr.mxu0 0.0
        %9627 = vmatpush1.xpose.msra.mxu0 0.0
        %9628 = vmatprep.subr.mxu0 0.0
        %9629 = vmatpush1.xpose.msra.mxu0 0.0
        %9630 = vmatprep.subr.mxu0 0.0
        %9631 = vmatpush1.xpose.msra.mxu0 %v9390
        %9632 = vmatprep.subr.mxu0 0.0
        %9633 = vmatpush1.xpose.msra.mxu0 %v9387
        %9634 = vmatprep.subr.mxu0 0.0
        %9635 = vmatpush2.xpose.msra.mxu0 0.0
        %9636 = vmatprep.subr.mxu0 0.0
        %9637 = vmatpush2.xpose.msra.mxu0 0.0
        %9638 = vmatprep.subr.mxu0 0.0
        %9639 = vmatpush2.xpose.msra.mxu0 0.0
        %9640 = vmatprep.subr.mxu0 0.0
        %9641 = vmatpush2.xpose.msra.mxu0 0.0
        %9642 = vmatprep.subr.mxu0 0.0
        %9643 = vmatpush2.xpose.msra.mxu0 0.0
        %9644 = vmatprep.subr.mxu0 0.0
        %9645 = vmatpush2.xpose.msra.mxu0 0.0
        %9646 = vmatprep.subr.mxu0 0.0
        %9647 = vmatpush2.xpose.msra.mxu0 0.0
        %9648 = vmatprep.subr.mxu0 0.0
        %9649 = vmatpush2.xpose.msra.mxu0 0.0
        %9650 = vmatprep.subr.mxu0 0.0
        %9651 = vmatpush2.xpose.msra.mxu0 0.0
        %9652 = vmatprep.subr.mxu0 0.0
        %9653 = vmatpush2.xpose.msra.mxu0 0.0
        %9654 = vmatprep.subr.mxu0 0.0
        %9655 = vmatpush2.xpose.msra.mxu0 0.0
        %9656 = vmatprep.subr.mxu0 0.0
        %9657 = vmatpush2.xpose.msra.mxu0 0.0
        %9658 = vmatprep.subr.mxu0 0.0
        %9659 = vmatpush2.xpose.msra.mxu0 0.0
        %9660 = vmatprep.subr.mxu0 0.0
        %9661 = vmatpush2.xpose.msra.mxu0 0.0
        %9662 = vmatprep.subr.mxu0 0.0
        %9663 = vmatpush2.xpose.msra.mxu0 0.0
        %9664 = vmatprep.subr.mxu0 0.0
        %9665 = vmatpush2.xpose.msra.mxu0 0.0
        %9666 = vmatprep.mubr.f32.mxu0 0.0
        %9667 = vmatmul.mubr.f32.gmra.mxu0 %v9384
        %v9668 = vpop.f32.mrf.mxu0
        %v9669 = vadd.f32 %v9599, %v9668
        %v9670 = vpop.f32.mrf.mxu0
        %9671 = vdwg.mxu0
        %vm9672 = vcmask 73728
        %v9673 = vsel %vm9672, %v9669, -inf
        %9674 = vmax.xlane.f32.xlu0 %v9673
        %v9675 = vpop.xlane.xlu0 %9674
        %v9676 = vsub.f32 %v9669, %v9675
        %v9677 = vmul.f32 %v9676, 1.442695
        %v9678 = vpow.pop %v9677
        %v9679 = vsel %vm9672, %v9678, 0.0
        %9680 = vadd.xlane.f32.xlu0 %v9679
        %v9681 = vpop.xlane.xlu0 %9680
        %v9682 = vlog2.pop %v9681
        %v9683 = vmul.f32 %v9682, 0.6931472
        %v9684 = vsub.f32 %v9676, %v9683
        %9685 = vst.msk [vmem:[%s160] sm:$0x1] %vm9672, %v9684
        %s9686 = sand.u32 %s93, 1
        %s9687 = scalar_lea.sflag [#allocation6], %s9686
        %s9688 = sand.u32 %s93, 1
        %s9689 = scalar_lea.vmem [#allocation5], %s9688
        // Predicated region
        $region33: #{net8_forward.1} parent=31 // pred_check
          %p9690 = pneg %p103
        $region34: #{net8_forward.1} parent=31 // pred_check_branch
          %9692 = sbr.rel (%p9690) target = $region36
        $region35: #{net8_forward.1} parent=31 // pred_region
          %s9694 = ssub.s32 16, 16
          %9695 = vsyncadd %s9687, %s9694
          %s9696 = smul.addr %s17, 16
          %s9697 = scalar_lea.hbm %s3, %s9696
          %s9699 = sshll.u32 %s9689, 4
          %s9700 = int_to_ptr.vmem [resolvable:$true] %s9699
          %9702 = dma.vmem_to_hbm [thread:$0]  %s9700, 16, %s9697, %s9687
        $region36: #{net8_forward.1} parent=31 // pred_fallthru
          _
      $region32: #{net8_forward.1} parent=5 // pred_fallthru
        _
      %p9703 = scmp.le.s32.totalorder 2, %s12
      // Predicated region
      $region37: #{net8_forward.1} parent=5 // pred_check
        %p9704 = pneg %p9703
      $region38: #{net8_forward.1} parent=5 // pred_check_branch
        %9706 = sbr.rel (%p9704) target = $region40
      $region39: #{net8_forward.1} parent=5 // pred_region
        %s9707 = ssub.s32 %s12, 2
        // Predicated region
        $region41: #{net8_forward.1} parent=39 // pred_check
          %p9708 = pneg %p109
        $region42: #{net8_forward.1} parent=39 // pred_check_branch
          %9710 = sbr.rel (%p9708) target = $region44
        $region43: #{net8_forward.1} parent=39 // pred_region
          %s9711 = sand.u32 %s94, 1
          %s9712 = scalar_lea.sflag [#allocation6], %s9711
          %s9713 = sand.u32 %s94, 1
          %s9714 = scalar_lea.vmem [#allocation5], %s9713
          %9715 = dma.done %s9712, 16
        $region44: #{net8_forward.1} parent=39 // pred_fallthru
          _
      $region40: #{net8_forward.1} parent=5 // pred_fallthru
        _
    $region6: #{net8_forward.1} parent=1 // loop_footer
      %s16 = sadd.s32 1, %s12
    $region7: #{net8_forward.1} parent=1 // loop_footer_branch
      %11 = sbr.rel target = $region3
    $region8: #{net8_forward.1} parent=1 // loop_exit
      _
    %9716 = vsyncpa [#allocation6], 1
    %s9717 = scalar_lea.sflag [#allocation6], 1
    %9718 = vsyncpa %s9717, 1

</llo_original>
